<compile_context>
chip_gen: v6e
topology: v6e:2x2x1
jax: 0.10.0
libtpu: 0.0.40
codegen_flags: <defaults>
</compile_context>

<pallas_src>
import functools

import numpy as np

import jax
import jax.numpy as jnp
from jax.experimental import pallas as pl
from jax.experimental.pallas import tpu as pltpu


OUT_PAD = 128  # lane-dense padded width of the kernel output


# ----------------------------------------------------------------------------
# Fused forward kernel
# ----------------------------------------------------------------------------
def _fused_kernel(p_ref, w1_ref, b1_ref, w2_ref, b2_ref, w3_ref, b3_ref,
                  wh_ref, bh_ref, wo_ref, bo_ref,
                  o_ref, h1_scr, wide_scr, *, num_actions):
    f32 = jnp.float32
    bf16 = jnp.bfloat16
    bt, n_pos, c1 = h1_scr.shape

    # conv1: im2col'd patches (bt*n_pos, C*k*k) @ (C*k*k, 32) + bias, ReLU.
    h1 = jnp.dot(p_ref[...], w1_ref[...], preferred_element_type=f32)
    h1 = jnp.maximum(h1 + b1_ref[...], 0.0)                    # (bt*n_pos, c1) f32
    for b in range(bt):                                        # rows are (b, pos)
        h1_scr[b] = h1[b * n_pos:(b + 1) * n_pos, :]

    # Re-pack to per-batch NHWC-flat rows (bt, n_pos*c1) so the remaining
    # layers are plain 2-D matmuls (batch rows x flattened features).
    for r in range(n_pos):
        wide_scr[:, r * c1:(r + 1) * c1] = h1_scr[:, r, :]
    a1 = wide_scr[...].astype(bf16)                            # (bt, n_pos*c1)

    # conv2 folded into a dense (n_pos*c1, Ho2*Wo2*64) matrix (fixed spatial).
    h2 = jnp.dot(a1, w2_ref[...], preferred_element_type=f32)
    h2 = jnp.maximum(h2 + b2_ref[...], 0.0)                    # (bt, 576) f32

    # conv3 folded into a dense matrix; its output spatial is 1x1, so this is
    # exactly the flattened feature vector the head consumes.
    h3 = jnp.dot(h2.astype(bf16), w3_ref[...], preferred_element_type=f32)
    feats = jnp.maximum(h3 + b3_ref[...], 0.0)                 # (bt, 64) f32

    # Dueling head, value|advantage streams merged:
    #   hid[:, :256] = value hidden, hid[:, 256:] = advantage hidden.
    hid = jnp.dot(feats.astype(bf16), wh_ref[...], preferred_element_type=f32)
    hid = jnp.maximum(hid + bh_ref[...], 0.0)                  # (bt, 512) f32

    # Second stage (block-diagonal): cols [0:A) = advantage, col A = value,
    # every remaining column is exactly zero.
    va = jnp.dot(hid.astype(bf16), wo_ref[...], preferred_element_type=f32)
    va = va + bo_ref[...]                                      # (bt, OUT_PAD)
    val = va[:, num_actions:num_actions + 1]                   # (bt, 1)
    adv_sum = jnp.sum(va, axis=1, keepdims=True) - val         # zero cols drop out
    adv_mean = adv_sum * (1.0 / num_actions)
    # cols < num_actions hold Q = V + A - mean(A); the rest is sliced off.
    o_ref[...] = va + val - adv_mean


# ----------------------------------------------------------------------------
# Wrapper: conv1 im2col on the raw input (glue) + one fused pallas_call
# ----------------------------------------------------------------------------
def _im2col(x, k, s):
    """x: (B,C,H,W) -> (B*Ho*Wo, C*k*k); rows (b, oh, ow), cols (C, kh, kw)."""
    B, C, H, W = x.shape
    Ho = (H - k) // s + 1
    Wo = (W - k) // s + 1
    cols = []
    for i in range(k):
        for j in range(k):
            cols.append(x[:, :, i:i + s * Ho:s, j:j + s * Wo:s])  # (B,C,Ho,Wo)
    patches = jnp.stack(cols, axis=2).reshape(B, C, k, k, Ho, Wo)
    patches = patches.transpose(0, 4, 5, 1, 2, 3).reshape(B * Ho * Wo, C * k * k)
    return patches, Ho, Wo


def forward_pallas(x, kparams, num_actions):
    """x: (B, C, H, W) float32 -> (B, num_actions) float32."""
    B = x.shape[0]
    patches, ho, wo = _im2col(x, 8, 4)
    n_pos = ho * wo
    c1 = kparams["w1"].shape[1]
    patches = patches.astype(jnp.bfloat16)

    bt = B if B <= 8 else 8
    if B % bt:
        raise ValueError("batch must be <= 8 or a multiple of 8")
    grid = (B // bt,)

    weights = [kparams[k] for k in
               ("w1", "b1", "w2", "b2", "w3", "b3", "wh", "bh", "wo", "bo")]

    def full_spec(a):
        zeros = (0,) * a.ndim
        return pl.BlockSpec(a.shape, lambda i, z=zeros: z)

    in_specs = ([pl.BlockSpec((bt * n_pos, patches.shape[1]), lambda i: (i, 0))]
                + [full_spec(a) for a in weights])
    out_specs = pl.BlockSpec((bt, OUT_PAD), lambda i: (i, 0))

    q_pad = pl.pallas_call(
        functools.partial(_fused_kernel, num_actions=num_actions),
        out_shape=jax.ShapeDtypeStruct((B, OUT_PAD), jnp.float32),
        grid=grid,
        in_specs=in_specs,
        out_specs=out_specs,
        scratch_shapes=[
            pltpu.VMEM((bt, n_pos, c1), jnp.float32),
            pltpu.VMEM((bt, n_pos * c1), jnp.float32),
        ],
        compiler_params=pltpu.CompilerParams(
            dimension_semantics=("parallel",)),
    )(patches, *weights)
    return q_pad[:, :num_actions]


# ----------------------------------------------------------------------------
# Parameter construction (glue): PyTorch-equivalent init + kernel packing
# ----------------------------------------------------------------------------
def _conv_out(n, k, s):
    return (n - k) // s + 1


def init_conv(key, out_c, in_c, k):
    k1, k2 = jax.random.split(key)
    bound = 1.0 / float(in_c * k * k) ** 0.5
    w = jax.random.uniform(k1, (out_c, in_c, k, k), jnp.float32, -bound, bound)
    b = jax.random.uniform(k2, (out_c,), jnp.float32, -bound, bound)
    return w, b


def _scale_noise(key, n):
    x = jax.random.normal(key, (n,), jnp.float32)
    return jnp.sign(x) * jnp.sqrt(jnp.abs(x))


def init_noisy_linear(key, in_f, out_f, std_init=0.5, training=True):
    """Effective (w: (in, out), b: (out,)) with factorized noise folded in."""
    kw, kb, ki, ko = jax.random.split(key, 4)
    mu_range = 1.0 / float(in_f) ** 0.5
    w_mu = jax.random.uniform(kw, (out_f, in_f), jnp.float32, -mu_range, mu_range)
    w_sigma = jnp.full((out_f, in_f), std_init / float(in_f) ** 0.5, jnp.float32)
    b_mu = jax.random.uniform(kb, (out_f,), jnp.float32, -mu_range, mu_range)
    b_sigma = jnp.full((out_f,), std_init / float(out_f) ** 0.5, jnp.float32)
    eps_in = _scale_noise(ki, in_f)
    eps_out = _scale_noise(ko, out_f)
    if training:
        w = w_mu + w_sigma * jnp.outer(eps_out, eps_in)
        b = b_mu + b_sigma * eps_out
    else:
        w, b = w_mu, b_mu
    return w.T, b


def build_raw_params(root, input_dim, output_dim):
    h = _conv_out(_conv_out(_conv_out(input_dim[1], 8, 4), 4, 2), 3, 1)
    w = _conv_out(_conv_out(_conv_out(input_dim[2], 8, 4), 4, 2), 3, 1)
    feature_size = 64 * h * w            # same probe as the torch dummy forward
    keys = jax.random.split(root, 7)
    return (
        init_conv(keys[0], 32, input_dim[0], 8),
        init_conv(keys[1], 64, 32, 4),
        init_conv(keys[2], 64, 64, 3),
        init_noisy_linear(keys[3], feature_size, 256),
        init_noisy_linear(keys[4], 256, 1),
        init_noisy_linear(keys[5], feature_size, 256),
        init_noisy_linear(keys[6], 256, output_dim),
    )


def _conv_to_dense(w, b, in_hw, stride):
    """Fold a conv (OIHW weights) over a FIXED NHWC spatial grid into a dense
    matrix acting on the NHWC-flattened activation."""
    w = np.asarray(w, np.float32)
    b = np.asarray(b, np.float32)
    o_c, i_c, k, _ = w.shape
    h, wd = in_hw
    ho = (h - k) // stride + 1
    wo = (wd - k) // stride + 1
    mat = np.zeros((h * wd * i_c, ho * wo * o_c), np.float32)
    for oh in range(ho):
        for ow in range(wo):
            c0 = (oh * wo + ow) * o_c
            for kh in range(k):
                for kw in range(k):
                    r0 = ((oh * stride + kh) * wd + (ow * stride + kw)) * i_c
                    mat[r0:r0 + i_c, c0:c0 + o_c] = w[:, :, kh, kw].T
    return mat, np.tile(b, ho * wo)


def build_kernel_params(raw, input_dim, num_actions):
    (c1w, c1b), (c2w, c2b), (c3w, c3b), v1, v2, a1, a2 = raw
    bf16 = jnp.bfloat16
    f32 = jnp.float32

    s1h, s1w = _conv_out(input_dim[1], 8, 4), _conv_out(input_dim[2], 8, 4)
    s2h, s2w = _conv_out(s1h, 4, 2), _conv_out(s1w, 4, 2)
    s3h, s3w = _conv_out(s2h, 3, 1), _conv_out(s2w, 3, 1)
    # TODO(synk): the fused kernel flattens features in NHWC order, which only
    # matches PyTorch's NCHW .view(B, -1) because conv3's output is 1x1.
    assert (s3h, s3w) == (1, 1), "fused kernel assumes conv3 output spatial = 1x1"
    assert num_actions + 1 <= OUT_PAD

    o1 = c1w.shape[0]
    w1m = c1w.reshape(o1, -1).T.astype(bf16)                    # (C*k*k, 32)
    b1v = c1b.reshape(1, -1).astype(f32)

    w2d, b2d = _conv_to_dense(c2w, c2b, (s1h, s1w), 2)          # (2048, 576)
    w3d, b3d = _conv_to_dense(c3w, c3b, (s2h, s2w), 1)          # (576, 64)

    hidden = v1[0].shape[1]                                     # 256
    whm = jnp.concatenate([v1[0], a1[0]], axis=1).astype(bf16)  # (feat, 512)
    bhv = jnp.concatenate([v1[1], a1[1]]).reshape(1, -1).astype(f32)

    wom = jnp.zeros((2 * hidden, OUT_PAD), f32)
    wom = wom.at[:hidden, num_actions].set(v2[0][:, 0])         # value column
    wom = wom.at[hidden:, :num_actions].set(a2[0])              # advantage cols
    bov = jnp.zeros((1, OUT_PAD), f32)
    bov = bov.at[0, :num_actions].set(a2[1])
    bov = bov.at[0, num_actions].set(v2[1][0])

    return dict(
        w1=w1m, b1=b1v,
        w2=jnp.asarray(w2d, bf16), b2=jnp.asarray(b2d, f32).reshape(1, -1),
        w3=jnp.asarray(w3d, bf16), b3=jnp.asarray(b3d, f32).reshape(1, -1),
        wh=whm, bh=bhv,
        wo=wom.astype(bf16), bo=bov,
    )


# ----------------------------------------------------------------------------
# Pure-JAX reference (mirrors the PyTorch module; bf16 matmul inputs, f32 acc)
# ----------------------------------------------------------------------------
def forward_ref(x, raw):
    (c1w, c1b), (c2w, c2b), (c3w, c3b), v1, v2, a1, a2 = raw
    bf16 = jnp.bfloat16

    def conv(t, w, b, s):
        y = jax.lax.conv_general_dilated(
            t.astype(bf16), w.astype(bf16), (s, s), "VALID",
            dimension_numbers=("NCHW", "OIHW", "NCHW"),
            preferred_element_type=jnp.float32)
        return jax.nn.relu(y + b[None, :, None, None])

    y = conv(x, c1w, c1b, 4)
    y = conv(y, c2w, c2b, 2)
    y = conv(y, c3w, c3b, 1)
    f = y.reshape(y.shape[0], -1)

    def lin(t, wb):
        w, b = wb
        return jnp.dot(t.astype(bf16), w.astype(bf16),
                       preferred_element_type=jnp.float32) + b

    hv = jax.nn.relu(lin(f, v1))
    v = lin(hv, v2)
    ha = jax.nn.relu(lin(f, a1))
    a = lin(ha, a2)
    return v + a - a.mean(axis=1, keepdims=True)


if __name__ == "__main__":
    B = 2
    input_dim = (4, 36, 36)     # conv stack: 36 -> 8 -> 3 -> 1 (feature_size 64)
    output_dim = 6

    root = jax.random.PRNGKey(0)
    pkey, xkey = jax.random.split(root)
    raw = build_raw_params(pkey, input_dim, output_dim)
    kparams = build_kernel_params(raw, input_dim, output_dim)

    x = jax.random.normal(xkey, (B,) + input_dim, jnp.float32)

    fwd = jax.jit(lambda inp: forward_pallas(inp, kparams, output_dim))
    q = fwd(x)
    jax.block_until_ready(q)

    q_ref = forward_ref(x, raw)
    assert q.shape == (B, output_dim), q.shape
    assert bool(jnp.allclose(q, q_ref, atol=5e-3, rtol=5e-3)), (q, q_ref)
    print("KERNEL_OK")
</pallas_src>

<mosaic_0001>
module attributes {stable_mosaic.version = 11 : i64} {
  func.func @_fused_kernel(%arg0: i32, %arg1: memref<128x256xbf16, #tpu.memory_space<vmem>>, %arg2: memref<256x32xbf16, #tpu.memory_space<vmem>>, %arg3: memref<1x32xf32, #tpu.memory_space<vmem>>, %arg4: memref<2048x576xbf16, #tpu.memory_space<vmem>>, %arg5: memref<1x576xf32, #tpu.memory_space<vmem>>, %arg6: memref<576x64xbf16, #tpu.memory_space<vmem>>, %arg7: memref<1x64xf32, #tpu.memory_space<vmem>>, %arg8: memref<64x512xbf16, #tpu.memory_space<vmem>>, %arg9: memref<1x512xf32, #tpu.memory_space<vmem>>, %arg10: memref<512x128xbf16, #tpu.memory_space<vmem>>, %arg11: memref<1x128xf32, #tpu.memory_space<vmem>>, %arg12: memref<2x128xf32, #tpu.memory_space<vmem>>, %arg13: memref<2x64x32xf32, #tpu.memory_space<vmem>>, %arg14: memref<2x2048xf32, #tpu.memory_space<vmem>>) attributes {dimension_semantics = [#tpu.dimension_semantics<parallel>], iteration_bounds = array<i64: 1>, scalar_prefetch = 0 : i64, scratch_operands = 2 : i64, tpu.core_type = #tpu.core_type<tc>, window_params = [{transform_indices = @transform_0, window_bounds = array<i64: 128, 256>}, {pipeline_mode = #tpu.pipeline_mode<synchronous>, transform_indices = @transform_1, window_bounds = array<i64: 256, 32>}, {pipeline_mode = #tpu.pipeline_mode<synchronous>, transform_indices = @transform_2, window_bounds = array<i64: 1, 32>}, {pipeline_mode = #tpu.pipeline_mode<synchronous>, transform_indices = @transform_3, window_bounds = array<i64: 2048, 576>}, {pipeline_mode = #tpu.pipeline_mode<synchronous>, transform_indices = @transform_4, window_bounds = array<i64: 1, 576>}, {pipeline_mode = #tpu.pipeline_mode<synchronous>, transform_indices = @transform_5, window_bounds = array<i64: 576, 64>}, {pipeline_mode = #tpu.pipeline_mode<synchronous>, transform_indices = @transform_6, window_bounds = array<i64: 1, 64>}, {pipeline_mode = #tpu.pipeline_mode<synchronous>, transform_indices = @transform_7, window_bounds = array<i64: 64, 512>}, {pipeline_mode = #tpu.pipeline_mode<synchronous>, transform_indices = @transform_8, window_bounds = array<i64: 1, 512>}, {pipeline_mode = #tpu.pipeline_mode<synchronous>, transform_indices = @transform_9, window_bounds = array<i64: 512, 128>}, {pipeline_mode = #tpu.pipeline_mode<synchronous>, transform_indices = @transform_10, window_bounds = array<i64: 1, 128>}, {transform_indices = @transform_11, window_bounds = array<i64: 2, 128>}]} {
    %c0 = arith.constant 0 : index
    %c0_0 = arith.constant 0 : index
    %0 = vector.load %arg1[%c0, %c0_0] : memref<128x256xbf16, #tpu.memory_space<vmem>>, vector<128x256xbf16>
    %c0_1 = arith.constant 0 : index
    %c0_2 = arith.constant 0 : index
    %1 = vector.load %arg2[%c0_1, %c0_2] : memref<256x32xbf16, #tpu.memory_space<vmem>>, vector<256x32xbf16>
    %cst = arith.constant dense<0.000000e+00> : vector<128x32xf32>
    %2 = tpu.matmul %0, %1, %cst {dimension_numbers = #tpu.dot_dimension_numbers<[1], [0], [0], [1], [0, 0, 1, 1], [], []>} : vector<128x256xbf16>, vector<256x32xbf16>, vector<128x32xf32> -> vector<128x32xf32>
    %c0_3 = arith.constant 0 : index
    %c0_4 = arith.constant 0 : index
    %3 = vector.load %arg3[%c0_3, %c0_4] : memref<1x32xf32, #tpu.memory_space<vmem>>, vector<1x32xf32>
    %4 = vector.broadcast %3 : vector<1x32xf32> to vector<128x32xf32>
    %5 = arith.addf %2, %4 : vector<128x32xf32>
    %cst_5 = arith.constant 0.000000e+00 : f32
    %6 = vector.broadcast %cst_5 : f32 to vector<128x32xf32>
    %7 = arith.maximumf %5, %6 : vector<128x32xf32>
    %8 = vector.extract_strided_slice %7 {offsets = [0, 0], sizes = [64, 32], strides = [1, 1]} : vector<128x32xf32> to vector<64x32xf32>
    %c0_6 = arith.constant 0 : index
    %c0_7 = arith.constant 0 : index
    %c0_8 = arith.constant 0 : index
    %9 = vector.load %arg13[%c0_6, %c0_7, %c0_8] : memref<2x64x32xf32, #tpu.memory_space<vmem>>, vector<1x64x32xf32>
    %10 = vector.shape_cast %9 : vector<1x64x32xf32> to vector<64x32xf32>
    %11 = vector.shape_cast %8 : vector<64x32xf32> to vector<1x64x32xf32>
    tpu.vector_store %arg13[%c0_6, %c0_7, %c0_8], %11 {strides = array<i32>} : memref<2x64x32xf32, #tpu.memory_space<vmem>>, vector<1x64x32xf32>,
    %12 = vector.extract_strided_slice %7 {offsets = [64, 0], sizes = [64, 32], strides = [1, 1]} : vector<128x32xf32> to vector<64x32xf32>
    %c1 = arith.constant 1 : index
    %c0_9 = arith.constant 0 : index
    %c0_10 = arith.constant 0 : index
    %13 = vector.load %arg13[%c1, %c0_9, %c0_10] : memref<2x64x32xf32, #tpu.memory_space<vmem>>, vector<1x64x32xf32>
    %14 = vector.shape_cast %13 : vector<1x64x32xf32> to vector<64x32xf32>
    %15 = vector.shape_cast %12 : vector<64x32xf32> to vector<1x64x32xf32>
    tpu.vector_store %arg13[%c1, %c0_9, %c0_10], %15 {strides = array<i32>} : memref<2x64x32xf32, #tpu.memory_space<vmem>>, vector<1x64x32xf32>,
    %c0_11 = arith.constant 0 : index
    %c0_12 = arith.constant 0 : index
    %c0_13 = arith.constant 0 : index
    %16 = vector.load %arg13[%c0_11, %c0_12, %c0_13] : memref<2x64x32xf32, #tpu.memory_space<vmem>>, vector<2x1x32xf32>
    %17 = vector.shape_cast %16 : vector<2x1x32xf32> to vector<2x32xf32>
    %c0_14 = arith.constant 0 : index
    %c0_15 = arith.constant 0 : index
    %18 = vector.load %arg14[%c0_14, %c0_15] : memref<2x2048xf32, #tpu.memory_space<vmem>>, vector<2x32xf32>
    tpu.vector_store %arg14[%c0_14, %c0_15], %17 {strides = array<i32>} : memref<2x2048xf32, #tpu.memory_space<vmem>>, vector<2x32xf32>,
    %c0_16 = arith.constant 0 : index
    %c1_17 = arith.constant 1 : index
    %c0_18 = arith.constant 0 : index
    %19 = vector.load %arg13[%c0_16, %c1_17, %c0_18] : memref<2x64x32xf32, #tpu.memory_space<vmem>>, vector<2x1x32xf32>
    %20 = vector.shape_cast %19 : vector<2x1x32xf32> to vector<2x32xf32>
    %c0_19 = arith.constant 0 : index
    %c32 = arith.constant 32 : index
    %21 = vector.load %arg14[%c0_19, %c32] : memref<2x2048xf32, #tpu.memory_space<vmem>>, vector<2x32xf32>
    tpu.vector_store %arg14[%c0_19, %c32], %20 {strides = array<i32>} : memref<2x2048xf32, #tpu.memory_space<vmem>>, vector<2x32xf32>,
    %c0_20 = arith.constant 0 : index
    %c2 = arith.constant 2 : index
    %c0_21 = arith.constant 0 : index
    %22 = vector.load %arg13[%c0_20, %c2, %c0_21] : memref<2x64x32xf32, #tpu.memory_space<vmem>>, vector<2x1x32xf32>
    %23 = vector.shape_cast %22 : vector<2x1x32xf32> to vector<2x32xf32>
    %c0_22 = arith.constant 0 : index
    %c64 = arith.constant 64 : index
    %24 = vector.load %arg14[%c0_22, %c64] : memref<2x2048xf32, #tpu.memory_space<vmem>>, vector<2x32xf32>
    tpu.vector_store %arg14[%c0_22, %c64], %23 {strides = array<i32>} : memref<2x2048xf32, #tpu.memory_space<vmem>>, vector<2x32xf32>,
    %c0_23 = arith.constant 0 : index
    %c3 = arith.constant 3 : index
    %c0_24 = arith.constant 0 : index
    %25 = vector.load %arg13[%c0_23, %c3, %c0_24] : memref<2x64x32xf32, #tpu.memory_space<vmem>>, vector<2x1x32xf32>
    %26 = vector.shape_cast %25 : vector<2x1x32xf32> to vector<2x32xf32>
    %c0_25 = arith.constant 0 : index
    %c96 = arith.constant 96 : index
    %27 = vector.load %arg14[%c0_25, %c96] : memref<2x2048xf32, #tpu.memory_space<vmem>>, vector<2x32xf32>
    tpu.vector_store %arg14[%c0_25, %c96], %26 {strides = array<i32>} : memref<2x2048xf32, #tpu.memory_space<vmem>>, vector<2x32xf32>,
    %c0_26 = arith.constant 0 : index
    %c4 = arith.constant 4 : index
    %c0_27 = arith.constant 0 : index
    %28 = vector.load %arg13[%c0_26, %c4, %c0_27] : memref<2x64x32xf32, #tpu.memory_space<vmem>>, vector<2x1x32xf32>
    %29 = vector.shape_cast %28 : vector<2x1x32xf32> to vector<2x32xf32>
    %c0_28 = arith.constant 0 : index
    %c128 = arith.constant 128 : index
    %30 = vector.load %arg14[%c0_28, %c128] : memref<2x2048xf32, #tpu.memory_space<vmem>>, vector<2x32xf32>
    tpu.vector_store %arg14[%c0_28, %c128], %29 {strides = array<i32>} : memref<2x2048xf32, #tpu.memory_space<vmem>>, vector<2x32xf32>,
    %c0_29 = arith.constant 0 : index
    %c5 = arith.constant 5 : index
    %c0_30 = arith.constant 0 : index
    %31 = vector.load %arg13[%c0_29, %c5, %c0_30] : memref<2x64x32xf32, #tpu.memory_space<vmem>>, vector<2x1x32xf32>
    %32 = vector.shape_cast %31 : vector<2x1x32xf32> to vector<2x32xf32>
    %c0_31 = arith.constant 0 : index
    %c160 = arith.constant 160 : index
    %33 = vector.load %arg14[%c0_31, %c160] : memref<2x2048xf32, #tpu.memory_space<vmem>>, vector<2x32xf32>
    tpu.vector_store %arg14[%c0_31, %c160], %32 {strides = array<i32>} : memref<2x2048xf32, #tpu.memory_space<vmem>>, vector<2x32xf32>,
    %c0_32 = arith.constant 0 : index
    %c6 = arith.constant 6 : index
    %c0_33 = arith.constant 0 : index
    %34 = vector.load %arg13[%c0_32, %c6, %c0_33] : memref<2x64x32xf32, #tpu.memory_space<vmem>>, vector<2x1x32xf32>
    %35 = vector.shape_cast %34 : vector<2x1x32xf32> to vector<2x32xf32>
    %c0_34 = arith.constant 0 : index
    %c192 = arith.constant 192 : index
    %36 = vector.load %arg14[%c0_34, %c192] : memref<2x2048xf32, #tpu.memory_space<vmem>>, vector<2x32xf32>
    tpu.vector_store %arg14[%c0_34, %c192], %35 {strides = array<i32>} : memref<2x2048xf32, #tpu.memory_space<vmem>>, vector<2x32xf32>,
    %c0_35 = arith.constant 0 : index
    %c7 = arith.constant 7 : index
    %c0_36 = arith.constant 0 : index
    %37 = vector.load %arg13[%c0_35, %c7, %c0_36] : memref<2x64x32xf32, #tpu.memory_space<vmem>>, vector<2x1x32xf32>
    %38 = vector.shape_cast %37 : vector<2x1x32xf32> to vector<2x32xf32>
    %c0_37 = arith.constant 0 : index
    %c224 = arith.constant 224 : index
    %39 = vector.load %arg14[%c0_37, %c224] : memref<2x2048xf32, #tpu.memory_space<vmem>>, vector<2x32xf32>
    tpu.vector_store %arg14[%c0_37, %c224], %38 {strides = array<i32>} : memref<2x2048xf32, #tpu.memory_space<vmem>>, vector<2x32xf32>,
    %c0_38 = arith.constant 0 : index
    %c8 = arith.constant 8 : index
    %c0_39 = arith.constant 0 : index
    %40 = vector.load %arg13[%c0_38, %c8, %c0_39] : memref<2x64x32xf32, #tpu.memory_space<vmem>>, vector<2x1x32xf32>
    %41 = vector.shape_cast %40 : vector<2x1x32xf32> to vector<2x32xf32>
    %c0_40 = arith.constant 0 : index
    %c256 = arith.constant 256 : index
    %42 = vector.load %arg14[%c0_40, %c256] : memref<2x2048xf32, #tpu.memory_space<vmem>>, vector<2x32xf32>
    tpu.vector_store %arg14[%c0_40, %c256], %41 {strides = array<i32>} : memref<2x2048xf32, #tpu.memory_space<vmem>>, vector<2x32xf32>,
    %c0_41 = arith.constant 0 : index
    %c9 = arith.constant 9 : index
    %c0_42 = arith.constant 0 : index
    %43 = vector.load %arg13[%c0_41, %c9, %c0_42] : memref<2x64x32xf32, #tpu.memory_space<vmem>>, vector<2x1x32xf32>
    %44 = vector.shape_cast %43 : vector<2x1x32xf32> to vector<2x32xf32>
    %c0_43 = arith.constant 0 : index
    %c288 = arith.constant 288 : index
    %45 = vector.load %arg14[%c0_43, %c288] : memref<2x2048xf32, #tpu.memory_space<vmem>>, vector<2x32xf32>
    tpu.vector_store %arg14[%c0_43, %c288], %44 {strides = array<i32>} : memref<2x2048xf32, #tpu.memory_space<vmem>>, vector<2x32xf32>,
    %c0_44 = arith.constant 0 : index
    %c10 = arith.constant 10 : index
    %c0_45 = arith.constant 0 : index
    %46 = vector.load %arg13[%c0_44, %c10, %c0_45] : memref<2x64x32xf32, #tpu.memory_space<vmem>>, vector<2x1x32xf32>
    %47 = vector.shape_cast %46 : vector<2x1x32xf32> to vector<2x32xf32>
    %c0_46 = arith.constant 0 : index
    %c320 = arith.constant 320 : index
    %48 = vector.load %arg14[%c0_46, %c320] : memref<2x2048xf32, #tpu.memory_space<vmem>>, vector<2x32xf32>
    tpu.vector_store %arg14[%c0_46, %c320], %47 {strides = array<i32>} : memref<2x2048xf32, #tpu.memory_space<vmem>>, vector<2x32xf32>,
    %c0_47 = arith.constant 0 : index
    %c11 = arith.constant 11 : index
    %c0_48 = arith.constant 0 : index
    %49 = vector.load %arg13[%c0_47, %c11, %c0_48] : memref<2x64x32xf32, #tpu.memory_space<vmem>>, vector<2x1x32xf32>
    %50 = vector.shape_cast %49 : vector<2x1x32xf32> to vector<2x32xf32>
    %c0_49 = arith.constant 0 : index
    %c352 = arith.constant 352 : index
    %51 = vector.load %arg14[%c0_49, %c352] : memref<2x2048xf32, #tpu.memory_space<vmem>>, vector<2x32xf32>
    tpu.vector_store %arg14[%c0_49, %c352], %50 {strides = array<i32>} : memref<2x2048xf32, #tpu.memory_space<vmem>>, vector<2x32xf32>,
    %c0_50 = arith.constant 0 : index
    %c12 = arith.constant 12 : index
    %c0_51 = arith.constant 0 : index
    %52 = vector.load %arg13[%c0_50, %c12, %c0_51] : memref<2x64x32xf32, #tpu.memory_space<vmem>>, vector<2x1x32xf32>
    %53 = vector.shape_cast %52 : vector<2x1x32xf32> to vector<2x32xf32>
    %c0_52 = arith.constant 0 : index
    %c384 = arith.constant 384 : index
    %54 = vector.load %arg14[%c0_52, %c384] : memref<2x2048xf32, #tpu.memory_space<vmem>>, vector<2x32xf32>
    tpu.vector_store %arg14[%c0_52, %c384], %53 {strides = array<i32>} : memref<2x2048xf32, #tpu.memory_space<vmem>>, vector<2x32xf32>,
    %c0_53 = arith.constant 0 : index
    %c13 = arith.constant 13 : index
    %c0_54 = arith.constant 0 : index
    %55 = vector.load %arg13[%c0_53, %c13, %c0_54] : memref<2x64x32xf32, #tpu.memory_space<vmem>>, vector<2x1x32xf32>
    %56 = vector.shape_cast %55 : vector<2x1x32xf32> to vector<2x32xf32>
    %c0_55 = arith.constant 0 : index
    %c416 = arith.constant 416 : index
    %57 = vector.load %arg14[%c0_55, %c416] : memref<2x2048xf32, #tpu.memory_space<vmem>>, vector<2x32xf32>
    tpu.vector_store %arg14[%c0_55, %c416], %56 {strides = array<i32>} : memref<2x2048xf32, #tpu.memory_space<vmem>>, vector<2x32xf32>,
    %c0_56 = arith.constant 0 : index
    %c14 = arith.constant 14 : index
    %c0_57 = arith.constant 0 : index
    %58 = vector.load %arg13[%c0_56, %c14, %c0_57] : memref<2x64x32xf32, #tpu.memory_space<vmem>>, vector<2x1x32xf32>
    %59 = vector.shape_cast %58 : vector<2x1x32xf32> to vector<2x32xf32>
    %c0_58 = arith.constant 0 : index
    %c448 = arith.constant 448 : index
    %60 = vector.load %arg14[%c0_58, %c448] : memref<2x2048xf32, #tpu.memory_space<vmem>>, vector<2x32xf32>
    tpu.vector_store %arg14[%c0_58, %c448], %59 {strides = array<i32>} : memref<2x2048xf32, #tpu.memory_space<vmem>>, vector<2x32xf32>,
    %c0_59 = arith.constant 0 : index
    %c15 = arith.constant 15 : index
    %c0_60 = arith.constant 0 : index
    %61 = vector.load %arg13[%c0_59, %c15, %c0_60] : memref<2x64x32xf32, #tpu.memory_space<vmem>>, vector<2x1x32xf32>
    %62 = vector.shape_cast %61 : vector<2x1x32xf32> to vector<2x32xf32>
    %c0_61 = arith.constant 0 : index
    %c480 = arith.constant 480 : index
    %63 = vector.load %arg14[%c0_61, %c480] : memref<2x2048xf32, #tpu.memory_space<vmem>>, vector<2x32xf32>
    tpu.vector_store %arg14[%c0_61, %c480], %62 {strides = array<i32>} : memref<2x2048xf32, #tpu.memory_space<vmem>>, vector<2x32xf32>,
    %c0_62 = arith.constant 0 : index
    %c16 = arith.constant 16 : index
    %c0_63 = arith.constant 0 : index
    %64 = vector.load %arg13[%c0_62, %c16, %c0_63] : memref<2x64x32xf32, #tpu.memory_space<vmem>>, vector<2x1x32xf32>
    %65 = vector.shape_cast %64 : vector<2x1x32xf32> to vector<2x32xf32>
    %c0_64 = arith.constant 0 : index
    %c512 = arith.constant 512 : index
    %66 = vector.load %arg14[%c0_64, %c512] : memref<2x2048xf32, #tpu.memory_space<vmem>>, vector<2x32xf32>
    tpu.vector_store %arg14[%c0_64, %c512], %65 {strides = array<i32>} : memref<2x2048xf32, #tpu.memory_space<vmem>>, vector<2x32xf32>,
    %c0_65 = arith.constant 0 : index
    %c17 = arith.constant 17 : index
    %c0_66 = arith.constant 0 : index
    %67 = vector.load %arg13[%c0_65, %c17, %c0_66] : memref<2x64x32xf32, #tpu.memory_space<vmem>>, vector<2x1x32xf32>
    %68 = vector.shape_cast %67 : vector<2x1x32xf32> to vector<2x32xf32>
    %c0_67 = arith.constant 0 : index
    %c544 = arith.constant 544 : index
    %69 = vector.load %arg14[%c0_67, %c544] : memref<2x2048xf32, #tpu.memory_space<vmem>>, vector<2x32xf32>
    tpu.vector_store %arg14[%c0_67, %c544], %68 {strides = array<i32>} : memref<2x2048xf32, #tpu.memory_space<vmem>>, vector<2x32xf32>,
    %c0_68 = arith.constant 0 : index
    %c18 = arith.constant 18 : index
    %c0_69 = arith.constant 0 : index
    %70 = vector.load %arg13[%c0_68, %c18, %c0_69] : memref<2x64x32xf32, #tpu.memory_space<vmem>>, vector<2x1x32xf32>
    %71 = vector.shape_cast %70 : vector<2x1x32xf32> to vector<2x32xf32>
    %c0_70 = arith.constant 0 : index
    %c576 = arith.constant 576 : index
    %72 = vector.load %arg14[%c0_70, %c576] : memref<2x2048xf32, #tpu.memory_space<vmem>>, vector<2x32xf32>
    tpu.vector_store %arg14[%c0_70, %c576], %71 {strides = array<i32>} : memref<2x2048xf32, #tpu.memory_space<vmem>>, vector<2x32xf32>,
    %c0_71 = arith.constant 0 : index
    %c19 = arith.constant 19 : index
    %c0_72 = arith.constant 0 : index
    %73 = vector.load %arg13[%c0_71, %c19, %c0_72] : memref<2x64x32xf32, #tpu.memory_space<vmem>>, vector<2x1x32xf32>
    %74 = vector.shape_cast %73 : vector<2x1x32xf32> to vector<2x32xf32>
    %c0_73 = arith.constant 0 : index
    %c608 = arith.constant 608 : index
    %75 = vector.load %arg14[%c0_73, %c608] : memref<2x2048xf32, #tpu.memory_space<vmem>>, vector<2x32xf32>
    tpu.vector_store %arg14[%c0_73, %c608], %74 {strides = array<i32>} : memref<2x2048xf32, #tpu.memory_space<vmem>>, vector<2x32xf32>,
    %c0_74 = arith.constant 0 : index
    %c20 = arith.constant 20 : index
    %c0_75 = arith.constant 0 : index
    %76 = vector.load %arg13[%c0_74, %c20, %c0_75] : memref<2x64x32xf32, #tpu.memory_space<vmem>>, vector<2x1x32xf32>
    %77 = vector.shape_cast %76 : vector<2x1x32xf32> to vector<2x32xf32>
    %c0_76 = arith.constant 0 : index
    %c640 = arith.constant 640 : index
    %78 = vector.load %arg14[%c0_76, %c640] : memref<2x2048xf32, #tpu.memory_space<vmem>>, vector<2x32xf32>
    tpu.vector_store %arg14[%c0_76, %c640], %77 {strides = array<i32>} : memref<2x2048xf32, #tpu.memory_space<vmem>>, vector<2x32xf32>,
    %c0_77 = arith.constant 0 : index
    %c21 = arith.constant 21 : index
    %c0_78 = arith.constant 0 : index
    %79 = vector.load %arg13[%c0_77, %c21, %c0_78] : memref<2x64x32xf32, #tpu.memory_space<vmem>>, vector<2x1x32xf32>
    %80 = vector.shape_cast %79 : vector<2x1x32xf32> to vector<2x32xf32>
    %c0_79 = arith.constant 0 : index
    %c672 = arith.constant 672 : index
    %81 = vector.load %arg14[%c0_79, %c672] : memref<2x2048xf32, #tpu.memory_space<vmem>>, vector<2x32xf32>
    tpu.vector_store %arg14[%c0_79, %c672], %80 {strides = array<i32>} : memref<2x2048xf32, #tpu.memory_space<vmem>>, vector<2x32xf32>,
    %c0_80 = arith.constant 0 : index
    %c22 = arith.constant 22 : index
    %c0_81 = arith.constant 0 : index
    %82 = vector.load %arg13[%c0_80, %c22, %c0_81] : memref<2x64x32xf32, #tpu.memory_space<vmem>>, vector<2x1x32xf32>
    %83 = vector.shape_cast %82 : vector<2x1x32xf32> to vector<2x32xf32>
    %c0_82 = arith.constant 0 : index
    %c704 = arith.constant 704 : index
    %84 = vector.load %arg14[%c0_82, %c704] : memref<2x2048xf32, #tpu.memory_space<vmem>>, vector<2x32xf32>
    tpu.vector_store %arg14[%c0_82, %c704], %83 {strides = array<i32>} : memref<2x2048xf32, #tpu.memory_space<vmem>>, vector<2x32xf32>,
    %c0_83 = arith.constant 0 : index
    %c23 = arith.constant 23 : index
    %c0_84 = arith.constant 0 : index
    %85 = vector.load %arg13[%c0_83, %c23, %c0_84] : memref<2x64x32xf32, #tpu.memory_space<vmem>>, vector<2x1x32xf32>
    %86 = vector.shape_cast %85 : vector<2x1x32xf32> to vector<2x32xf32>
    %c0_85 = arith.constant 0 : index
    %c736 = arith.constant 736 : index
    %87 = vector.load %arg14[%c0_85, %c736] : memref<2x2048xf32, #tpu.memory_space<vmem>>, vector<2x32xf32>
    tpu.vector_store %arg14[%c0_85, %c736], %86 {strides = array<i32>} : memref<2x2048xf32, #tpu.memory_space<vmem>>, vector<2x32xf32>,
    %c0_86 = arith.constant 0 : index
    %c24 = arith.constant 24 : index
    %c0_87 = arith.constant 0 : index
    %88 = vector.load %arg13[%c0_86, %c24, %c0_87] : memref<2x64x32xf32, #tpu.memory_space<vmem>>, vector<2x1x32xf32>
    %89 = vector.shape_cast %88 : vector<2x1x32xf32> to vector<2x32xf32>
    %c0_88 = arith.constant 0 : index
    %c768 = arith.constant 768 : index
    %90 = vector.load %arg14[%c0_88, %c768] : memref<2x2048xf32, #tpu.memory_space<vmem>>, vector<2x32xf32>
    tpu.vector_store %arg14[%c0_88, %c768], %89 {strides = array<i32>} : memref<2x2048xf32, #tpu.memory_space<vmem>>, vector<2x32xf32>,
    %c0_89 = arith.constant 0 : index
    %c25 = arith.constant 25 : index
    %c0_90 = arith.constant 0 : index
    %91 = vector.load %arg13[%c0_89, %c25, %c0_90] : memref<2x64x32xf32, #tpu.memory_space<vmem>>, vector<2x1x32xf32>
    %92 = vector.shape_cast %91 : vector<2x1x32xf32> to vector<2x32xf32>
    %c0_91 = arith.constant 0 : index
    %c800 = arith.constant 800 : index
    %93 = vector.load %arg14[%c0_91, %c800] : memref<2x2048xf32, #tpu.memory_space<vmem>>, vector<2x32xf32>
    tpu.vector_store %arg14[%c0_91, %c800], %92 {strides = array<i32>} : memref<2x2048xf32, #tpu.memory_space<vmem>>, vector<2x32xf32>,
    %c0_92 = arith.constant 0 : index
    %c26 = arith.constant 26 : index
    %c0_93 = arith.constant 0 : index
    %94 = vector.load %arg13[%c0_92, %c26, %c0_93] : memref<2x64x32xf32, #tpu.memory_space<vmem>>, vector<2x1x32xf32>
    %95 = vector.shape_cast %94 : vector<2x1x32xf32> to vector<2x32xf32>
    %c0_94 = arith.constant 0 : index
    %c832 = arith.constant 832 : index
    %96 = vector.load %arg14[%c0_94, %c832] : memref<2x2048xf32, #tpu.memory_space<vmem>>, vector<2x32xf32>
    tpu.vector_store %arg14[%c0_94, %c832], %95 {strides = array<i32>} : memref<2x2048xf32, #tpu.memory_space<vmem>>, vector<2x32xf32>,
    %c0_95 = arith.constant 0 : index
    %c27 = arith.constant 27 : index
    %c0_96 = arith.constant 0 : index
    %97 = vector.load %arg13[%c0_95, %c27, %c0_96] : memref<2x64x32xf32, #tpu.memory_space<vmem>>, vector<2x1x32xf32>
    %98 = vector.shape_cast %97 : vector<2x1x32xf32> to vector<2x32xf32>
    %c0_97 = arith.constant 0 : index
    %c864 = arith.constant 864 : index
    %99 = vector.load %arg14[%c0_97, %c864] : memref<2x2048xf32, #tpu.memory_space<vmem>>, vector<2x32xf32>
    tpu.vector_store %arg14[%c0_97, %c864], %98 {strides = array<i32>} : memref<2x2048xf32, #tpu.memory_space<vmem>>, vector<2x32xf32>,
    %c0_98 = arith.constant 0 : index
    %c28 = arith.constant 28 : index
    %c0_99 = arith.constant 0 : index
    %100 = vector.load %arg13[%c0_98, %c28, %c0_99] : memref<2x64x32xf32, #tpu.memory_space<vmem>>, vector<2x1x32xf32>
    %101 = vector.shape_cast %100 : vector<2x1x32xf32> to vector<2x32xf32>
    %c0_100 = arith.constant 0 : index
    %c896 = arith.constant 896 : index
    %102 = vector.load %arg14[%c0_100, %c896] : memref<2x2048xf32, #tpu.memory_space<vmem>>, vector<2x32xf32>
    tpu.vector_store %arg14[%c0_100, %c896], %101 {strides = array<i32>} : memref<2x2048xf32, #tpu.memory_space<vmem>>, vector<2x32xf32>,
    %c0_101 = arith.constant 0 : index
    %c29 = arith.constant 29 : index
    %c0_102 = arith.constant 0 : index
    %103 = vector.load %arg13[%c0_101, %c29, %c0_102] : memref<2x64x32xf32, #tpu.memory_space<vmem>>, vector<2x1x32xf32>
    %104 = vector.shape_cast %103 : vector<2x1x32xf32> to vector<2x32xf32>
    %c0_103 = arith.constant 0 : index
    %c928 = arith.constant 928 : index
    %105 = vector.load %arg14[%c0_103, %c928] : memref<2x2048xf32, #tpu.memory_space<vmem>>, vector<2x32xf32>
    tpu.vector_store %arg14[%c0_103, %c928], %104 {strides = array<i32>} : memref<2x2048xf32, #tpu.memory_space<vmem>>, vector<2x32xf32>,
    %c0_104 = arith.constant 0 : index
    %c30 = arith.constant 30 : index
    %c0_105 = arith.constant 0 : index
    %106 = vector.load %arg13[%c0_104, %c30, %c0_105] : memref<2x64x32xf32, #tpu.memory_space<vmem>>, vector<2x1x32xf32>
    %107 = vector.shape_cast %106 : vector<2x1x32xf32> to vector<2x32xf32>
    %c0_106 = arith.constant 0 : index
    %c960 = arith.constant 960 : index
    %108 = vector.load %arg14[%c0_106, %c960] : memref<2x2048xf32, #tpu.memory_space<vmem>>, vector<2x32xf32>
    tpu.vector_store %arg14[%c0_106, %c960], %107 {strides = array<i32>} : memref<2x2048xf32, #tpu.memory_space<vmem>>, vector<2x32xf32>,
    %c0_107 = arith.constant 0 : index
    %c31 = arith.constant 31 : index
    %c0_108 = arith.constant 0 : index
    %109 = vector.load %arg13[%c0_107, %c31, %c0_108] : memref<2x64x32xf32, #tpu.memory_space<vmem>>, vector<2x1x32xf32>
    %110 = vector.shape_cast %109 : vector<2x1x32xf32> to vector<2x32xf32>
    %c0_109 = arith.constant 0 : index
    %c992 = arith.constant 992 : index
    %111 = vector.load %arg14[%c0_109, %c992] : memref<2x2048xf32, #tpu.memory_space<vmem>>, vector<2x32xf32>
    tpu.vector_store %arg14[%c0_109, %c992], %110 {strides = array<i32>} : memref<2x2048xf32, #tpu.memory_space<vmem>>, vector<2x32xf32>,
    %c0_110 = arith.constant 0 : index
    %c32_111 = arith.constant 32 : index
    %c0_112 = arith.constant 0 : index
    %112 = vector.load %arg13[%c0_110, %c32_111, %c0_112] : memref<2x64x32xf32, #tpu.memory_space<vmem>>, vector<2x1x32xf32>
    %113 = vector.shape_cast %112 : vector<2x1x32xf32> to vector<2x32xf32>
    %c0_113 = arith.constant 0 : index
    %c1024 = arith.constant 1024 : index
    %114 = vector.load %arg14[%c0_113, %c1024] : memref<2x2048xf32, #tpu.memory_space<vmem>>, vector<2x32xf32>
    tpu.vector_store %arg14[%c0_113, %c1024], %113 {strides = array<i32>} : memref<2x2048xf32, #tpu.memory_space<vmem>>, vector<2x32xf32>,
    %c0_114 = arith.constant 0 : index
    %c33 = arith.constant 33 : index
    %c0_115 = arith.constant 0 : index
    %115 = vector.load %arg13[%c0_114, %c33, %c0_115] : memref<2x64x32xf32, #tpu.memory_space<vmem>>, vector<2x1x32xf32>
    %116 = vector.shape_cast %115 : vector<2x1x32xf32> to vector<2x32xf32>
    %c0_116 = arith.constant 0 : index
    %c1056 = arith.constant 1056 : index
    %117 = vector.load %arg14[%c0_116, %c1056] : memref<2x2048xf32, #tpu.memory_space<vmem>>, vector<2x32xf32>
    tpu.vector_store %arg14[%c0_116, %c1056], %116 {strides = array<i32>} : memref<2x2048xf32, #tpu.memory_space<vmem>>, vector<2x32xf32>,
    %c0_117 = arith.constant 0 : index
    %c34 = arith.constant 34 : index
    %c0_118 = arith.constant 0 : index
    %118 = vector.load %arg13[%c0_117, %c34, %c0_118] : memref<2x64x32xf32, #tpu.memory_space<vmem>>, vector<2x1x32xf32>
    %119 = vector.shape_cast %118 : vector<2x1x32xf32> to vector<2x32xf32>
    %c0_119 = arith.constant 0 : index
    %c1088 = arith.constant 1088 : index
    %120 = vector.load %arg14[%c0_119, %c1088] : memref<2x2048xf32, #tpu.memory_space<vmem>>, vector<2x32xf32>
    tpu.vector_store %arg14[%c0_119, %c1088], %119 {strides = array<i32>} : memref<2x2048xf32, #tpu.memory_space<vmem>>, vector<2x32xf32>,
    %c0_120 = arith.constant 0 : index
    %c35 = arith.constant 35 : index
    %c0_121 = arith.constant 0 : index
    %121 = vector.load %arg13[%c0_120, %c35, %c0_121] : memref<2x64x32xf32, #tpu.memory_space<vmem>>, vector<2x1x32xf32>
    %122 = vector.shape_cast %121 : vector<2x1x32xf32> to vector<2x32xf32>
    %c0_122 = arith.constant 0 : index
    %c1120 = arith.constant 1120 : index
    %123 = vector.load %arg14[%c0_122, %c1120] : memref<2x2048xf32, #tpu.memory_space<vmem>>, vector<2x32xf32>
    tpu.vector_store %arg14[%c0_122, %c1120], %122 {strides = array<i32>} : memref<2x2048xf32, #tpu.memory_space<vmem>>, vector<2x32xf32>,
    %c0_123 = arith.constant 0 : index
    %c36 = arith.constant 36 : index
    %c0_124 = arith.constant 0 : index
    %124 = vector.load %arg13[%c0_123, %c36, %c0_124] : memref<2x64x32xf32, #tpu.memory_space<vmem>>, vector<2x1x32xf32>
    %125 = vector.shape_cast %124 : vector<2x1x32xf32> to vector<2x32xf32>
    %c0_125 = arith.constant 0 : index
    %c1152 = arith.constant 1152 : index
    %126 = vector.load %arg14[%c0_125, %c1152] : memref<2x2048xf32, #tpu.memory_space<vmem>>, vector<2x32xf32>
    tpu.vector_store %arg14[%c0_125, %c1152], %125 {strides = array<i32>} : memref<2x2048xf32, #tpu.memory_space<vmem>>, vector<2x32xf32>,
    %c0_126 = arith.constant 0 : index
    %c37 = arith.constant 37 : index
    %c0_127 = arith.constant 0 : index
    %127 = vector.load %arg13[%c0_126, %c37, %c0_127] : memref<2x64x32xf32, #tpu.memory_space<vmem>>, vector<2x1x32xf32>
    %128 = vector.shape_cast %127 : vector<2x1x32xf32> to vector<2x32xf32>
    %c0_128 = arith.constant 0 : index
    %c1184 = arith.constant 1184 : index
    %129 = vector.load %arg14[%c0_128, %c1184] : memref<2x2048xf32, #tpu.memory_space<vmem>>, vector<2x32xf32>
    tpu.vector_store %arg14[%c0_128, %c1184], %128 {strides = array<i32>} : memref<2x2048xf32, #tpu.memory_space<vmem>>, vector<2x32xf32>,
    %c0_129 = arith.constant 0 : index
    %c38 = arith.constant 38 : index
    %c0_130 = arith.constant 0 : index
    %130 = vector.load %arg13[%c0_129, %c38, %c0_130] : memref<2x64x32xf32, #tpu.memory_space<vmem>>, vector<2x1x32xf32>
    %131 = vector.shape_cast %130 : vector<2x1x32xf32> to vector<2x32xf32>
    %c0_131 = arith.constant 0 : index
    %c1216 = arith.constant 1216 : index
    %132 = vector.load %arg14[%c0_131, %c1216] : memref<2x2048xf32, #tpu.memory_space<vmem>>, vector<2x32xf32>
    tpu.vector_store %arg14[%c0_131, %c1216], %131 {strides = array<i32>} : memref<2x2048xf32, #tpu.memory_space<vmem>>, vector<2x32xf32>,
    %c0_132 = arith.constant 0 : index
    %c39 = arith.constant 39 : index
    %c0_133 = arith.constant 0 : index
    %133 = vector.load %arg13[%c0_132, %c39, %c0_133] : memref<2x64x32xf32, #tpu.memory_space<vmem>>, vector<2x1x32xf32>
    %134 = vector.shape_cast %133 : vector<2x1x32xf32> to vector<2x32xf32>
    %c0_134 = arith.constant 0 : index
    %c1248 = arith.constant 1248 : index
    %135 = vector.load %arg14[%c0_134, %c1248] : memref<2x2048xf32, #tpu.memory_space<vmem>>, vector<2x32xf32>
    tpu.vector_store %arg14[%c0_134, %c1248], %134 {strides = array<i32>} : memref<2x2048xf32, #tpu.memory_space<vmem>>, vector<2x32xf32>,
    %c0_135 = arith.constant 0 : index
    %c40 = arith.constant 40 : index
    %c0_136 = arith.constant 0 : index
    %136 = vector.load %arg13[%c0_135, %c40, %c0_136] : memref<2x64x32xf32, #tpu.memory_space<vmem>>, vector<2x1x32xf32>
    %137 = vector.shape_cast %136 : vector<2x1x32xf32> to vector<2x32xf32>
    %c0_137 = arith.constant 0 : index
    %c1280 = arith.constant 1280 : index
    %138 = vector.load %arg14[%c0_137, %c1280] : memref<2x2048xf32, #tpu.memory_space<vmem>>, vector<2x32xf32>
    tpu.vector_store %arg14[%c0_137, %c1280], %137 {strides = array<i32>} : memref<2x2048xf32, #tpu.memory_space<vmem>>, vector<2x32xf32>,
    %c0_138 = arith.constant 0 : index
    %c41 = arith.constant 41 : index
    %c0_139 = arith.constant 0 : index
    %139 = vector.load %arg13[%c0_138, %c41, %c0_139] : memref<2x64x32xf32, #tpu.memory_space<vmem>>, vector<2x1x32xf32>
    %140 = vector.shape_cast %139 : vector<2x1x32xf32> to vector<2x32xf32>
    %c0_140 = arith.constant 0 : index
    %c1312 = arith.constant 1312 : index
    %141 = vector.load %arg14[%c0_140, %c1312] : memref<2x2048xf32, #tpu.memory_space<vmem>>, vector<2x32xf32>
    tpu.vector_store %arg14[%c0_140, %c1312], %140 {strides = array<i32>} : memref<2x2048xf32, #tpu.memory_space<vmem>>, vector<2x32xf32>,
    %c0_141 = arith.constant 0 : index
    %c42 = arith.constant 42 : index
    %c0_142 = arith.constant 0 : index
    %142 = vector.load %arg13[%c0_141, %c42, %c0_142] : memref<2x64x32xf32, #tpu.memory_space<vmem>>, vector<2x1x32xf32>
    %143 = vector.shape_cast %142 : vector<2x1x32xf32> to vector<2x32xf32>
    %c0_143 = arith.constant 0 : index
    %c1344 = arith.constant 1344 : index
    %144 = vector.load %arg14[%c0_143, %c1344] : memref<2x2048xf32, #tpu.memory_space<vmem>>, vector<2x32xf32>
    tpu.vector_store %arg14[%c0_143, %c1344], %143 {strides = array<i32>} : memref<2x2048xf32, #tpu.memory_space<vmem>>, vector<2x32xf32>,
    %c0_144 = arith.constant 0 : index
    %c43 = arith.constant 43 : index
    %c0_145 = arith.constant 0 : index
    %145 = vector.load %arg13[%c0_144, %c43, %c0_145] : memref<2x64x32xf32, #tpu.memory_space<vmem>>, vector<2x1x32xf32>
    %146 = vector.shape_cast %145 : vector<2x1x32xf32> to vector<2x32xf32>
    %c0_146 = arith.constant 0 : index
    %c1376 = arith.constant 1376 : index
    %147 = vector.load %arg14[%c0_146, %c1376] : memref<2x2048xf32, #tpu.memory_space<vmem>>, vector<2x32xf32>
    tpu.vector_store %arg14[%c0_146, %c1376], %146 {strides = array<i32>} : memref<2x2048xf32, #tpu.memory_space<vmem>>, vector<2x32xf32>,
    %c0_147 = arith.constant 0 : index
    %c44 = arith.constant 44 : index
    %c0_148 = arith.constant 0 : index
    %148 = vector.load %arg13[%c0_147, %c44, %c0_148] : memref<2x64x32xf32, #tpu.memory_space<vmem>>, vector<2x1x32xf32>
    %149 = vector.shape_cast %148 : vector<2x1x32xf32> to vector<2x32xf32>
    %c0_149 = arith.constant 0 : index
    %c1408 = arith.constant 1408 : index
    %150 = vector.load %arg14[%c0_149, %c1408] : memref<2x2048xf32, #tpu.memory_space<vmem>>, vector<2x32xf32>
    tpu.vector_store %arg14[%c0_149, %c1408], %149 {strides = array<i32>} : memref<2x2048xf32, #tpu.memory_space<vmem>>, vector<2x32xf32>,
    %c0_150 = arith.constant 0 : index
    %c45 = arith.constant 45 : index
    %c0_151 = arith.constant 0 : index
    %151 = vector.load %arg13[%c0_150, %c45, %c0_151] : memref<2x64x32xf32, #tpu.memory_space<vmem>>, vector<2x1x32xf32>
    %152 = vector.shape_cast %151 : vector<2x1x32xf32> to vector<2x32xf32>
    %c0_152 = arith.constant 0 : index
    %c1440 = arith.constant 1440 : index
    %153 = vector.load %arg14[%c0_152, %c1440] : memref<2x2048xf32, #tpu.memory_space<vmem>>, vector<2x32xf32>
    tpu.vector_store %arg14[%c0_152, %c1440], %152 {strides = array<i32>} : memref<2x2048xf32, #tpu.memory_space<vmem>>, vector<2x32xf32>,
    %c0_153 = arith.constant 0 : index
    %c46 = arith.constant 46 : index
    %c0_154 = arith.constant 0 : index
    %154 = vector.load %arg13[%c0_153, %c46, %c0_154] : memref<2x64x32xf32, #tpu.memory_space<vmem>>, vector<2x1x32xf32>
    %155 = vector.shape_cast %154 : vector<2x1x32xf32> to vector<2x32xf32>
    %c0_155 = arith.constant 0 : index
    %c1472 = arith.constant 1472 : index
    %156 = vector.load %arg14[%c0_155, %c1472] : memref<2x2048xf32, #tpu.memory_space<vmem>>, vector<2x32xf32>
    tpu.vector_store %arg14[%c0_155, %c1472], %155 {strides = array<i32>} : memref<2x2048xf32, #tpu.memory_space<vmem>>, vector<2x32xf32>,
    %c0_156 = arith.constant 0 : index
    %c47 = arith.constant 47 : index
    %c0_157 = arith.constant 0 : index
    %157 = vector.load %arg13[%c0_156, %c47, %c0_157] : memref<2x64x32xf32, #tpu.memory_space<vmem>>, vector<2x1x32xf32>
    %158 = vector.shape_cast %157 : vector<2x1x32xf32> to vector<2x32xf32>
    %c0_158 = arith.constant 0 : index
    %c1504 = arith.constant 1504 : index
    %159 = vector.load %arg14[%c0_158, %c1504] : memref<2x2048xf32, #tpu.memory_space<vmem>>, vector<2x32xf32>
    tpu.vector_store %arg14[%c0_158, %c1504], %158 {strides = array<i32>} : memref<2x2048xf32, #tpu.memory_space<vmem>>, vector<2x32xf32>,
    %c0_159 = arith.constant 0 : index
    %c48 = arith.constant 48 : index
    %c0_160 = arith.constant 0 : index
    %160 = vector.load %arg13[%c0_159, %c48, %c0_160] : memref<2x64x32xf32, #tpu.memory_space<vmem>>, vector<2x1x32xf32>
    %161 = vector.shape_cast %160 : vector<2x1x32xf32> to vector<2x32xf32>
    %c0_161 = arith.constant 0 : index
    %c1536 = arith.constant 1536 : index
    %162 = vector.load %arg14[%c0_161, %c1536] : memref<2x2048xf32, #tpu.memory_space<vmem>>, vector<2x32xf32>
    tpu.vector_store %arg14[%c0_161, %c1536], %161 {strides = array<i32>} : memref<2x2048xf32, #tpu.memory_space<vmem>>, vector<2x32xf32>,
    %c0_162 = arith.constant 0 : index
    %c49 = arith.constant 49 : index
    %c0_163 = arith.constant 0 : index
    %163 = vector.load %arg13[%c0_162, %c49, %c0_163] : memref<2x64x32xf32, #tpu.memory_space<vmem>>, vector<2x1x32xf32>
    %164 = vector.shape_cast %163 : vector<2x1x32xf32> to vector<2x32xf32>
    %c0_164 = arith.constant 0 : index
    %c1568 = arith.constant 1568 : index
    %165 = vector.load %arg14[%c0_164, %c1568] : memref<2x2048xf32, #tpu.memory_space<vmem>>, vector<2x32xf32>
    tpu.vector_store %arg14[%c0_164, %c1568], %164 {strides = array<i32>} : memref<2x2048xf32, #tpu.memory_space<vmem>>, vector<2x32xf32>,
    %c0_165 = arith.constant 0 : index
    %c50 = arith.constant 50 : index
    %c0_166 = arith.constant 0 : index
    %166 = vector.load %arg13[%c0_165, %c50, %c0_166] : memref<2x64x32xf32, #tpu.memory_space<vmem>>, vector<2x1x32xf32>
    %167 = vector.shape_cast %166 : vector<2x1x32xf32> to vector<2x32xf32>
    %c0_167 = arith.constant 0 : index
    %c1600 = arith.constant 1600 : index
    %168 = vector.load %arg14[%c0_167, %c1600] : memref<2x2048xf32, #tpu.memory_space<vmem>>, vector<2x32xf32>
    tpu.vector_store %arg14[%c0_167, %c1600], %167 {strides = array<i32>} : memref<2x2048xf32, #tpu.memory_space<vmem>>, vector<2x32xf32>,
    %c0_168 = arith.constant 0 : index
    %c51 = arith.constant 51 : index
    %c0_169 = arith.constant 0 : index
    %169 = vector.load %arg13[%c0_168, %c51, %c0_169] : memref<2x64x32xf32, #tpu.memory_space<vmem>>, vector<2x1x32xf32>
    %170 = vector.shape_cast %169 : vector<2x1x32xf32> to vector<2x32xf32>
    %c0_170 = arith.constant 0 : index
    %c1632 = arith.constant 1632 : index
    %171 = vector.load %arg14[%c0_170, %c1632] : memref<2x2048xf32, #tpu.memory_space<vmem>>, vector<2x32xf32>
    tpu.vector_store %arg14[%c0_170, %c1632], %170 {strides = array<i32>} : memref<2x2048xf32, #tpu.memory_space<vmem>>, vector<2x32xf32>,
    %c0_171 = arith.constant 0 : index
    %c52 = arith.constant 52 : index
    %c0_172 = arith.constant 0 : index
    %172 = vector.load %arg13[%c0_171, %c52, %c0_172] : memref<2x64x32xf32, #tpu.memory_space<vmem>>, vector<2x1x32xf32>
    %173 = vector.shape_cast %172 : vector<2x1x32xf32> to vector<2x32xf32>
    %c0_173 = arith.constant 0 : index
    %c1664 = arith.constant 1664 : index
    %174 = vector.load %arg14[%c0_173, %c1664] : memref<2x2048xf32, #tpu.memory_space<vmem>>, vector<2x32xf32>
    tpu.vector_store %arg14[%c0_173, %c1664], %173 {strides = array<i32>} : memref<2x2048xf32, #tpu.memory_space<vmem>>, vector<2x32xf32>,
    %c0_174 = arith.constant 0 : index
    %c53 = arith.constant 53 : index
    %c0_175 = arith.constant 0 : index
    %175 = vector.load %arg13[%c0_174, %c53, %c0_175] : memref<2x64x32xf32, #tpu.memory_space<vmem>>, vector<2x1x32xf32>
    %176 = vector.shape_cast %175 : vector<2x1x32xf32> to vector<2x32xf32>
    %c0_176 = arith.constant 0 : index
    %c1696 = arith.constant 1696 : index
    %177 = vector.load %arg14[%c0_176, %c1696] : memref<2x2048xf32, #tpu.memory_space<vmem>>, vector<2x32xf32>
    tpu.vector_store %arg14[%c0_176, %c1696], %176 {strides = array<i32>} : memref<2x2048xf32, #tpu.memory_space<vmem>>, vector<2x32xf32>,
    %c0_177 = arith.constant 0 : index
    %c54 = arith.constant 54 : index
    %c0_178 = arith.constant 0 : index
    %178 = vector.load %arg13[%c0_177, %c54, %c0_178] : memref<2x64x32xf32, #tpu.memory_space<vmem>>, vector<2x1x32xf32>
    %179 = vector.shape_cast %178 : vector<2x1x32xf32> to vector<2x32xf32>
    %c0_179 = arith.constant 0 : index
    %c1728 = arith.constant 1728 : index
    %180 = vector.load %arg14[%c0_179, %c1728] : memref<2x2048xf32, #tpu.memory_space<vmem>>, vector<2x32xf32>
    tpu.vector_store %arg14[%c0_179, %c1728], %179 {strides = array<i32>} : memref<2x2048xf32, #tpu.memory_space<vmem>>, vector<2x32xf32>,
    %c0_180 = arith.constant 0 : index
    %c55 = arith.constant 55 : index
    %c0_181 = arith.constant 0 : index
    %181 = vector.load %arg13[%c0_180, %c55, %c0_181] : memref<2x64x32xf32, #tpu.memory_space<vmem>>, vector<2x1x32xf32>
    %182 = vector.shape_cast %181 : vector<2x1x32xf32> to vector<2x32xf32>
    %c0_182 = arith.constant 0 : index
    %c1760 = arith.constant 1760 : index
    %183 = vector.load %arg14[%c0_182, %c1760] : memref<2x2048xf32, #tpu.memory_space<vmem>>, vector<2x32xf32>
    tpu.vector_store %arg14[%c0_182, %c1760], %182 {strides = array<i32>} : memref<2x2048xf32, #tpu.memory_space<vmem>>, vector<2x32xf32>,
    %c0_183 = arith.constant 0 : index
    %c56 = arith.constant 56 : index
    %c0_184 = arith.constant 0 : index
    %184 = vector.load %arg13[%c0_183, %c56, %c0_184] : memref<2x64x32xf32, #tpu.memory_space<vmem>>, vector<2x1x32xf32>
    %185 = vector.shape_cast %184 : vector<2x1x32xf32> to vector<2x32xf32>
    %c0_185 = arith.constant 0 : index
    %c1792 = arith.constant 1792 : index
    %186 = vector.load %arg14[%c0_185, %c1792] : memref<2x2048xf32, #tpu.memory_space<vmem>>, vector<2x32xf32>
    tpu.vector_store %arg14[%c0_185, %c1792], %185 {strides = array<i32>} : memref<2x2048xf32, #tpu.memory_space<vmem>>, vector<2x32xf32>,
    %c0_186 = arith.constant 0 : index
    %c57 = arith.constant 57 : index
    %c0_187 = arith.constant 0 : index
    %187 = vector.load %arg13[%c0_186, %c57, %c0_187] : memref<2x64x32xf32, #tpu.memory_space<vmem>>, vector<2x1x32xf32>
    %188 = vector.shape_cast %187 : vector<2x1x32xf32> to vector<2x32xf32>
    %c0_188 = arith.constant 0 : index
    %c1824 = arith.constant 1824 : index
    %189 = vector.load %arg14[%c0_188, %c1824] : memref<2x2048xf32, #tpu.memory_space<vmem>>, vector<2x32xf32>
    tpu.vector_store %arg14[%c0_188, %c1824], %188 {strides = array<i32>} : memref<2x2048xf32, #tpu.memory_space<vmem>>, vector<2x32xf32>,
    %c0_189 = arith.constant 0 : index
    %c58 = arith.constant 58 : index
    %c0_190 = arith.constant 0 : index
    %190 = vector.load %arg13[%c0_189, %c58, %c0_190] : memref<2x64x32xf32, #tpu.memory_space<vmem>>, vector<2x1x32xf32>
    %191 = vector.shape_cast %190 : vector<2x1x32xf32> to vector<2x32xf32>
    %c0_191 = arith.constant 0 : index
    %c1856 = arith.constant 1856 : index
    %192 = vector.load %arg14[%c0_191, %c1856] : memref<2x2048xf32, #tpu.memory_space<vmem>>, vector<2x32xf32>
    tpu.vector_store %arg14[%c0_191, %c1856], %191 {strides = array<i32>} : memref<2x2048xf32, #tpu.memory_space<vmem>>, vector<2x32xf32>,
    %c0_192 = arith.constant 0 : index
    %c59 = arith.constant 59 : index
    %c0_193 = arith.constant 0 : index
    %193 = vector.load %arg13[%c0_192, %c59, %c0_193] : memref<2x64x32xf32, #tpu.memory_space<vmem>>, vector<2x1x32xf32>
    %194 = vector.shape_cast %193 : vector<2x1x32xf32> to vector<2x32xf32>
    %c0_194 = arith.constant 0 : index
    %c1888 = arith.constant 1888 : index
    %195 = vector.load %arg14[%c0_194, %c1888] : memref<2x2048xf32, #tpu.memory_space<vmem>>, vector<2x32xf32>
    tpu.vector_store %arg14[%c0_194, %c1888], %194 {strides = array<i32>} : memref<2x2048xf32, #tpu.memory_space<vmem>>, vector<2x32xf32>,
    %c0_195 = arith.constant 0 : index
    %c60 = arith.constant 60 : index
    %c0_196 = arith.constant 0 : index
    %196 = vector.load %arg13[%c0_195, %c60, %c0_196] : memref<2x64x32xf32, #tpu.memory_space<vmem>>, vector<2x1x32xf32>
    %197 = vector.shape_cast %196 : vector<2x1x32xf32> to vector<2x32xf32>
    %c0_197 = arith.constant 0 : index
    %c1920 = arith.constant 1920 : index
    %198 = vector.load %arg14[%c0_197, %c1920] : memref<2x2048xf32, #tpu.memory_space<vmem>>, vector<2x32xf32>
    tpu.vector_store %arg14[%c0_197, %c1920], %197 {strides = array<i32>} : memref<2x2048xf32, #tpu.memory_space<vmem>>, vector<2x32xf32>,
    %c0_198 = arith.constant 0 : index
    %c61 = arith.constant 61 : index
    %c0_199 = arith.constant 0 : index
    %199 = vector.load %arg13[%c0_198, %c61, %c0_199] : memref<2x64x32xf32, #tpu.memory_space<vmem>>, vector<2x1x32xf32>
    %200 = vector.shape_cast %199 : vector<2x1x32xf32> to vector<2x32xf32>
    %c0_200 = arith.constant 0 : index
    %c1952 = arith.constant 1952 : index
    %201 = vector.load %arg14[%c0_200, %c1952] : memref<2x2048xf32, #tpu.memory_space<vmem>>, vector<2x32xf32>
    tpu.vector_store %arg14[%c0_200, %c1952], %200 {strides = array<i32>} : memref<2x2048xf32, #tpu.memory_space<vmem>>, vector<2x32xf32>,
    %c0_201 = arith.constant 0 : index
    %c62 = arith.constant 62 : index
    %c0_202 = arith.constant 0 : index
    %202 = vector.load %arg13[%c0_201, %c62, %c0_202] : memref<2x64x32xf32, #tpu.memory_space<vmem>>, vector<2x1x32xf32>
    %203 = vector.shape_cast %202 : vector<2x1x32xf32> to vector<2x32xf32>
    %c0_203 = arith.constant 0 : index
    %c1984 = arith.constant 1984 : index
    %204 = vector.load %arg14[%c0_203, %c1984] : memref<2x2048xf32, #tpu.memory_space<vmem>>, vector<2x32xf32>
    tpu.vector_store %arg14[%c0_203, %c1984], %203 {strides = array<i32>} : memref<2x2048xf32, #tpu.memory_space<vmem>>, vector<2x32xf32>,
    %c0_204 = arith.constant 0 : index
    %c63 = arith.constant 63 : index
    %c0_205 = arith.constant 0 : index
    %205 = vector.load %arg13[%c0_204, %c63, %c0_205] : memref<2x64x32xf32, #tpu.memory_space<vmem>>, vector<2x1x32xf32>
    %206 = vector.shape_cast %205 : vector<2x1x32xf32> to vector<2x32xf32>
    %c0_206 = arith.constant 0 : index
    %c2016 = arith.constant 2016 : index
    %207 = vector.load %arg14[%c0_206, %c2016] : memref<2x2048xf32, #tpu.memory_space<vmem>>, vector<2x32xf32>
    tpu.vector_store %arg14[%c0_206, %c2016], %206 {strides = array<i32>} : memref<2x2048xf32, #tpu.memory_space<vmem>>, vector<2x32xf32>,
    %c0_207 = arith.constant 0 : index
    %c0_208 = arith.constant 0 : index
    %208 = vector.load %arg14[%c0_207, %c0_208] : memref<2x2048xf32, #tpu.memory_space<vmem>>, vector<2x2048xf32>
    %209 = arith.truncf %208 : vector<2x2048xf32> to vector<2x2048xbf16>
    %c0_209 = arith.constant 0 : index
    %c0_210 = arith.constant 0 : index
    %210 = vector.load %arg4[%c0_209, %c0_210] : memref<2048x576xbf16, #tpu.memory_space<vmem>>, vector<2048x576xbf16>
    %cst_211 = arith.constant dense<0.000000e+00> : vector<2x576xf32>
    %211 = tpu.matmul %209, %210, %cst_211 {dimension_numbers = #tpu.dot_dimension_numbers<[1], [0], [0], [1], [0, 0, 1, 1], [], []>} : vector<2x2048xbf16>, vector<2048x576xbf16>, vector<2x576xf32> -> vector<2x576xf32>
    %c0_212 = arith.constant 0 : index
    %c0_213 = arith.constant 0 : index
    %212 = vector.load %arg5[%c0_212, %c0_213] : memref<1x576xf32, #tpu.memory_space<vmem>>, vector<1x576xf32>
    %213 = vector.broadcast %212 : vector<1x576xf32> to vector<2x576xf32>
    %214 = arith.addf %211, %213 : vector<2x576xf32>
    %cst_214 = arith.constant 0.000000e+00 : f32
    %215 = vector.broadcast %cst_214 : f32 to vector<2x576xf32>
    %216 = arith.maximumf %214, %215 : vector<2x576xf32>
    %217 = arith.truncf %216 : vector<2x576xf32> to vector<2x576xbf16>
    %c0_215 = arith.constant 0 : index
    %c0_216 = arith.constant 0 : index
    %218 = vector.load %arg6[%c0_215, %c0_216] : memref<576x64xbf16, #tpu.memory_space<vmem>>, vector<576x64xbf16>
    %cst_217 = arith.constant dense<0.000000e+00> : vector<2x64xf32>
    %219 = tpu.matmul %217, %218, %cst_217 {dimension_numbers = #tpu.dot_dimension_numbers<[1], [0], [0], [1], [0, 0, 1, 1], [], []>} : vector<2x576xbf16>, vector<576x64xbf16>, vector<2x64xf32> -> vector<2x64xf32>
    %c0_218 = arith.constant 0 : index
    %c0_219 = arith.constant 0 : index
    %220 = vector.load %arg7[%c0_218, %c0_219] : memref<1x64xf32, #tpu.memory_space<vmem>>, vector<1x64xf32>
    %221 = vector.broadcast %220 : vector<1x64xf32> to vector<2x64xf32>
    %222 = arith.addf %219, %221 : vector<2x64xf32>
    %cst_220 = arith.constant 0.000000e+00 : f32
    %223 = vector.broadcast %cst_220 : f32 to vector<2x64xf32>
    %224 = arith.maximumf %222, %223 : vector<2x64xf32>
    %225 = arith.truncf %224 : vector<2x64xf32> to vector<2x64xbf16>
    %c0_221 = arith.constant 0 : index
    %c0_222 = arith.constant 0 : index
    %226 = vector.load %arg8[%c0_221, %c0_222] : memref<64x512xbf16, #tpu.memory_space<vmem>>, vector<64x512xbf16>
    %cst_223 = arith.constant dense<0.000000e+00> : vector<2x512xf32>
    %227 = tpu.matmul %225, %226, %cst_223 {dimension_numbers = #tpu.dot_dimension_numbers<[1], [0], [0], [1], [0, 0, 1, 1], [], []>} : vector<2x64xbf16>, vector<64x512xbf16>, vector<2x512xf32> -> vector<2x512xf32>
    %c0_224 = arith.constant 0 : index
    %c0_225 = arith.constant 0 : index
    %228 = vector.load %arg9[%c0_224, %c0_225] : memref<1x512xf32, #tpu.memory_space<vmem>>, vector<1x512xf32>
    %229 = vector.broadcast %228 : vector<1x512xf32> to vector<2x512xf32>
    %230 = arith.addf %227, %229 : vector<2x512xf32>
    %cst_226 = arith.constant 0.000000e+00 : f32
    %231 = vector.broadcast %cst_226 : f32 to vector<2x512xf32>
    %232 = arith.maximumf %230, %231 : vector<2x512xf32>
    %233 = arith.truncf %232 : vector<2x512xf32> to vector<2x512xbf16>
    %c0_227 = arith.constant 0 : index
    %c0_228 = arith.constant 0 : index
    %234 = vector.load %arg10[%c0_227, %c0_228] : memref<512x128xbf16, #tpu.memory_space<vmem>>, vector<512x128xbf16>
    %cst_229 = arith.constant dense<0.000000e+00> : vector<2x128xf32>
    %235 = tpu.matmul %233, %234, %cst_229 {dimension_numbers = #tpu.dot_dimension_numbers<[1], [0], [0], [1], [0, 0, 1, 1], [], []>} : vector<2x512xbf16>, vector<512x128xbf16>, vector<2x128xf32> -> vector<2x128xf32>
    %c0_230 = arith.constant 0 : index
    %c0_231 = arith.constant 0 : index
    %236 = vector.load %arg11[%c0_230, %c0_231] : memref<1x128xf32, #tpu.memory_space<vmem>>, vector<1x128xf32>
    %237 = vector.broadcast %236 : vector<1x128xf32> to vector<2x128xf32>
    %238 = arith.addf %235, %237 : vector<2x128xf32>
    %239 = vector.extract_strided_slice %238 {offsets = [0, 6], sizes = [2, 1], strides = [1, 1]} : vector<2x128xf32> to vector<2x1xf32>
    %cst_232 = arith.constant dense<0.000000e+00> : vector<2xf32>
    %240 = vector.multi_reduction <add>, %238, %cst_232 [1] : vector<2x128xf32> to vector<2xf32>
    %241 = vector.shape_cast %240 : vector<2xf32> to vector<2x1xf32>
    %242 = arith.subf %241, %239 : vector<2x1xf32>
    %cst_233 = arith.constant 0.166666672 : f32
    %243 = vector.broadcast %cst_233 : f32 to vector<2x1xf32>
    %244 = arith.mulf %242, %243 : vector<2x1xf32>
    %245 = vector.broadcast %239 : vector<2x1xf32> to vector<2x128xf32>
    %246 = arith.addf %238, %245 : vector<2x128xf32>
    %247 = vector.broadcast %244 : vector<2x1xf32> to vector<2x128xf32>
    %248 = arith.subf %246, %247 : vector<2x128xf32>
    %c0_234 = arith.constant 0 : index
    %c0_235 = arith.constant 0 : index
    %249 = vector.load %arg12[%c0_234, %c0_235] : memref<2x128xf32, #tpu.memory_space<vmem>>, vector<2x128xf32>
    tpu.vector_store %arg12[%c0_234, %c0_235], %248 {strides = array<i32>} : memref<2x128xf32, #tpu.memory_space<vmem>>, vector<2x128xf32>,
    return
  }
  func.func @transform_0(%arg0: i32) -> (i32, i32) {
    %c0_i32 = arith.constant 0 : i32
    %c0_i32_0 = arith.constant 0 : i32
    return %arg0, %c0_i32 : i32, i32
  }
  func.func @transform_1(%arg0: i32) -> (i32, i32) {
    %c0_i32 = arith.constant 0 : i32
    %c0_i32_0 = arith.constant 0 : i32
    %c0_i32_1 = arith.constant 0 : i32
    return %c0_i32, %c0_i32_0 : i32, i32
  }
  func.func @transform_2(%arg0: i32) -> (i32, i32) {
    %c0_i32 = arith.constant 0 : i32
    %c0_i32_0 = arith.constant 0 : i32
    %c0_i32_1 = arith.constant 0 : i32
    return %c0_i32, %c0_i32_0 : i32, i32
  }
  func.func @transform_3(%arg0: i32) -> (i32, i32) {
    %c0_i32 = arith.constant 0 : i32
    %c0_i32_0 = arith.constant 0 : i32
    %c0_i32_1 = arith.constant 0 : i32
    return %c0_i32, %c0_i32_0 : i32, i32
  }
  func.func @transform_4(%arg0: i32) -> (i32, i32) {
    %c0_i32 = arith.constant 0 : i32
    %c0_i32_0 = arith.constant 0 : i32
    %c0_i32_1 = arith.constant 0 : i32
    return %c0_i32, %c0_i32_0 : i32, i32
  }
  func.func @transform_5(%arg0: i32) -> (i32, i32) {
    %c0_i32 = arith.constant 0 : i32
    %c0_i32_0 = arith.constant 0 : i32
    %c0_i32_1 = arith.constant 0 : i32
    return %c0_i32, %c0_i32_0 : i32, i32
  }
  func.func @transform_6(%arg0: i32) -> (i32, i32) {
    %c0_i32 = arith.constant 0 : i32
    %c0_i32_0 = arith.constant 0 : i32
    %c0_i32_1 = arith.constant 0 : i32
    return %c0_i32, %c0_i32_0 : i32, i32
  }
  func.func @transform_7(%arg0: i32) -> (i32, i32) {
    %c0_i32 = arith.constant 0 : i32
    %c0_i32_0 = arith.constant 0 : i32
    %c0_i32_1 = arith.constant 0 : i32
    return %c0_i32, %c0_i32_0 : i32, i32
  }
  func.func @transform_8(%arg0: i32) -> (i32, i32) {
    %c0_i32 = arith.constant 0 : i32
    %c0_i32_0 = arith.constant 0 : i32
    %c0_i32_1 = arith.constant 0 : i32
    return %c0_i32, %c0_i32_0 : i32, i32
  }
  func.func @transform_9(%arg0: i32) -> (i32, i32) {
    %c0_i32 = arith.constant 0 : i32
    %c0_i32_0 = arith.constant 0 : i32
    %c0_i32_1 = arith.constant 0 : i32
    return %c0_i32, %c0_i32_0 : i32, i32
  }
  func.func @transform_10(%arg0: i32) -> (i32, i32) {
    %c0_i32 = arith.constant 0 : i32
    %c0_i32_0 = arith.constant 0 : i32
    %c0_i32_1 = arith.constant 0 : i32
    return %c0_i32, %c0_i32_0 : i32, i32
  }
  func.func @transform_11(%arg0: i32) -> (i32, i32) {
    %c0_i32 = arith.constant 0 : i32
    %c0_i32_0 = arith.constant 0 : i32
    return %arg0, %c0_i32 : i32, i32
  }
}

</mosaic_0001>

<llo_original>
// kernel: _lambda_.1
$region0: #{_lambda_.1}
  #allocation0 [shape = 'u32[]', space=smem, size = 0x4, offset = 0x4, fixed_abs, tag = 'smem constant byte address 0x4 - core index']
  #allocation1 [shape = 'u32[144,128]{1,0:T(1,128)}', space=vmem, size = 0x12000, scoped, tag = 'internal scratch']
  #allocation2 [shape = 'f32[2,64,32]{2,1,0:T(8,128)}', space=vmem, size = 0x10000, scoped, tag = 'scratch operand']
  #allocation3 [shape = 'f32[2,2048]{1,0:T(2,128)}', space=vmem, size = 0x4000, scoped, tag = 'scratch operand']
  %s0 = inlined_call_operand.vmem [shape: bf16[128,256], index: 0, kind: input, shape index: {}]
  %s1 = inlined_call_operand.vmem [shape: bf16[256,32], index: 1, kind: input, shape index: {}]
  %s2 = inlined_call_operand.vmem [shape: f32[1,32], index: 2, kind: input, shape index: {}]
  %s3 = inlined_call_operand.vmem [shape: bf16[2048,576], index: 3, kind: input, shape index: {}]
  %s4 = inlined_call_operand.vmem [shape: f32[1,576], index: 4, kind: input, shape index: {}]
  %s5 = inlined_call_operand.vmem [shape: bf16[576,64], index: 5, kind: input, shape index: {}]
  %s6 = inlined_call_operand.vmem [shape: f32[1,64], index: 6, kind: input, shape index: {}]
  %s7 = inlined_call_operand.vmem [shape: bf16[64,512], index: 7, kind: input, shape index: {}]
  %s8 = inlined_call_operand.vmem [shape: f32[1,512], index: 8, kind: input, shape index: {}]
  %s9 = inlined_call_operand.vmem [shape: bf16[512,128], index: 9, kind: input, shape index: {}]
  %s10 = inlined_call_operand.vmem [shape: f32[1,128], index: 10, kind: input, shape index: {}]
  %s11 = inlined_call_operand.hbm [shape: f32[2,128], index: 11, kind: output, shape index: {}]
  %s12 = sld [smem:[#allocation0]]
  $region54: #{_lambda_.1} parent=0
    _
  %s14 = ssub.s32 1, %s12
  %s15 = scalar_select 0, %s14, %s12
  $region1: #{_lambda_.1} parent=0
    #allocation4 [shape = 'u8[1024]{0}', space=vmem, size = 0x400, scoped, tag = 'output window, operand 0, single buffered']
    #allocation5 [shape = 's32[1]{0}', space=sflag, size = 0x4, scoped, tag = 'scoped memory for _lambda_.1']
    %16 = vsyncpa [#allocation5], 0
    // Predicated region
    $region2: #{_lambda_.1} parent=1 // pred_check
      _
    $region3: #{_lambda_.1} parent=1 // pred_check_branch
      %18 = sbr.rel (0) target = $region5
    $region4: #{_lambda_.1} parent=1 // pred_region
      _
    $region5: #{_lambda_.1} parent=1 // pred_fallthru
      _
    // Predicated region
    $region6: #{_lambda_.1} parent=1 // pred_check
      _
    $region7: #{_lambda_.1} parent=1 // pred_check_branch
      %20 = sbr.rel (0) target = $region9
    $region8: #{_lambda_.1} parent=1 // pred_region
      _
    $region9: #{_lambda_.1} parent=1 // pred_fallthru
      _
    // Predicated region
    $region10: #{_lambda_.1} parent=1 // pred_check
      _
    $region11: #{_lambda_.1} parent=1 // pred_check_branch
      %22 = sbr.rel (0) target = $region13
    $region12: #{_lambda_.1} parent=1 // pred_region
      _
    $region13: #{_lambda_.1} parent=1 // pred_fallthru
      _
    // Predicated region
    $region14: #{_lambda_.1} parent=1 // pred_check
      _
    $region15: #{_lambda_.1} parent=1 // pred_check_branch
      %24 = sbr.rel (0) target = $region17
    $region16: #{_lambda_.1} parent=1 // pred_region
      _
    $region17: #{_lambda_.1} parent=1 // pred_fallthru
      _
    // Predicated region
    $region18: #{_lambda_.1} parent=1 // pred_check
      _
    $region19: #{_lambda_.1} parent=1 // pred_check_branch
      %26 = sbr.rel (0) target = $region21
    $region20: #{_lambda_.1} parent=1 // pred_region
      _
    $region21: #{_lambda_.1} parent=1 // pred_fallthru
      _
    // Predicated region
    $region22: #{_lambda_.1} parent=1 // pred_check
      _
    $region23: #{_lambda_.1} parent=1 // pred_check_branch
      %28 = sbr.rel (0) target = $region25
    $region24: #{_lambda_.1} parent=1 // pred_region
      _
    $region25: #{_lambda_.1} parent=1 // pred_fallthru
      _
    // Predicated region
    $region26: #{_lambda_.1} parent=1 // pred_check
      _
    $region27: #{_lambda_.1} parent=1 // pred_check_branch
      %30 = sbr.rel (0) target = $region29
    $region28: #{_lambda_.1} parent=1 // pred_region
      _
    $region29: #{_lambda_.1} parent=1 // pred_fallthru
      _
    // Predicated region
    $region30: #{_lambda_.1} parent=1 // pred_check
      _
    $region31: #{_lambda_.1} parent=1 // pred_check_branch
      %32 = sbr.rel (0) target = $region33
    $region32: #{_lambda_.1} parent=1 // pred_region
      _
    $region33: #{_lambda_.1} parent=1 // pred_fallthru
      _
    // Predicated region
    $region34: #{_lambda_.1} parent=1 // pred_check
      _
    $region35: #{_lambda_.1} parent=1 // pred_check_branch
      %34 = sbr.rel (0) target = $region37
    $region36: #{_lambda_.1} parent=1 // pred_region
      _
    $region37: #{_lambda_.1} parent=1 // pred_fallthru
      _
    // Predicated region
    $region38: #{_lambda_.1} parent=1 // pred_check
      _
    $region39: #{_lambda_.1} parent=1 // pred_check_branch
      %36 = sbr.rel (0) target = $region41
    $region40: #{_lambda_.1} parent=1 // pred_region
      _
    $region41: #{_lambda_.1} parent=1 // pred_fallthru
      _
    // Predicated region
    $region42: #{_lambda_.1} parent=1 // pred_check
      _
    $region43: #{_lambda_.1} parent=1 // pred_check_branch
      %38 = sbr.rel (0) target = $region45
    $region44: #{_lambda_.1} parent=1 // pred_region
      _
    $region45: #{_lambda_.1} parent=1 // pred_fallthru
      _
    %v40 = vld [vmem:[%s0] sm:$0xff]
    %v41 = vld [vmem:[%s0 + $0x8] sm:$0xff]
    %v42 = vld [vmem:[%s0 + $0x10] sm:$0xff]
    %v43 = vld [vmem:[%s0 + $0x18] sm:$0xff]
    %v44 = vld [vmem:[%s0 + $0x20] sm:$0xff]
    %v45 = vld [vmem:[%s0 + $0x28] sm:$0xff]
    %v46 = vld [vmem:[%s0 + $0x30] sm:$0xff]
    %v47 = vld [vmem:[%s0 + $0x38] sm:$0xff]
    %v48 = vld [vmem:[%s0 + $0x40] sm:$0xff]
    %v49 = vld [vmem:[%s0 + $0x48] sm:$0xff]
    %v50 = vld [vmem:[%s0 + $0x50] sm:$0xff]
    %v51 = vld [vmem:[%s0 + $0x58] sm:$0xff]
    %v52 = vld [vmem:[%s0 + $0x60] sm:$0xff]
    %v53 = vld [vmem:[%s0 + $0x68] sm:$0xff]
    %v54 = vld [vmem:[%s0 + $0x70] sm:$0xff]
    %v55 = vld [vmem:[%s0 + $0x78] sm:$0xff]
    %v56 = vld [vmem:[%s1] sm:$0xf]
    %v57 = vld [vmem:[%s1 + $0x4] sm:$0xf]
    %v58 = vld [vmem:[%s1 + $0x8] sm:$0xf]
    %v59 = vld [vmem:[%s1 + $0xc] sm:$0xf]
    %v60 = vld [vmem:[%s1 + $0x10] sm:$0xf]
    %v61 = vld [vmem:[%s1 + $0x14] sm:$0xf]
    %v62 = vld [vmem:[%s1 + $0x18] sm:$0xf]
    %v63 = vld [vmem:[%s1 + $0x1c] sm:$0xf]
    %v64 = vld [vmem:[%s1 + $0x20] sm:$0xf]
    %v65 = vld [vmem:[%s1 + $0x24] sm:$0xf]
    %v66 = vld [vmem:[%s1 + $0x28] sm:$0xf]
    %v67 = vld [vmem:[%s1 + $0x2c] sm:$0xf]
    %v68 = vld [vmem:[%s1 + $0x30] sm:$0xf]
    %v69 = vld [vmem:[%s1 + $0x34] sm:$0xf]
    %v70 = vld [vmem:[%s1 + $0x38] sm:$0xf]
    %v71 = vld [vmem:[%s1 + $0x3c] sm:$0xf]
    %v72 = vld [vmem:[%s1 + $0x40] sm:$0xf]
    %v73 = vld [vmem:[%s1 + $0x44] sm:$0xf]
    %v74 = vld [vmem:[%s1 + $0x48] sm:$0xf]
    %v75 = vld [vmem:[%s1 + $0x4c] sm:$0xf]
    %v76 = vld [vmem:[%s1 + $0x50] sm:$0xf]
    %v77 = vld [vmem:[%s1 + $0x54] sm:$0xf]
    %v78 = vld [vmem:[%s1 + $0x58] sm:$0xf]
    %v79 = vld [vmem:[%s1 + $0x5c] sm:$0xf]
    %v80 = vld [vmem:[%s1 + $0x60] sm:$0xf]
    %v81 = vld [vmem:[%s1 + $0x64] sm:$0xf]
    %v82 = vld [vmem:[%s1 + $0x68] sm:$0xf]
    %v83 = vld [vmem:[%s1 + $0x6c] sm:$0xf]
    %v84 = vld [vmem:[%s1 + $0x70] sm:$0xf]
    %v85 = vld [vmem:[%s1 + $0x74] sm:$0xf]
    %v86 = vld [vmem:[%s1 + $0x78] sm:$0xf]
    %v87 = vld [vmem:[%s1 + $0x7c] sm:$0xf]
    %v88 = vld [vmem:[%s2] sm:$0x1]
    %v90 = vlaneseq
    %v91 = vshrl.u32 %v90, 7
    %v92 = vsub.s32 0, %v91
    %v93 = vrot.slane %v88, %v92
    %v111 = vunpack.c.l.b16 %v40
    %v112 = vunpack.c.h.b16 %v40
    %v113 = vunpack.c.l.b16 %v41
    %v114 = vunpack.c.h.b16 %v41
    %v115 = vunpack.c.l.b16 %v42
    %v116 = vunpack.c.h.b16 %v42
    %v117 = vunpack.c.l.b16 %v43
    %v118 = vunpack.c.h.b16 %v43
    %v119 = vunpack.c.l.b16 %v44
    %v120 = vunpack.c.h.b16 %v44
    %v121 = vunpack.c.l.b16 %v45
    %v122 = vunpack.c.h.b16 %v45
    %v123 = vunpack.c.l.b16 %v46
    %v124 = vunpack.c.h.b16 %v46
    %v125 = vunpack.c.l.b16 %v47
    %v126 = vunpack.c.h.b16 %v47
    %v127 = vunpack.c.l.b16 %v48
    %v128 = vunpack.c.h.b16 %v48
    %v129 = vunpack.c.l.b16 %v49
    %v130 = vunpack.c.h.b16 %v49
    %v131 = vunpack.c.l.b16 %v50
    %v132 = vunpack.c.h.b16 %v50
    %v133 = vunpack.c.l.b16 %v51
    %v134 = vunpack.c.h.b16 %v51
    %v135 = vunpack.c.l.b16 %v52
    %v136 = vunpack.c.h.b16 %v52
    %v137 = vunpack.c.l.b16 %v53
    %v138 = vunpack.c.h.b16 %v53
    %v139 = vunpack.c.l.b16 %v54
    %v140 = vunpack.c.h.b16 %v54
    %v141 = vunpack.c.l.b16 %v55
    %v142 = vunpack.c.h.b16 %v55
    %v143 = vpack.c.b16 %v113, %v111
    %v144 = vpack.c.b16 %v114, %v112
    %v145 = vpack.c.b16 %v117, %v115
    %v146 = vpack.c.b16 %v118, %v116
    %v147 = vpack.c.b16 %v121, %v119
    %v148 = vpack.c.b16 %v122, %v120
    %v149 = vpack.c.b16 %v125, %v123
    %v150 = vpack.c.b16 %v126, %v124
    %v151 = vpack.c.b16 %v129, %v127
    %v152 = vpack.c.b16 %v130, %v128
    %v153 = vpack.c.b16 %v133, %v131
    %v154 = vpack.c.b16 %v134, %v132
    %v155 = vpack.c.b16 %v137, %v135
    %v156 = vpack.c.b16 %v138, %v136
    %v157 = vpack.c.b16 %v141, %v139
    %v158 = vpack.c.b16 %v142, %v140
    %v207 = vunpack.c.l.b16 %v56
    %v208 = vunpack.c.l.b16 %v57
    %v209 = vunpack.c.l.b16 %v58
    %v210 = vunpack.c.l.b16 %v59
    %v211 = vunpack.c.l.b16 %v60
    %v212 = vunpack.c.l.b16 %v61
    %v213 = vunpack.c.l.b16 %v62
    %v214 = vunpack.c.l.b16 %v63
    %v215 = vunpack.c.l.b16 %v64
    %v216 = vunpack.c.l.b16 %v65
    %v217 = vunpack.c.l.b16 %v66
    %v218 = vunpack.c.l.b16 %v67
    %v219 = vunpack.c.l.b16 %v68
    %v220 = vunpack.c.l.b16 %v69
    %v221 = vunpack.c.l.b16 %v70
    %v222 = vunpack.c.l.b16 %v71
    %v223 = vunpack.c.l.b16 %v72
    %v224 = vunpack.c.l.b16 %v73
    %v225 = vunpack.c.l.b16 %v74
    %v226 = vunpack.c.l.b16 %v75
    %v227 = vunpack.c.l.b16 %v76
    %v228 = vunpack.c.l.b16 %v77
    %v229 = vunpack.c.l.b16 %v78
    %v230 = vunpack.c.l.b16 %v79
    %v231 = vunpack.c.l.b16 %v80
    %v232 = vunpack.c.l.b16 %v81
    %v233 = vunpack.c.l.b16 %v82
    %v234 = vunpack.c.l.b16 %v83
    %v235 = vunpack.c.l.b16 %v84
    %v236 = vunpack.c.l.b16 %v85
    %v237 = vunpack.c.l.b16 %v86
    %v238 = vunpack.c.l.b16 %v87
    %v239 = vpack.c.b16 %v208, %v207
    %v240 = vpack.c.b16 %v210, %v209
    %v241 = vpack.c.b16 %v212, %v211
    %v242 = vpack.c.b16 %v214, %v213
    %v243 = vpack.c.b16 %v216, %v215
    %v244 = vpack.c.b16 %v218, %v217
    %v245 = vpack.c.b16 %v220, %v219
    %v246 = vpack.c.b16 %v222, %v221
    %v247 = vpack.c.b16 %v224, %v223
    %v248 = vpack.c.b16 %v226, %v225
    %v249 = vpack.c.b16 %v228, %v227
    %v250 = vpack.c.b16 %v230, %v229
    %v251 = vpack.c.b16 %v232, %v231
    %v252 = vpack.c.b16 %v234, %v233
    %v253 = vpack.c.b16 %v236, %v235
    %v254 = vpack.c.b16 %v238, %v237
    %271 = vmatprep.subr.bf16.mxu0 0
    %272 = vmatpush1.bf16.msra.mxu0 %v246
    %273 = vmatprep.subr.bf16.mxu0 0
    %274 = vmatpush1.bf16.msra.mxu0 %v245
    %275 = vmatprep.subr.bf16.mxu0 0
    %276 = vmatpush1.bf16.msra.mxu0 %v244
    %277 = vmatprep.subr.bf16.mxu0 0
    %278 = vmatpush1.bf16.msra.mxu0 %v243
    %279 = vmatprep.subr.bf16.mxu0 0
    %280 = vmatpush1.bf16.msra.mxu0 %v242
    %281 = vmatprep.subr.bf16.mxu0 0
    %282 = vmatpush1.bf16.msra.mxu0 %v241
    %283 = vmatprep.subr.bf16.mxu0 0
    %284 = vmatpush1.bf16.msra.mxu0 %v240
    %285 = vmatprep.subr.bf16.mxu0 0
    %286 = vmatpush1.bf16.msra.mxu0 %v239
    %287 = vmatprep.subr.bf16.mxu0 0
    %288 = vmatpush2.bf16.msra.mxu0 %v254
    %289 = vmatprep.subr.bf16.mxu0 0
    %290 = vmatpush2.bf16.msra.mxu0 %v253
    %291 = vmatprep.subr.bf16.mxu0 0
    %292 = vmatpush2.bf16.msra.mxu0 %v252
    %293 = vmatprep.subr.bf16.mxu0 0
    %294 = vmatpush2.bf16.msra.mxu0 %v251
    %295 = vmatprep.subr.bf16.mxu0 0
    %296 = vmatpush2.bf16.msra.mxu0 %v250
    %297 = vmatprep.subr.bf16.mxu0 0
    %298 = vmatpush2.bf16.msra.mxu0 %v249
    %299 = vmatprep.subr.bf16.mxu0 0
    %300 = vmatpush2.bf16.msra.mxu0 %v248
    %301 = vmatprep.subr.bf16.mxu0 0
    %302 = vmatpush2.bf16.msra.mxu0 %v247
    %303 = vmatprep.mubr.bf16.mxu0 %v144
    %304 = vmatmul.mubr.bf16.gmra.mxu0 %v143
    %v305 = vpop.f32.mrf.mxu0
    %v306 = vadd.f32 %v93, %v305
    %v307 = vpop.f32.mrf.mxu0
    %v308 = vpop.f32.mrf.mxu0
    %v309 = vadd.f32 %v93, %v308
    %v310 = vpop.f32.mrf.mxu0
    %311 = vmatprep.mubr.bf16.mxu0 %v146
    %312 = vmatmul.mubr.bf16.gmra.mxu0 %v145
    %v313 = vpop.f32.mrf.mxu0
    %v314 = vadd.f32 %v93, %v313
    %v315 = vpop.f32.mrf.mxu0
    %v316 = vpop.f32.mrf.mxu0
    %v317 = vadd.f32 %v93, %v316
    %v318 = vpop.f32.mrf.mxu0
    %319 = vmatprep.mubr.bf16.mxu0 %v148
    %320 = vmatmul.mubr.bf16.gmra.mxu0 %v147
    %v321 = vpop.f32.mrf.mxu0
    %v322 = vadd.f32 %v93, %v321
    %v323 = vpop.f32.mrf.mxu0
    %v324 = vpop.f32.mrf.mxu0
    %v325 = vadd.f32 %v93, %v324
    %v326 = vpop.f32.mrf.mxu0
    %327 = vmatprep.mubr.bf16.mxu0 %v150
    %328 = vmatmul.mubr.bf16.gmra.mxu0 %v149
    %v329 = vpop.f32.mrf.mxu0
    %v330 = vadd.f32 %v93, %v329
    %v331 = vpop.f32.mrf.mxu0
    %v332 = vpop.f32.mrf.mxu0
    %v333 = vadd.f32 %v93, %v332
    %v334 = vpop.f32.mrf.mxu0
    %335 = vmatprep.mubr.bf16.mxu0 %v152
    %336 = vmatmul.mubr.bf16.gmra.mxu0 %v151
    %v337 = vpop.f32.mrf.mxu0
    %v338 = vadd.f32 %v93, %v337
    %v339 = vpop.f32.mrf.mxu0
    %v340 = vpop.f32.mrf.mxu0
    %v341 = vadd.f32 %v93, %v340
    %v342 = vpop.f32.mrf.mxu0
    %343 = vmatprep.mubr.bf16.mxu0 %v154
    %344 = vmatmul.mubr.bf16.gmra.mxu0 %v153
    %v345 = vpop.f32.mrf.mxu0
    %v346 = vadd.f32 %v93, %v345
    %v347 = vpop.f32.mrf.mxu0
    %v348 = vpop.f32.mrf.mxu0
    %v349 = vadd.f32 %v93, %v348
    %v350 = vpop.f32.mrf.mxu0
    %351 = vmatprep.mubr.bf16.mxu0 %v156
    %352 = vmatmul.mubr.bf16.gmra.mxu0 %v155
    %v353 = vpop.f32.mrf.mxu0
    %v354 = vadd.f32 %v93, %v353
    %v355 = vpop.f32.mrf.mxu0
    %v356 = vpop.f32.mrf.mxu0
    %v357 = vadd.f32 %v93, %v356
    %v358 = vpop.f32.mrf.mxu0
    %359 = vmatprep.mubr.bf16.mxu0 %v158
    %360 = vmatmul.mubr.bf16.gmra.mxu0 %v157
    %v361 = vpop.f32.mrf.mxu0
    %v362 = vadd.f32 %v93, %v361
    %v363 = vpop.f32.mrf.mxu0
    %v364 = vpop.f32.mrf.mxu0
    %v365 = vadd.f32 %v93, %v364
    %v366 = vpop.f32.mrf.mxu0
    %367 = vdwg.mxu0
    %v368 = vmax.f32 %v306, 0.0
    %v369 = vmax.f32 %v309, 0.0
    %v370 = vmax.f32 %v314, 0.0
    %v371 = vmax.f32 %v317, 0.0
    %v372 = vmax.f32 %v322, 0.0
    %v373 = vmax.f32 %v325, 0.0
    %v374 = vmax.f32 %v330, 0.0
    %v375 = vmax.f32 %v333, 0.0
    %v376 = vmax.f32 %v338, 0.0
    %v377 = vmax.f32 %v341, 0.0
    %v378 = vmax.f32 %v346, 0.0
    %v379 = vmax.f32 %v349, 0.0
    %v380 = vmax.f32 %v354, 0.0
    %v381 = vmax.f32 %v357, 0.0
    %v382 = vmax.f32 %v362, 0.0
    %v383 = vmax.f32 %v365, 0.0
    %vm384 = vcmask 261120
    %385 = vst.msk [vmem:[#allocation2] sm:$0xff] %vm384, %v368
    %386 = vst.msk [vmem:[#allocation2 + $0x8] sm:$0xff] %vm384, %v369
    %387 = vst.msk [vmem:[#allocation2 + $0x10] sm:$0xff] %vm384, %v370
    %388 = vst.msk [vmem:[#allocation2 + $0x18] sm:$0xff] %vm384, %v371
    %389 = vst.msk [vmem:[#allocation2 + $0x20] sm:$0xff] %vm384, %v372
    %390 = vst.msk [vmem:[#allocation2 + $0x28] sm:$0xff] %vm384, %v373
    %391 = vst.msk [vmem:[#allocation2 + $0x30] sm:$0xff] %vm384, %v374
    %392 = vst.msk [vmem:[#allocation2 + $0x38] sm:$0xff] %vm384, %v375
    %s393 = scalar_lea.vmem [#allocation2], 64
    %394 = vst.msk [vmem:[%s393] sm:$0xff] %vm384, %v376
    %395 = vst.msk [vmem:[%s393 + $0x8] sm:$0xff] %vm384, %v377
    %396 = vst.msk [vmem:[%s393 + $0x10] sm:$0xff] %vm384, %v378
    %397 = vst.msk [vmem:[%s393 + $0x18] sm:$0xff] %vm384, %v379
    %398 = vst.msk [vmem:[%s393 + $0x20] sm:$0xff] %vm384, %v380
    %399 = vst.msk [vmem:[%s393 + $0x28] sm:$0xff] %vm384, %v381
    %400 = vst.msk [vmem:[%s393 + $0x30] sm:$0xff] %vm384, %v382
    %401 = vst.msk [vmem:[%s393 + $0x38] sm:$0xff] %vm384, %v383
    %v402 = vld [vmem:[#allocation2] sm:$0x1]
    %v403 = vld [vmem:[#allocation2 + $0x40] sm:$0x1]
    %v407 = vunpack.c.l.s4 1983009808
    %v408 = vunpack.c.0.s8 %v407
    %v409 = vlaneseq
    %v410 = vshrl.u32 %v409, 7
    %v411 = vsub.s32 %v408, %v410
    %v412 = vrot.slane %v402, %v411
    %v414 = vunpack.c.l.s4 1983009808
    %v415 = vunpack.c.0.s8 %v414
    %v416 = vlaneseq
    %v417 = vshrl.u32 %v416, 7
    %v418 = vsub.s32 %v415, %v417
    %v419 = vrot.slane %v403, %v418
    %vm420 = vcmask 1044484
    %v421 = vsel %vm420, %v412, %v412
    %vm422 = vcmask 1046534
    %v423 = vsel %vm422, %v412, %v421
    %v424 = vrot.slane %v419, 7
    %vm425 = vcmask 1041409
    %v426 = vsel %vm425, %v424, %v423
    %vm427 = vcmask 1043459
    %v428 = vsel %vm427, %v424, %v426
    %vm429 = vcmask 1045509
    %v430 = vsel %vm429, %v424, %v428
    %vm431 = vcmask 1047559
    %v432 = vsel %vm431, %v424, %v430
    %vm434 = vcmask 254976
    %435 = vst.msk [vmem:[#allocation3] sm:$0x3] %vm434, %v432
    %v436 = vld [vmem:[#allocation2 + $0x1] sm:$0x1]
    %v437 = vld [vmem:[#allocation2 + $0x41] sm:$0x1]
    %v441 = vunpack.c.l.s4 1983009808
    %v442 = vunpack.c.0.s8 %v441
    %v443 = vlaneseq
    %v444 = vshrl.u32 %v443, 7
    %v445 = vsub.s32 %v442, %v444
    %v446 = vrot.slane %v436, %v445
    %v448 = vunpack.c.l.s4 1983009808
    %v449 = vunpack.c.0.s8 %v448
    %v450 = vlaneseq
    %v451 = vshrl.u32 %v450, 7
    %v452 = vsub.s32 %v449, %v451
    %v453 = vrot.slane %v437, %v452
    %v454 = vsel %vm420, %v446, %v446
    %v455 = vsel %vm422, %v446, %v454
    %v456 = vrot.slane %v453, 7
    %v457 = vsel %vm425, %v456, %v455
    %v458 = vsel %vm427, %v456, %v457
    %v459 = vsel %vm429, %v456, %v458
    %v460 = vsel %vm431, %v456, %v459
    %461 = vrot.lane.b32.xlu0 %v460, 32
    %v462 = vpop.permute.xlu0 %461
    %vm464 = vcmask 517376
    %465 = vst.msk [vmem:[#allocation3] sm:$0x3] %vm464, %v462
    %v466 = vld [vmem:[#allocation2 + $0x2] sm:$0x1]
    %v467 = vld [vmem:[#allocation2 + $0x42] sm:$0x1]
    %v471 = vunpack.c.l.s4 1983009808
    %v472 = vunpack.c.0.s8 %v471
    %v473 = vlaneseq
    %v474 = vshrl.u32 %v473, 7
    %v475 = vsub.s32 %v472, %v474
    %v476 = vrot.slane %v466, %v475
    %v478 = vunpack.c.l.s4 1983009808
    %v479 = vunpack.c.0.s8 %v478
    %v480 = vlaneseq
    %v481 = vshrl.u32 %v480, 7
    %v482 = vsub.s32 %v479, %v481
    %v483 = vrot.slane %v467, %v482
    %v484 = vsel %vm420, %v476, %v476
    %v485 = vsel %vm422, %v476, %v484
    %v486 = vrot.slane %v483, 7
    %v487 = vsel %vm425, %v486, %v485
    %v488 = vsel %vm427, %v486, %v487
    %v489 = vsel %vm429, %v486, %v488
    %v490 = vsel %vm431, %v486, %v489
    %491 = vrot.lane.b32.xlu0 %v490, 64
    %v492 = vpop.permute.xlu0 %491
    %vm494 = vcmask 779776
    %495 = vst.msk [vmem:[#allocation3] sm:$0x3] %vm494, %v492
    %v496 = vld [vmem:[#allocation2 + $0x3] sm:$0x1]
    %v497 = vld [vmem:[#allocation2 + $0x43] sm:$0x1]
    %v501 = vunpack.c.l.s4 1983009808
    %v502 = vunpack.c.0.s8 %v501
    %v503 = vlaneseq
    %v504 = vshrl.u32 %v503, 7
    %v505 = vsub.s32 %v502, %v504
    %v506 = vrot.slane %v496, %v505
    %v508 = vunpack.c.l.s4 1983009808
    %v509 = vunpack.c.0.s8 %v508
    %v510 = vlaneseq
    %v511 = vshrl.u32 %v510, 7
    %v512 = vsub.s32 %v509, %v511
    %v513 = vrot.slane %v497, %v512
    %v514 = vsel %vm420, %v506, %v506
    %v515 = vsel %vm422, %v506, %v514
    %v516 = vrot.slane %v513, 7
    %v517 = vsel %vm425, %v516, %v515
    %v518 = vsel %vm427, %v516, %v517
    %v519 = vsel %vm429, %v516, %v518
    %v520 = vsel %vm431, %v516, %v519
    %521 = vrot.lane.b32.xlu0 %v520, 96
    %v522 = vpop.permute.xlu0 %521
    %vm524 = vcmask 1042176
    %525 = vst.msk [vmem:[#allocation3] sm:$0x3] %vm524, %v522
    %v526 = vld [vmem:[#allocation2 + $0x4] sm:$0x1]
    %v527 = vld [vmem:[#allocation2 + $0x44] sm:$0x1]
    %v531 = vunpack.c.l.s4 1983009808
    %v532 = vunpack.c.0.s8 %v531
    %v533 = vlaneseq
    %v534 = vshrl.u32 %v533, 7
    %v535 = vsub.s32 %v532, %v534
    %v536 = vrot.slane %v526, %v535
    %v538 = vunpack.c.l.s4 1983009808
    %v539 = vunpack.c.0.s8 %v538
    %v540 = vlaneseq
    %v541 = vshrl.u32 %v540, 7
    %v542 = vsub.s32 %v539, %v541
    %v543 = vrot.slane %v527, %v542
    %v544 = vsel %vm420, %v536, %v536
    %v545 = vsel %vm422, %v536, %v544
    %v546 = vrot.slane %v543, 7
    %v547 = vsel %vm425, %v546, %v545
    %v548 = vsel %vm427, %v546, %v547
    %v549 = vsel %vm429, %v546, %v548
    %v550 = vsel %vm431, %v546, %v549
    %552 = vst.msk [vmem:[#allocation3 + $0x2] sm:$0x3] %vm434, %v550
    %v553 = vld [vmem:[#allocation2 + $0x5] sm:$0x1]
    %v554 = vld [vmem:[#allocation2 + $0x45] sm:$0x1]
    %v558 = vunpack.c.l.s4 1983009808
    %v559 = vunpack.c.0.s8 %v558
    %v560 = vlaneseq
    %v561 = vshrl.u32 %v560, 7
    %v562 = vsub.s32 %v559, %v561
    %v563 = vrot.slane %v553, %v562
    %v565 = vunpack.c.l.s4 1983009808
    %v566 = vunpack.c.0.s8 %v565
    %v567 = vlaneseq
    %v568 = vshrl.u32 %v567, 7
    %v569 = vsub.s32 %v566, %v568
    %v570 = vrot.slane %v554, %v569
    %v571 = vsel %vm420, %v563, %v563
    %v572 = vsel %vm422, %v563, %v571
    %v573 = vrot.slane %v570, 7
    %v574 = vsel %vm425, %v573, %v572
    %v575 = vsel %vm427, %v573, %v574
    %v576 = vsel %vm429, %v573, %v575
    %v577 = vsel %vm431, %v573, %v576
    %578 = vrot.lane.b32.xlu0 %v577, 32
    %v579 = vpop.permute.xlu0 %578
    %581 = vst.msk [vmem:[#allocation3 + $0x2] sm:$0x3] %vm464, %v579
    %v582 = vld [vmem:[#allocation2 + $0x6] sm:$0x1]
    %v583 = vld [vmem:[#allocation2 + $0x46] sm:$0x1]
    %v587 = vunpack.c.l.s4 1983009808
    %v588 = vunpack.c.0.s8 %v587
    %v589 = vlaneseq
    %v590 = vshrl.u32 %v589, 7
    %v591 = vsub.s32 %v588, %v590
    %v592 = vrot.slane %v582, %v591
    %v594 = vunpack.c.l.s4 1983009808
    %v595 = vunpack.c.0.s8 %v594
    %v596 = vlaneseq
    %v597 = vshrl.u32 %v596, 7
    %v598 = vsub.s32 %v595, %v597
    %v599 = vrot.slane %v583, %v598
    %v600 = vsel %vm420, %v592, %v592
    %v601 = vsel %vm422, %v592, %v600
    %v602 = vrot.slane %v599, 7
    %v603 = vsel %vm425, %v602, %v601
    %v604 = vsel %vm427, %v602, %v603
    %v605 = vsel %vm429, %v602, %v604
    %v606 = vsel %vm431, %v602, %v605
    %607 = vrot.lane.b32.xlu0 %v606, 64
    %v608 = vpop.permute.xlu0 %607
    %610 = vst.msk [vmem:[#allocation3 + $0x2] sm:$0x3] %vm494, %v608
    %v611 = vld [vmem:[#allocation2 + $0x7] sm:$0x1]
    %v612 = vld [vmem:[#allocation2 + $0x47] sm:$0x1]
    %v616 = vunpack.c.l.s4 1983009808
    %v617 = vunpack.c.0.s8 %v616
    %v618 = vlaneseq
    %v619 = vshrl.u32 %v618, 7
    %v620 = vsub.s32 %v617, %v619
    %v621 = vrot.slane %v611, %v620
    %v623 = vunpack.c.l.s4 1983009808
    %v624 = vunpack.c.0.s8 %v623
    %v625 = vlaneseq
    %v626 = vshrl.u32 %v625, 7
    %v627 = vsub.s32 %v624, %v626
    %v628 = vrot.slane %v612, %v627
    %v629 = vsel %vm420, %v621, %v621
    %v630 = vsel %vm422, %v621, %v629
    %v631 = vrot.slane %v628, 7
    %v632 = vsel %vm425, %v631, %v630
    %v633 = vsel %vm427, %v631, %v632
    %v634 = vsel %vm429, %v631, %v633
    %v635 = vsel %vm431, %v631, %v634
    %636 = vrot.lane.b32.xlu0 %v635, 96
    %v637 = vpop.permute.xlu0 %636
    %639 = vst.msk [vmem:[#allocation3 + $0x2] sm:$0x3] %vm524, %v637
    %v640 = vld [vmem:[#allocation2 + $0x8] sm:$0x1]
    %v641 = vld [vmem:[#allocation2 + $0x48] sm:$0x1]
    %v645 = vunpack.c.l.s4 1983009808
    %v646 = vunpack.c.0.s8 %v645
    %v647 = vlaneseq
    %v648 = vshrl.u32 %v647, 7
    %v649 = vsub.s32 %v646, %v648
    %v650 = vrot.slane %v640, %v649
    %v652 = vunpack.c.l.s4 1983009808
    %v653 = vunpack.c.0.s8 %v652
    %v654 = vlaneseq
    %v655 = vshrl.u32 %v654, 7
    %v656 = vsub.s32 %v653, %v655
    %v657 = vrot.slane %v641, %v656
    %v658 = vsel %vm420, %v650, %v650
    %v659 = vsel %vm422, %v650, %v658
    %v660 = vrot.slane %v657, 7
    %v661 = vsel %vm425, %v660, %v659
    %v662 = vsel %vm427, %v660, %v661
    %v663 = vsel %vm429, %v660, %v662
    %v664 = vsel %vm431, %v660, %v663
    %666 = vst.msk [vmem:[#allocation3 + $0x4] sm:$0x3] %vm434, %v664
    %v667 = vld [vmem:[#allocation2 + $0x9] sm:$0x1]
    %v668 = vld [vmem:[#allocation2 + $0x49] sm:$0x1]
    %v672 = vunpack.c.l.s4 1983009808
    %v673 = vunpack.c.0.s8 %v672
    %v674 = vlaneseq
    %v675 = vshrl.u32 %v674, 7
    %v676 = vsub.s32 %v673, %v675
    %v677 = vrot.slane %v667, %v676
    %v679 = vunpack.c.l.s4 1983009808
    %v680 = vunpack.c.0.s8 %v679
    %v681 = vlaneseq
    %v682 = vshrl.u32 %v681, 7
    %v683 = vsub.s32 %v680, %v682
    %v684 = vrot.slane %v668, %v683
    %v685 = vsel %vm420, %v677, %v677
    %v686 = vsel %vm422, %v677, %v685
    %v687 = vrot.slane %v684, 7
    %v688 = vsel %vm425, %v687, %v686
    %v689 = vsel %vm427, %v687, %v688
    %v690 = vsel %vm429, %v687, %v689
    %v691 = vsel %vm431, %v687, %v690
    %692 = vrot.lane.b32.xlu0 %v691, 32
    %v693 = vpop.permute.xlu0 %692
    %695 = vst.msk [vmem:[#allocation3 + $0x4] sm:$0x3] %vm464, %v693
    %v696 = vld [vmem:[#allocation2 + $0xa] sm:$0x1]
    %v697 = vld [vmem:[#allocation2 + $0x4a] sm:$0x1]
    %v701 = vunpack.c.l.s4 1983009808
    %v702 = vunpack.c.0.s8 %v701
    %v703 = vlaneseq
    %v704 = vshrl.u32 %v703, 7
    %v705 = vsub.s32 %v702, %v704
    %v706 = vrot.slane %v696, %v705
    %v708 = vunpack.c.l.s4 1983009808
    %v709 = vunpack.c.0.s8 %v708
    %v710 = vlaneseq
    %v711 = vshrl.u32 %v710, 7
    %v712 = vsub.s32 %v709, %v711
    %v713 = vrot.slane %v697, %v712
    %v714 = vsel %vm420, %v706, %v706
    %v715 = vsel %vm422, %v706, %v714
    %v716 = vrot.slane %v713, 7
    %v717 = vsel %vm425, %v716, %v715
    %v718 = vsel %vm427, %v716, %v717
    %v719 = vsel %vm429, %v716, %v718
    %v720 = vsel %vm431, %v716, %v719
    %721 = vrot.lane.b32.xlu0 %v720, 64
    %v722 = vpop.permute.xlu0 %721
    %724 = vst.msk [vmem:[#allocation3 + $0x4] sm:$0x3] %vm494, %v722
    %v725 = vld [vmem:[#allocation2 + $0xb] sm:$0x1]
    %v726 = vld [vmem:[#allocation2 + $0x4b] sm:$0x1]
    %v730 = vunpack.c.l.s4 1983009808
    %v731 = vunpack.c.0.s8 %v730
    %v732 = vlaneseq
    %v733 = vshrl.u32 %v732, 7
    %v734 = vsub.s32 %v731, %v733
    %v735 = vrot.slane %v725, %v734
    %v737 = vunpack.c.l.s4 1983009808
    %v738 = vunpack.c.0.s8 %v737
    %v739 = vlaneseq
    %v740 = vshrl.u32 %v739, 7
    %v741 = vsub.s32 %v738, %v740
    %v742 = vrot.slane %v726, %v741
    %v743 = vsel %vm420, %v735, %v735
    %v744 = vsel %vm422, %v735, %v743
    %v745 = vrot.slane %v742, 7
    %v746 = vsel %vm425, %v745, %v744
    %v747 = vsel %vm427, %v745, %v746
    %v748 = vsel %vm429, %v745, %v747
    %v749 = vsel %vm431, %v745, %v748
    %750 = vrot.lane.b32.xlu0 %v749, 96
    %v751 = vpop.permute.xlu0 %750
    %753 = vst.msk [vmem:[#allocation3 + $0x4] sm:$0x3] %vm524, %v751
    %v754 = vld [vmem:[#allocation2 + $0xc] sm:$0x1]
    %v755 = vld [vmem:[#allocation2 + $0x4c] sm:$0x1]
    %v759 = vunpack.c.l.s4 1983009808
    %v760 = vunpack.c.0.s8 %v759
    %v761 = vlaneseq
    %v762 = vshrl.u32 %v761, 7
    %v763 = vsub.s32 %v760, %v762
    %v764 = vrot.slane %v754, %v763
    %v766 = vunpack.c.l.s4 1983009808
    %v767 = vunpack.c.0.s8 %v766
    %v768 = vlaneseq
    %v769 = vshrl.u32 %v768, 7
    %v770 = vsub.s32 %v767, %v769
    %v771 = vrot.slane %v755, %v770
    %v772 = vsel %vm420, %v764, %v764
    %v773 = vsel %vm422, %v764, %v772
    %v774 = vrot.slane %v771, 7
    %v775 = vsel %vm425, %v774, %v773
    %v776 = vsel %vm427, %v774, %v775
    %v777 = vsel %vm429, %v774, %v776
    %v778 = vsel %vm431, %v774, %v777
    %780 = vst.msk [vmem:[#allocation3 + $0x6] sm:$0x3] %vm434, %v778
    %v781 = vld [vmem:[#allocation2 + $0xd] sm:$0x1]
    %v782 = vld [vmem:[#allocation2 + $0x4d] sm:$0x1]
    %v786 = vunpack.c.l.s4 1983009808
    %v787 = vunpack.c.0.s8 %v786
    %v788 = vlaneseq
    %v789 = vshrl.u32 %v788, 7
    %v790 = vsub.s32 %v787, %v789
    %v791 = vrot.slane %v781, %v790
    %v793 = vunpack.c.l.s4 1983009808
    %v794 = vunpack.c.0.s8 %v793
    %v795 = vlaneseq
    %v796 = vshrl.u32 %v795, 7
    %v797 = vsub.s32 %v794, %v796
    %v798 = vrot.slane %v782, %v797
    %v799 = vsel %vm420, %v791, %v791
    %v800 = vsel %vm422, %v791, %v799
    %v801 = vrot.slane %v798, 7
    %v802 = vsel %vm425, %v801, %v800
    %v803 = vsel %vm427, %v801, %v802
    %v804 = vsel %vm429, %v801, %v803
    %v805 = vsel %vm431, %v801, %v804
    %806 = vrot.lane.b32.xlu0 %v805, 32
    %v807 = vpop.permute.xlu0 %806
    %809 = vst.msk [vmem:[#allocation3 + $0x6] sm:$0x3] %vm464, %v807
    %v810 = vld [vmem:[#allocation2 + $0xe] sm:$0x1]
    %v811 = vld [vmem:[#allocation2 + $0x4e] sm:$0x1]
    %v815 = vunpack.c.l.s4 1983009808
    %v816 = vunpack.c.0.s8 %v815
    %v817 = vlaneseq
    %v818 = vshrl.u32 %v817, 7
    %v819 = vsub.s32 %v816, %v818
    %v820 = vrot.slane %v810, %v819
    %v822 = vunpack.c.l.s4 1983009808
    %v823 = vunpack.c.0.s8 %v822
    %v824 = vlaneseq
    %v825 = vshrl.u32 %v824, 7
    %v826 = vsub.s32 %v823, %v825
    %v827 = vrot.slane %v811, %v826
    %v828 = vsel %vm420, %v820, %v820
    %v829 = vsel %vm422, %v820, %v828
    %v830 = vrot.slane %v827, 7
    %v831 = vsel %vm425, %v830, %v829
    %v832 = vsel %vm427, %v830, %v831
    %v833 = vsel %vm429, %v830, %v832
    %v834 = vsel %vm431, %v830, %v833
    %835 = vrot.lane.b32.xlu0 %v834, 64
    %v836 = vpop.permute.xlu0 %835
    %838 = vst.msk [vmem:[#allocation3 + $0x6] sm:$0x3] %vm494, %v836
    %v839 = vld [vmem:[#allocation2 + $0xf] sm:$0x1]
    %v840 = vld [vmem:[#allocation2 + $0x4f] sm:$0x1]
    %v844 = vunpack.c.l.s4 1983009808
    %v845 = vunpack.c.0.s8 %v844
    %v846 = vlaneseq
    %v847 = vshrl.u32 %v846, 7
    %v848 = vsub.s32 %v845, %v847
    %v849 = vrot.slane %v839, %v848
    %v851 = vunpack.c.l.s4 1983009808
    %v852 = vunpack.c.0.s8 %v851
    %v853 = vlaneseq
    %v854 = vshrl.u32 %v853, 7
    %v855 = vsub.s32 %v852, %v854
    %v856 = vrot.slane %v840, %v855
    %v857 = vsel %vm420, %v849, %v849
    %v858 = vsel %vm422, %v849, %v857
    %v859 = vrot.slane %v856, 7
    %v860 = vsel %vm425, %v859, %v858
    %v861 = vsel %vm427, %v859, %v860
    %v862 = vsel %vm429, %v859, %v861
    %v863 = vsel %vm431, %v859, %v862
    %864 = vrot.lane.b32.xlu0 %v863, 96
    %v865 = vpop.permute.xlu0 %864
    %867 = vst.msk [vmem:[#allocation3 + $0x6] sm:$0x3] %vm524, %v865
    %v868 = vld [vmem:[#allocation2 + $0x10] sm:$0x1]
    %v869 = vld [vmem:[#allocation2 + $0x50] sm:$0x1]
    %v873 = vunpack.c.l.s4 1983009808
    %v874 = vunpack.c.0.s8 %v873
    %v875 = vlaneseq
    %v876 = vshrl.u32 %v875, 7
    %v877 = vsub.s32 %v874, %v876
    %v878 = vrot.slane %v868, %v877
    %v880 = vunpack.c.l.s4 1983009808
    %v881 = vunpack.c.0.s8 %v880
    %v882 = vlaneseq
    %v883 = vshrl.u32 %v882, 7
    %v884 = vsub.s32 %v881, %v883
    %v885 = vrot.slane %v869, %v884
    %v886 = vsel %vm420, %v878, %v878
    %v887 = vsel %vm422, %v878, %v886
    %v888 = vrot.slane %v885, 7
    %v889 = vsel %vm425, %v888, %v887
    %v890 = vsel %vm427, %v888, %v889
    %v891 = vsel %vm429, %v888, %v890
    %v892 = vsel %vm431, %v888, %v891
    %894 = vst.msk [vmem:[#allocation3 + $0x8] sm:$0x3] %vm434, %v892
    %v895 = vld [vmem:[#allocation2 + $0x11] sm:$0x1]
    %v896 = vld [vmem:[#allocation2 + $0x51] sm:$0x1]
    %v900 = vunpack.c.l.s4 1983009808
    %v901 = vunpack.c.0.s8 %v900
    %v902 = vlaneseq
    %v903 = vshrl.u32 %v902, 7
    %v904 = vsub.s32 %v901, %v903
    %v905 = vrot.slane %v895, %v904
    %v907 = vunpack.c.l.s4 1983009808
    %v908 = vunpack.c.0.s8 %v907
    %v909 = vlaneseq
    %v910 = vshrl.u32 %v909, 7
    %v911 = vsub.s32 %v908, %v910
    %v912 = vrot.slane %v896, %v911
    %v913 = vsel %vm420, %v905, %v905
    %v914 = vsel %vm422, %v905, %v913
    %v915 = vrot.slane %v912, 7
    %v916 = vsel %vm425, %v915, %v914
    %v917 = vsel %vm427, %v915, %v916
    %v918 = vsel %vm429, %v915, %v917
    %v919 = vsel %vm431, %v915, %v918
    %920 = vrot.lane.b32.xlu0 %v919, 32
    %v921 = vpop.permute.xlu0 %920
    %923 = vst.msk [vmem:[#allocation3 + $0x8] sm:$0x3] %vm464, %v921
    %v924 = vld [vmem:[#allocation2 + $0x12] sm:$0x1]
    %v925 = vld [vmem:[#allocation2 + $0x52] sm:$0x1]
    %v929 = vunpack.c.l.s4 1983009808
    %v930 = vunpack.c.0.s8 %v929
    %v931 = vlaneseq
    %v932 = vshrl.u32 %v931, 7
    %v933 = vsub.s32 %v930, %v932
    %v934 = vrot.slane %v924, %v933
    %v936 = vunpack.c.l.s4 1983009808
    %v937 = vunpack.c.0.s8 %v936
    %v938 = vlaneseq
    %v939 = vshrl.u32 %v938, 7
    %v940 = vsub.s32 %v937, %v939
    %v941 = vrot.slane %v925, %v940
    %v942 = vsel %vm420, %v934, %v934
    %v943 = vsel %vm422, %v934, %v942
    %v944 = vrot.slane %v941, 7
    %v945 = vsel %vm425, %v944, %v943
    %v946 = vsel %vm427, %v944, %v945
    %v947 = vsel %vm429, %v944, %v946
    %v948 = vsel %vm431, %v944, %v947
    %949 = vrot.lane.b32.xlu0 %v948, 64
    %v950 = vpop.permute.xlu0 %949
    %952 = vst.msk [vmem:[#allocation3 + $0x8] sm:$0x3] %vm494, %v950
    %v953 = vld [vmem:[#allocation2 + $0x13] sm:$0x1]
    %v954 = vld [vmem:[#allocation2 + $0x53] sm:$0x1]
    %v958 = vunpack.c.l.s4 1983009808
    %v959 = vunpack.c.0.s8 %v958
    %v960 = vlaneseq
    %v961 = vshrl.u32 %v960, 7
    %v962 = vsub.s32 %v959, %v961
    %v963 = vrot.slane %v953, %v962
    %v965 = vunpack.c.l.s4 1983009808
    %v966 = vunpack.c.0.s8 %v965
    %v967 = vlaneseq
    %v968 = vshrl.u32 %v967, 7
    %v969 = vsub.s32 %v966, %v968
    %v970 = vrot.slane %v954, %v969
    %v971 = vsel %vm420, %v963, %v963
    %v972 = vsel %vm422, %v963, %v971
    %v973 = vrot.slane %v970, 7
    %v974 = vsel %vm425, %v973, %v972
    %v975 = vsel %vm427, %v973, %v974
    %v976 = vsel %vm429, %v973, %v975
    %v977 = vsel %vm431, %v973, %v976
    %978 = vrot.lane.b32.xlu0 %v977, 96
    %v979 = vpop.permute.xlu0 %978
    %981 = vst.msk [vmem:[#allocation3 + $0x8] sm:$0x3] %vm524, %v979
    %v982 = vld [vmem:[#allocation2 + $0x14] sm:$0x1]
    %v983 = vld [vmem:[#allocation2 + $0x54] sm:$0x1]
    %v987 = vunpack.c.l.s4 1983009808
    %v988 = vunpack.c.0.s8 %v987
    %v989 = vlaneseq
    %v990 = vshrl.u32 %v989, 7
    %v991 = vsub.s32 %v988, %v990
    %v992 = vrot.slane %v982, %v991
    %v994 = vunpack.c.l.s4 1983009808
    %v995 = vunpack.c.0.s8 %v994
    %v996 = vlaneseq
    %v997 = vshrl.u32 %v996, 7
    %v998 = vsub.s32 %v995, %v997
    %v999 = vrot.slane %v983, %v998
    %v1000 = vsel %vm420, %v992, %v992
    %v1001 = vsel %vm422, %v992, %v1000
    %v1002 = vrot.slane %v999, 7
    %v1003 = vsel %vm425, %v1002, %v1001
    %v1004 = vsel %vm427, %v1002, %v1003
    %v1005 = vsel %vm429, %v1002, %v1004
    %v1006 = vsel %vm431, %v1002, %v1005
    %1008 = vst.msk [vmem:[#allocation3 + $0xa] sm:$0x3] %vm434, %v1006
    %v1009 = vld [vmem:[#allocation2 + $0x15] sm:$0x1]
    %v1010 = vld [vmem:[#allocation2 + $0x55] sm:$0x1]
    %v1014 = vunpack.c.l.s4 1983009808
    %v1015 = vunpack.c.0.s8 %v1014
    %v1016 = vlaneseq
    %v1017 = vshrl.u32 %v1016, 7
    %v1018 = vsub.s32 %v1015, %v1017
    %v1019 = vrot.slane %v1009, %v1018
    %v1021 = vunpack.c.l.s4 1983009808
    %v1022 = vunpack.c.0.s8 %v1021
    %v1023 = vlaneseq
    %v1024 = vshrl.u32 %v1023, 7
    %v1025 = vsub.s32 %v1022, %v1024
    %v1026 = vrot.slane %v1010, %v1025
    %v1027 = vsel %vm420, %v1019, %v1019
    %v1028 = vsel %vm422, %v1019, %v1027
    %v1029 = vrot.slane %v1026, 7
    %v1030 = vsel %vm425, %v1029, %v1028
    %v1031 = vsel %vm427, %v1029, %v1030
    %v1032 = vsel %vm429, %v1029, %v1031
    %v1033 = vsel %vm431, %v1029, %v1032
    %1034 = vrot.lane.b32.xlu0 %v1033, 32
    %v1035 = vpop.permute.xlu0 %1034
    %1037 = vst.msk [vmem:[#allocation3 + $0xa] sm:$0x3] %vm464, %v1035
    %v1038 = vld [vmem:[#allocation2 + $0x16] sm:$0x1]
    %v1039 = vld [vmem:[#allocation2 + $0x56] sm:$0x1]
    %v1043 = vunpack.c.l.s4 1983009808
    %v1044 = vunpack.c.0.s8 %v1043
    %v1045 = vlaneseq
    %v1046 = vshrl.u32 %v1045, 7
    %v1047 = vsub.s32 %v1044, %v1046
    %v1048 = vrot.slane %v1038, %v1047
    %v1050 = vunpack.c.l.s4 1983009808
    %v1051 = vunpack.c.0.s8 %v1050
    %v1052 = vlaneseq
    %v1053 = vshrl.u32 %v1052, 7
    %v1054 = vsub.s32 %v1051, %v1053
    %v1055 = vrot.slane %v1039, %v1054
    %v1056 = vsel %vm420, %v1048, %v1048
    %v1057 = vsel %vm422, %v1048, %v1056
    %v1058 = vrot.slane %v1055, 7
    %v1059 = vsel %vm425, %v1058, %v1057
    %v1060 = vsel %vm427, %v1058, %v1059
    %v1061 = vsel %vm429, %v1058, %v1060
    %v1062 = vsel %vm431, %v1058, %v1061
    %1063 = vrot.lane.b32.xlu0 %v1062, 64
    %v1064 = vpop.permute.xlu0 %1063
    %1066 = vst.msk [vmem:[#allocation3 + $0xa] sm:$0x3] %vm494, %v1064
    %v1067 = vld [vmem:[#allocation2 + $0x17] sm:$0x1]
    %v1068 = vld [vmem:[#allocation2 + $0x57] sm:$0x1]
    %v1072 = vunpack.c.l.s4 1983009808
    %v1073 = vunpack.c.0.s8 %v1072
    %v1074 = vlaneseq
    %v1075 = vshrl.u32 %v1074, 7
    %v1076 = vsub.s32 %v1073, %v1075
    %v1077 = vrot.slane %v1067, %v1076
    %v1079 = vunpack.c.l.s4 1983009808
    %v1080 = vunpack.c.0.s8 %v1079
    %v1081 = vlaneseq
    %v1082 = vshrl.u32 %v1081, 7
    %v1083 = vsub.s32 %v1080, %v1082
    %v1084 = vrot.slane %v1068, %v1083
    %v1085 = vsel %vm420, %v1077, %v1077
    %v1086 = vsel %vm422, %v1077, %v1085
    %v1087 = vrot.slane %v1084, 7
    %v1088 = vsel %vm425, %v1087, %v1086
    %v1089 = vsel %vm427, %v1087, %v1088
    %v1090 = vsel %vm429, %v1087, %v1089
    %v1091 = vsel %vm431, %v1087, %v1090
    %1092 = vrot.lane.b32.xlu0 %v1091, 96
    %v1093 = vpop.permute.xlu0 %1092
    %1095 = vst.msk [vmem:[#allocation3 + $0xa] sm:$0x3] %vm524, %v1093
    %v1096 = vld [vmem:[#allocation2 + $0x18] sm:$0x1]
    %v1097 = vld [vmem:[#allocation2 + $0x58] sm:$0x1]
    %v1101 = vunpack.c.l.s4 1983009808
    %v1102 = vunpack.c.0.s8 %v1101
    %v1103 = vlaneseq
    %v1104 = vshrl.u32 %v1103, 7
    %v1105 = vsub.s32 %v1102, %v1104
    %v1106 = vrot.slane %v1096, %v1105
    %v1108 = vunpack.c.l.s4 1983009808
    %v1109 = vunpack.c.0.s8 %v1108
    %v1110 = vlaneseq
    %v1111 = vshrl.u32 %v1110, 7
    %v1112 = vsub.s32 %v1109, %v1111
    %v1113 = vrot.slane %v1097, %v1112
    %v1114 = vsel %vm420, %v1106, %v1106
    %v1115 = vsel %vm422, %v1106, %v1114
    %v1116 = vrot.slane %v1113, 7
    %v1117 = vsel %vm425, %v1116, %v1115
    %v1118 = vsel %vm427, %v1116, %v1117
    %v1119 = vsel %vm429, %v1116, %v1118
    %v1120 = vsel %vm431, %v1116, %v1119
    %1122 = vst.msk [vmem:[#allocation3 + $0xc] sm:$0x3] %vm434, %v1120
    %v1123 = vld [vmem:[#allocation2 + $0x19] sm:$0x1]
    %v1124 = vld [vmem:[#allocation2 + $0x59] sm:$0x1]
    %v1128 = vunpack.c.l.s4 1983009808
    %v1129 = vunpack.c.0.s8 %v1128
    %v1130 = vlaneseq
    %v1131 = vshrl.u32 %v1130, 7
    %v1132 = vsub.s32 %v1129, %v1131
    %v1133 = vrot.slane %v1123, %v1132
    %v1135 = vunpack.c.l.s4 1983009808
    %v1136 = vunpack.c.0.s8 %v1135
    %v1137 = vlaneseq
    %v1138 = vshrl.u32 %v1137, 7
    %v1139 = vsub.s32 %v1136, %v1138
    %v1140 = vrot.slane %v1124, %v1139
    %v1141 = vsel %vm420, %v1133, %v1133
    %v1142 = vsel %vm422, %v1133, %v1141
    %v1143 = vrot.slane %v1140, 7
    %v1144 = vsel %vm425, %v1143, %v1142
    %v1145 = vsel %vm427, %v1143, %v1144
    %v1146 = vsel %vm429, %v1143, %v1145
    %v1147 = vsel %vm431, %v1143, %v1146
    %1148 = vrot.lane.b32.xlu0 %v1147, 32
    %v1149 = vpop.permute.xlu0 %1148
    %1151 = vst.msk [vmem:[#allocation3 + $0xc] sm:$0x3] %vm464, %v1149
    %v1152 = vld [vmem:[#allocation2 + $0x1a] sm:$0x1]
    %v1153 = vld [vmem:[#allocation2 + $0x5a] sm:$0x1]
    %v1157 = vunpack.c.l.s4 1983009808
    %v1158 = vunpack.c.0.s8 %v1157
    %v1159 = vlaneseq
    %v1160 = vshrl.u32 %v1159, 7
    %v1161 = vsub.s32 %v1158, %v1160
    %v1162 = vrot.slane %v1152, %v1161
    %v1164 = vunpack.c.l.s4 1983009808
    %v1165 = vunpack.c.0.s8 %v1164
    %v1166 = vlaneseq
    %v1167 = vshrl.u32 %v1166, 7
    %v1168 = vsub.s32 %v1165, %v1167
    %v1169 = vrot.slane %v1153, %v1168
    %v1170 = vsel %vm420, %v1162, %v1162
    %v1171 = vsel %vm422, %v1162, %v1170
    %v1172 = vrot.slane %v1169, 7
    %v1173 = vsel %vm425, %v1172, %v1171
    %v1174 = vsel %vm427, %v1172, %v1173
    %v1175 = vsel %vm429, %v1172, %v1174
    %v1176 = vsel %vm431, %v1172, %v1175
    %1177 = vrot.lane.b32.xlu0 %v1176, 64
    %v1178 = vpop.permute.xlu0 %1177
    %1180 = vst.msk [vmem:[#allocation3 + $0xc] sm:$0x3] %vm494, %v1178
    %v1181 = vld [vmem:[#allocation2 + $0x1b] sm:$0x1]
    %v1182 = vld [vmem:[#allocation2 + $0x5b] sm:$0x1]
    %v1186 = vunpack.c.l.s4 1983009808
    %v1187 = vunpack.c.0.s8 %v1186
    %v1188 = vlaneseq
    %v1189 = vshrl.u32 %v1188, 7
    %v1190 = vsub.s32 %v1187, %v1189
    %v1191 = vrot.slane %v1181, %v1190
    %v1193 = vunpack.c.l.s4 1983009808
    %v1194 = vunpack.c.0.s8 %v1193
    %v1195 = vlaneseq
    %v1196 = vshrl.u32 %v1195, 7
    %v1197 = vsub.s32 %v1194, %v1196
    %v1198 = vrot.slane %v1182, %v1197
    %v1199 = vsel %vm420, %v1191, %v1191
    %v1200 = vsel %vm422, %v1191, %v1199
    %v1201 = vrot.slane %v1198, 7
    %v1202 = vsel %vm425, %v1201, %v1200
    %v1203 = vsel %vm427, %v1201, %v1202
    %v1204 = vsel %vm429, %v1201, %v1203
    %v1205 = vsel %vm431, %v1201, %v1204
    %1206 = vrot.lane.b32.xlu0 %v1205, 96
    %v1207 = vpop.permute.xlu0 %1206
    %1209 = vst.msk [vmem:[#allocation3 + $0xc] sm:$0x3] %vm524, %v1207
    %v1210 = vld [vmem:[#allocation2 + $0x1c] sm:$0x1]
    %v1211 = vld [vmem:[#allocation2 + $0x5c] sm:$0x1]
    %v1215 = vunpack.c.l.s4 1983009808
    %v1216 = vunpack.c.0.s8 %v1215
    %v1217 = vlaneseq
    %v1218 = vshrl.u32 %v1217, 7
    %v1219 = vsub.s32 %v1216, %v1218
    %v1220 = vrot.slane %v1210, %v1219
    %v1222 = vunpack.c.l.s4 1983009808
    %v1223 = vunpack.c.0.s8 %v1222
    %v1224 = vlaneseq
    %v1225 = vshrl.u32 %v1224, 7
    %v1226 = vsub.s32 %v1223, %v1225
    %v1227 = vrot.slane %v1211, %v1226
    %v1228 = vsel %vm420, %v1220, %v1220
    %v1229 = vsel %vm422, %v1220, %v1228
    %v1230 = vrot.slane %v1227, 7
    %v1231 = vsel %vm425, %v1230, %v1229
    %v1232 = vsel %vm427, %v1230, %v1231
    %v1233 = vsel %vm429, %v1230, %v1232
    %v1234 = vsel %vm431, %v1230, %v1233
    %1236 = vst.msk [vmem:[#allocation3 + $0xe] sm:$0x3] %vm434, %v1234
    %v1237 = vld [vmem:[#allocation2 + $0x1d] sm:$0x1]
    %v1238 = vld [vmem:[#allocation2 + $0x5d] sm:$0x1]
    %v1242 = vunpack.c.l.s4 1983009808
    %v1243 = vunpack.c.0.s8 %v1242
    %v1244 = vlaneseq
    %v1245 = vshrl.u32 %v1244, 7
    %v1246 = vsub.s32 %v1243, %v1245
    %v1247 = vrot.slane %v1237, %v1246
    %v1249 = vunpack.c.l.s4 1983009808
    %v1250 = vunpack.c.0.s8 %v1249
    %v1251 = vlaneseq
    %v1252 = vshrl.u32 %v1251, 7
    %v1253 = vsub.s32 %v1250, %v1252
    %v1254 = vrot.slane %v1238, %v1253
    %v1255 = vsel %vm420, %v1247, %v1247
    %v1256 = vsel %vm422, %v1247, %v1255
    %v1257 = vrot.slane %v1254, 7
    %v1258 = vsel %vm425, %v1257, %v1256
    %v1259 = vsel %vm427, %v1257, %v1258
    %v1260 = vsel %vm429, %v1257, %v1259
    %v1261 = vsel %vm431, %v1257, %v1260
    %1262 = vrot.lane.b32.xlu0 %v1261, 32
    %v1263 = vpop.permute.xlu0 %1262
    %1265 = vst.msk [vmem:[#allocation3 + $0xe] sm:$0x3] %vm464, %v1263
    %v1266 = vld [vmem:[#allocation2 + $0x1e] sm:$0x1]
    %v1267 = vld [vmem:[#allocation2 + $0x5e] sm:$0x1]
    %v1271 = vunpack.c.l.s4 1983009808
    %v1272 = vunpack.c.0.s8 %v1271
    %v1273 = vlaneseq
    %v1274 = vshrl.u32 %v1273, 7
    %v1275 = vsub.s32 %v1272, %v1274
    %v1276 = vrot.slane %v1266, %v1275
    %v1278 = vunpack.c.l.s4 1983009808
    %v1279 = vunpack.c.0.s8 %v1278
    %v1280 = vlaneseq
    %v1281 = vshrl.u32 %v1280, 7
    %v1282 = vsub.s32 %v1279, %v1281
    %v1283 = vrot.slane %v1267, %v1282
    %v1284 = vsel %vm420, %v1276, %v1276
    %v1285 = vsel %vm422, %v1276, %v1284
    %v1286 = vrot.slane %v1283, 7
    %v1287 = vsel %vm425, %v1286, %v1285
    %v1288 = vsel %vm427, %v1286, %v1287
    %v1289 = vsel %vm429, %v1286, %v1288
    %v1290 = vsel %vm431, %v1286, %v1289
    %1291 = vrot.lane.b32.xlu0 %v1290, 64
    %v1292 = vpop.permute.xlu0 %1291
    %1294 = vst.msk [vmem:[#allocation3 + $0xe] sm:$0x3] %vm494, %v1292
    %v1295 = vld [vmem:[#allocation2 + $0x1f] sm:$0x1]
    %v1296 = vld [vmem:[#allocation2 + $0x5f] sm:$0x1]
    %v1300 = vunpack.c.l.s4 1983009808
    %v1301 = vunpack.c.0.s8 %v1300
    %v1302 = vlaneseq
    %v1303 = vshrl.u32 %v1302, 7
    %v1304 = vsub.s32 %v1301, %v1303
    %v1305 = vrot.slane %v1295, %v1304
    %v1307 = vunpack.c.l.s4 1983009808
    %v1308 = vunpack.c.0.s8 %v1307
    %v1309 = vlaneseq
    %v1310 = vshrl.u32 %v1309, 7
    %v1311 = vsub.s32 %v1308, %v1310
    %v1312 = vrot.slane %v1296, %v1311
    %v1313 = vsel %vm420, %v1305, %v1305
    %v1314 = vsel %vm422, %v1305, %v1313
    %v1315 = vrot.slane %v1312, 7
    %v1316 = vsel %vm425, %v1315, %v1314
    %v1317 = vsel %vm427, %v1315, %v1316
    %v1318 = vsel %vm429, %v1315, %v1317
    %v1319 = vsel %vm431, %v1315, %v1318
    %1320 = vrot.lane.b32.xlu0 %v1319, 96
    %v1321 = vpop.permute.xlu0 %1320
    %1323 = vst.msk [vmem:[#allocation3 + $0xe] sm:$0x3] %vm524, %v1321
    %v1324 = vld [vmem:[#allocation2 + $0x20] sm:$0x1]
    %v1325 = vld [vmem:[#allocation2 + $0x60] sm:$0x1]
    %v1329 = vunpack.c.l.s4 1983009808
    %v1330 = vunpack.c.0.s8 %v1329
    %v1331 = vlaneseq
    %v1332 = vshrl.u32 %v1331, 7
    %v1333 = vsub.s32 %v1330, %v1332
    %v1334 = vrot.slane %v1324, %v1333
    %v1336 = vunpack.c.l.s4 1983009808
    %v1337 = vunpack.c.0.s8 %v1336
    %v1338 = vlaneseq
    %v1339 = vshrl.u32 %v1338, 7
    %v1340 = vsub.s32 %v1337, %v1339
    %v1341 = vrot.slane %v1325, %v1340
    %v1342 = vsel %vm420, %v1334, %v1334
    %v1343 = vsel %vm422, %v1334, %v1342
    %v1344 = vrot.slane %v1341, 7
    %v1345 = vsel %vm425, %v1344, %v1343
    %v1346 = vsel %vm427, %v1344, %v1345
    %v1347 = vsel %vm429, %v1344, %v1346
    %v1348 = vsel %vm431, %v1344, %v1347
    %1350 = vst.msk [vmem:[#allocation3 + $0x10] sm:$0x3] %vm434, %v1348
    %v1351 = vld [vmem:[#allocation2 + $0x21] sm:$0x1]
    %v1352 = vld [vmem:[#allocation2 + $0x61] sm:$0x1]
    %v1356 = vunpack.c.l.s4 1983009808
    %v1357 = vunpack.c.0.s8 %v1356
    %v1358 = vlaneseq
    %v1359 = vshrl.u32 %v1358, 7
    %v1360 = vsub.s32 %v1357, %v1359
    %v1361 = vrot.slane %v1351, %v1360
    %v1363 = vunpack.c.l.s4 1983009808
    %v1364 = vunpack.c.0.s8 %v1363
    %v1365 = vlaneseq
    %v1366 = vshrl.u32 %v1365, 7
    %v1367 = vsub.s32 %v1364, %v1366
    %v1368 = vrot.slane %v1352, %v1367
    %v1369 = vsel %vm420, %v1361, %v1361
    %v1370 = vsel %vm422, %v1361, %v1369
    %v1371 = vrot.slane %v1368, 7
    %v1372 = vsel %vm425, %v1371, %v1370
    %v1373 = vsel %vm427, %v1371, %v1372
    %v1374 = vsel %vm429, %v1371, %v1373
    %v1375 = vsel %vm431, %v1371, %v1374
    %1376 = vrot.lane.b32.xlu0 %v1375, 32
    %v1377 = vpop.permute.xlu0 %1376
    %1379 = vst.msk [vmem:[#allocation3 + $0x10] sm:$0x3] %vm464, %v1377
    %v1380 = vld [vmem:[#allocation2 + $0x22] sm:$0x1]
    %v1381 = vld [vmem:[#allocation2 + $0x62] sm:$0x1]
    %v1385 = vunpack.c.l.s4 1983009808
    %v1386 = vunpack.c.0.s8 %v1385
    %v1387 = vlaneseq
    %v1388 = vshrl.u32 %v1387, 7
    %v1389 = vsub.s32 %v1386, %v1388
    %v1390 = vrot.slane %v1380, %v1389
    %v1392 = vunpack.c.l.s4 1983009808
    %v1393 = vunpack.c.0.s8 %v1392
    %v1394 = vlaneseq
    %v1395 = vshrl.u32 %v1394, 7
    %v1396 = vsub.s32 %v1393, %v1395
    %v1397 = vrot.slane %v1381, %v1396
    %v1398 = vsel %vm420, %v1390, %v1390
    %v1399 = vsel %vm422, %v1390, %v1398
    %v1400 = vrot.slane %v1397, 7
    %v1401 = vsel %vm425, %v1400, %v1399
    %v1402 = vsel %vm427, %v1400, %v1401
    %v1403 = vsel %vm429, %v1400, %v1402
    %v1404 = vsel %vm431, %v1400, %v1403
    %1405 = vrot.lane.b32.xlu0 %v1404, 64
    %v1406 = vpop.permute.xlu0 %1405
    %1408 = vst.msk [vmem:[#allocation3 + $0x10] sm:$0x3] %vm494, %v1406
    %v1409 = vld [vmem:[#allocation2 + $0x23] sm:$0x1]
    %v1410 = vld [vmem:[#allocation2 + $0x63] sm:$0x1]
    %v1414 = vunpack.c.l.s4 1983009808
    %v1415 = vunpack.c.0.s8 %v1414
    %v1416 = vlaneseq
    %v1417 = vshrl.u32 %v1416, 7
    %v1418 = vsub.s32 %v1415, %v1417
    %v1419 = vrot.slane %v1409, %v1418
    %v1421 = vunpack.c.l.s4 1983009808
    %v1422 = vunpack.c.0.s8 %v1421
    %v1423 = vlaneseq
    %v1424 = vshrl.u32 %v1423, 7
    %v1425 = vsub.s32 %v1422, %v1424
    %v1426 = vrot.slane %v1410, %v1425
    %v1427 = vsel %vm420, %v1419, %v1419
    %v1428 = vsel %vm422, %v1419, %v1427
    %v1429 = vrot.slane %v1426, 7
    %v1430 = vsel %vm425, %v1429, %v1428
    %v1431 = vsel %vm427, %v1429, %v1430
    %v1432 = vsel %vm429, %v1429, %v1431
    %v1433 = vsel %vm431, %v1429, %v1432
    %1434 = vrot.lane.b32.xlu0 %v1433, 96
    %v1435 = vpop.permute.xlu0 %1434
    %1437 = vst.msk [vmem:[#allocation3 + $0x10] sm:$0x3] %vm524, %v1435
    %v1438 = vld [vmem:[#allocation2 + $0x24] sm:$0x1]
    %v1439 = vld [vmem:[#allocation2 + $0x64] sm:$0x1]
    %v1443 = vunpack.c.l.s4 1983009808
    %v1444 = vunpack.c.0.s8 %v1443
    %v1445 = vlaneseq
    %v1446 = vshrl.u32 %v1445, 7
    %v1447 = vsub.s32 %v1444, %v1446
    %v1448 = vrot.slane %v1438, %v1447
    %v1450 = vunpack.c.l.s4 1983009808
    %v1451 = vunpack.c.0.s8 %v1450
    %v1452 = vlaneseq
    %v1453 = vshrl.u32 %v1452, 7
    %v1454 = vsub.s32 %v1451, %v1453
    %v1455 = vrot.slane %v1439, %v1454
    %v1456 = vsel %vm420, %v1448, %v1448
    %v1457 = vsel %vm422, %v1448, %v1456
    %v1458 = vrot.slane %v1455, 7
    %v1459 = vsel %vm425, %v1458, %v1457
    %v1460 = vsel %vm427, %v1458, %v1459
    %v1461 = vsel %vm429, %v1458, %v1460
    %v1462 = vsel %vm431, %v1458, %v1461
    %1464 = vst.msk [vmem:[#allocation3 + $0x12] sm:$0x3] %vm434, %v1462
    %v1465 = vld [vmem:[#allocation2 + $0x25] sm:$0x1]
    %v1466 = vld [vmem:[#allocation2 + $0x65] sm:$0x1]
    %v1470 = vunpack.c.l.s4 1983009808
    %v1471 = vunpack.c.0.s8 %v1470
    %v1472 = vlaneseq
    %v1473 = vshrl.u32 %v1472, 7
    %v1474 = vsub.s32 %v1471, %v1473
    %v1475 = vrot.slane %v1465, %v1474
    %v1477 = vunpack.c.l.s4 1983009808
    %v1478 = vunpack.c.0.s8 %v1477
    %v1479 = vlaneseq
    %v1480 = vshrl.u32 %v1479, 7
    %v1481 = vsub.s32 %v1478, %v1480
    %v1482 = vrot.slane %v1466, %v1481
    %v1483 = vsel %vm420, %v1475, %v1475
    %v1484 = vsel %vm422, %v1475, %v1483
    %v1485 = vrot.slane %v1482, 7
    %v1486 = vsel %vm425, %v1485, %v1484
    %v1487 = vsel %vm427, %v1485, %v1486
    %v1488 = vsel %vm429, %v1485, %v1487
    %v1489 = vsel %vm431, %v1485, %v1488
    %1490 = vrot.lane.b32.xlu0 %v1489, 32
    %v1491 = vpop.permute.xlu0 %1490
    %1493 = vst.msk [vmem:[#allocation3 + $0x12] sm:$0x3] %vm464, %v1491
    %v1494 = vld [vmem:[#allocation2 + $0x26] sm:$0x1]
    %v1495 = vld [vmem:[#allocation2 + $0x66] sm:$0x1]
    %v1499 = vunpack.c.l.s4 1983009808
    %v1500 = vunpack.c.0.s8 %v1499
    %v1501 = vlaneseq
    %v1502 = vshrl.u32 %v1501, 7
    %v1503 = vsub.s32 %v1500, %v1502
    %v1504 = vrot.slane %v1494, %v1503
    %v1506 = vunpack.c.l.s4 1983009808
    %v1507 = vunpack.c.0.s8 %v1506
    %v1508 = vlaneseq
    %v1509 = vshrl.u32 %v1508, 7
    %v1510 = vsub.s32 %v1507, %v1509
    %v1511 = vrot.slane %v1495, %v1510
    %v1512 = vsel %vm420, %v1504, %v1504
    %v1513 = vsel %vm422, %v1504, %v1512
    %v1514 = vrot.slane %v1511, 7
    %v1515 = vsel %vm425, %v1514, %v1513
    %v1516 = vsel %vm427, %v1514, %v1515
    %v1517 = vsel %vm429, %v1514, %v1516
    %v1518 = vsel %vm431, %v1514, %v1517
    %1519 = vrot.lane.b32.xlu0 %v1518, 64
    %v1520 = vpop.permute.xlu0 %1519
    %1522 = vst.msk [vmem:[#allocation3 + $0x12] sm:$0x3] %vm494, %v1520
    %v1523 = vld [vmem:[#allocation2 + $0x27] sm:$0x1]
    %v1524 = vld [vmem:[#allocation2 + $0x67] sm:$0x1]
    %v1528 = vunpack.c.l.s4 1983009808
    %v1529 = vunpack.c.0.s8 %v1528
    %v1530 = vlaneseq
    %v1531 = vshrl.u32 %v1530, 7
    %v1532 = vsub.s32 %v1529, %v1531
    %v1533 = vrot.slane %v1523, %v1532
    %v1535 = vunpack.c.l.s4 1983009808
    %v1536 = vunpack.c.0.s8 %v1535
    %v1537 = vlaneseq
    %v1538 = vshrl.u32 %v1537, 7
    %v1539 = vsub.s32 %v1536, %v1538
    %v1540 = vrot.slane %v1524, %v1539
    %v1541 = vsel %vm420, %v1533, %v1533
    %v1542 = vsel %vm422, %v1533, %v1541
    %v1543 = vrot.slane %v1540, 7
    %v1544 = vsel %vm425, %v1543, %v1542
    %v1545 = vsel %vm427, %v1543, %v1544
    %v1546 = vsel %vm429, %v1543, %v1545
    %v1547 = vsel %vm431, %v1543, %v1546
    %1548 = vrot.lane.b32.xlu0 %v1547, 96
    %v1549 = vpop.permute.xlu0 %1548
    %1551 = vst.msk [vmem:[#allocation3 + $0x12] sm:$0x3] %vm524, %v1549
    %v1552 = vld [vmem:[#allocation2 + $0x28] sm:$0x1]
    %v1553 = vld [vmem:[#allocation2 + $0x68] sm:$0x1]
    %v1557 = vunpack.c.l.s4 1983009808
    %v1558 = vunpack.c.0.s8 %v1557
    %v1559 = vlaneseq
    %v1560 = vshrl.u32 %v1559, 7
    %v1561 = vsub.s32 %v1558, %v1560
    %v1562 = vrot.slane %v1552, %v1561
    %v1564 = vunpack.c.l.s4 1983009808
    %v1565 = vunpack.c.0.s8 %v1564
    %v1566 = vlaneseq
    %v1567 = vshrl.u32 %v1566, 7
    %v1568 = vsub.s32 %v1565, %v1567
    %v1569 = vrot.slane %v1553, %v1568
    %v1570 = vsel %vm420, %v1562, %v1562
    %v1571 = vsel %vm422, %v1562, %v1570
    %v1572 = vrot.slane %v1569, 7
    %v1573 = vsel %vm425, %v1572, %v1571
    %v1574 = vsel %vm427, %v1572, %v1573
    %v1575 = vsel %vm429, %v1572, %v1574
    %v1576 = vsel %vm431, %v1572, %v1575
    %1578 = vst.msk [vmem:[#allocation3 + $0x14] sm:$0x3] %vm434, %v1576
    %v1579 = vld [vmem:[#allocation2 + $0x29] sm:$0x1]
    %v1580 = vld [vmem:[#allocation2 + $0x69] sm:$0x1]
    %v1584 = vunpack.c.l.s4 1983009808
    %v1585 = vunpack.c.0.s8 %v1584
    %v1586 = vlaneseq
    %v1587 = vshrl.u32 %v1586, 7
    %v1588 = vsub.s32 %v1585, %v1587
    %v1589 = vrot.slane %v1579, %v1588
    %v1591 = vunpack.c.l.s4 1983009808
    %v1592 = vunpack.c.0.s8 %v1591
    %v1593 = vlaneseq
    %v1594 = vshrl.u32 %v1593, 7
    %v1595 = vsub.s32 %v1592, %v1594
    %v1596 = vrot.slane %v1580, %v1595
    %v1597 = vsel %vm420, %v1589, %v1589
    %v1598 = vsel %vm422, %v1589, %v1597
    %v1599 = vrot.slane %v1596, 7
    %v1600 = vsel %vm425, %v1599, %v1598
    %v1601 = vsel %vm427, %v1599, %v1600
    %v1602 = vsel %vm429, %v1599, %v1601
    %v1603 = vsel %vm431, %v1599, %v1602
    %1604 = vrot.lane.b32.xlu0 %v1603, 32
    %v1605 = vpop.permute.xlu0 %1604
    %1607 = vst.msk [vmem:[#allocation3 + $0x14] sm:$0x3] %vm464, %v1605
    %v1608 = vld [vmem:[#allocation2 + $0x2a] sm:$0x1]
    %v1609 = vld [vmem:[#allocation2 + $0x6a] sm:$0x1]
    %v1613 = vunpack.c.l.s4 1983009808
    %v1614 = vunpack.c.0.s8 %v1613
    %v1615 = vlaneseq
    %v1616 = vshrl.u32 %v1615, 7
    %v1617 = vsub.s32 %v1614, %v1616
    %v1618 = vrot.slane %v1608, %v1617
    %v1620 = vunpack.c.l.s4 1983009808
    %v1621 = vunpack.c.0.s8 %v1620
    %v1622 = vlaneseq
    %v1623 = vshrl.u32 %v1622, 7
    %v1624 = vsub.s32 %v1621, %v1623
    %v1625 = vrot.slane %v1609, %v1624
    %v1626 = vsel %vm420, %v1618, %v1618
    %v1627 = vsel %vm422, %v1618, %v1626
    %v1628 = vrot.slane %v1625, 7
    %v1629 = vsel %vm425, %v1628, %v1627
    %v1630 = vsel %vm427, %v1628, %v1629
    %v1631 = vsel %vm429, %v1628, %v1630
    %v1632 = vsel %vm431, %v1628, %v1631
    %1633 = vrot.lane.b32.xlu0 %v1632, 64
    %v1634 = vpop.permute.xlu0 %1633
    %1636 = vst.msk [vmem:[#allocation3 + $0x14] sm:$0x3] %vm494, %v1634
    %v1637 = vld [vmem:[#allocation2 + $0x2b] sm:$0x1]
    %v1638 = vld [vmem:[#allocation2 + $0x6b] sm:$0x1]
    %v1642 = vunpack.c.l.s4 1983009808
    %v1643 = vunpack.c.0.s8 %v1642
    %v1644 = vlaneseq
    %v1645 = vshrl.u32 %v1644, 7
    %v1646 = vsub.s32 %v1643, %v1645
    %v1647 = vrot.slane %v1637, %v1646
    %v1649 = vunpack.c.l.s4 1983009808
    %v1650 = vunpack.c.0.s8 %v1649
    %v1651 = vlaneseq
    %v1652 = vshrl.u32 %v1651, 7
    %v1653 = vsub.s32 %v1650, %v1652
    %v1654 = vrot.slane %v1638, %v1653
    %v1655 = vsel %vm420, %v1647, %v1647
    %v1656 = vsel %vm422, %v1647, %v1655
    %v1657 = vrot.slane %v1654, 7
    %v1658 = vsel %vm425, %v1657, %v1656
    %v1659 = vsel %vm427, %v1657, %v1658
    %v1660 = vsel %vm429, %v1657, %v1659
    %v1661 = vsel %vm431, %v1657, %v1660
    %1662 = vrot.lane.b32.xlu0 %v1661, 96
    %v1663 = vpop.permute.xlu0 %1662
    %1665 = vst.msk [vmem:[#allocation3 + $0x14] sm:$0x3] %vm524, %v1663
    %v1666 = vld [vmem:[#allocation2 + $0x2c] sm:$0x1]
    %v1667 = vld [vmem:[#allocation2 + $0x6c] sm:$0x1]
    %v1671 = vunpack.c.l.s4 1983009808
    %v1672 = vunpack.c.0.s8 %v1671
    %v1673 = vlaneseq
    %v1674 = vshrl.u32 %v1673, 7
    %v1675 = vsub.s32 %v1672, %v1674
    %v1676 = vrot.slane %v1666, %v1675
    %v1678 = vunpack.c.l.s4 1983009808
    %v1679 = vunpack.c.0.s8 %v1678
    %v1680 = vlaneseq
    %v1681 = vshrl.u32 %v1680, 7
    %v1682 = vsub.s32 %v1679, %v1681
    %v1683 = vrot.slane %v1667, %v1682
    %v1684 = vsel %vm420, %v1676, %v1676
    %v1685 = vsel %vm422, %v1676, %v1684
    %v1686 = vrot.slane %v1683, 7
    %v1687 = vsel %vm425, %v1686, %v1685
    %v1688 = vsel %vm427, %v1686, %v1687
    %v1689 = vsel %vm429, %v1686, %v1688
    %v1690 = vsel %vm431, %v1686, %v1689
    %1692 = vst.msk [vmem:[#allocation3 + $0x16] sm:$0x3] %vm434, %v1690
    %v1693 = vld [vmem:[#allocation2 + $0x2d] sm:$0x1]
    %v1694 = vld [vmem:[#allocation2 + $0x6d] sm:$0x1]
    %v1698 = vunpack.c.l.s4 1983009808
    %v1699 = vunpack.c.0.s8 %v1698
    %v1700 = vlaneseq
    %v1701 = vshrl.u32 %v1700, 7
    %v1702 = vsub.s32 %v1699, %v1701
    %v1703 = vrot.slane %v1693, %v1702
    %v1705 = vunpack.c.l.s4 1983009808
    %v1706 = vunpack.c.0.s8 %v1705
    %v1707 = vlaneseq
    %v1708 = vshrl.u32 %v1707, 7
    %v1709 = vsub.s32 %v1706, %v1708
    %v1710 = vrot.slane %v1694, %v1709
    %v1711 = vsel %vm420, %v1703, %v1703
    %v1712 = vsel %vm422, %v1703, %v1711
    %v1713 = vrot.slane %v1710, 7
    %v1714 = vsel %vm425, %v1713, %v1712
    %v1715 = vsel %vm427, %v1713, %v1714
    %v1716 = vsel %vm429, %v1713, %v1715
    %v1717 = vsel %vm431, %v1713, %v1716
    %1718 = vrot.lane.b32.xlu0 %v1717, 32
    %v1719 = vpop.permute.xlu0 %1718
    %1721 = vst.msk [vmem:[#allocation3 + $0x16] sm:$0x3] %vm464, %v1719
    %v1722 = vld [vmem:[#allocation2 + $0x2e] sm:$0x1]
    %v1723 = vld [vmem:[#allocation2 + $0x6e] sm:$0x1]
    %v1727 = vunpack.c.l.s4 1983009808
    %v1728 = vunpack.c.0.s8 %v1727
    %v1729 = vlaneseq
    %v1730 = vshrl.u32 %v1729, 7
    %v1731 = vsub.s32 %v1728, %v1730
    %v1732 = vrot.slane %v1722, %v1731
    %v1734 = vunpack.c.l.s4 1983009808
    %v1735 = vunpack.c.0.s8 %v1734
    %v1736 = vlaneseq
    %v1737 = vshrl.u32 %v1736, 7
    %v1738 = vsub.s32 %v1735, %v1737
    %v1739 = vrot.slane %v1723, %v1738
    %v1740 = vsel %vm420, %v1732, %v1732
    %v1741 = vsel %vm422, %v1732, %v1740
    %v1742 = vrot.slane %v1739, 7
    %v1743 = vsel %vm425, %v1742, %v1741
    %v1744 = vsel %vm427, %v1742, %v1743
    %v1745 = vsel %vm429, %v1742, %v1744
    %v1746 = vsel %vm431, %v1742, %v1745
    %1747 = vrot.lane.b32.xlu0 %v1746, 64
    %v1748 = vpop.permute.xlu0 %1747
    %1750 = vst.msk [vmem:[#allocation3 + $0x16] sm:$0x3] %vm494, %v1748
    %v1751 = vld [vmem:[#allocation2 + $0x2f] sm:$0x1]
    %v1752 = vld [vmem:[#allocation2 + $0x6f] sm:$0x1]
    %v1756 = vunpack.c.l.s4 1983009808
    %v1757 = vunpack.c.0.s8 %v1756
    %v1758 = vlaneseq
    %v1759 = vshrl.u32 %v1758, 7
    %v1760 = vsub.s32 %v1757, %v1759
    %v1761 = vrot.slane %v1751, %v1760
    %v1763 = vunpack.c.l.s4 1983009808
    %v1764 = vunpack.c.0.s8 %v1763
    %v1765 = vlaneseq
    %v1766 = vshrl.u32 %v1765, 7
    %v1767 = vsub.s32 %v1764, %v1766
    %v1768 = vrot.slane %v1752, %v1767
    %v1769 = vsel %vm420, %v1761, %v1761
    %v1770 = vsel %vm422, %v1761, %v1769
    %v1771 = vrot.slane %v1768, 7
    %v1772 = vsel %vm425, %v1771, %v1770
    %v1773 = vsel %vm427, %v1771, %v1772
    %v1774 = vsel %vm429, %v1771, %v1773
    %v1775 = vsel %vm431, %v1771, %v1774
    %1776 = vrot.lane.b32.xlu0 %v1775, 96
    %v1777 = vpop.permute.xlu0 %1776
    %1779 = vst.msk [vmem:[#allocation3 + $0x16] sm:$0x3] %vm524, %v1777
    %v1780 = vld [vmem:[#allocation2 + $0x30] sm:$0x1]
    %v1781 = vld [vmem:[#allocation2 + $0x70] sm:$0x1]
    %v1785 = vunpack.c.l.s4 1983009808
    %v1786 = vunpack.c.0.s8 %v1785
    %v1787 = vlaneseq
    %v1788 = vshrl.u32 %v1787, 7
    %v1789 = vsub.s32 %v1786, %v1788
    %v1790 = vrot.slane %v1780, %v1789
    %v1792 = vunpack.c.l.s4 1983009808
    %v1793 = vunpack.c.0.s8 %v1792
    %v1794 = vlaneseq
    %v1795 = vshrl.u32 %v1794, 7
    %v1796 = vsub.s32 %v1793, %v1795
    %v1797 = vrot.slane %v1781, %v1796
    %v1798 = vsel %vm420, %v1790, %v1790
    %v1799 = vsel %vm422, %v1790, %v1798
    %v1800 = vrot.slane %v1797, 7
    %v1801 = vsel %vm425, %v1800, %v1799
    %v1802 = vsel %vm427, %v1800, %v1801
    %v1803 = vsel %vm429, %v1800, %v1802
    %v1804 = vsel %vm431, %v1800, %v1803
    %1806 = vst.msk [vmem:[#allocation3 + $0x18] sm:$0x3] %vm434, %v1804
    %v1807 = vld [vmem:[#allocation2 + $0x31] sm:$0x1]
    %v1808 = vld [vmem:[#allocation2 + $0x71] sm:$0x1]
    %v1812 = vunpack.c.l.s4 1983009808
    %v1813 = vunpack.c.0.s8 %v1812
    %v1814 = vlaneseq
    %v1815 = vshrl.u32 %v1814, 7
    %v1816 = vsub.s32 %v1813, %v1815
    %v1817 = vrot.slane %v1807, %v1816
    %v1819 = vunpack.c.l.s4 1983009808
    %v1820 = vunpack.c.0.s8 %v1819
    %v1821 = vlaneseq
    %v1822 = vshrl.u32 %v1821, 7
    %v1823 = vsub.s32 %v1820, %v1822
    %v1824 = vrot.slane %v1808, %v1823
    %v1825 = vsel %vm420, %v1817, %v1817
    %v1826 = vsel %vm422, %v1817, %v1825
    %v1827 = vrot.slane %v1824, 7
    %v1828 = vsel %vm425, %v1827, %v1826
    %v1829 = vsel %vm427, %v1827, %v1828
    %v1830 = vsel %vm429, %v1827, %v1829
    %v1831 = vsel %vm431, %v1827, %v1830
    %1832 = vrot.lane.b32.xlu0 %v1831, 32
    %v1833 = vpop.permute.xlu0 %1832
    %1835 = vst.msk [vmem:[#allocation3 + $0x18] sm:$0x3] %vm464, %v1833
    %v1836 = vld [vmem:[#allocation2 + $0x32] sm:$0x1]
    %v1837 = vld [vmem:[#allocation2 + $0x72] sm:$0x1]
    %v1841 = vunpack.c.l.s4 1983009808
    %v1842 = vunpack.c.0.s8 %v1841
    %v1843 = vlaneseq
    %v1844 = vshrl.u32 %v1843, 7
    %v1845 = vsub.s32 %v1842, %v1844
    %v1846 = vrot.slane %v1836, %v1845
    %v1848 = vunpack.c.l.s4 1983009808
    %v1849 = vunpack.c.0.s8 %v1848
    %v1850 = vlaneseq
    %v1851 = vshrl.u32 %v1850, 7
    %v1852 = vsub.s32 %v1849, %v1851
    %v1853 = vrot.slane %v1837, %v1852
    %v1854 = vsel %vm420, %v1846, %v1846
    %v1855 = vsel %vm422, %v1846, %v1854
    %v1856 = vrot.slane %v1853, 7
    %v1857 = vsel %vm425, %v1856, %v1855
    %v1858 = vsel %vm427, %v1856, %v1857
    %v1859 = vsel %vm429, %v1856, %v1858
    %v1860 = vsel %vm431, %v1856, %v1859
    %1861 = vrot.lane.b32.xlu0 %v1860, 64
    %v1862 = vpop.permute.xlu0 %1861
    %1864 = vst.msk [vmem:[#allocation3 + $0x18] sm:$0x3] %vm494, %v1862
    %v1865 = vld [vmem:[#allocation2 + $0x33] sm:$0x1]
    %v1866 = vld [vmem:[#allocation2 + $0x73] sm:$0x1]
    %v1870 = vunpack.c.l.s4 1983009808
    %v1871 = vunpack.c.0.s8 %v1870
    %v1872 = vlaneseq
    %v1873 = vshrl.u32 %v1872, 7
    %v1874 = vsub.s32 %v1871, %v1873
    %v1875 = vrot.slane %v1865, %v1874
    %v1877 = vunpack.c.l.s4 1983009808
    %v1878 = vunpack.c.0.s8 %v1877
    %v1879 = vlaneseq
    %v1880 = vshrl.u32 %v1879, 7
    %v1881 = vsub.s32 %v1878, %v1880
    %v1882 = vrot.slane %v1866, %v1881
    %v1883 = vsel %vm420, %v1875, %v1875
    %v1884 = vsel %vm422, %v1875, %v1883
    %v1885 = vrot.slane %v1882, 7
    %v1886 = vsel %vm425, %v1885, %v1884
    %v1887 = vsel %vm427, %v1885, %v1886
    %v1888 = vsel %vm429, %v1885, %v1887
    %v1889 = vsel %vm431, %v1885, %v1888
    %1890 = vrot.lane.b32.xlu0 %v1889, 96
    %v1891 = vpop.permute.xlu0 %1890
    %1893 = vst.msk [vmem:[#allocation3 + $0x18] sm:$0x3] %vm524, %v1891
    %v1894 = vld [vmem:[#allocation2 + $0x34] sm:$0x1]
    %v1895 = vld [vmem:[#allocation2 + $0x74] sm:$0x1]
    %v1899 = vunpack.c.l.s4 1983009808
    %v1900 = vunpack.c.0.s8 %v1899
    %v1901 = vlaneseq
    %v1902 = vshrl.u32 %v1901, 7
    %v1903 = vsub.s32 %v1900, %v1902
    %v1904 = vrot.slane %v1894, %v1903
    %v1906 = vunpack.c.l.s4 1983009808
    %v1907 = vunpack.c.0.s8 %v1906
    %v1908 = vlaneseq
    %v1909 = vshrl.u32 %v1908, 7
    %v1910 = vsub.s32 %v1907, %v1909
    %v1911 = vrot.slane %v1895, %v1910
    %v1912 = vsel %vm420, %v1904, %v1904
    %v1913 = vsel %vm422, %v1904, %v1912
    %v1914 = vrot.slane %v1911, 7
    %v1915 = vsel %vm425, %v1914, %v1913
    %v1916 = vsel %vm427, %v1914, %v1915
    %v1917 = vsel %vm429, %v1914, %v1916
    %v1918 = vsel %vm431, %v1914, %v1917
    %1920 = vst.msk [vmem:[#allocation3 + $0x1a] sm:$0x3] %vm434, %v1918
    %v1921 = vld [vmem:[#allocation2 + $0x35] sm:$0x1]
    %v1922 = vld [vmem:[#allocation2 + $0x75] sm:$0x1]
    %v1926 = vunpack.c.l.s4 1983009808
    %v1927 = vunpack.c.0.s8 %v1926
    %v1928 = vlaneseq
    %v1929 = vshrl.u32 %v1928, 7
    %v1930 = vsub.s32 %v1927, %v1929
    %v1931 = vrot.slane %v1921, %v1930
    %v1933 = vunpack.c.l.s4 1983009808
    %v1934 = vunpack.c.0.s8 %v1933
    %v1935 = vlaneseq
    %v1936 = vshrl.u32 %v1935, 7
    %v1937 = vsub.s32 %v1934, %v1936
    %v1938 = vrot.slane %v1922, %v1937
    %v1939 = vsel %vm420, %v1931, %v1931
    %v1940 = vsel %vm422, %v1931, %v1939
    %v1941 = vrot.slane %v1938, 7
    %v1942 = vsel %vm425, %v1941, %v1940
    %v1943 = vsel %vm427, %v1941, %v1942
    %v1944 = vsel %vm429, %v1941, %v1943
    %v1945 = vsel %vm431, %v1941, %v1944
    %1946 = vrot.lane.b32.xlu0 %v1945, 32
    %v1947 = vpop.permute.xlu0 %1946
    %1949 = vst.msk [vmem:[#allocation3 + $0x1a] sm:$0x3] %vm464, %v1947
    %v1950 = vld [vmem:[#allocation2 + $0x36] sm:$0x1]
    %v1951 = vld [vmem:[#allocation2 + $0x76] sm:$0x1]
    %v1955 = vunpack.c.l.s4 1983009808
    %v1956 = vunpack.c.0.s8 %v1955
    %v1957 = vlaneseq
    %v1958 = vshrl.u32 %v1957, 7
    %v1959 = vsub.s32 %v1956, %v1958
    %v1960 = vrot.slane %v1950, %v1959
    %v1962 = vunpack.c.l.s4 1983009808
    %v1963 = vunpack.c.0.s8 %v1962
    %v1964 = vlaneseq
    %v1965 = vshrl.u32 %v1964, 7
    %v1966 = vsub.s32 %v1963, %v1965
    %v1967 = vrot.slane %v1951, %v1966
    %v1968 = vsel %vm420, %v1960, %v1960
    %v1969 = vsel %vm422, %v1960, %v1968
    %v1970 = vrot.slane %v1967, 7
    %v1971 = vsel %vm425, %v1970, %v1969
    %v1972 = vsel %vm427, %v1970, %v1971
    %v1973 = vsel %vm429, %v1970, %v1972
    %v1974 = vsel %vm431, %v1970, %v1973
    %1975 = vrot.lane.b32.xlu0 %v1974, 64
    %v1976 = vpop.permute.xlu0 %1975
    %1978 = vst.msk [vmem:[#allocation3 + $0x1a] sm:$0x3] %vm494, %v1976
    %v1979 = vld [vmem:[#allocation2 + $0x37] sm:$0x1]
    %v1980 = vld [vmem:[#allocation2 + $0x77] sm:$0x1]
    %v1984 = vunpack.c.l.s4 1983009808
    %v1985 = vunpack.c.0.s8 %v1984
    %v1986 = vlaneseq
    %v1987 = vshrl.u32 %v1986, 7
    %v1988 = vsub.s32 %v1985, %v1987
    %v1989 = vrot.slane %v1979, %v1988
    %v1991 = vunpack.c.l.s4 1983009808
    %v1992 = vunpack.c.0.s8 %v1991
    %v1993 = vlaneseq
    %v1994 = vshrl.u32 %v1993, 7
    %v1995 = vsub.s32 %v1992, %v1994
    %v1996 = vrot.slane %v1980, %v1995
    %v1997 = vsel %vm420, %v1989, %v1989
    %v1998 = vsel %vm422, %v1989, %v1997
    %v1999 = vrot.slane %v1996, 7
    %v2000 = vsel %vm425, %v1999, %v1998
    %v2001 = vsel %vm427, %v1999, %v2000
    %v2002 = vsel %vm429, %v1999, %v2001
    %v2003 = vsel %vm431, %v1999, %v2002
    %2004 = vrot.lane.b32.xlu0 %v2003, 96
    %v2005 = vpop.permute.xlu0 %2004
    %2007 = vst.msk [vmem:[#allocation3 + $0x1a] sm:$0x3] %vm524, %v2005
    %v2008 = vld [vmem:[#allocation2 + $0x38] sm:$0x1]
    %v2009 = vld [vmem:[#allocation2 + $0x78] sm:$0x1]
    %v2013 = vunpack.c.l.s4 1983009808
    %v2014 = vunpack.c.0.s8 %v2013
    %v2015 = vlaneseq
    %v2016 = vshrl.u32 %v2015, 7
    %v2017 = vsub.s32 %v2014, %v2016
    %v2018 = vrot.slane %v2008, %v2017
    %v2020 = vunpack.c.l.s4 1983009808
    %v2021 = vunpack.c.0.s8 %v2020
    %v2022 = vlaneseq
    %v2023 = vshrl.u32 %v2022, 7
    %v2024 = vsub.s32 %v2021, %v2023
    %v2025 = vrot.slane %v2009, %v2024
    %v2026 = vsel %vm420, %v2018, %v2018
    %v2027 = vsel %vm422, %v2018, %v2026
    %v2028 = vrot.slane %v2025, 7
    %v2029 = vsel %vm425, %v2028, %v2027
    %v2030 = vsel %vm427, %v2028, %v2029
    %v2031 = vsel %vm429, %v2028, %v2030
    %v2032 = vsel %vm431, %v2028, %v2031
    %2034 = vst.msk [vmem:[#allocation3 + $0x1c] sm:$0x3] %vm434, %v2032
    %v2035 = vld [vmem:[#allocation2 + $0x39] sm:$0x1]
    %v2036 = vld [vmem:[#allocation2 + $0x79] sm:$0x1]
    %v2040 = vunpack.c.l.s4 1983009808
    %v2041 = vunpack.c.0.s8 %v2040
    %v2042 = vlaneseq
    %v2043 = vshrl.u32 %v2042, 7
    %v2044 = vsub.s32 %v2041, %v2043
    %v2045 = vrot.slane %v2035, %v2044
    %v2047 = vunpack.c.l.s4 1983009808
    %v2048 = vunpack.c.0.s8 %v2047
    %v2049 = vlaneseq
    %v2050 = vshrl.u32 %v2049, 7
    %v2051 = vsub.s32 %v2048, %v2050
    %v2052 = vrot.slane %v2036, %v2051
    %v2053 = vsel %vm420, %v2045, %v2045
    %v2054 = vsel %vm422, %v2045, %v2053
    %v2055 = vrot.slane %v2052, 7
    %v2056 = vsel %vm425, %v2055, %v2054
    %v2057 = vsel %vm427, %v2055, %v2056
    %v2058 = vsel %vm429, %v2055, %v2057
    %v2059 = vsel %vm431, %v2055, %v2058
    %2060 = vrot.lane.b32.xlu0 %v2059, 32
    %v2061 = vpop.permute.xlu0 %2060
    %2063 = vst.msk [vmem:[#allocation3 + $0x1c] sm:$0x3] %vm464, %v2061
    %v2064 = vld [vmem:[#allocation2 + $0x3a] sm:$0x1]
    %v2065 = vld [vmem:[#allocation2 + $0x7a] sm:$0x1]
    %v2069 = vunpack.c.l.s4 1983009808
    %v2070 = vunpack.c.0.s8 %v2069
    %v2071 = vlaneseq
    %v2072 = vshrl.u32 %v2071, 7
    %v2073 = vsub.s32 %v2070, %v2072
    %v2074 = vrot.slane %v2064, %v2073
    %v2076 = vunpack.c.l.s4 1983009808
    %v2077 = vunpack.c.0.s8 %v2076
    %v2078 = vlaneseq
    %v2079 = vshrl.u32 %v2078, 7
    %v2080 = vsub.s32 %v2077, %v2079
    %v2081 = vrot.slane %v2065, %v2080
    %v2082 = vsel %vm420, %v2074, %v2074
    %v2083 = vsel %vm422, %v2074, %v2082
    %v2084 = vrot.slane %v2081, 7
    %v2085 = vsel %vm425, %v2084, %v2083
    %v2086 = vsel %vm427, %v2084, %v2085
    %v2087 = vsel %vm429, %v2084, %v2086
    %v2088 = vsel %vm431, %v2084, %v2087
    %2089 = vrot.lane.b32.xlu0 %v2088, 64
    %v2090 = vpop.permute.xlu0 %2089
    %2092 = vst.msk [vmem:[#allocation3 + $0x1c] sm:$0x3] %vm494, %v2090
    %v2093 = vld [vmem:[#allocation2 + $0x3b] sm:$0x1]
    %v2094 = vld [vmem:[#allocation2 + $0x7b] sm:$0x1]
    %v2098 = vunpack.c.l.s4 1983009808
    %v2099 = vunpack.c.0.s8 %v2098
    %v2100 = vlaneseq
    %v2101 = vshrl.u32 %v2100, 7
    %v2102 = vsub.s32 %v2099, %v2101
    %v2103 = vrot.slane %v2093, %v2102
    %v2105 = vunpack.c.l.s4 1983009808
    %v2106 = vunpack.c.0.s8 %v2105
    %v2107 = vlaneseq
    %v2108 = vshrl.u32 %v2107, 7
    %v2109 = vsub.s32 %v2106, %v2108
    %v2110 = vrot.slane %v2094, %v2109
    %v2111 = vsel %vm420, %v2103, %v2103
    %v2112 = vsel %vm422, %v2103, %v2111
    %v2113 = vrot.slane %v2110, 7
    %v2114 = vsel %vm425, %v2113, %v2112
    %v2115 = vsel %vm427, %v2113, %v2114
    %v2116 = vsel %vm429, %v2113, %v2115
    %v2117 = vsel %vm431, %v2113, %v2116
    %2118 = vrot.lane.b32.xlu0 %v2117, 96
    %v2119 = vpop.permute.xlu0 %2118
    %2121 = vst.msk [vmem:[#allocation3 + $0x1c] sm:$0x3] %vm524, %v2119
    %v2122 = vld [vmem:[#allocation2 + $0x3c] sm:$0x1]
    %v2123 = vld [vmem:[#allocation2 + $0x7c] sm:$0x1]
    %v2127 = vunpack.c.l.s4 1983009808
    %v2128 = vunpack.c.0.s8 %v2127
    %v2129 = vlaneseq
    %v2130 = vshrl.u32 %v2129, 7
    %v2131 = vsub.s32 %v2128, %v2130
    %v2132 = vrot.slane %v2122, %v2131
    %v2134 = vunpack.c.l.s4 1983009808
    %v2135 = vunpack.c.0.s8 %v2134
    %v2136 = vlaneseq
    %v2137 = vshrl.u32 %v2136, 7
    %v2138 = vsub.s32 %v2135, %v2137
    %v2139 = vrot.slane %v2123, %v2138
    %v2140 = vsel %vm420, %v2132, %v2132
    %v2141 = vsel %vm422, %v2132, %v2140
    %v2142 = vrot.slane %v2139, 7
    %v2143 = vsel %vm425, %v2142, %v2141
    %v2144 = vsel %vm427, %v2142, %v2143
    %v2145 = vsel %vm429, %v2142, %v2144
    %v2146 = vsel %vm431, %v2142, %v2145
    %2148 = vst.msk [vmem:[#allocation3 + $0x1e] sm:$0x3] %vm434, %v2146
    %v2149 = vld [vmem:[#allocation2 + $0x3d] sm:$0x1]
    %v2150 = vld [vmem:[#allocation2 + $0x7d] sm:$0x1]
    %v2154 = vunpack.c.l.s4 1983009808
    %v2155 = vunpack.c.0.s8 %v2154
    %v2156 = vlaneseq
    %v2157 = vshrl.u32 %v2156, 7
    %v2158 = vsub.s32 %v2155, %v2157
    %v2159 = vrot.slane %v2149, %v2158
    %v2161 = vunpack.c.l.s4 1983009808
    %v2162 = vunpack.c.0.s8 %v2161
    %v2163 = vlaneseq
    %v2164 = vshrl.u32 %v2163, 7
    %v2165 = vsub.s32 %v2162, %v2164
    %v2166 = vrot.slane %v2150, %v2165
    %v2167 = vsel %vm420, %v2159, %v2159
    %v2168 = vsel %vm422, %v2159, %v2167
    %v2169 = vrot.slane %v2166, 7
    %v2170 = vsel %vm425, %v2169, %v2168
    %v2171 = vsel %vm427, %v2169, %v2170
    %v2172 = vsel %vm429, %v2169, %v2171
    %v2173 = vsel %vm431, %v2169, %v2172
    %2174 = vrot.lane.b32.xlu0 %v2173, 32
    %v2175 = vpop.permute.xlu0 %2174
    %2177 = vst.msk [vmem:[#allocation3 + $0x1e] sm:$0x3] %vm464, %v2175
    %v2178 = vld [vmem:[#allocation2 + $0x3e] sm:$0x1]
    %v2179 = vld [vmem:[#allocation2 + $0x7e] sm:$0x1]
    %v2183 = vunpack.c.l.s4 1983009808
    %v2184 = vunpack.c.0.s8 %v2183
    %v2185 = vlaneseq
    %v2186 = vshrl.u32 %v2185, 7
    %v2187 = vsub.s32 %v2184, %v2186
    %v2188 = vrot.slane %v2178, %v2187
    %v2190 = vunpack.c.l.s4 1983009808
    %v2191 = vunpack.c.0.s8 %v2190
    %v2192 = vlaneseq
    %v2193 = vshrl.u32 %v2192, 7
    %v2194 = vsub.s32 %v2191, %v2193
    %v2195 = vrot.slane %v2179, %v2194
    %v2196 = vsel %vm420, %v2188, %v2188
    %v2197 = vsel %vm422, %v2188, %v2196
    %v2198 = vrot.slane %v2195, 7
    %v2199 = vsel %vm425, %v2198, %v2197
    %v2200 = vsel %vm427, %v2198, %v2199
    %v2201 = vsel %vm429, %v2198, %v2200
    %v2202 = vsel %vm431, %v2198, %v2201
    %2203 = vrot.lane.b32.xlu0 %v2202, 64
    %v2204 = vpop.permute.xlu0 %2203
    %2206 = vst.msk [vmem:[#allocation3 + $0x1e] sm:$0x3] %vm494, %v2204
    %v2207 = vld [vmem:[#allocation2 + $0x3f] sm:$0x1]
    %v2208 = vld [vmem:[#allocation2 + $0x7f] sm:$0x1]
    %v2212 = vunpack.c.l.s4 1983009808
    %v2213 = vunpack.c.0.s8 %v2212
    %v2214 = vlaneseq
    %v2215 = vshrl.u32 %v2214, 7
    %v2216 = vsub.s32 %v2213, %v2215
    %v2217 = vrot.slane %v2207, %v2216
    %v2219 = vunpack.c.l.s4 1983009808
    %v2220 = vunpack.c.0.s8 %v2219
    %v2221 = vlaneseq
    %v2222 = vshrl.u32 %v2221, 7
    %v2223 = vsub.s32 %v2220, %v2222
    %v2224 = vrot.slane %v2208, %v2223
    %v2225 = vsel %vm420, %v2217, %v2217
    %v2226 = vsel %vm422, %v2217, %v2225
    %v2227 = vrot.slane %v2224, 7
    %v2228 = vsel %vm425, %v2227, %v2226
    %v2229 = vsel %vm427, %v2227, %v2228
    %v2230 = vsel %vm429, %v2227, %v2229
    %v2231 = vsel %vm431, %v2227, %v2230
    %2232 = vrot.lane.b32.xlu0 %v2231, 96
    %v2233 = vpop.permute.xlu0 %2232
    %2235 = vst.msk [vmem:[#allocation3 + $0x1e] sm:$0x3] %vm524, %v2233
    %v2236 = vld [vmem:[#allocation3] sm:$0xff]
    %v2237 = vld [vmem:[#allocation3 + $0x8] sm:$0xff]
    %v2238 = vld [vmem:[#allocation3 + $0x10] sm:$0xff]
    %v2239 = vld [vmem:[#allocation3 + $0x18] sm:$0xff]
    %v2244 = vcombine.high %v2236, %v2236
    %v2246 = vunpack.c.l.s4 1983009808
    %v2247 = vunpack.c.0.s8 %v2246
    %v2248 = vlaneseq
    %v2249 = vshrl.u32 %v2248, 7
    %v2250 = vsub.s32 %v2247, %v2249
    %v2251 = vrot.slane %v2236, %v2250
    %v2253 = vunpack.c.l.s4 1983009808
    %v2254 = vunpack.c.0.s8 %v2253
    %v2255 = vlaneseq
    %v2256 = vshrl.u32 %v2255, 7
    %v2257 = vsub.s32 %v2254, %v2256
    %v2258 = vrot.slane %v2244, %v2257
    %v2259 = vcombine.high %v2251, %v2251
    %v2260 = vcombine.high %v2258, %v2258
    %v2261 = vcombine.high %v2237, %v2237
    %v2263 = vunpack.c.l.s4 1983009808
    %v2264 = vunpack.c.0.s8 %v2263
    %v2265 = vlaneseq
    %v2266 = vshrl.u32 %v2265, 7
    %v2267 = vsub.s32 %v2264, %v2266
    %v2268 = vrot.slane %v2237, %v2267
    %v2270 = vunpack.c.l.s4 1983009808
    %v2271 = vunpack.c.0.s8 %v2270
    %v2272 = vlaneseq
    %v2273 = vshrl.u32 %v2272, 7
    %v2274 = vsub.s32 %v2271, %v2273
    %v2275 = vrot.slane %v2261, %v2274
    %v2276 = vcombine.high %v2268, %v2268
    %v2277 = vcombine.high %v2275, %v2275
    %v2278 = vcombine.high %v2238, %v2238
    %v2280 = vunpack.c.l.s4 1983009808
    %v2281 = vunpack.c.0.s8 %v2280
    %v2282 = vlaneseq
    %v2283 = vshrl.u32 %v2282, 7
    %v2284 = vsub.s32 %v2281, %v2283
    %v2285 = vrot.slane %v2238, %v2284
    %v2287 = vunpack.c.l.s4 1983009808
    %v2288 = vunpack.c.0.s8 %v2287
    %v2289 = vlaneseq
    %v2290 = vshrl.u32 %v2289, 7
    %v2291 = vsub.s32 %v2288, %v2290
    %v2292 = vrot.slane %v2278, %v2291
    %v2293 = vcombine.high %v2285, %v2285
    %v2294 = vcombine.high %v2292, %v2292
    %v2295 = vcombine.high %v2239, %v2239
    %v2297 = vunpack.c.l.s4 1983009808
    %v2298 = vunpack.c.0.s8 %v2297
    %v2299 = vlaneseq
    %v2300 = vshrl.u32 %v2299, 7
    %v2301 = vsub.s32 %v2298, %v2300
    %v2302 = vrot.slane %v2239, %v2301
    %v2304 = vunpack.c.l.s4 1983009808
    %v2305 = vunpack.c.0.s8 %v2304
    %v2306 = vlaneseq
    %v2307 = vshrl.u32 %v2306, 7
    %v2308 = vsub.s32 %v2305, %v2307
    %v2309 = vrot.slane %v2295, %v2308
    %v2310 = vcombine.high %v2302, %v2302
    %v2311 = vcombine.high %v2309, %v2309
    %v2328 = vpack.c.bf16 %v2251, %v2251
    %v2329 = vpack.c.bf16 %v2259, %v2259
    %v2330 = vpack.c.bf16 %v2258, %v2258
    %v2331 = vpack.c.bf16 %v2260, %v2260
    %v2332 = vpack.c.bf16 %v2268, %v2268
    %v2333 = vpack.c.bf16 %v2276, %v2276
    %v2334 = vpack.c.bf16 %v2275, %v2275
    %v2335 = vpack.c.bf16 %v2277, %v2277
    %v2336 = vpack.c.bf16 %v2285, %v2285
    %v2337 = vpack.c.bf16 %v2293, %v2293
    %v2338 = vpack.c.bf16 %v2292, %v2292
    %v2339 = vpack.c.bf16 %v2294, %v2294
    %v2340 = vpack.c.bf16 %v2302, %v2302
    %v2341 = vpack.c.bf16 %v2310, %v2310
    %v2342 = vpack.c.bf16 %v2309, %v2309
    %v2343 = vpack.c.bf16 %v2311, %v2311
    %v2344 = vld [vmem:[%s3] sm:$0xff]
    %v2345 = vld [vmem:[%s3 + $0x8] sm:$0xff]
    %v2346 = vld [vmem:[%s3 + $0x10] sm:$0xf]
    %v2347 = vld [vmem:[%s3 + $0x14] sm:$0xff]
    %v2348 = vld [vmem:[%s3 + $0x1c] sm:$0xff]
    %v2349 = vld [vmem:[%s3 + $0x24] sm:$0xf]
    %v2350 = vld [vmem:[%s3 + $0x28] sm:$0xff]
    %v2351 = vld [vmem:[%s3 + $0x30] sm:$0xff]
    %v2352 = vld [vmem:[%s3 + $0x38] sm:$0xf]
    %v2353 = vld [vmem:[%s3 + $0x3c] sm:$0xff]
    %v2354 = vld [vmem:[%s3 + $0x44] sm:$0xff]
    %v2355 = vld [vmem:[%s3 + $0x4c] sm:$0xf]
    %v2356 = vld [vmem:[%s3 + $0x50] sm:$0xff]
    %v2357 = vld [vmem:[%s3 + $0x58] sm:$0xff]
    %v2358 = vld [vmem:[%s3 + $0x60] sm:$0xf]
    %v2359 = vld [vmem:[%s3 + $0x64] sm:$0xff]
    %v2360 = vld [vmem:[%s3 + $0x6c] sm:$0xff]
    %v2361 = vld [vmem:[%s3 + $0x74] sm:$0xf]
    %v2362 = vld [vmem:[%s3 + $0x78] sm:$0xff]
    %v2363 = vld [vmem:[%s3 + $0x80] sm:$0xff]
    %v2364 = vld [vmem:[%s3 + $0x88] sm:$0xf]
    %v2365 = vld [vmem:[%s3 + $0x8c] sm:$0xff]
    %v2366 = vld [vmem:[%s3 + $0x94] sm:$0xff]
    %v2367 = vld [vmem:[%s3 + $0x9c] sm:$0xf]
    %v2368 = vld [vmem:[%s3 + $0xa0] sm:$0xff]
    %v2369 = vld [vmem:[%s3 + $0xa8] sm:$0xff]
    %v2370 = vld [vmem:[%s3 + $0xb0] sm:$0xf]
    %v2371 = vld [vmem:[%s3 + $0xb4] sm:$0xff]
    %v2372 = vld [vmem:[%s3 + $0xbc] sm:$0xff]
    %v2373 = vld [vmem:[%s3 + $0xc4] sm:$0xf]
    %v2374 = vld [vmem:[%s3 + $0xc8] sm:$0xff]
    %v2375 = vld [vmem:[%s3 + $0xd0] sm:$0xff]
    %v2376 = vld [vmem:[%s3 + $0xd8] sm:$0xf]
    %v2377 = vld [vmem:[%s3 + $0xdc] sm:$0xff]
    %v2378 = vld [vmem:[%s3 + $0xe4] sm:$0xff]
    %v2379 = vld [vmem:[%s3 + $0xec] sm:$0xf]
    %v2380 = vld [vmem:[%s3 + $0xf0] sm:$0xff]
    %v2381 = vld [vmem:[%s3 + $0xf8] sm:$0xff]
    %v2382 = vld [vmem:[%s3 + $0x100] sm:$0xf]
    %v2383 = vld [vmem:[%s3 + $0x104] sm:$0xff]
    %v2384 = vld [vmem:[%s3 + $0x10c] sm:$0xff]
    %v2385 = vld [vmem:[%s3 + $0x114] sm:$0xf]
    %v2386 = vld [vmem:[%s3 + $0x118] sm:$0xff]
    %v2387 = vld [vmem:[%s3 + $0x120] sm:$0xff]
    %v2388 = vld [vmem:[%s3 + $0x128] sm:$0xf]
    %v2389 = vld [vmem:[%s3 + $0x12c] sm:$0xff]
    %v2390 = vld [vmem:[%s3 + $0x134] sm:$0xff]
    %v2391 = vld [vmem:[%s3 + $0x13c] sm:$0xf]
    %v2392 = vld [vmem:[%s3 + $0x140] sm:$0xff]
    %v2393 = vld [vmem:[%s3 + $0x148] sm:$0xff]
    %v2394 = vld [vmem:[%s3 + $0x150] sm:$0xf]
    %v2395 = vld [vmem:[%s3 + $0x154] sm:$0xff]
    %v2396 = vld [vmem:[%s3 + $0x15c] sm:$0xff]
    %v2397 = vld [vmem:[%s3 + $0x164] sm:$0xf]
    %v2398 = vld [vmem:[%s3 + $0x168] sm:$0xff]
    %v2399 = vld [vmem:[%s3 + $0x170] sm:$0xff]
    %v2400 = vld [vmem:[%s3 + $0x178] sm:$0xf]
    %v2401 = vld [vmem:[%s3 + $0x17c] sm:$0xff]
    %v2402 = vld [vmem:[%s3 + $0x184] sm:$0xff]
    %v2403 = vld [vmem:[%s3 + $0x18c] sm:$0xf]
    %v2404 = vld [vmem:[%s3 + $0x190] sm:$0xff]
    %v2405 = vld [vmem:[%s3 + $0x198] sm:$0xff]
    %v2406 = vld [vmem:[%s3 + $0x1a0] sm:$0xf]
    %v2407 = vld [vmem:[%s3 + $0x1a4] sm:$0xff]
    %v2408 = vld [vmem:[%s3 + $0x1ac] sm:$0xff]
    %v2409 = vld [vmem:[%s3 + $0x1b4] sm:$0xf]
    %v2410 = vld [vmem:[%s3 + $0x1b8] sm:$0xff]
    %v2411 = vld [vmem:[%s3 + $0x1c0] sm:$0xff]
    %v2412 = vld [vmem:[%s3 + $0x1c8] sm:$0xf]
    %v2413 = vld [vmem:[%s3 + $0x1cc] sm:$0xff]
    %v2414 = vld [vmem:[%s3 + $0x1d4] sm:$0xff]
    %v2415 = vld [vmem:[%s3 + $0x1dc] sm:$0xf]
    %v2416 = vld [vmem:[%s3 + $0x1e0] sm:$0xff]
    %v2417 = vld [vmem:[%s3 + $0x1e8] sm:$0xff]
    %v2418 = vld [vmem:[%s3 + $0x1f0] sm:$0xf]
    %v2419 = vld [vmem:[%s3 + $0x1f4] sm:$0xff]
    %v2420 = vld [vmem:[%s3 + $0x1fc] sm:$0xff]
    %v2421 = vld [vmem:[%s3 + $0x204] sm:$0xf]
    %v2422 = vld [vmem:[%s3 + $0x208] sm:$0xff]
    %v2423 = vld [vmem:[%s3 + $0x210] sm:$0xff]
    %v2424 = vld [vmem:[%s3 + $0x218] sm:$0xf]
    %v2425 = vld [vmem:[%s3 + $0x21c] sm:$0xff]
    %v2426 = vld [vmem:[%s3 + $0x224] sm:$0xff]
    %v2427 = vld [vmem:[%s3 + $0x22c] sm:$0xf]
    %v2428 = vld [vmem:[%s3 + $0x230] sm:$0xff]
    %v2429 = vld [vmem:[%s3 + $0x238] sm:$0xff]
    %v2430 = vld [vmem:[%s3 + $0x240] sm:$0xf]
    %v2431 = vld [vmem:[%s3 + $0x244] sm:$0xff]
    %v2432 = vld [vmem:[%s3 + $0x24c] sm:$0xff]
    %v2433 = vld [vmem:[%s3 + $0x254] sm:$0xf]
    %v2434 = vld [vmem:[%s3 + $0x258] sm:$0xff]
    %v2435 = vld [vmem:[%s3 + $0x260] sm:$0xff]
    %v2436 = vld [vmem:[%s3 + $0x268] sm:$0xf]
    %v2437 = vld [vmem:[%s3 + $0x26c] sm:$0xff]
    %v2438 = vld [vmem:[%s3 + $0x274] sm:$0xff]
    %v2439 = vld [vmem:[%s3 + $0x27c] sm:$0xf]
    %v2440 = vld [vmem:[%s3 + $0x280] sm:$0xff]
    %v2441 = vld [vmem:[%s3 + $0x288] sm:$0xff]
    %v2442 = vld [vmem:[%s3 + $0x290] sm:$0xf]
    %v2443 = vld [vmem:[%s3 + $0x294] sm:$0xff]
    %v2444 = vld [vmem:[%s3 + $0x29c] sm:$0xff]
    %v2445 = vld [vmem:[%s3 + $0x2a4] sm:$0xf]
    %v2446 = vld [vmem:[%s3 + $0x2a8] sm:$0xff]
    %v2447 = vld [vmem:[%s3 + $0x2b0] sm:$0xff]
    %v2448 = vld [vmem:[%s3 + $0x2b8] sm:$0xf]
    %v2449 = vld [vmem:[%s3 + $0x2bc] sm:$0xff]
    %v2450 = vld [vmem:[%s3 + $0x2c4] sm:$0xff]
    %v2451 = vld [vmem:[%s3 + $0x2cc] sm:$0xf]
    %v2452 = vld [vmem:[%s3 + $0x2d0] sm:$0xff]
    %v2453 = vld [vmem:[%s3 + $0x2d8] sm:$0xff]
    %v2454 = vld [vmem:[%s3 + $0x2e0] sm:$0xf]
    %v2455 = vld [vmem:[%s3 + $0x2e4] sm:$0xff]
    %v2456 = vld [vmem:[%s3 + $0x2ec] sm:$0xff]
    %v2457 = vld [vmem:[%s3 + $0x2f4] sm:$0xf]
    %v2458 = vld [vmem:[%s3 + $0x2f8] sm:$0xff]
    %v2459 = vld [vmem:[%s3 + $0x300] sm:$0xff]
    %v2460 = vld [vmem:[%s3 + $0x308] sm:$0xf]
    %v2461 = vld [vmem:[%s3 + $0x30c] sm:$0xff]
    %v2462 = vld [vmem:[%s3 + $0x314] sm:$0xff]
    %v2463 = vld [vmem:[%s3 + $0x31c] sm:$0xf]
    %v2464 = vld [vmem:[%s3 + $0x320] sm:$0xff]
    %v2465 = vld [vmem:[%s3 + $0x328] sm:$0xff]
    %v2466 = vld [vmem:[%s3 + $0x330] sm:$0xf]
    %v2467 = vld [vmem:[%s3 + $0x334] sm:$0xff]
    %v2468 = vld [vmem:[%s3 + $0x33c] sm:$0xff]
    %v2469 = vld [vmem:[%s3 + $0x344] sm:$0xf]
    %v2470 = vld [vmem:[%s3 + $0x348] sm:$0xff]
    %v2471 = vld [vmem:[%s3 + $0x350] sm:$0xff]
    %v2472 = vld [vmem:[%s3 + $0x358] sm:$0xf]
    %v2473 = vld [vmem:[%s3 + $0x35c] sm:$0xff]
    %v2474 = vld [vmem:[%s3 + $0x364] sm:$0xff]
    %v2475 = vld [vmem:[%s3 + $0x36c] sm:$0xf]
    %v2476 = vld [vmem:[%s3 + $0x370] sm:$0xff]
    %v2477 = vld [vmem:[%s3 + $0x378] sm:$0xff]
    %v2478 = vld [vmem:[%s3 + $0x380] sm:$0xf]
    %v2479 = vld [vmem:[%s3 + $0x384] sm:$0xff]
    %v2480 = vld [vmem:[%s3 + $0x38c] sm:$0xff]
    %v2481 = vld [vmem:[%s3 + $0x394] sm:$0xf]
    %v2482 = vld [vmem:[%s3 + $0x398] sm:$0xff]
    %v2483 = vld [vmem:[%s3 + $0x3a0] sm:$0xff]
    %v2484 = vld [vmem:[%s3 + $0x3a8] sm:$0xf]
    %v2485 = vld [vmem:[%s3 + $0x3ac] sm:$0xff]
    %v2486 = vld [vmem:[%s3 + $0x3b4] sm:$0xff]
    %v2487 = vld [vmem:[%s3 + $0x3bc] sm:$0xf]
    %v2488 = vld [vmem:[%s3 + $0x3c0] sm:$0xff]
    %v2489 = vld [vmem:[%s3 + $0x3c8] sm:$0xff]
    %v2490 = vld [vmem:[%s3 + $0x3d0] sm:$0xf]
    %v2491 = vld [vmem:[%s3 + $0x3d4] sm:$0xff]
    %v2492 = vld [vmem:[%s3 + $0x3dc] sm:$0xff]
    %v2493 = vld [vmem:[%s3 + $0x3e4] sm:$0xf]
    %v2494 = vld [vmem:[%s3 + $0x3e8] sm:$0xff]
    %v2495 = vld [vmem:[%s3 + $0x3f0] sm:$0xff]
    %v2496 = vld [vmem:[%s3 + $0x3f8] sm:$0xf]
    %v2497 = vld [vmem:[%s3 + $0x3fc] sm:$0xff]
    %v2498 = vld [vmem:[%s3 + $0x404] sm:$0xff]
    %v2499 = vld [vmem:[%s3 + $0x40c] sm:$0xf]
    %v2500 = vld [vmem:[%s3 + $0x410] sm:$0xff]
    %v2501 = vld [vmem:[%s3 + $0x418] sm:$0xff]
    %v2502 = vld [vmem:[%s3 + $0x420] sm:$0xf]
    %v2503 = vld [vmem:[%s3 + $0x424] sm:$0xff]
    %v2504 = vld [vmem:[%s3 + $0x42c] sm:$0xff]
    %v2505 = vld [vmem:[%s3 + $0x434] sm:$0xf]
    %v2506 = vld [vmem:[%s3 + $0x438] sm:$0xff]
    %v2507 = vld [vmem:[%s3 + $0x440] sm:$0xff]
    %v2508 = vld [vmem:[%s3 + $0x448] sm:$0xf]
    %v2509 = vld [vmem:[%s3 + $0x44c] sm:$0xff]
    %v2510 = vld [vmem:[%s3 + $0x454] sm:$0xff]
    %v2511 = vld [vmem:[%s3 + $0x45c] sm:$0xf]
    %v2512 = vld [vmem:[%s3 + $0x460] sm:$0xff]
    %v2513 = vld [vmem:[%s3 + $0x468] sm:$0xff]
    %v2514 = vld [vmem:[%s3 + $0x470] sm:$0xf]
    %v2515 = vld [vmem:[%s3 + $0x474] sm:$0xff]
    %v2516 = vld [vmem:[%s3 + $0x47c] sm:$0xff]
    %v2517 = vld [vmem:[%s3 + $0x484] sm:$0xf]
    %v2518 = vld [vmem:[%s3 + $0x488] sm:$0xff]
    %v2519 = vld [vmem:[%s3 + $0x490] sm:$0xff]
    %v2520 = vld [vmem:[%s3 + $0x498] sm:$0xf]
    %v2521 = vld [vmem:[%s3 + $0x49c] sm:$0xff]
    %v2522 = vld [vmem:[%s3 + $0x4a4] sm:$0xff]
    %v2523 = vld [vmem:[%s3 + $0x4ac] sm:$0xf]
    %v2524 = vld [vmem:[%s3 + $0x4b0] sm:$0xff]
    %v2525 = vld [vmem:[%s3 + $0x4b8] sm:$0xff]
    %v2526 = vld [vmem:[%s3 + $0x4c0] sm:$0xf]
    %v2527 = vld [vmem:[%s3 + $0x4c4] sm:$0xff]
    %v2528 = vld [vmem:[%s3 + $0x4cc] sm:$0xff]
    %v2529 = vld [vmem:[%s3 + $0x4d4] sm:$0xf]
    %v2530 = vld [vmem:[%s3 + $0x4d8] sm:$0xff]
    %v2531 = vld [vmem:[%s3 + $0x4e0] sm:$0xff]
    %v2532 = vld [vmem:[%s3 + $0x4e8] sm:$0xf]
    %v2533 = vld [vmem:[%s3 + $0x4ec] sm:$0xff]
    %v2534 = vld [vmem:[%s3 + $0x4f4] sm:$0xff]
    %v2535 = vld [vmem:[%s3 + $0x4fc] sm:$0xf]
    %v2536 = vld [vmem:[%s3 + $0x500] sm:$0xff]
    %v2537 = vld [vmem:[%s3 + $0x508] sm:$0xff]
    %v2538 = vld [vmem:[%s3 + $0x510] sm:$0xf]
    %v2539 = vld [vmem:[%s3 + $0x514] sm:$0xff]
    %v2540 = vld [vmem:[%s3 + $0x51c] sm:$0xff]
    %v2541 = vld [vmem:[%s3 + $0x524] sm:$0xf]
    %v2542 = vld [vmem:[%s3 + $0x528] sm:$0xff]
    %v2543 = vld [vmem:[%s3 + $0x530] sm:$0xff]
    %v2544 = vld [vmem:[%s3 + $0x538] sm:$0xf]
    %v2545 = vld [vmem:[%s3 + $0x53c] sm:$0xff]
    %v2546 = vld [vmem:[%s3 + $0x544] sm:$0xff]
    %v2547 = vld [vmem:[%s3 + $0x54c] sm:$0xf]
    %v2548 = vld [vmem:[%s3 + $0x550] sm:$0xff]
    %v2549 = vld [vmem:[%s3 + $0x558] sm:$0xff]
    %v2550 = vld [vmem:[%s3 + $0x560] sm:$0xf]
    %v2551 = vld [vmem:[%s3 + $0x564] sm:$0xff]
    %v2552 = vld [vmem:[%s3 + $0x56c] sm:$0xff]
    %v2553 = vld [vmem:[%s3 + $0x574] sm:$0xf]
    %v2554 = vld [vmem:[%s3 + $0x578] sm:$0xff]
    %v2555 = vld [vmem:[%s3 + $0x580] sm:$0xff]
    %v2556 = vld [vmem:[%s3 + $0x588] sm:$0xf]
    %v2557 = vld [vmem:[%s3 + $0x58c] sm:$0xff]
    %v2558 = vld [vmem:[%s3 + $0x594] sm:$0xff]
    %v2559 = vld [vmem:[%s3 + $0x59c] sm:$0xf]
    %v2560 = vld [vmem:[%s3 + $0x5a0] sm:$0xff]
    %v2561 = vld [vmem:[%s3 + $0x5a8] sm:$0xff]
    %v2562 = vld [vmem:[%s3 + $0x5b0] sm:$0xf]
    %v2563 = vld [vmem:[%s3 + $0x5b4] sm:$0xff]
    %v2564 = vld [vmem:[%s3 + $0x5bc] sm:$0xff]
    %v2565 = vld [vmem:[%s3 + $0x5c4] sm:$0xf]
    %v2566 = vld [vmem:[%s3 + $0x5c8] sm:$0xff]
    %v2567 = vld [vmem:[%s3 + $0x5d0] sm:$0xff]
    %v2568 = vld [vmem:[%s3 + $0x5d8] sm:$0xf]
    %v2569 = vld [vmem:[%s3 + $0x5dc] sm:$0xff]
    %v2570 = vld [vmem:[%s3 + $0x5e4] sm:$0xff]
    %v2571 = vld [vmem:[%s3 + $0x5ec] sm:$0xf]
    %v2572 = vld [vmem:[%s3 + $0x5f0] sm:$0xff]
    %v2573 = vld [vmem:[%s3 + $0x5f8] sm:$0xff]
    %v2574 = vld [vmem:[%s3 + $0x600] sm:$0xf]
    %v2575 = vld [vmem:[%s3 + $0x604] sm:$0xff]
    %v2576 = vld [vmem:[%s3 + $0x60c] sm:$0xff]
    %v2577 = vld [vmem:[%s3 + $0x614] sm:$0xf]
    %v2578 = vld [vmem:[%s3 + $0x618] sm:$0xff]
    %v2579 = vld [vmem:[%s3 + $0x620] sm:$0xff]
    %v2580 = vld [vmem:[%s3 + $0x628] sm:$0xf]
    %v2581 = vld [vmem:[%s3 + $0x62c] sm:$0xff]
    %v2582 = vld [vmem:[%s3 + $0x634] sm:$0xff]
    %v2583 = vld [vmem:[%s3 + $0x63c] sm:$0xf]
    %v2584 = vld [vmem:[%s3 + $0x640] sm:$0xff]
    %v2585 = vld [vmem:[%s3 + $0x648] sm:$0xff]
    %v2586 = vld [vmem:[%s3 + $0x650] sm:$0xf]
    %v2587 = vld [vmem:[%s3 + $0x654] sm:$0xff]
    %v2588 = vld [vmem:[%s3 + $0x65c] sm:$0xff]
    %v2589 = vld [vmem:[%s3 + $0x664] sm:$0xf]
    %v2590 = vld [vmem:[%s3 + $0x668] sm:$0xff]
    %v2591 = vld [vmem:[%s3 + $0x670] sm:$0xff]
    %v2592 = vld [vmem:[%s3 + $0x678] sm:$0xf]
    %v2593 = vld [vmem:[%s3 + $0x67c] sm:$0xff]
    %v2594 = vld [vmem:[%s3 + $0x684] sm:$0xff]
    %v2595 = vld [vmem:[%s3 + $0x68c] sm:$0xf]
    %v2596 = vld [vmem:[%s3 + $0x690] sm:$0xff]
    %v2597 = vld [vmem:[%s3 + $0x698] sm:$0xff]
    %v2598 = vld [vmem:[%s3 + $0x6a0] sm:$0xf]
    %v2599 = vld [vmem:[%s3 + $0x6a4] sm:$0xff]
    %v2600 = vld [vmem:[%s3 + $0x6ac] sm:$0xff]
    %v2601 = vld [vmem:[%s3 + $0x6b4] sm:$0xf]
    %v2602 = vld [vmem:[%s3 + $0x6b8] sm:$0xff]
    %v2603 = vld [vmem:[%s3 + $0x6c0] sm:$0xff]
    %v2604 = vld [vmem:[%s3 + $0x6c8] sm:$0xf]
    %v2605 = vld [vmem:[%s3 + $0x6cc] sm:$0xff]
    %v2606 = vld [vmem:[%s3 + $0x6d4] sm:$0xff]
    %v2607 = vld [vmem:[%s3 + $0x6dc] sm:$0xf]
    %v2608 = vld [vmem:[%s3 + $0x6e0] sm:$0xff]
    %v2609 = vld [vmem:[%s3 + $0x6e8] sm:$0xff]
    %v2610 = vld [vmem:[%s3 + $0x6f0] sm:$0xf]
    %v2611 = vld [vmem:[%s3 + $0x6f4] sm:$0xff]
    %v2612 = vld [vmem:[%s3 + $0x6fc] sm:$0xff]
    %v2613 = vld [vmem:[%s3 + $0x704] sm:$0xf]
    %v2614 = vld [vmem:[%s3 + $0x708] sm:$0xff]
    %v2615 = vld [vmem:[%s3 + $0x710] sm:$0xff]
    %v2616 = vld [vmem:[%s3 + $0x718] sm:$0xf]
    %v2617 = vld [vmem:[%s3 + $0x71c] sm:$0xff]
    %v2618 = vld [vmem:[%s3 + $0x724] sm:$0xff]
    %v2619 = vld [vmem:[%s3 + $0x72c] sm:$0xf]
    %v2620 = vld [vmem:[%s3 + $0x730] sm:$0xff]
    %v2621 = vld [vmem:[%s3 + $0x738] sm:$0xff]
    %v2622 = vld [vmem:[%s3 + $0x740] sm:$0xf]
    %v2623 = vld [vmem:[%s3 + $0x744] sm:$0xff]
    %v2624 = vld [vmem:[%s3 + $0x74c] sm:$0xff]
    %v2625 = vld [vmem:[%s3 + $0x754] sm:$0xf]
    %v2626 = vld [vmem:[%s3 + $0x758] sm:$0xff]
    %v2627 = vld [vmem:[%s3 + $0x760] sm:$0xff]
    %v2628 = vld [vmem:[%s3 + $0x768] sm:$0xf]
    %v2629 = vld [vmem:[%s3 + $0x76c] sm:$0xff]
    %v2630 = vld [vmem:[%s3 + $0x774] sm:$0xff]
    %v2631 = vld [vmem:[%s3 + $0x77c] sm:$0xf]
    %v2632 = vld [vmem:[%s3 + $0x780] sm:$0xff]
    %v2633 = vld [vmem:[%s3 + $0x788] sm:$0xff]
    %v2634 = vld [vmem:[%s3 + $0x790] sm:$0xf]
    %v2635 = vld [vmem:[%s3 + $0x794] sm:$0xff]
    %v2636 = vld [vmem:[%s3 + $0x79c] sm:$0xff]
    %v2637 = vld [vmem:[%s3 + $0x7a4] sm:$0xf]
    %v2638 = vld [vmem:[%s3 + $0x7a8] sm:$0xff]
    %v2639 = vld [vmem:[%s3 + $0x7b0] sm:$0xff]
    %v2640 = vld [vmem:[%s3 + $0x7b8] sm:$0xf]
    %v2641 = vld [vmem:[%s3 + $0x7bc] sm:$0xff]
    %v2642 = vld [vmem:[%s3 + $0x7c4] sm:$0xff]
    %v2643 = vld [vmem:[%s3 + $0x7cc] sm:$0xf]
    %v2644 = vld [vmem:[%s3 + $0x7d0] sm:$0xff]
    %v2645 = vld [vmem:[%s3 + $0x7d8] sm:$0xff]
    %v2646 = vld [vmem:[%s3 + $0x7e0] sm:$0xf]
    %v2647 = vld [vmem:[%s3 + $0x7e4] sm:$0xff]
    %v2648 = vld [vmem:[%s3 + $0x7ec] sm:$0xff]
    %v2649 = vld [vmem:[%s3 + $0x7f4] sm:$0xf]
    %v2650 = vld [vmem:[%s3 + $0x7f8] sm:$0xff]
    %v2651 = vld [vmem:[%s3 + $0x800] sm:$0xff]
    %v2652 = vld [vmem:[%s3 + $0x808] sm:$0xf]
    %v2653 = vld [vmem:[%s3 + $0x80c] sm:$0xff]
    %v2654 = vld [vmem:[%s3 + $0x814] sm:$0xff]
    %v2655 = vld [vmem:[%s3 + $0x81c] sm:$0xf]
    %v2656 = vld [vmem:[%s3 + $0x820] sm:$0xff]
    %v2657 = vld [vmem:[%s3 + $0x828] sm:$0xff]
    %v2658 = vld [vmem:[%s3 + $0x830] sm:$0xf]
    %v2659 = vld [vmem:[%s3 + $0x834] sm:$0xff]
    %v2660 = vld [vmem:[%s3 + $0x83c] sm:$0xff]
    %v2661 = vld [vmem:[%s3 + $0x844] sm:$0xf]
    %v2662 = vld [vmem:[%s3 + $0x848] sm:$0xff]
    %v2663 = vld [vmem:[%s3 + $0x850] sm:$0xff]
    %v2664 = vld [vmem:[%s3 + $0x858] sm:$0xf]
    %v2665 = vld [vmem:[%s3 + $0x85c] sm:$0xff]
    %v2666 = vld [vmem:[%s3 + $0x864] sm:$0xff]
    %v2667 = vld [vmem:[%s3 + $0x86c] sm:$0xf]
    %v2668 = vld [vmem:[%s3 + $0x870] sm:$0xff]
    %v2669 = vld [vmem:[%s3 + $0x878] sm:$0xff]
    %v2670 = vld [vmem:[%s3 + $0x880] sm:$0xf]
    %v2671 = vld [vmem:[%s3 + $0x884] sm:$0xff]
    %v2672 = vld [vmem:[%s3 + $0x88c] sm:$0xff]
    %v2673 = vld [vmem:[%s3 + $0x894] sm:$0xf]
    %v2674 = vld [vmem:[%s3 + $0x898] sm:$0xff]
    %v2675 = vld [vmem:[%s3 + $0x8a0] sm:$0xff]
    %v2676 = vld [vmem:[%s3 + $0x8a8] sm:$0xf]
    %v2677 = vld [vmem:[%s3 + $0x8ac] sm:$0xff]
    %v2678 = vld [vmem:[%s3 + $0x8b4] sm:$0xff]
    %v2679 = vld [vmem:[%s3 + $0x8bc] sm:$0xf]
    %v2680 = vld [vmem:[%s3 + $0x8c0] sm:$0xff]
    %v2681 = vld [vmem:[%s3 + $0x8c8] sm:$0xff]
    %v2682 = vld [vmem:[%s3 + $0x8d0] sm:$0xf]
    %v2683 = vld [vmem:[%s3 + $0x8d4] sm:$0xff]
    %v2684 = vld [vmem:[%s3 + $0x8dc] sm:$0xff]
    %v2685 = vld [vmem:[%s3 + $0x8e4] sm:$0xf]
    %v2686 = vld [vmem:[%s3 + $0x8e8] sm:$0xff]
    %v2687 = vld [vmem:[%s3 + $0x8f0] sm:$0xff]
    %v2688 = vld [vmem:[%s3 + $0x8f8] sm:$0xf]
    %v2689 = vld [vmem:[%s3 + $0x8fc] sm:$0xff]
    %v2690 = vld [vmem:[%s3 + $0x904] sm:$0xff]
    %v2691 = vld [vmem:[%s3 + $0x90c] sm:$0xf]
    %v2692 = vld [vmem:[%s3 + $0x910] sm:$0xff]
    %v2693 = vld [vmem:[%s3 + $0x918] sm:$0xff]
    %v2694 = vld [vmem:[%s3 + $0x920] sm:$0xf]
    %v2695 = vld [vmem:[%s3 + $0x924] sm:$0xff]
    %v2696 = vld [vmem:[%s3 + $0x92c] sm:$0xff]
    %v2697 = vld [vmem:[%s3 + $0x934] sm:$0xf]
    %v2698 = vld [vmem:[%s3 + $0x938] sm:$0xff]
    %v2699 = vld [vmem:[%s3 + $0x940] sm:$0xff]
    %v2700 = vld [vmem:[%s3 + $0x948] sm:$0xf]
    %v2701 = vld [vmem:[%s3 + $0x94c] sm:$0xff]
    %v2702 = vld [vmem:[%s3 + $0x954] sm:$0xff]
    %v2703 = vld [vmem:[%s3 + $0x95c] sm:$0xf]
    %v2704 = vld [vmem:[%s3 + $0x960] sm:$0xff]
    %v2705 = vld [vmem:[%s3 + $0x968] sm:$0xff]
    %v2706 = vld [vmem:[%s3 + $0x970] sm:$0xf]
    %v2707 = vld [vmem:[%s3 + $0x974] sm:$0xff]
    %v2708 = vld [vmem:[%s3 + $0x97c] sm:$0xff]
    %v2709 = vld [vmem:[%s3 + $0x984] sm:$0xf]
    %v2710 = vld [vmem:[%s3 + $0x988] sm:$0xff]
    %v2711 = vld [vmem:[%s3 + $0x990] sm:$0xff]
    %v2712 = vld [vmem:[%s3 + $0x998] sm:$0xf]
    %v2713 = vld [vmem:[%s3 + $0x99c] sm:$0xff]
    %v2714 = vld [vmem:[%s3 + $0x9a4] sm:$0xff]
    %v2715 = vld [vmem:[%s3 + $0x9ac] sm:$0xf]
    %v2716 = vld [vmem:[%s3 + $0x9b0] sm:$0xff]
    %v2717 = vld [vmem:[%s3 + $0x9b8] sm:$0xff]
    %v2718 = vld [vmem:[%s3 + $0x9c0] sm:$0xf]
    %v2719 = vld [vmem:[%s3 + $0x9c4] sm:$0xff]
    %v2720 = vld [vmem:[%s3 + $0x9cc] sm:$0xff]
    %v2721 = vld [vmem:[%s3 + $0x9d4] sm:$0xf]
    %v2722 = vld [vmem:[%s3 + $0x9d8] sm:$0xff]
    %v2723 = vld [vmem:[%s3 + $0x9e0] sm:$0xff]
    %v2724 = vld [vmem:[%s3 + $0x9e8] sm:$0xf]
    %v2725 = vld [vmem:[%s3 + $0x9ec] sm:$0xff]
    %v2726 = vld [vmem:[%s3 + $0x9f4] sm:$0xff]
    %v2727 = vld [vmem:[%s3 + $0x9fc] sm:$0xf]
    %v2728 = vld [vmem:[%s3 + $0xa00] sm:$0xff]
    %v2729 = vld [vmem:[%s3 + $0xa08] sm:$0xff]
    %v2730 = vld [vmem:[%s3 + $0xa10] sm:$0xf]
    %v2731 = vld [vmem:[%s3 + $0xa14] sm:$0xff]
    %v2732 = vld [vmem:[%s3 + $0xa1c] sm:$0xff]
    %v2733 = vld [vmem:[%s3 + $0xa24] sm:$0xf]
    %v2734 = vld [vmem:[%s3 + $0xa28] sm:$0xff]
    %v2735 = vld [vmem:[%s3 + $0xa30] sm:$0xff]
    %v2736 = vld [vmem:[%s3 + $0xa38] sm:$0xf]
    %v2737 = vld [vmem:[%s3 + $0xa3c] sm:$0xff]
    %v2738 = vld [vmem:[%s3 + $0xa44] sm:$0xff]
    %v2739 = vld [vmem:[%s3 + $0xa4c] sm:$0xf]
    %v2740 = vld [vmem:[%s3 + $0xa50] sm:$0xff]
    %v2741 = vld [vmem:[%s3 + $0xa58] sm:$0xff]
    %v2742 = vld [vmem:[%s3 + $0xa60] sm:$0xf]
    %v2743 = vld [vmem:[%s3 + $0xa64] sm:$0xff]
    %v2744 = vld [vmem:[%s3 + $0xa6c] sm:$0xff]
    %v2745 = vld [vmem:[%s3 + $0xa74] sm:$0xf]
    %v2746 = vld [vmem:[%s3 + $0xa78] sm:$0xff]
    %v2747 = vld [vmem:[%s3 + $0xa80] sm:$0xff]
    %v2748 = vld [vmem:[%s3 + $0xa88] sm:$0xf]
    %v2749 = vld [vmem:[%s3 + $0xa8c] sm:$0xff]
    %v2750 = vld [vmem:[%s3 + $0xa94] sm:$0xff]
    %v2751 = vld [vmem:[%s3 + $0xa9c] sm:$0xf]
    %v2752 = vld [vmem:[%s3 + $0xaa0] sm:$0xff]
    %v2753 = vld [vmem:[%s3 + $0xaa8] sm:$0xff]
    %v2754 = vld [vmem:[%s3 + $0xab0] sm:$0xf]
    %v2755 = vld [vmem:[%s3 + $0xab4] sm:$0xff]
    %v2756 = vld [vmem:[%s3 + $0xabc] sm:$0xff]
    %v2757 = vld [vmem:[%s3 + $0xac4] sm:$0xf]
    %v2758 = vld [vmem:[%s3 + $0xac8] sm:$0xff]
    %v2759 = vld [vmem:[%s3 + $0xad0] sm:$0xff]
    %v2760 = vld [vmem:[%s3 + $0xad8] sm:$0xf]
    %v2761 = vld [vmem:[%s3 + $0xadc] sm:$0xff]
    %v2762 = vld [vmem:[%s3 + $0xae4] sm:$0xff]
    %v2763 = vld [vmem:[%s3 + $0xaec] sm:$0xf]
    %v2764 = vld [vmem:[%s3 + $0xaf0] sm:$0xff]
    %v2765 = vld [vmem:[%s3 + $0xaf8] sm:$0xff]
    %v2766 = vld [vmem:[%s3 + $0xb00] sm:$0xf]
    %v2767 = vld [vmem:[%s3 + $0xb04] sm:$0xff]
    %v2768 = vld [vmem:[%s3 + $0xb0c] sm:$0xff]
    %v2769 = vld [vmem:[%s3 + $0xb14] sm:$0xf]
    %v2770 = vld [vmem:[%s3 + $0xb18] sm:$0xff]
    %v2771 = vld [vmem:[%s3 + $0xb20] sm:$0xff]
    %v2772 = vld [vmem:[%s3 + $0xb28] sm:$0xf]
    %v2773 = vld [vmem:[%s3 + $0xb2c] sm:$0xff]
    %v2774 = vld [vmem:[%s3 + $0xb34] sm:$0xff]
    %v2775 = vld [vmem:[%s3 + $0xb3c] sm:$0xf]
    %v2776 = vld [vmem:[%s3 + $0xb40] sm:$0xff]
    %v2777 = vld [vmem:[%s3 + $0xb48] sm:$0xff]
    %v2778 = vld [vmem:[%s3 + $0xb50] sm:$0xf]
    %v2779 = vld [vmem:[%s3 + $0xb54] sm:$0xff]
    %v2780 = vld [vmem:[%s3 + $0xb5c] sm:$0xff]
    %v2781 = vld [vmem:[%s3 + $0xb64] sm:$0xf]
    %v2782 = vld [vmem:[%s3 + $0xb68] sm:$0xff]
    %v2783 = vld [vmem:[%s3 + $0xb70] sm:$0xff]
    %v2784 = vld [vmem:[%s3 + $0xb78] sm:$0xf]
    %v2785 = vld [vmem:[%s3 + $0xb7c] sm:$0xff]
    %v2786 = vld [vmem:[%s3 + $0xb84] sm:$0xff]
    %v2787 = vld [vmem:[%s3 + $0xb8c] sm:$0xf]
    %v2788 = vld [vmem:[%s3 + $0xb90] sm:$0xff]
    %v2789 = vld [vmem:[%s3 + $0xb98] sm:$0xff]
    %v2790 = vld [vmem:[%s3 + $0xba0] sm:$0xf]
    %v2791 = vld [vmem:[%s3 + $0xba4] sm:$0xff]
    %v2792 = vld [vmem:[%s3 + $0xbac] sm:$0xff]
    %v2793 = vld [vmem:[%s3 + $0xbb4] sm:$0xf]
    %v2794 = vld [vmem:[%s3 + $0xbb8] sm:$0xff]
    %v2795 = vld [vmem:[%s3 + $0xbc0] sm:$0xff]
    %v2796 = vld [vmem:[%s3 + $0xbc8] sm:$0xf]
    %v2797 = vld [vmem:[%s3 + $0xbcc] sm:$0xff]
    %v2798 = vld [vmem:[%s3 + $0xbd4] sm:$0xff]
    %v2799 = vld [vmem:[%s3 + $0xbdc] sm:$0xf]
    %v2800 = vld [vmem:[%s3 + $0xbe0] sm:$0xff]
    %v2801 = vld [vmem:[%s3 + $0xbe8] sm:$0xff]
    %v2802 = vld [vmem:[%s3 + $0xbf0] sm:$0xf]
    %v2803 = vld [vmem:[%s3 + $0xbf4] sm:$0xff]
    %v2804 = vld [vmem:[%s3 + $0xbfc] sm:$0xff]
    %v2805 = vld [vmem:[%s3 + $0xc04] sm:$0xf]
    %v2806 = vld [vmem:[%s3 + $0xc08] sm:$0xff]
    %v2807 = vld [vmem:[%s3 + $0xc10] sm:$0xff]
    %v2808 = vld [vmem:[%s3 + $0xc18] sm:$0xf]
    %v2809 = vld [vmem:[%s3 + $0xc1c] sm:$0xff]
    %v2810 = vld [vmem:[%s3 + $0xc24] sm:$0xff]
    %v2811 = vld [vmem:[%s3 + $0xc2c] sm:$0xf]
    %v2812 = vld [vmem:[%s3 + $0xc30] sm:$0xff]
    %v2813 = vld [vmem:[%s3 + $0xc38] sm:$0xff]
    %v2814 = vld [vmem:[%s3 + $0xc40] sm:$0xf]
    %v2815 = vld [vmem:[%s3 + $0xc44] sm:$0xff]
    %v2816 = vld [vmem:[%s3 + $0xc4c] sm:$0xff]
    %v2817 = vld [vmem:[%s3 + $0xc54] sm:$0xf]
    %v2818 = vld [vmem:[%s3 + $0xc58] sm:$0xff]
    %v2819 = vld [vmem:[%s3 + $0xc60] sm:$0xff]
    %v2820 = vld [vmem:[%s3 + $0xc68] sm:$0xf]
    %v2821 = vld [vmem:[%s3 + $0xc6c] sm:$0xff]
    %v2822 = vld [vmem:[%s3 + $0xc74] sm:$0xff]
    %v2823 = vld [vmem:[%s3 + $0xc7c] sm:$0xf]
    %v2824 = vld [vmem:[%s3 + $0xc80] sm:$0xff]
    %v2825 = vld [vmem:[%s3 + $0xc88] sm:$0xff]
    %v2826 = vld [vmem:[%s3 + $0xc90] sm:$0xf]
    %v2827 = vld [vmem:[%s3 + $0xc94] sm:$0xff]
    %v2828 = vld [vmem:[%s3 + $0xc9c] sm:$0xff]
    %v2829 = vld [vmem:[%s3 + $0xca4] sm:$0xf]
    %v2830 = vld [vmem:[%s3 + $0xca8] sm:$0xff]
    %v2831 = vld [vmem:[%s3 + $0xcb0] sm:$0xff]
    %v2832 = vld [vmem:[%s3 + $0xcb8] sm:$0xf]
    %v2833 = vld [vmem:[%s3 + $0xcbc] sm:$0xff]
    %v2834 = vld [vmem:[%s3 + $0xcc4] sm:$0xff]
    %v2835 = vld [vmem:[%s3 + $0xccc] sm:$0xf]
    %v2836 = vld [vmem:[%s3 + $0xcd0] sm:$0xff]
    %v2837 = vld [vmem:[%s3 + $0xcd8] sm:$0xff]
    %v2838 = vld [vmem:[%s3 + $0xce0] sm:$0xf]
    %v2839 = vld [vmem:[%s3 + $0xce4] sm:$0xff]
    %v2840 = vld [vmem:[%s3 + $0xcec] sm:$0xff]
    %v2841 = vld [vmem:[%s3 + $0xcf4] sm:$0xf]
    %v2842 = vld [vmem:[%s3 + $0xcf8] sm:$0xff]
    %v2843 = vld [vmem:[%s3 + $0xd00] sm:$0xff]
    %v2844 = vld [vmem:[%s3 + $0xd08] sm:$0xf]
    %v2845 = vld [vmem:[%s3 + $0xd0c] sm:$0xff]
    %v2846 = vld [vmem:[%s3 + $0xd14] sm:$0xff]
    %v2847 = vld [vmem:[%s3 + $0xd1c] sm:$0xf]
    %v2848 = vld [vmem:[%s3 + $0xd20] sm:$0xff]
    %v2849 = vld [vmem:[%s3 + $0xd28] sm:$0xff]
    %v2850 = vld [vmem:[%s3 + $0xd30] sm:$0xf]
    %v2851 = vld [vmem:[%s3 + $0xd34] sm:$0xff]
    %v2852 = vld [vmem:[%s3 + $0xd3c] sm:$0xff]
    %v2853 = vld [vmem:[%s3 + $0xd44] sm:$0xf]
    %v2854 = vld [vmem:[%s3 + $0xd48] sm:$0xff]
    %v2855 = vld [vmem:[%s3 + $0xd50] sm:$0xff]
    %v2856 = vld [vmem:[%s3 + $0xd58] sm:$0xf]
    %v2857 = vld [vmem:[%s3 + $0xd5c] sm:$0xff]
    %v2858 = vld [vmem:[%s3 + $0xd64] sm:$0xff]
    %v2859 = vld [vmem:[%s3 + $0xd6c] sm:$0xf]
    %v2860 = vld [vmem:[%s3 + $0xd70] sm:$0xff]
    %v2861 = vld [vmem:[%s3 + $0xd78] sm:$0xff]
    %v2862 = vld [vmem:[%s3 + $0xd80] sm:$0xf]
    %v2863 = vld [vmem:[%s3 + $0xd84] sm:$0xff]
    %v2864 = vld [vmem:[%s3 + $0xd8c] sm:$0xff]
    %v2865 = vld [vmem:[%s3 + $0xd94] sm:$0xf]
    %v2866 = vld [vmem:[%s3 + $0xd98] sm:$0xff]
    %v2867 = vld [vmem:[%s3 + $0xda0] sm:$0xff]
    %v2868 = vld [vmem:[%s3 + $0xda8] sm:$0xf]
    %v2869 = vld [vmem:[%s3 + $0xdac] sm:$0xff]
    %v2870 = vld [vmem:[%s3 + $0xdb4] sm:$0xff]
    %v2871 = vld [vmem:[%s3 + $0xdbc] sm:$0xf]
    %v2872 = vld [vmem:[%s3 + $0xdc0] sm:$0xff]
    %v2873 = vld [vmem:[%s3 + $0xdc8] sm:$0xff]
    %v2874 = vld [vmem:[%s3 + $0xdd0] sm:$0xf]
    %v2875 = vld [vmem:[%s3 + $0xdd4] sm:$0xff]
    %v2876 = vld [vmem:[%s3 + $0xddc] sm:$0xff]
    %v2877 = vld [vmem:[%s3 + $0xde4] sm:$0xf]
    %v2878 = vld [vmem:[%s3 + $0xde8] sm:$0xff]
    %v2879 = vld [vmem:[%s3 + $0xdf0] sm:$0xff]
    %v2880 = vld [vmem:[%s3 + $0xdf8] sm:$0xf]
    %v2881 = vld [vmem:[%s3 + $0xdfc] sm:$0xff]
    %v2882 = vld [vmem:[%s3 + $0xe04] sm:$0xff]
    %v2883 = vld [vmem:[%s3 + $0xe0c] sm:$0xf]
    %v2884 = vld [vmem:[%s3 + $0xe10] sm:$0xff]
    %v2885 = vld [vmem:[%s3 + $0xe18] sm:$0xff]
    %v2886 = vld [vmem:[%s3 + $0xe20] sm:$0xf]
    %v2887 = vld [vmem:[%s3 + $0xe24] sm:$0xff]
    %v2888 = vld [vmem:[%s3 + $0xe2c] sm:$0xff]
    %v2889 = vld [vmem:[%s3 + $0xe34] sm:$0xf]
    %v2890 = vld [vmem:[%s3 + $0xe38] sm:$0xff]
    %v2891 = vld [vmem:[%s3 + $0xe40] sm:$0xff]
    %v2892 = vld [vmem:[%s3 + $0xe48] sm:$0xf]
    %v2893 = vld [vmem:[%s3 + $0xe4c] sm:$0xff]
    %v2894 = vld [vmem:[%s3 + $0xe54] sm:$0xff]
    %v2895 = vld [vmem:[%s3 + $0xe5c] sm:$0xf]
    %v2896 = vld [vmem:[%s3 + $0xe60] sm:$0xff]
    %v2897 = vld [vmem:[%s3 + $0xe68] sm:$0xff]
    %v2898 = vld [vmem:[%s3 + $0xe70] sm:$0xf]
    %v2899 = vld [vmem:[%s3 + $0xe74] sm:$0xff]
    %v2900 = vld [vmem:[%s3 + $0xe7c] sm:$0xff]
    %v2901 = vld [vmem:[%s3 + $0xe84] sm:$0xf]
    %v2902 = vld [vmem:[%s3 + $0xe88] sm:$0xff]
    %v2903 = vld [vmem:[%s3 + $0xe90] sm:$0xff]
    %v2904 = vld [vmem:[%s3 + $0xe98] sm:$0xf]
    %v2905 = vld [vmem:[%s3 + $0xe9c] sm:$0xff]
    %v2906 = vld [vmem:[%s3 + $0xea4] sm:$0xff]
    %v2907 = vld [vmem:[%s3 + $0xeac] sm:$0xf]
    %v2908 = vld [vmem:[%s3 + $0xeb0] sm:$0xff]
    %v2909 = vld [vmem:[%s3 + $0xeb8] sm:$0xff]
    %v2910 = vld [vmem:[%s3 + $0xec0] sm:$0xf]
    %v2911 = vld [vmem:[%s3 + $0xec4] sm:$0xff]
    %v2912 = vld [vmem:[%s3 + $0xecc] sm:$0xff]
    %v2913 = vld [vmem:[%s3 + $0xed4] sm:$0xf]
    %v2914 = vld [vmem:[%s3 + $0xed8] sm:$0xff]
    %v2915 = vld [vmem:[%s3 + $0xee0] sm:$0xff]
    %v2916 = vld [vmem:[%s3 + $0xee8] sm:$0xf]
    %v2917 = vld [vmem:[%s3 + $0xeec] sm:$0xff]
    %v2918 = vld [vmem:[%s3 + $0xef4] sm:$0xff]
    %v2919 = vld [vmem:[%s3 + $0xefc] sm:$0xf]
    %v2920 = vld [vmem:[%s3 + $0xf00] sm:$0xff]
    %v2921 = vld [vmem:[%s3 + $0xf08] sm:$0xff]
    %v2922 = vld [vmem:[%s3 + $0xf10] sm:$0xf]
    %v2923 = vld [vmem:[%s3 + $0xf14] sm:$0xff]
    %v2924 = vld [vmem:[%s3 + $0xf1c] sm:$0xff]
    %v2925 = vld [vmem:[%s3 + $0xf24] sm:$0xf]
    %v2926 = vld [vmem:[%s3 + $0xf28] sm:$0xff]
    %v2927 = vld [vmem:[%s3 + $0xf30] sm:$0xff]
    %v2928 = vld [vmem:[%s3 + $0xf38] sm:$0xf]
    %v2929 = vld [vmem:[%s3 + $0xf3c] sm:$0xff]
    %v2930 = vld [vmem:[%s3 + $0xf44] sm:$0xff]
    %v2931 = vld [vmem:[%s3 + $0xf4c] sm:$0xf]
    %v2932 = vld [vmem:[%s3 + $0xf50] sm:$0xff]
    %v2933 = vld [vmem:[%s3 + $0xf58] sm:$0xff]
    %v2934 = vld [vmem:[%s3 + $0xf60] sm:$0xf]
    %v2935 = vld [vmem:[%s3 + $0xf64] sm:$0xff]
    %v2936 = vld [vmem:[%s3 + $0xf6c] sm:$0xff]
    %v2937 = vld [vmem:[%s3 + $0xf74] sm:$0xf]
    %v2938 = vld [vmem:[%s3 + $0xf78] sm:$0xff]
    %v2939 = vld [vmem:[%s3 + $0xf80] sm:$0xff]
    %v2940 = vld [vmem:[%s3 + $0xf88] sm:$0xf]
    %v2941 = vld [vmem:[%s3 + $0xf8c] sm:$0xff]
    %v2942 = vld [vmem:[%s3 + $0xf94] sm:$0xff]
    %v2943 = vld [vmem:[%s3 + $0xf9c] sm:$0xf]
    %v2944 = vld [vmem:[%s3 + $0xfa0] sm:$0xff]
    %v2945 = vld [vmem:[%s3 + $0xfa8] sm:$0xff]
    %v2946 = vld [vmem:[%s3 + $0xfb0] sm:$0xf]
    %v2947 = vld [vmem:[%s3 + $0xfb4] sm:$0xff]
    %v2948 = vld [vmem:[%s3 + $0xfbc] sm:$0xff]
    %v2949 = vld [vmem:[%s3 + $0xfc4] sm:$0xf]
    %v2950 = vld [vmem:[%s3 + $0xfc8] sm:$0xff]
    %v2951 = vld [vmem:[%s3 + $0xfd0] sm:$0xff]
    %v2952 = vld [vmem:[%s3 + $0xfd8] sm:$0xf]
    %v2953 = vld [vmem:[%s3 + $0xfdc] sm:$0xff]
    %v2954 = vld [vmem:[%s3 + $0xfe4] sm:$0xff]
    %v2955 = vld [vmem:[%s3 + $0xfec] sm:$0xf]
    %v2956 = vld [vmem:[%s3 + $0xff0] sm:$0xff]
    %v2957 = vld [vmem:[%s3 + $0xff8] sm:$0xff]
    %v2958 = vld [vmem:[%s3 + $0x1000] sm:$0xf]
    %v2959 = vld [vmem:[%s3 + $0x1004] sm:$0xff]
    %v2960 = vld [vmem:[%s3 + $0x100c] sm:$0xff]
    %v2961 = vld [vmem:[%s3 + $0x1014] sm:$0xf]
    %v2962 = vld [vmem:[%s3 + $0x1018] sm:$0xff]
    %v2963 = vld [vmem:[%s3 + $0x1020] sm:$0xff]
    %v2964 = vld [vmem:[%s3 + $0x1028] sm:$0xf]
    %v2965 = vld [vmem:[%s3 + $0x102c] sm:$0xff]
    %v2966 = vld [vmem:[%s3 + $0x1034] sm:$0xff]
    %v2967 = vld [vmem:[%s3 + $0x103c] sm:$0xf]
    %v2968 = vld [vmem:[%s3 + $0x1040] sm:$0xff]
    %v2969 = vld [vmem:[%s3 + $0x1048] sm:$0xff]
    %v2970 = vld [vmem:[%s3 + $0x1050] sm:$0xf]
    %v2971 = vld [vmem:[%s3 + $0x1054] sm:$0xff]
    %v2972 = vld [vmem:[%s3 + $0x105c] sm:$0xff]
    %v2973 = vld [vmem:[%s3 + $0x1064] sm:$0xf]
    %v2974 = vld [vmem:[%s3 + $0x1068] sm:$0xff]
    %v2975 = vld [vmem:[%s3 + $0x1070] sm:$0xff]
    %v2976 = vld [vmem:[%s3 + $0x1078] sm:$0xf]
    %v2977 = vld [vmem:[%s3 + $0x107c] sm:$0xff]
    %v2978 = vld [vmem:[%s3 + $0x1084] sm:$0xff]
    %v2979 = vld [vmem:[%s3 + $0x108c] sm:$0xf]
    %v2980 = vld [vmem:[%s3 + $0x1090] sm:$0xff]
    %v2981 = vld [vmem:[%s3 + $0x1098] sm:$0xff]
    %v2982 = vld [vmem:[%s3 + $0x10a0] sm:$0xf]
    %v2983 = vld [vmem:[%s3 + $0x10a4] sm:$0xff]
    %v2984 = vld [vmem:[%s3 + $0x10ac] sm:$0xff]
    %v2985 = vld [vmem:[%s3 + $0x10b4] sm:$0xf]
    %v2986 = vld [vmem:[%s3 + $0x10b8] sm:$0xff]
    %v2987 = vld [vmem:[%s3 + $0x10c0] sm:$0xff]
    %v2988 = vld [vmem:[%s3 + $0x10c8] sm:$0xf]
    %v2989 = vld [vmem:[%s3 + $0x10cc] sm:$0xff]
    %v2990 = vld [vmem:[%s3 + $0x10d4] sm:$0xff]
    %v2991 = vld [vmem:[%s3 + $0x10dc] sm:$0xf]
    %v2992 = vld [vmem:[%s3 + $0x10e0] sm:$0xff]
    %v2993 = vld [vmem:[%s3 + $0x10e8] sm:$0xff]
    %v2994 = vld [vmem:[%s3 + $0x10f0] sm:$0xf]
    %v2995 = vld [vmem:[%s3 + $0x10f4] sm:$0xff]
    %v2996 = vld [vmem:[%s3 + $0x10fc] sm:$0xff]
    %v2997 = vld [vmem:[%s3 + $0x1104] sm:$0xf]
    %v2998 = vld [vmem:[%s3 + $0x1108] sm:$0xff]
    %v2999 = vld [vmem:[%s3 + $0x1110] sm:$0xff]
    %v3000 = vld [vmem:[%s3 + $0x1118] sm:$0xf]
    %v3001 = vld [vmem:[%s3 + $0x111c] sm:$0xff]
    %v3002 = vld [vmem:[%s3 + $0x1124] sm:$0xff]
    %v3003 = vld [vmem:[%s3 + $0x112c] sm:$0xf]
    %v3004 = vld [vmem:[%s3 + $0x1130] sm:$0xff]
    %v3005 = vld [vmem:[%s3 + $0x1138] sm:$0xff]
    %v3006 = vld [vmem:[%s3 + $0x1140] sm:$0xf]
    %v3007 = vld [vmem:[%s3 + $0x1144] sm:$0xff]
    %v3008 = vld [vmem:[%s3 + $0x114c] sm:$0xff]
    %v3009 = vld [vmem:[%s3 + $0x1154] sm:$0xf]
    %v3010 = vld [vmem:[%s3 + $0x1158] sm:$0xff]
    %v3011 = vld [vmem:[%s3 + $0x1160] sm:$0xff]
    %v3012 = vld [vmem:[%s3 + $0x1168] sm:$0xf]
    %v3013 = vld [vmem:[%s3 + $0x116c] sm:$0xff]
    %v3014 = vld [vmem:[%s3 + $0x1174] sm:$0xff]
    %v3015 = vld [vmem:[%s3 + $0x117c] sm:$0xf]
    %v3016 = vld [vmem:[%s3 + $0x1180] sm:$0xff]
    %v3017 = vld [vmem:[%s3 + $0x1188] sm:$0xff]
    %v3018 = vld [vmem:[%s3 + $0x1190] sm:$0xf]
    %v3019 = vld [vmem:[%s3 + $0x1194] sm:$0xff]
    %v3020 = vld [vmem:[%s3 + $0x119c] sm:$0xff]
    %v3021 = vld [vmem:[%s3 + $0x11a4] sm:$0xf]
    %v3022 = vld [vmem:[%s3 + $0x11a8] sm:$0xff]
    %v3023 = vld [vmem:[%s3 + $0x11b0] sm:$0xff]
    %v3024 = vld [vmem:[%s3 + $0x11b8] sm:$0xf]
    %v3025 = vld [vmem:[%s3 + $0x11bc] sm:$0xff]
    %v3026 = vld [vmem:[%s3 + $0x11c4] sm:$0xff]
    %v3027 = vld [vmem:[%s3 + $0x11cc] sm:$0xf]
    %v3028 = vld [vmem:[%s3 + $0x11d0] sm:$0xff]
    %v3029 = vld [vmem:[%s3 + $0x11d8] sm:$0xff]
    %v3030 = vld [vmem:[%s3 + $0x11e0] sm:$0xf]
    %v3031 = vld [vmem:[%s3 + $0x11e4] sm:$0xff]
    %v3032 = vld [vmem:[%s3 + $0x11ec] sm:$0xff]
    %v3033 = vld [vmem:[%s3 + $0x11f4] sm:$0xf]
    %v3034 = vld [vmem:[%s3 + $0x11f8] sm:$0xff]
    %v3035 = vld [vmem:[%s3 + $0x1200] sm:$0xff]
    %v3036 = vld [vmem:[%s3 + $0x1208] sm:$0xf]
    %v3037 = vld [vmem:[%s3 + $0x120c] sm:$0xff]
    %v3038 = vld [vmem:[%s3 + $0x1214] sm:$0xff]
    %v3039 = vld [vmem:[%s3 + $0x121c] sm:$0xf]
    %v3040 = vld [vmem:[%s3 + $0x1220] sm:$0xff]
    %v3041 = vld [vmem:[%s3 + $0x1228] sm:$0xff]
    %v3042 = vld [vmem:[%s3 + $0x1230] sm:$0xf]
    %v3043 = vld [vmem:[%s3 + $0x1234] sm:$0xff]
    %v3044 = vld [vmem:[%s3 + $0x123c] sm:$0xff]
    %v3045 = vld [vmem:[%s3 + $0x1244] sm:$0xf]
    %v3046 = vld [vmem:[%s3 + $0x1248] sm:$0xff]
    %v3047 = vld [vmem:[%s3 + $0x1250] sm:$0xff]
    %v3048 = vld [vmem:[%s3 + $0x1258] sm:$0xf]
    %v3049 = vld [vmem:[%s3 + $0x125c] sm:$0xff]
    %v3050 = vld [vmem:[%s3 + $0x1264] sm:$0xff]
    %v3051 = vld [vmem:[%s3 + $0x126c] sm:$0xf]
    %v3052 = vld [vmem:[%s3 + $0x1270] sm:$0xff]
    %v3053 = vld [vmem:[%s3 + $0x1278] sm:$0xff]
    %v3054 = vld [vmem:[%s3 + $0x1280] sm:$0xf]
    %v3055 = vld [vmem:[%s3 + $0x1284] sm:$0xff]
    %v3056 = vld [vmem:[%s3 + $0x128c] sm:$0xff]
    %v3057 = vld [vmem:[%s3 + $0x1294] sm:$0xf]
    %v3058 = vld [vmem:[%s3 + $0x1298] sm:$0xff]
    %v3059 = vld [vmem:[%s3 + $0x12a0] sm:$0xff]
    %v3060 = vld [vmem:[%s3 + $0x12a8] sm:$0xf]
    %v3061 = vld [vmem:[%s3 + $0x12ac] sm:$0xff]
    %v3062 = vld [vmem:[%s3 + $0x12b4] sm:$0xff]
    %v3063 = vld [vmem:[%s3 + $0x12bc] sm:$0xf]
    %v3064 = vld [vmem:[%s3 + $0x12c0] sm:$0xff]
    %v3065 = vld [vmem:[%s3 + $0x12c8] sm:$0xff]
    %v3066 = vld [vmem:[%s3 + $0x12d0] sm:$0xf]
    %v3067 = vld [vmem:[%s3 + $0x12d4] sm:$0xff]
    %v3068 = vld [vmem:[%s3 + $0x12dc] sm:$0xff]
    %v3069 = vld [vmem:[%s3 + $0x12e4] sm:$0xf]
    %v3070 = vld [vmem:[%s3 + $0x12e8] sm:$0xff]
    %v3071 = vld [vmem:[%s3 + $0x12f0] sm:$0xff]
    %v3072 = vld [vmem:[%s3 + $0x12f8] sm:$0xf]
    %v3073 = vld [vmem:[%s3 + $0x12fc] sm:$0xff]
    %v3074 = vld [vmem:[%s3 + $0x1304] sm:$0xff]
    %v3075 = vld [vmem:[%s3 + $0x130c] sm:$0xf]
    %v3076 = vld [vmem:[%s3 + $0x1310] sm:$0xff]
    %v3077 = vld [vmem:[%s3 + $0x1318] sm:$0xff]
    %v3078 = vld [vmem:[%s3 + $0x1320] sm:$0xf]
    %v3079 = vld [vmem:[%s3 + $0x1324] sm:$0xff]
    %v3080 = vld [vmem:[%s3 + $0x132c] sm:$0xff]
    %v3081 = vld [vmem:[%s3 + $0x1334] sm:$0xf]
    %v3082 = vld [vmem:[%s3 + $0x1338] sm:$0xff]
    %v3083 = vld [vmem:[%s3 + $0x1340] sm:$0xff]
    %v3084 = vld [vmem:[%s3 + $0x1348] sm:$0xf]
    %v3085 = vld [vmem:[%s3 + $0x134c] sm:$0xff]
    %v3086 = vld [vmem:[%s3 + $0x1354] sm:$0xff]
    %v3087 = vld [vmem:[%s3 + $0x135c] sm:$0xf]
    %v3088 = vld [vmem:[%s3 + $0x1360] sm:$0xff]
    %v3089 = vld [vmem:[%s3 + $0x1368] sm:$0xff]
    %v3090 = vld [vmem:[%s3 + $0x1370] sm:$0xf]
    %v3091 = vld [vmem:[%s3 + $0x1374] sm:$0xff]
    %v3092 = vld [vmem:[%s3 + $0x137c] sm:$0xff]
    %v3093 = vld [vmem:[%s3 + $0x1384] sm:$0xf]
    %v3094 = vld [vmem:[%s3 + $0x1388] sm:$0xff]
    %v3095 = vld [vmem:[%s3 + $0x1390] sm:$0xff]
    %v3096 = vld [vmem:[%s3 + $0x1398] sm:$0xf]
    %v3097 = vld [vmem:[%s3 + $0x139c] sm:$0xff]
    %v3098 = vld [vmem:[%s3 + $0x13a4] sm:$0xff]
    %v3099 = vld [vmem:[%s3 + $0x13ac] sm:$0xf]
    %v3100 = vld [vmem:[%s3 + $0x13b0] sm:$0xff]
    %v3101 = vld [vmem:[%s3 + $0x13b8] sm:$0xff]
    %v3102 = vld [vmem:[%s3 + $0x13c0] sm:$0xf]
    %v3103 = vld [vmem:[%s3 + $0x13c4] sm:$0xff]
    %v3104 = vld [vmem:[%s3 + $0x13cc] sm:$0xff]
    %v3105 = vld [vmem:[%s3 + $0x13d4] sm:$0xf]
    %v3106 = vld [vmem:[%s3 + $0x13d8] sm:$0xff]
    %v3107 = vld [vmem:[%s3 + $0x13e0] sm:$0xff]
    %v3108 = vld [vmem:[%s3 + $0x13e8] sm:$0xf]
    %v3109 = vld [vmem:[%s3 + $0x13ec] sm:$0xff]
    %v3110 = vld [vmem:[%s3 + $0x13f4] sm:$0xff]
    %v3111 = vld [vmem:[%s3 + $0x13fc] sm:$0xf]
    %v3112 = vld [vmem:[%s4] sm:$0x1f]
    %v3114 = vlaneseq
    %v3115 = vshrl.u32 %v3114, 7
    %v3116 = vsub.s32 0, %v3115
    %v3117 = vrot.slane %v3112, %v3116
    %v3118 = vlaneseq
    %v3119 = vshrl.u32 %v3118, 7
    %v3120 = vsub.s32 1, %v3119
    %v3121 = vrot.slane %v3112, %v3120
    %v3122 = vlaneseq
    %v3123 = vshrl.u32 %v3122, 7
    %v3124 = vsub.s32 2, %v3123
    %v3125 = vrot.slane %v3112, %v3124
    %v3126 = vlaneseq
    %v3127 = vshrl.u32 %v3126, 7
    %v3128 = vsub.s32 3, %v3127
    %v3129 = vrot.slane %v3112, %v3128
    %v3130 = vlaneseq
    %v3131 = vshrl.u32 %v3130, 7
    %v3132 = vsub.s32 4, %v3131
    %v3133 = vrot.slane %v3112, %v3132
    %v3907 = vunpack.c.l.b16 %v2344
    %v3908 = vunpack.c.h.b16 %v2344
    %v3909 = vunpack.c.l.b16 %v2345
    %v3910 = vunpack.c.h.b16 %v2345
    %v3911 = vunpack.c.l.b16 %v2346
    %v3912 = vunpack.c.l.b16 %v2347
    %v3913 = vunpack.c.h.b16 %v2347
    %v3914 = vunpack.c.l.b16 %v2348
    %v3915 = vunpack.c.h.b16 %v2348
    %v3916 = vunpack.c.l.b16 %v2349
    %v3917 = vunpack.c.l.b16 %v2350
    %v3918 = vunpack.c.h.b16 %v2350
    %v3919 = vunpack.c.l.b16 %v2351
    %v3920 = vunpack.c.h.b16 %v2351
    %v3921 = vunpack.c.l.b16 %v2352
    %v3922 = vunpack.c.l.b16 %v2353
    %v3923 = vunpack.c.h.b16 %v2353
    %v3924 = vunpack.c.l.b16 %v2354
    %v3925 = vunpack.c.h.b16 %v2354
    %v3926 = vunpack.c.l.b16 %v2355
    %v3927 = vunpack.c.l.b16 %v2356
    %v3928 = vunpack.c.h.b16 %v2356
    %v3929 = vunpack.c.l.b16 %v2357
    %v3930 = vunpack.c.h.b16 %v2357
    %v3931 = vunpack.c.l.b16 %v2358
    %v3932 = vunpack.c.l.b16 %v2359
    %v3933 = vunpack.c.h.b16 %v2359
    %v3934 = vunpack.c.l.b16 %v2360
    %v3935 = vunpack.c.h.b16 %v2360
    %v3936 = vunpack.c.l.b16 %v2361
    %v3937 = vunpack.c.l.b16 %v2362
    %v3938 = vunpack.c.h.b16 %v2362
    %v3939 = vunpack.c.l.b16 %v2363
    %v3940 = vunpack.c.h.b16 %v2363
    %v3941 = vunpack.c.l.b16 %v2364
    %v3942 = vunpack.c.l.b16 %v2365
    %v3943 = vunpack.c.h.b16 %v2365
    %v3944 = vunpack.c.l.b16 %v2366
    %v3945 = vunpack.c.h.b16 %v2366
    %v3946 = vunpack.c.l.b16 %v2367
    %v3947 = vunpack.c.l.b16 %v2368
    %v3948 = vunpack.c.h.b16 %v2368
    %v3949 = vunpack.c.l.b16 %v2369
    %v3950 = vunpack.c.h.b16 %v2369
    %v3951 = vunpack.c.l.b16 %v2370
    %v3952 = vunpack.c.l.b16 %v2371
    %v3953 = vunpack.c.h.b16 %v2371
    %v3954 = vunpack.c.l.b16 %v2372
    %v3955 = vunpack.c.h.b16 %v2372
    %v3956 = vunpack.c.l.b16 %v2373
    %v3957 = vunpack.c.l.b16 %v2374
    %v3958 = vunpack.c.h.b16 %v2374
    %v3959 = vunpack.c.l.b16 %v2375
    %v3960 = vunpack.c.h.b16 %v2375
    %v3961 = vunpack.c.l.b16 %v2376
    %v3962 = vunpack.c.l.b16 %v2377
    %v3963 = vunpack.c.h.b16 %v2377
    %v3964 = vunpack.c.l.b16 %v2378
    %v3965 = vunpack.c.h.b16 %v2378
    %v3966 = vunpack.c.l.b16 %v2379
    %v3967 = vunpack.c.l.b16 %v2380
    %v3968 = vunpack.c.h.b16 %v2380
    %v3969 = vunpack.c.l.b16 %v2381
    %v3970 = vunpack.c.h.b16 %v2381
    %v3971 = vunpack.c.l.b16 %v2382
    %v3972 = vunpack.c.l.b16 %v2383
    %v3973 = vunpack.c.h.b16 %v2383
    %v3974 = vunpack.c.l.b16 %v2384
    %v3975 = vunpack.c.h.b16 %v2384
    %v3976 = vunpack.c.l.b16 %v2385
    %v3977 = vunpack.c.l.b16 %v2386
    %v3978 = vunpack.c.h.b16 %v2386
    %v3979 = vunpack.c.l.b16 %v2387
    %v3980 = vunpack.c.h.b16 %v2387
    %v3981 = vunpack.c.l.b16 %v2388
    %v3982 = vunpack.c.l.b16 %v2389
    %v3983 = vunpack.c.h.b16 %v2389
    %v3984 = vunpack.c.l.b16 %v2390
    %v3985 = vunpack.c.h.b16 %v2390
    %v3986 = vunpack.c.l.b16 %v2391
    %v3987 = vunpack.c.l.b16 %v2392
    %v3988 = vunpack.c.h.b16 %v2392
    %v3989 = vunpack.c.l.b16 %v2393
    %v3990 = vunpack.c.h.b16 %v2393
    %v3991 = vunpack.c.l.b16 %v2394
    %v3992 = vunpack.c.l.b16 %v2395
    %v3993 = vunpack.c.h.b16 %v2395
    %v3994 = vunpack.c.l.b16 %v2396
    %v3995 = vunpack.c.h.b16 %v2396
    %v3996 = vunpack.c.l.b16 %v2397
    %v3997 = vunpack.c.l.b16 %v2398
    %v3998 = vunpack.c.h.b16 %v2398
    %v3999 = vunpack.c.l.b16 %v2399
    %v4000 = vunpack.c.h.b16 %v2399
    %v4001 = vunpack.c.l.b16 %v2400
    %v4002 = vunpack.c.l.b16 %v2401
    %v4003 = vunpack.c.h.b16 %v2401
    %v4004 = vunpack.c.l.b16 %v2402
    %v4005 = vunpack.c.h.b16 %v2402
    %v4006 = vunpack.c.l.b16 %v2403
    %v4007 = vunpack.c.l.b16 %v2404
    %v4008 = vunpack.c.h.b16 %v2404
    %v4009 = vunpack.c.l.b16 %v2405
    %v4010 = vunpack.c.h.b16 %v2405
    %v4011 = vunpack.c.l.b16 %v2406
    %v4012 = vunpack.c.l.b16 %v2407
    %v4013 = vunpack.c.h.b16 %v2407
    %v4014 = vunpack.c.l.b16 %v2408
    %v4015 = vunpack.c.h.b16 %v2408
    %v4016 = vunpack.c.l.b16 %v2409
    %v4017 = vunpack.c.l.b16 %v2410
    %v4018 = vunpack.c.h.b16 %v2410
    %v4019 = vunpack.c.l.b16 %v2411
    %v4020 = vunpack.c.h.b16 %v2411
    %v4021 = vunpack.c.l.b16 %v2412
    %v4022 = vunpack.c.l.b16 %v2413
    %v4023 = vunpack.c.h.b16 %v2413
    %v4024 = vunpack.c.l.b16 %v2414
    %v4025 = vunpack.c.h.b16 %v2414
    %v4026 = vunpack.c.l.b16 %v2415
    %v4027 = vunpack.c.l.b16 %v2416
    %v4028 = vunpack.c.h.b16 %v2416
    %v4029 = vunpack.c.l.b16 %v2417
    %v4030 = vunpack.c.h.b16 %v2417
    %v4031 = vunpack.c.l.b16 %v2418
    %v4032 = vunpack.c.l.b16 %v2419
    %v4033 = vunpack.c.h.b16 %v2419
    %v4034 = vunpack.c.l.b16 %v2420
    %v4035 = vunpack.c.h.b16 %v2420
    %v4036 = vunpack.c.l.b16 %v2421
    %v4037 = vunpack.c.l.b16 %v2422
    %v4038 = vunpack.c.h.b16 %v2422
    %v4039 = vunpack.c.l.b16 %v2423
    %v4040 = vunpack.c.h.b16 %v2423
    %v4041 = vunpack.c.l.b16 %v2424
    %v4042 = vunpack.c.l.b16 %v2425
    %v4043 = vunpack.c.h.b16 %v2425
    %v4044 = vunpack.c.l.b16 %v2426
    %v4045 = vunpack.c.h.b16 %v2426
    %v4046 = vunpack.c.l.b16 %v2427
    %v4047 = vunpack.c.l.b16 %v2428
    %v4048 = vunpack.c.h.b16 %v2428
    %v4049 = vunpack.c.l.b16 %v2429
    %v4050 = vunpack.c.h.b16 %v2429
    %v4051 = vunpack.c.l.b16 %v2430
    %v4052 = vunpack.c.l.b16 %v2431
    %v4053 = vunpack.c.h.b16 %v2431
    %v4054 = vunpack.c.l.b16 %v2432
    %v4055 = vunpack.c.h.b16 %v2432
    %v4056 = vunpack.c.l.b16 %v2433
    %v4057 = vunpack.c.l.b16 %v2434
    %v4058 = vunpack.c.h.b16 %v2434
    %v4059 = vunpack.c.l.b16 %v2435
    %v4060 = vunpack.c.h.b16 %v2435
    %v4061 = vunpack.c.l.b16 %v2436
    %v4062 = vunpack.c.l.b16 %v2437
    %v4063 = vunpack.c.h.b16 %v2437
    %v4064 = vunpack.c.l.b16 %v2438
    %v4065 = vunpack.c.h.b16 %v2438
    %v4066 = vunpack.c.l.b16 %v2439
    %v4067 = vunpack.c.l.b16 %v2440
    %v4068 = vunpack.c.h.b16 %v2440
    %v4069 = vunpack.c.l.b16 %v2441
    %v4070 = vunpack.c.h.b16 %v2441
    %v4071 = vunpack.c.l.b16 %v2442
    %v4072 = vunpack.c.l.b16 %v2443
    %v4073 = vunpack.c.h.b16 %v2443
    %v4074 = vunpack.c.l.b16 %v2444
    %v4075 = vunpack.c.h.b16 %v2444
    %v4076 = vunpack.c.l.b16 %v2445
    %v4077 = vunpack.c.l.b16 %v2446
    %v4078 = vunpack.c.h.b16 %v2446
    %v4079 = vunpack.c.l.b16 %v2447
    %v4080 = vunpack.c.h.b16 %v2447
    %v4081 = vunpack.c.l.b16 %v2448
    %v4082 = vunpack.c.l.b16 %v2449
    %v4083 = vunpack.c.h.b16 %v2449
    %v4084 = vunpack.c.l.b16 %v2450
    %v4085 = vunpack.c.h.b16 %v2450
    %v4086 = vunpack.c.l.b16 %v2451
    %v4087 = vunpack.c.l.b16 %v2452
    %v4088 = vunpack.c.h.b16 %v2452
    %v4089 = vunpack.c.l.b16 %v2453
    %v4090 = vunpack.c.h.b16 %v2453
    %v4091 = vunpack.c.l.b16 %v2454
    %v4092 = vunpack.c.l.b16 %v2455
    %v4093 = vunpack.c.h.b16 %v2455
    %v4094 = vunpack.c.l.b16 %v2456
    %v4095 = vunpack.c.h.b16 %v2456
    %v4096 = vunpack.c.l.b16 %v2457
    %v4097 = vunpack.c.l.b16 %v2458
    %v4098 = vunpack.c.h.b16 %v2458
    %v4099 = vunpack.c.l.b16 %v2459
    %v4100 = vunpack.c.h.b16 %v2459
    %v4101 = vunpack.c.l.b16 %v2460
    %v4102 = vunpack.c.l.b16 %v2461
    %v4103 = vunpack.c.h.b16 %v2461
    %v4104 = vunpack.c.l.b16 %v2462
    %v4105 = vunpack.c.h.b16 %v2462
    %v4106 = vunpack.c.l.b16 %v2463
    %v4107 = vunpack.c.l.b16 %v2464
    %v4108 = vunpack.c.h.b16 %v2464
    %v4109 = vunpack.c.l.b16 %v2465
    %v4110 = vunpack.c.h.b16 %v2465
    %v4111 = vunpack.c.l.b16 %v2466
    %v4112 = vunpack.c.l.b16 %v2467
    %v4113 = vunpack.c.h.b16 %v2467
    %v4114 = vunpack.c.l.b16 %v2468
    %v4115 = vunpack.c.h.b16 %v2468
    %v4116 = vunpack.c.l.b16 %v2469
    %v4117 = vunpack.c.l.b16 %v2470
    %v4118 = vunpack.c.h.b16 %v2470
    %v4119 = vunpack.c.l.b16 %v2471
    %v4120 = vunpack.c.h.b16 %v2471
    %v4121 = vunpack.c.l.b16 %v2472
    %v4122 = vunpack.c.l.b16 %v2473
    %v4123 = vunpack.c.h.b16 %v2473
    %v4124 = vunpack.c.l.b16 %v2474
    %v4125 = vunpack.c.h.b16 %v2474
    %v4126 = vunpack.c.l.b16 %v2475
    %v4127 = vunpack.c.l.b16 %v2476
    %v4128 = vunpack.c.h.b16 %v2476
    %v4129 = vunpack.c.l.b16 %v2477
    %v4130 = vunpack.c.h.b16 %v2477
    %v4131 = vunpack.c.l.b16 %v2478
    %v4132 = vunpack.c.l.b16 %v2479
    %v4133 = vunpack.c.h.b16 %v2479
    %v4134 = vunpack.c.l.b16 %v2480
    %v4135 = vunpack.c.h.b16 %v2480
    %v4136 = vunpack.c.l.b16 %v2481
    %v4137 = vunpack.c.l.b16 %v2482
    %v4138 = vunpack.c.h.b16 %v2482
    %v4139 = vunpack.c.l.b16 %v2483
    %v4140 = vunpack.c.h.b16 %v2483
    %v4141 = vunpack.c.l.b16 %v2484
    %v4142 = vunpack.c.l.b16 %v2485
    %v4143 = vunpack.c.h.b16 %v2485
    %v4144 = vunpack.c.l.b16 %v2486
    %v4145 = vunpack.c.h.b16 %v2486
    %v4146 = vunpack.c.l.b16 %v2487
    %v4147 = vunpack.c.l.b16 %v2488
    %v4148 = vunpack.c.h.b16 %v2488
    %v4149 = vunpack.c.l.b16 %v2489
    %v4150 = vunpack.c.h.b16 %v2489
    %v4151 = vunpack.c.l.b16 %v2490
    %v4152 = vunpack.c.l.b16 %v2491
    %v4153 = vunpack.c.h.b16 %v2491
    %v4154 = vunpack.c.l.b16 %v2492
    %v4155 = vunpack.c.h.b16 %v2492
    %v4156 = vunpack.c.l.b16 %v2493
    %v4157 = vunpack.c.l.b16 %v2494
    %v4158 = vunpack.c.h.b16 %v2494
    %v4159 = vunpack.c.l.b16 %v2495
    %v4160 = vunpack.c.h.b16 %v2495
    %v4161 = vunpack.c.l.b16 %v2496
    %v4162 = vunpack.c.l.b16 %v2497
    %v4163 = vunpack.c.h.b16 %v2497
    %v4164 = vunpack.c.l.b16 %v2498
    %v4165 = vunpack.c.h.b16 %v2498
    %v4166 = vunpack.c.l.b16 %v2499
    %v4167 = vunpack.c.l.b16 %v2500
    %v4168 = vunpack.c.h.b16 %v2500
    %v4169 = vunpack.c.l.b16 %v2501
    %v4170 = vunpack.c.h.b16 %v2501
    %v4171 = vunpack.c.l.b16 %v2502
    %v4172 = vunpack.c.l.b16 %v2503
    %v4173 = vunpack.c.h.b16 %v2503
    %v4174 = vunpack.c.l.b16 %v2504
    %v4175 = vunpack.c.h.b16 %v2504
    %v4176 = vunpack.c.l.b16 %v2505
    %v4177 = vunpack.c.l.b16 %v2506
    %v4178 = vunpack.c.h.b16 %v2506
    %v4179 = vunpack.c.l.b16 %v2507
    %v4180 = vunpack.c.h.b16 %v2507
    %v4181 = vunpack.c.l.b16 %v2508
    %v4182 = vunpack.c.l.b16 %v2509
    %v4183 = vunpack.c.h.b16 %v2509
    %v4184 = vunpack.c.l.b16 %v2510
    %v4185 = vunpack.c.h.b16 %v2510
    %v4186 = vunpack.c.l.b16 %v2511
    %v4187 = vunpack.c.l.b16 %v2512
    %v4188 = vunpack.c.h.b16 %v2512
    %v4189 = vunpack.c.l.b16 %v2513
    %v4190 = vunpack.c.h.b16 %v2513
    %v4191 = vunpack.c.l.b16 %v2514
    %v4192 = vunpack.c.l.b16 %v2515
    %v4193 = vunpack.c.h.b16 %v2515
    %v4194 = vunpack.c.l.b16 %v2516
    %v4195 = vunpack.c.h.b16 %v2516
    %v4196 = vunpack.c.l.b16 %v2517
    %v4197 = vunpack.c.l.b16 %v2518
    %v4198 = vunpack.c.h.b16 %v2518
    %v4199 = vunpack.c.l.b16 %v2519
    %v4200 = vunpack.c.h.b16 %v2519
    %v4201 = vunpack.c.l.b16 %v2520
    %v4202 = vunpack.c.l.b16 %v2521
    %v4203 = vunpack.c.h.b16 %v2521
    %v4204 = vunpack.c.l.b16 %v2522
    %v4205 = vunpack.c.h.b16 %v2522
    %v4206 = vunpack.c.l.b16 %v2523
    %v4207 = vunpack.c.l.b16 %v2524
    %v4208 = vunpack.c.h.b16 %v2524
    %v4209 = vunpack.c.l.b16 %v2525
    %v4210 = vunpack.c.h.b16 %v2525
    %v4211 = vunpack.c.l.b16 %v2526
    %v4212 = vunpack.c.l.b16 %v2527
    %v4213 = vunpack.c.h.b16 %v2527
    %v4214 = vunpack.c.l.b16 %v2528
    %v4215 = vunpack.c.h.b16 %v2528
    %v4216 = vunpack.c.l.b16 %v2529
    %v4217 = vunpack.c.l.b16 %v2530
    %v4218 = vunpack.c.h.b16 %v2530
    %v4219 = vunpack.c.l.b16 %v2531
    %v4220 = vunpack.c.h.b16 %v2531
    %v4221 = vunpack.c.l.b16 %v2532
    %v4222 = vunpack.c.l.b16 %v2533
    %v4223 = vunpack.c.h.b16 %v2533
    %v4224 = vunpack.c.l.b16 %v2534
    %v4225 = vunpack.c.h.b16 %v2534
    %v4226 = vunpack.c.l.b16 %v2535
    %v4227 = vunpack.c.l.b16 %v2536
    %v4228 = vunpack.c.h.b16 %v2536
    %v4229 = vunpack.c.l.b16 %v2537
    %v4230 = vunpack.c.h.b16 %v2537
    %v4231 = vunpack.c.l.b16 %v2538
    %v4232 = vunpack.c.l.b16 %v2539
    %v4233 = vunpack.c.h.b16 %v2539
    %v4234 = vunpack.c.l.b16 %v2540
    %v4235 = vunpack.c.h.b16 %v2540
    %v4236 = vunpack.c.l.b16 %v2541
    %v4237 = vunpack.c.l.b16 %v2542
    %v4238 = vunpack.c.h.b16 %v2542
    %v4239 = vunpack.c.l.b16 %v2543
    %v4240 = vunpack.c.h.b16 %v2543
    %v4241 = vunpack.c.l.b16 %v2544
    %v4242 = vunpack.c.l.b16 %v2545
    %v4243 = vunpack.c.h.b16 %v2545
    %v4244 = vunpack.c.l.b16 %v2546
    %v4245 = vunpack.c.h.b16 %v2546
    %v4246 = vunpack.c.l.b16 %v2547
    %v4247 = vunpack.c.l.b16 %v2548
    %v4248 = vunpack.c.h.b16 %v2548
    %v4249 = vunpack.c.l.b16 %v2549
    %v4250 = vunpack.c.h.b16 %v2549
    %v4251 = vunpack.c.l.b16 %v2550
    %v4252 = vunpack.c.l.b16 %v2551
    %v4253 = vunpack.c.h.b16 %v2551
    %v4254 = vunpack.c.l.b16 %v2552
    %v4255 = vunpack.c.h.b16 %v2552
    %v4256 = vunpack.c.l.b16 %v2553
    %v4257 = vunpack.c.l.b16 %v2554
    %v4258 = vunpack.c.h.b16 %v2554
    %v4259 = vunpack.c.l.b16 %v2555
    %v4260 = vunpack.c.h.b16 %v2555
    %v4261 = vunpack.c.l.b16 %v2556
    %v4262 = vunpack.c.l.b16 %v2557
    %v4263 = vunpack.c.h.b16 %v2557
    %v4264 = vunpack.c.l.b16 %v2558
    %v4265 = vunpack.c.h.b16 %v2558
    %v4266 = vunpack.c.l.b16 %v2559
    %v4267 = vunpack.c.l.b16 %v2560
    %v4268 = vunpack.c.h.b16 %v2560
    %v4269 = vunpack.c.l.b16 %v2561
    %v4270 = vunpack.c.h.b16 %v2561
    %v4271 = vunpack.c.l.b16 %v2562
    %v4272 = vunpack.c.l.b16 %v2563
    %v4273 = vunpack.c.h.b16 %v2563
    %v4274 = vunpack.c.l.b16 %v2564
    %v4275 = vunpack.c.h.b16 %v2564
    %v4276 = vunpack.c.l.b16 %v2565
    %v4277 = vunpack.c.l.b16 %v2566
    %v4278 = vunpack.c.h.b16 %v2566
    %v4279 = vunpack.c.l.b16 %v2567
    %v4280 = vunpack.c.h.b16 %v2567
    %v4281 = vunpack.c.l.b16 %v2568
    %v4282 = vunpack.c.l.b16 %v2569
    %v4283 = vunpack.c.h.b16 %v2569
    %v4284 = vunpack.c.l.b16 %v2570
    %v4285 = vunpack.c.h.b16 %v2570
    %v4286 = vunpack.c.l.b16 %v2571
    %v4287 = vunpack.c.l.b16 %v2572
    %v4288 = vunpack.c.h.b16 %v2572
    %v4289 = vunpack.c.l.b16 %v2573
    %v4290 = vunpack.c.h.b16 %v2573
    %v4291 = vunpack.c.l.b16 %v2574
    %v4292 = vunpack.c.l.b16 %v2575
    %v4293 = vunpack.c.h.b16 %v2575
    %v4294 = vunpack.c.l.b16 %v2576
    %v4295 = vunpack.c.h.b16 %v2576
    %v4296 = vunpack.c.l.b16 %v2577
    %v4297 = vunpack.c.l.b16 %v2578
    %v4298 = vunpack.c.h.b16 %v2578
    %v4299 = vunpack.c.l.b16 %v2579
    %v4300 = vunpack.c.h.b16 %v2579
    %v4301 = vunpack.c.l.b16 %v2580
    %v4302 = vunpack.c.l.b16 %v2581
    %v4303 = vunpack.c.h.b16 %v2581
    %v4304 = vunpack.c.l.b16 %v2582
    %v4305 = vunpack.c.h.b16 %v2582
    %v4306 = vunpack.c.l.b16 %v2583
    %v4307 = vunpack.c.l.b16 %v2584
    %v4308 = vunpack.c.h.b16 %v2584
    %v4309 = vunpack.c.l.b16 %v2585
    %v4310 = vunpack.c.h.b16 %v2585
    %v4311 = vunpack.c.l.b16 %v2586
    %v4312 = vunpack.c.l.b16 %v2587
    %v4313 = vunpack.c.h.b16 %v2587
    %v4314 = vunpack.c.l.b16 %v2588
    %v4315 = vunpack.c.h.b16 %v2588
    %v4316 = vunpack.c.l.b16 %v2589
    %v4317 = vunpack.c.l.b16 %v2590
    %v4318 = vunpack.c.h.b16 %v2590
    %v4319 = vunpack.c.l.b16 %v2591
    %v4320 = vunpack.c.h.b16 %v2591
    %v4321 = vunpack.c.l.b16 %v2592
    %v4322 = vunpack.c.l.b16 %v2593
    %v4323 = vunpack.c.h.b16 %v2593
    %v4324 = vunpack.c.l.b16 %v2594
    %v4325 = vunpack.c.h.b16 %v2594
    %v4326 = vunpack.c.l.b16 %v2595
    %v4327 = vunpack.c.l.b16 %v2596
    %v4328 = vunpack.c.h.b16 %v2596
    %v4329 = vunpack.c.l.b16 %v2597
    %v4330 = vunpack.c.h.b16 %v2597
    %v4331 = vunpack.c.l.b16 %v2598
    %v4332 = vunpack.c.l.b16 %v2599
    %v4333 = vunpack.c.h.b16 %v2599
    %v4334 = vunpack.c.l.b16 %v2600
    %v4335 = vunpack.c.h.b16 %v2600
    %v4336 = vunpack.c.l.b16 %v2601
    %v4337 = vunpack.c.l.b16 %v2602
    %v4338 = vunpack.c.h.b16 %v2602
    %v4339 = vunpack.c.l.b16 %v2603
    %v4340 = vunpack.c.h.b16 %v2603
    %v4341 = vunpack.c.l.b16 %v2604
    %v4342 = vunpack.c.l.b16 %v2605
    %v4343 = vunpack.c.h.b16 %v2605
    %v4344 = vunpack.c.l.b16 %v2606
    %v4345 = vunpack.c.h.b16 %v2606
    %v4346 = vunpack.c.l.b16 %v2607
    %v4347 = vunpack.c.l.b16 %v2608
    %v4348 = vunpack.c.h.b16 %v2608
    %v4349 = vunpack.c.l.b16 %v2609
    %v4350 = vunpack.c.h.b16 %v2609
    %v4351 = vunpack.c.l.b16 %v2610
    %v4352 = vunpack.c.l.b16 %v2611
    %v4353 = vunpack.c.h.b16 %v2611
    %v4354 = vunpack.c.l.b16 %v2612
    %v4355 = vunpack.c.h.b16 %v2612
    %v4356 = vunpack.c.l.b16 %v2613
    %v4357 = vunpack.c.l.b16 %v2614
    %v4358 = vunpack.c.h.b16 %v2614
    %v4359 = vunpack.c.l.b16 %v2615
    %v4360 = vunpack.c.h.b16 %v2615
    %v4361 = vunpack.c.l.b16 %v2616
    %v4362 = vunpack.c.l.b16 %v2617
    %v4363 = vunpack.c.h.b16 %v2617
    %v4364 = vunpack.c.l.b16 %v2618
    %v4365 = vunpack.c.h.b16 %v2618
    %v4366 = vunpack.c.l.b16 %v2619
    %v4367 = vunpack.c.l.b16 %v2620
    %v4368 = vunpack.c.h.b16 %v2620
    %v4369 = vunpack.c.l.b16 %v2621
    %v4370 = vunpack.c.h.b16 %v2621
    %v4371 = vunpack.c.l.b16 %v2622
    %v4372 = vunpack.c.l.b16 %v2623
    %v4373 = vunpack.c.h.b16 %v2623
    %v4374 = vunpack.c.l.b16 %v2624
    %v4375 = vunpack.c.h.b16 %v2624
    %v4376 = vunpack.c.l.b16 %v2625
    %v4377 = vunpack.c.l.b16 %v2626
    %v4378 = vunpack.c.h.b16 %v2626
    %v4379 = vunpack.c.l.b16 %v2627
    %v4380 = vunpack.c.h.b16 %v2627
    %v4381 = vunpack.c.l.b16 %v2628
    %v4382 = vunpack.c.l.b16 %v2629
    %v4383 = vunpack.c.h.b16 %v2629
    %v4384 = vunpack.c.l.b16 %v2630
    %v4385 = vunpack.c.h.b16 %v2630
    %v4386 = vunpack.c.l.b16 %v2631
    %v4387 = vunpack.c.l.b16 %v2632
    %v4388 = vunpack.c.h.b16 %v2632
    %v4389 = vunpack.c.l.b16 %v2633
    %v4390 = vunpack.c.h.b16 %v2633
    %v4391 = vunpack.c.l.b16 %v2634
    %v4392 = vunpack.c.l.b16 %v2635
    %v4393 = vunpack.c.h.b16 %v2635
    %v4394 = vunpack.c.l.b16 %v2636
    %v4395 = vunpack.c.h.b16 %v2636
    %v4396 = vunpack.c.l.b16 %v2637
    %v4397 = vunpack.c.l.b16 %v2638
    %v4398 = vunpack.c.h.b16 %v2638
    %v4399 = vunpack.c.l.b16 %v2639
    %v4400 = vunpack.c.h.b16 %v2639
    %v4401 = vunpack.c.l.b16 %v2640
    %v4402 = vunpack.c.l.b16 %v2641
    %v4403 = vunpack.c.h.b16 %v2641
    %v4404 = vunpack.c.l.b16 %v2642
    %v4405 = vunpack.c.h.b16 %v2642
    %v4406 = vunpack.c.l.b16 %v2643
    %v4407 = vunpack.c.l.b16 %v2644
    %v4408 = vunpack.c.h.b16 %v2644
    %v4409 = vunpack.c.l.b16 %v2645
    %v4410 = vunpack.c.h.b16 %v2645
    %v4411 = vunpack.c.l.b16 %v2646
    %v4412 = vunpack.c.l.b16 %v2647
    %v4413 = vunpack.c.h.b16 %v2647
    %v4414 = vunpack.c.l.b16 %v2648
    %v4415 = vunpack.c.h.b16 %v2648
    %v4416 = vunpack.c.l.b16 %v2649
    %v4417 = vunpack.c.l.b16 %v2650
    %v4418 = vunpack.c.h.b16 %v2650
    %v4419 = vunpack.c.l.b16 %v2651
    %v4420 = vunpack.c.h.b16 %v2651
    %v4421 = vunpack.c.l.b16 %v2652
    %v4422 = vunpack.c.l.b16 %v2653
    %v4423 = vunpack.c.h.b16 %v2653
    %v4424 = vunpack.c.l.b16 %v2654
    %v4425 = vunpack.c.h.b16 %v2654
    %v4426 = vunpack.c.l.b16 %v2655
    %v4427 = vunpack.c.l.b16 %v2656
    %v4428 = vunpack.c.h.b16 %v2656
    %v4429 = vunpack.c.l.b16 %v2657
    %v4430 = vunpack.c.h.b16 %v2657
    %v4431 = vunpack.c.l.b16 %v2658
    %v4432 = vunpack.c.l.b16 %v2659
    %v4433 = vunpack.c.h.b16 %v2659
    %v4434 = vunpack.c.l.b16 %v2660
    %v4435 = vunpack.c.h.b16 %v2660
    %v4436 = vunpack.c.l.b16 %v2661
    %v4437 = vunpack.c.l.b16 %v2662
    %v4438 = vunpack.c.h.b16 %v2662
    %v4439 = vunpack.c.l.b16 %v2663
    %v4440 = vunpack.c.h.b16 %v2663
    %v4441 = vunpack.c.l.b16 %v2664
    %v4442 = vunpack.c.l.b16 %v2665
    %v4443 = vunpack.c.h.b16 %v2665
    %v4444 = vunpack.c.l.b16 %v2666
    %v4445 = vunpack.c.h.b16 %v2666
    %v4446 = vunpack.c.l.b16 %v2667
    %v4447 = vunpack.c.l.b16 %v2668
    %v4448 = vunpack.c.h.b16 %v2668
    %v4449 = vunpack.c.l.b16 %v2669
    %v4450 = vunpack.c.h.b16 %v2669
    %v4451 = vunpack.c.l.b16 %v2670
    %v4452 = vunpack.c.l.b16 %v2671
    %v4453 = vunpack.c.h.b16 %v2671
    %v4454 = vunpack.c.l.b16 %v2672
    %v4455 = vunpack.c.h.b16 %v2672
    %v4456 = vunpack.c.l.b16 %v2673
    %v4457 = vunpack.c.l.b16 %v2674
    %v4458 = vunpack.c.h.b16 %v2674
    %v4459 = vunpack.c.l.b16 %v2675
    %v4460 = vunpack.c.h.b16 %v2675
    %v4461 = vunpack.c.l.b16 %v2676
    %v4462 = vunpack.c.l.b16 %v2677
    %v4463 = vunpack.c.h.b16 %v2677
    %v4464 = vunpack.c.l.b16 %v2678
    %v4465 = vunpack.c.h.b16 %v2678
    %v4466 = vunpack.c.l.b16 %v2679
    %v4467 = vunpack.c.l.b16 %v2680
    %v4468 = vunpack.c.h.b16 %v2680
    %v4469 = vunpack.c.l.b16 %v2681
    %v4470 = vunpack.c.h.b16 %v2681
    %v4471 = vunpack.c.l.b16 %v2682
    %v4472 = vunpack.c.l.b16 %v2683
    %v4473 = vunpack.c.h.b16 %v2683
    %v4474 = vunpack.c.l.b16 %v2684
    %v4475 = vunpack.c.h.b16 %v2684
    %v4476 = vunpack.c.l.b16 %v2685
    %v4477 = vunpack.c.l.b16 %v2686
    %v4478 = vunpack.c.h.b16 %v2686
    %v4479 = vunpack.c.l.b16 %v2687
    %v4480 = vunpack.c.h.b16 %v2687
    %v4481 = vunpack.c.l.b16 %v2688
    %v4482 = vunpack.c.l.b16 %v2689
    %v4483 = vunpack.c.h.b16 %v2689
    %v4484 = vunpack.c.l.b16 %v2690
    %v4485 = vunpack.c.h.b16 %v2690
    %v4486 = vunpack.c.l.b16 %v2691
    %v4487 = vunpack.c.l.b16 %v2692
    %v4488 = vunpack.c.h.b16 %v2692
    %v4489 = vunpack.c.l.b16 %v2693
    %v4490 = vunpack.c.h.b16 %v2693
    %v4491 = vunpack.c.l.b16 %v2694
    %v4492 = vunpack.c.l.b16 %v2695
    %v4493 = vunpack.c.h.b16 %v2695
    %v4494 = vunpack.c.l.b16 %v2696
    %v4495 = vunpack.c.h.b16 %v2696
    %v4496 = vunpack.c.l.b16 %v2697
    %v4497 = vunpack.c.l.b16 %v2698
    %v4498 = vunpack.c.h.b16 %v2698
    %v4499 = vunpack.c.l.b16 %v2699
    %v4500 = vunpack.c.h.b16 %v2699
    %v4501 = vunpack.c.l.b16 %v2700
    %v4502 = vunpack.c.l.b16 %v2701
    %v4503 = vunpack.c.h.b16 %v2701
    %v4504 = vunpack.c.l.b16 %v2702
    %v4505 = vunpack.c.h.b16 %v2702
    %v4506 = vunpack.c.l.b16 %v2703
    %v4507 = vunpack.c.l.b16 %v2704
    %v4508 = vunpack.c.h.b16 %v2704
    %v4509 = vunpack.c.l.b16 %v2705
    %v4510 = vunpack.c.h.b16 %v2705
    %v4511 = vunpack.c.l.b16 %v2706
    %v4512 = vunpack.c.l.b16 %v2707
    %v4513 = vunpack.c.h.b16 %v2707
    %v4514 = vunpack.c.l.b16 %v2708
    %v4515 = vunpack.c.h.b16 %v2708
    %v4516 = vunpack.c.l.b16 %v2709
    %v4517 = vunpack.c.l.b16 %v2710
    %v4518 = vunpack.c.h.b16 %v2710
    %v4519 = vunpack.c.l.b16 %v2711
    %v4520 = vunpack.c.h.b16 %v2711
    %v4521 = vunpack.c.l.b16 %v2712
    %v4522 = vunpack.c.l.b16 %v2713
    %v4523 = vunpack.c.h.b16 %v2713
    %v4524 = vunpack.c.l.b16 %v2714
    %v4525 = vunpack.c.h.b16 %v2714
    %v4526 = vunpack.c.l.b16 %v2715
    %v4527 = vunpack.c.l.b16 %v2716
    %v4528 = vunpack.c.h.b16 %v2716
    %v4529 = vunpack.c.l.b16 %v2717
    %v4530 = vunpack.c.h.b16 %v2717
    %v4531 = vunpack.c.l.b16 %v2718
    %v4532 = vunpack.c.l.b16 %v2719
    %v4533 = vunpack.c.h.b16 %v2719
    %v4534 = vunpack.c.l.b16 %v2720
    %v4535 = vunpack.c.h.b16 %v2720
    %v4536 = vunpack.c.l.b16 %v2721
    %v4537 = vunpack.c.l.b16 %v2722
    %v4538 = vunpack.c.h.b16 %v2722
    %v4539 = vunpack.c.l.b16 %v2723
    %v4540 = vunpack.c.h.b16 %v2723
    %v4541 = vunpack.c.l.b16 %v2724
    %v4542 = vunpack.c.l.b16 %v2725
    %v4543 = vunpack.c.h.b16 %v2725
    %v4544 = vunpack.c.l.b16 %v2726
    %v4545 = vunpack.c.h.b16 %v2726
    %v4546 = vunpack.c.l.b16 %v2727
    %v4547 = vunpack.c.l.b16 %v2728
    %v4548 = vunpack.c.h.b16 %v2728
    %v4549 = vunpack.c.l.b16 %v2729
    %v4550 = vunpack.c.h.b16 %v2729
    %v4551 = vunpack.c.l.b16 %v2730
    %v4552 = vunpack.c.l.b16 %v2731
    %v4553 = vunpack.c.h.b16 %v2731
    %v4554 = vunpack.c.l.b16 %v2732
    %v4555 = vunpack.c.h.b16 %v2732
    %v4556 = vunpack.c.l.b16 %v2733
    %v4557 = vunpack.c.l.b16 %v2734
    %v4558 = vunpack.c.h.b16 %v2734
    %v4559 = vunpack.c.l.b16 %v2735
    %v4560 = vunpack.c.h.b16 %v2735
    %v4561 = vunpack.c.l.b16 %v2736
    %v4562 = vunpack.c.l.b16 %v2737
    %v4563 = vunpack.c.h.b16 %v2737
    %v4564 = vunpack.c.l.b16 %v2738
    %v4565 = vunpack.c.h.b16 %v2738
    %v4566 = vunpack.c.l.b16 %v2739
    %v4567 = vunpack.c.l.b16 %v2740
    %v4568 = vunpack.c.h.b16 %v2740
    %v4569 = vunpack.c.l.b16 %v2741
    %v4570 = vunpack.c.h.b16 %v2741
    %v4571 = vunpack.c.l.b16 %v2742
    %v4572 = vunpack.c.l.b16 %v2743
    %v4573 = vunpack.c.h.b16 %v2743
    %v4574 = vunpack.c.l.b16 %v2744
    %v4575 = vunpack.c.h.b16 %v2744
    %v4576 = vunpack.c.l.b16 %v2745
    %v4577 = vunpack.c.l.b16 %v2746
    %v4578 = vunpack.c.h.b16 %v2746
    %v4579 = vunpack.c.l.b16 %v2747
    %v4580 = vunpack.c.h.b16 %v2747
    %v4581 = vunpack.c.l.b16 %v2748
    %v4582 = vunpack.c.l.b16 %v2749
    %v4583 = vunpack.c.h.b16 %v2749
    %v4584 = vunpack.c.l.b16 %v2750
    %v4585 = vunpack.c.h.b16 %v2750
    %v4586 = vunpack.c.l.b16 %v2751
    %v4587 = vunpack.c.l.b16 %v2752
    %v4588 = vunpack.c.h.b16 %v2752
    %v4589 = vunpack.c.l.b16 %v2753
    %v4590 = vunpack.c.h.b16 %v2753
    %v4591 = vunpack.c.l.b16 %v2754
    %v4592 = vunpack.c.l.b16 %v2755
    %v4593 = vunpack.c.h.b16 %v2755
    %v4594 = vunpack.c.l.b16 %v2756
    %v4595 = vunpack.c.h.b16 %v2756
    %v4596 = vunpack.c.l.b16 %v2757
    %v4597 = vunpack.c.l.b16 %v2758
    %v4598 = vunpack.c.h.b16 %v2758
    %v4599 = vunpack.c.l.b16 %v2759
    %v4600 = vunpack.c.h.b16 %v2759
    %v4601 = vunpack.c.l.b16 %v2760
    %v4602 = vunpack.c.l.b16 %v2761
    %v4603 = vunpack.c.h.b16 %v2761
    %v4604 = vunpack.c.l.b16 %v2762
    %v4605 = vunpack.c.h.b16 %v2762
    %v4606 = vunpack.c.l.b16 %v2763
    %v4607 = vunpack.c.l.b16 %v2764
    %v4608 = vunpack.c.h.b16 %v2764
    %v4609 = vunpack.c.l.b16 %v2765
    %v4610 = vunpack.c.h.b16 %v2765
    %v4611 = vunpack.c.l.b16 %v2766
    %v4612 = vunpack.c.l.b16 %v2767
    %v4613 = vunpack.c.h.b16 %v2767
    %v4614 = vunpack.c.l.b16 %v2768
    %v4615 = vunpack.c.h.b16 %v2768
    %v4616 = vunpack.c.l.b16 %v2769
    %v4617 = vunpack.c.l.b16 %v2770
    %v4618 = vunpack.c.h.b16 %v2770
    %v4619 = vunpack.c.l.b16 %v2771
    %v4620 = vunpack.c.h.b16 %v2771
    %v4621 = vunpack.c.l.b16 %v2772
    %v4622 = vunpack.c.l.b16 %v2773
    %v4623 = vunpack.c.h.b16 %v2773
    %v4624 = vunpack.c.l.b16 %v2774
    %v4625 = vunpack.c.h.b16 %v2774
    %v4626 = vunpack.c.l.b16 %v2775
    %v4627 = vunpack.c.l.b16 %v2776
    %v4628 = vunpack.c.h.b16 %v2776
    %v4629 = vunpack.c.l.b16 %v2777
    %v4630 = vunpack.c.h.b16 %v2777
    %v4631 = vunpack.c.l.b16 %v2778
    %v4632 = vunpack.c.l.b16 %v2779
    %v4633 = vunpack.c.h.b16 %v2779
    %v4634 = vunpack.c.l.b16 %v2780
    %v4635 = vunpack.c.h.b16 %v2780
    %v4636 = vunpack.c.l.b16 %v2781
    %v4637 = vunpack.c.l.b16 %v2782
    %v4638 = vunpack.c.h.b16 %v2782
    %v4639 = vunpack.c.l.b16 %v2783
    %v4640 = vunpack.c.h.b16 %v2783
    %v4641 = vunpack.c.l.b16 %v2784
    %v4642 = vunpack.c.l.b16 %v2785
    %v4643 = vunpack.c.h.b16 %v2785
    %v4644 = vunpack.c.l.b16 %v2786
    %v4645 = vunpack.c.h.b16 %v2786
    %v4646 = vunpack.c.l.b16 %v2787
    %v4647 = vunpack.c.l.b16 %v2788
    %v4648 = vunpack.c.h.b16 %v2788
    %v4649 = vunpack.c.l.b16 %v2789
    %v4650 = vunpack.c.h.b16 %v2789
    %v4651 = vunpack.c.l.b16 %v2790
    %v4652 = vunpack.c.l.b16 %v2791
    %v4653 = vunpack.c.h.b16 %v2791
    %v4654 = vunpack.c.l.b16 %v2792
    %v4655 = vunpack.c.h.b16 %v2792
    %v4656 = vunpack.c.l.b16 %v2793
    %v4657 = vunpack.c.l.b16 %v2794
    %v4658 = vunpack.c.h.b16 %v2794
    %v4659 = vunpack.c.l.b16 %v2795
    %v4660 = vunpack.c.h.b16 %v2795
    %v4661 = vunpack.c.l.b16 %v2796
    %v4662 = vunpack.c.l.b16 %v2797
    %v4663 = vunpack.c.h.b16 %v2797
    %v4664 = vunpack.c.l.b16 %v2798
    %v4665 = vunpack.c.h.b16 %v2798
    %v4666 = vunpack.c.l.b16 %v2799
    %v4667 = vunpack.c.l.b16 %v2800
    %v4668 = vunpack.c.h.b16 %v2800
    %v4669 = vunpack.c.l.b16 %v2801
    %v4670 = vunpack.c.h.b16 %v2801
    %v4671 = vunpack.c.l.b16 %v2802
    %v4672 = vunpack.c.l.b16 %v2803
    %v4673 = vunpack.c.h.b16 %v2803
    %v4674 = vunpack.c.l.b16 %v2804
    %v4675 = vunpack.c.h.b16 %v2804
    %v4676 = vunpack.c.l.b16 %v2805
    %v4677 = vunpack.c.l.b16 %v2806
    %v4678 = vunpack.c.h.b16 %v2806
    %v4679 = vunpack.c.l.b16 %v2807
    %v4680 = vunpack.c.h.b16 %v2807
    %v4681 = vunpack.c.l.b16 %v2808
    %v4682 = vunpack.c.l.b16 %v2809
    %v4683 = vunpack.c.h.b16 %v2809
    %v4684 = vunpack.c.l.b16 %v2810
    %v4685 = vunpack.c.h.b16 %v2810
    %v4686 = vunpack.c.l.b16 %v2811
    %v4687 = vunpack.c.l.b16 %v2812
    %v4688 = vunpack.c.h.b16 %v2812
    %v4689 = vunpack.c.l.b16 %v2813
    %v4690 = vunpack.c.h.b16 %v2813
    %v4691 = vunpack.c.l.b16 %v2814
    %v4692 = vunpack.c.l.b16 %v2815
    %v4693 = vunpack.c.h.b16 %v2815
    %v4694 = vunpack.c.l.b16 %v2816
    %v4695 = vunpack.c.h.b16 %v2816
    %v4696 = vunpack.c.l.b16 %v2817
    %v4697 = vunpack.c.l.b16 %v2818
    %v4698 = vunpack.c.h.b16 %v2818
    %v4699 = vunpack.c.l.b16 %v2819
    %v4700 = vunpack.c.h.b16 %v2819
    %v4701 = vunpack.c.l.b16 %v2820
    %v4702 = vunpack.c.l.b16 %v2821
    %v4703 = vunpack.c.h.b16 %v2821
    %v4704 = vunpack.c.l.b16 %v2822
    %v4705 = vunpack.c.h.b16 %v2822
    %v4706 = vunpack.c.l.b16 %v2823
    %v4707 = vunpack.c.l.b16 %v2824
    %v4708 = vunpack.c.h.b16 %v2824
    %v4709 = vunpack.c.l.b16 %v2825
    %v4710 = vunpack.c.h.b16 %v2825
    %v4711 = vunpack.c.l.b16 %v2826
    %v4712 = vunpack.c.l.b16 %v2827
    %v4713 = vunpack.c.h.b16 %v2827
    %v4714 = vunpack.c.l.b16 %v2828
    %v4715 = vunpack.c.h.b16 %v2828
    %v4716 = vunpack.c.l.b16 %v2829
    %v4717 = vunpack.c.l.b16 %v2830
    %v4718 = vunpack.c.h.b16 %v2830
    %v4719 = vunpack.c.l.b16 %v2831
    %v4720 = vunpack.c.h.b16 %v2831
    %v4721 = vunpack.c.l.b16 %v2832
    %v4722 = vunpack.c.l.b16 %v2833
    %v4723 = vunpack.c.h.b16 %v2833
    %v4724 = vunpack.c.l.b16 %v2834
    %v4725 = vunpack.c.h.b16 %v2834
    %v4726 = vunpack.c.l.b16 %v2835
    %v4727 = vunpack.c.l.b16 %v2836
    %v4728 = vunpack.c.h.b16 %v2836
    %v4729 = vunpack.c.l.b16 %v2837
    %v4730 = vunpack.c.h.b16 %v2837
    %v4731 = vunpack.c.l.b16 %v2838
    %v4732 = vunpack.c.l.b16 %v2839
    %v4733 = vunpack.c.h.b16 %v2839
    %v4734 = vunpack.c.l.b16 %v2840
    %v4735 = vunpack.c.h.b16 %v2840
    %v4736 = vunpack.c.l.b16 %v2841
    %v4737 = vunpack.c.l.b16 %v2842
    %v4738 = vunpack.c.h.b16 %v2842
    %v4739 = vunpack.c.l.b16 %v2843
    %v4740 = vunpack.c.h.b16 %v2843
    %v4741 = vunpack.c.l.b16 %v2844
    %v4742 = vunpack.c.l.b16 %v2845
    %v4743 = vunpack.c.h.b16 %v2845
    %v4744 = vunpack.c.l.b16 %v2846
    %v4745 = vunpack.c.h.b16 %v2846
    %v4746 = vunpack.c.l.b16 %v2847
    %v4747 = vunpack.c.l.b16 %v2848
    %v4748 = vunpack.c.h.b16 %v2848
    %v4749 = vunpack.c.l.b16 %v2849
    %v4750 = vunpack.c.h.b16 %v2849
    %v4751 = vunpack.c.l.b16 %v2850
    %v4752 = vunpack.c.l.b16 %v2851
    %v4753 = vunpack.c.h.b16 %v2851
    %v4754 = vunpack.c.l.b16 %v2852
    %v4755 = vunpack.c.h.b16 %v2852
    %v4756 = vunpack.c.l.b16 %v2853
    %v4757 = vunpack.c.l.b16 %v2854
    %v4758 = vunpack.c.h.b16 %v2854
    %v4759 = vunpack.c.l.b16 %v2855
    %v4760 = vunpack.c.h.b16 %v2855
    %v4761 = vunpack.c.l.b16 %v2856
    %v4762 = vunpack.c.l.b16 %v2857
    %v4763 = vunpack.c.h.b16 %v2857
    %v4764 = vunpack.c.l.b16 %v2858
    %v4765 = vunpack.c.h.b16 %v2858
    %v4766 = vunpack.c.l.b16 %v2859
    %v4767 = vunpack.c.l.b16 %v2860
    %v4768 = vunpack.c.h.b16 %v2860
    %v4769 = vunpack.c.l.b16 %v2861
    %v4770 = vunpack.c.h.b16 %v2861
    %v4771 = vunpack.c.l.b16 %v2862
    %v4772 = vunpack.c.l.b16 %v2863
    %v4773 = vunpack.c.h.b16 %v2863
    %v4774 = vunpack.c.l.b16 %v2864
    %v4775 = vunpack.c.h.b16 %v2864
    %v4776 = vunpack.c.l.b16 %v2865
    %v4777 = vunpack.c.l.b16 %v2866
    %v4778 = vunpack.c.h.b16 %v2866
    %v4779 = vunpack.c.l.b16 %v2867
    %v4780 = vunpack.c.h.b16 %v2867
    %v4781 = vunpack.c.l.b16 %v2868
    %v4782 = vunpack.c.l.b16 %v2869
    %v4783 = vunpack.c.h.b16 %v2869
    %v4784 = vunpack.c.l.b16 %v2870
    %v4785 = vunpack.c.h.b16 %v2870
    %v4786 = vunpack.c.l.b16 %v2871
    %v4787 = vunpack.c.l.b16 %v2872
    %v4788 = vunpack.c.h.b16 %v2872
    %v4789 = vunpack.c.l.b16 %v2873
    %v4790 = vunpack.c.h.b16 %v2873
    %v4791 = vunpack.c.l.b16 %v2874
    %v4792 = vunpack.c.l.b16 %v2875
    %v4793 = vunpack.c.h.b16 %v2875
    %v4794 = vunpack.c.l.b16 %v2876
    %v4795 = vunpack.c.h.b16 %v2876
    %v4796 = vunpack.c.l.b16 %v2877
    %v4797 = vunpack.c.l.b16 %v2878
    %v4798 = vunpack.c.h.b16 %v2878
    %v4799 = vunpack.c.l.b16 %v2879
    %v4800 = vunpack.c.h.b16 %v2879
    %v4801 = vunpack.c.l.b16 %v2880
    %v4802 = vunpack.c.l.b16 %v2881
    %v4803 = vunpack.c.h.b16 %v2881
    %v4804 = vunpack.c.l.b16 %v2882
    %v4805 = vunpack.c.h.b16 %v2882
    %v4806 = vunpack.c.l.b16 %v2883
    %v4807 = vunpack.c.l.b16 %v2884
    %v4808 = vunpack.c.h.b16 %v2884
    %v4809 = vunpack.c.l.b16 %v2885
    %v4810 = vunpack.c.h.b16 %v2885
    %v4811 = vunpack.c.l.b16 %v2886
    %v4812 = vunpack.c.l.b16 %v2887
    %v4813 = vunpack.c.h.b16 %v2887
    %v4814 = vunpack.c.l.b16 %v2888
    %v4815 = vunpack.c.h.b16 %v2888
    %v4816 = vunpack.c.l.b16 %v2889
    %v4817 = vunpack.c.l.b16 %v2890
    %v4818 = vunpack.c.h.b16 %v2890
    %v4819 = vunpack.c.l.b16 %v2891
    %v4820 = vunpack.c.h.b16 %v2891
    %v4821 = vunpack.c.l.b16 %v2892
    %v4822 = vunpack.c.l.b16 %v2893
    %v4823 = vunpack.c.h.b16 %v2893
    %v4824 = vunpack.c.l.b16 %v2894
    %v4825 = vunpack.c.h.b16 %v2894
    %v4826 = vunpack.c.l.b16 %v2895
    %v4827 = vunpack.c.l.b16 %v2896
    %v4828 = vunpack.c.h.b16 %v2896
    %v4829 = vunpack.c.l.b16 %v2897
    %v4830 = vunpack.c.h.b16 %v2897
    %v4831 = vunpack.c.l.b16 %v2898
    %v4832 = vunpack.c.l.b16 %v2899
    %v4833 = vunpack.c.h.b16 %v2899
    %v4834 = vunpack.c.l.b16 %v2900
    %v4835 = vunpack.c.h.b16 %v2900
    %v4836 = vunpack.c.l.b16 %v2901
    %v4837 = vunpack.c.l.b16 %v2902
    %v4838 = vunpack.c.h.b16 %v2902
    %v4839 = vunpack.c.l.b16 %v2903
    %v4840 = vunpack.c.h.b16 %v2903
    %v4841 = vunpack.c.l.b16 %v2904
    %v4842 = vunpack.c.l.b16 %v2905
    %v4843 = vunpack.c.h.b16 %v2905
    %v4844 = vunpack.c.l.b16 %v2906
    %v4845 = vunpack.c.h.b16 %v2906
    %v4846 = vunpack.c.l.b16 %v2907
    %v4847 = vunpack.c.l.b16 %v2908
    %v4848 = vunpack.c.h.b16 %v2908
    %v4849 = vunpack.c.l.b16 %v2909
    %v4850 = vunpack.c.h.b16 %v2909
    %v4851 = vunpack.c.l.b16 %v2910
    %v4852 = vunpack.c.l.b16 %v2911
    %v4853 = vunpack.c.h.b16 %v2911
    %v4854 = vunpack.c.l.b16 %v2912
    %v4855 = vunpack.c.h.b16 %v2912
    %v4856 = vunpack.c.l.b16 %v2913
    %v4857 = vunpack.c.l.b16 %v2914
    %v4858 = vunpack.c.h.b16 %v2914
    %v4859 = vunpack.c.l.b16 %v2915
    %v4860 = vunpack.c.h.b16 %v2915
    %v4861 = vunpack.c.l.b16 %v2916
    %v4862 = vunpack.c.l.b16 %v2917
    %v4863 = vunpack.c.h.b16 %v2917
    %v4864 = vunpack.c.l.b16 %v2918
    %v4865 = vunpack.c.h.b16 %v2918
    %v4866 = vunpack.c.l.b16 %v2919
    %v4867 = vunpack.c.l.b16 %v2920
    %v4868 = vunpack.c.h.b16 %v2920
    %v4869 = vunpack.c.l.b16 %v2921
    %v4870 = vunpack.c.h.b16 %v2921
    %v4871 = vunpack.c.l.b16 %v2922
    %v4872 = vunpack.c.l.b16 %v2923
    %v4873 = vunpack.c.h.b16 %v2923
    %v4874 = vunpack.c.l.b16 %v2924
    %v4875 = vunpack.c.h.b16 %v2924
    %v4876 = vunpack.c.l.b16 %v2925
    %v4877 = vunpack.c.l.b16 %v2926
    %v4878 = vunpack.c.h.b16 %v2926
    %v4879 = vunpack.c.l.b16 %v2927
    %v4880 = vunpack.c.h.b16 %v2927
    %v4881 = vunpack.c.l.b16 %v2928
    %v4882 = vunpack.c.l.b16 %v2929
    %v4883 = vunpack.c.h.b16 %v2929
    %v4884 = vunpack.c.l.b16 %v2930
    %v4885 = vunpack.c.h.b16 %v2930
    %v4886 = vunpack.c.l.b16 %v2931
    %v4887 = vunpack.c.l.b16 %v2932
    %v4888 = vunpack.c.h.b16 %v2932
    %v4889 = vunpack.c.l.b16 %v2933
    %v4890 = vunpack.c.h.b16 %v2933
    %v4891 = vunpack.c.l.b16 %v2934
    %v4892 = vunpack.c.l.b16 %v2935
    %v4893 = vunpack.c.h.b16 %v2935
    %v4894 = vunpack.c.l.b16 %v2936
    %v4895 = vunpack.c.h.b16 %v2936
    %v4896 = vunpack.c.l.b16 %v2937
    %v4897 = vunpack.c.l.b16 %v2938
    %v4898 = vunpack.c.h.b16 %v2938
    %v4899 = vunpack.c.l.b16 %v2939
    %v4900 = vunpack.c.h.b16 %v2939
    %v4901 = vunpack.c.l.b16 %v2940
    %v4902 = vunpack.c.l.b16 %v2941
    %v4903 = vunpack.c.h.b16 %v2941
    %v4904 = vunpack.c.l.b16 %v2942
    %v4905 = vunpack.c.h.b16 %v2942
    %v4906 = vunpack.c.l.b16 %v2943
    %v4907 = vunpack.c.l.b16 %v2944
    %v4908 = vunpack.c.h.b16 %v2944
    %v4909 = vunpack.c.l.b16 %v2945
    %v4910 = vunpack.c.h.b16 %v2945
    %v4911 = vunpack.c.l.b16 %v2946
    %v4912 = vunpack.c.l.b16 %v2947
    %v4913 = vunpack.c.h.b16 %v2947
    %v4914 = vunpack.c.l.b16 %v2948
    %v4915 = vunpack.c.h.b16 %v2948
    %v4916 = vunpack.c.l.b16 %v2949
    %v4917 = vunpack.c.l.b16 %v2950
    %v4918 = vunpack.c.h.b16 %v2950
    %v4919 = vunpack.c.l.b16 %v2951
    %v4920 = vunpack.c.h.b16 %v2951
    %v4921 = vunpack.c.l.b16 %v2952
    %v4922 = vunpack.c.l.b16 %v2953
    %v4923 = vunpack.c.h.b16 %v2953
    %v4924 = vunpack.c.l.b16 %v2954
    %v4925 = vunpack.c.h.b16 %v2954
    %v4926 = vunpack.c.l.b16 %v2955
    %v4927 = vunpack.c.l.b16 %v2956
    %v4928 = vunpack.c.h.b16 %v2956
    %v4929 = vunpack.c.l.b16 %v2957
    %v4930 = vunpack.c.h.b16 %v2957
    %v4931 = vunpack.c.l.b16 %v2958
    %v4932 = vunpack.c.l.b16 %v2959
    %v4933 = vunpack.c.h.b16 %v2959
    %v4934 = vunpack.c.l.b16 %v2960
    %v4935 = vunpack.c.h.b16 %v2960
    %v4936 = vunpack.c.l.b16 %v2961
    %v4937 = vunpack.c.l.b16 %v2962
    %v4938 = vunpack.c.h.b16 %v2962
    %v4939 = vunpack.c.l.b16 %v2963
    %v4940 = vunpack.c.h.b16 %v2963
    %v4941 = vunpack.c.l.b16 %v2964
    %v4942 = vunpack.c.l.b16 %v2965
    %v4943 = vunpack.c.h.b16 %v2965
    %v4944 = vunpack.c.l.b16 %v2966
    %v4945 = vunpack.c.h.b16 %v2966
    %v4946 = vunpack.c.l.b16 %v2967
    %v4947 = vunpack.c.l.b16 %v2968
    %v4948 = vunpack.c.h.b16 %v2968
    %v4949 = vunpack.c.l.b16 %v2969
    %v4950 = vunpack.c.h.b16 %v2969
    %v4951 = vunpack.c.l.b16 %v2970
    %v4952 = vunpack.c.l.b16 %v2971
    %v4953 = vunpack.c.h.b16 %v2971
    %v4954 = vunpack.c.l.b16 %v2972
    %v4955 = vunpack.c.h.b16 %v2972
    %v4956 = vunpack.c.l.b16 %v2973
    %v4957 = vunpack.c.l.b16 %v2974
    %v4958 = vunpack.c.h.b16 %v2974
    %v4959 = vunpack.c.l.b16 %v2975
    %v4960 = vunpack.c.h.b16 %v2975
    %v4961 = vunpack.c.l.b16 %v2976
    %v4962 = vunpack.c.l.b16 %v2977
    %v4963 = vunpack.c.h.b16 %v2977
    %v4964 = vunpack.c.l.b16 %v2978
    %v4965 = vunpack.c.h.b16 %v2978
    %v4966 = vunpack.c.l.b16 %v2979
    %v4967 = vunpack.c.l.b16 %v2980
    %v4968 = vunpack.c.h.b16 %v2980
    %v4969 = vunpack.c.l.b16 %v2981
    %v4970 = vunpack.c.h.b16 %v2981
    %v4971 = vunpack.c.l.b16 %v2982
    %v4972 = vunpack.c.l.b16 %v2983
    %v4973 = vunpack.c.h.b16 %v2983
    %v4974 = vunpack.c.l.b16 %v2984
    %v4975 = vunpack.c.h.b16 %v2984
    %v4976 = vunpack.c.l.b16 %v2985
    %v4977 = vunpack.c.l.b16 %v2986
    %v4978 = vunpack.c.h.b16 %v2986
    %v4979 = vunpack.c.l.b16 %v2987
    %v4980 = vunpack.c.h.b16 %v2987
    %v4981 = vunpack.c.l.b16 %v2988
    %v4982 = vunpack.c.l.b16 %v2989
    %v4983 = vunpack.c.h.b16 %v2989
    %v4984 = vunpack.c.l.b16 %v2990
    %v4985 = vunpack.c.h.b16 %v2990
    %v4986 = vunpack.c.l.b16 %v2991
    %v4987 = vunpack.c.l.b16 %v2992
    %v4988 = vunpack.c.h.b16 %v2992
    %v4989 = vunpack.c.l.b16 %v2993
    %v4990 = vunpack.c.h.b16 %v2993
    %v4991 = vunpack.c.l.b16 %v2994
    %v4992 = vunpack.c.l.b16 %v2995
    %v4993 = vunpack.c.h.b16 %v2995
    %v4994 = vunpack.c.l.b16 %v2996
    %v4995 = vunpack.c.h.b16 %v2996
    %v4996 = vunpack.c.l.b16 %v2997
    %v4997 = vunpack.c.l.b16 %v2998
    %v4998 = vunpack.c.h.b16 %v2998
    %v4999 = vunpack.c.l.b16 %v2999
    %v5000 = vunpack.c.h.b16 %v2999
    %v5001 = vunpack.c.l.b16 %v3000
    %v5002 = vunpack.c.l.b16 %v3001
    %v5003 = vunpack.c.h.b16 %v3001
    %v5004 = vunpack.c.l.b16 %v3002
    %v5005 = vunpack.c.h.b16 %v3002
    %v5006 = vunpack.c.l.b16 %v3003
    %v5007 = vunpack.c.l.b16 %v3004
    %v5008 = vunpack.c.h.b16 %v3004
    %v5009 = vunpack.c.l.b16 %v3005
    %v5010 = vunpack.c.h.b16 %v3005
    %v5011 = vunpack.c.l.b16 %v3006
    %v5012 = vunpack.c.l.b16 %v3007
    %v5013 = vunpack.c.h.b16 %v3007
    %v5014 = vunpack.c.l.b16 %v3008
    %v5015 = vunpack.c.h.b16 %v3008
    %v5016 = vunpack.c.l.b16 %v3009
    %v5017 = vunpack.c.l.b16 %v3010
    %v5018 = vunpack.c.h.b16 %v3010
    %v5019 = vunpack.c.l.b16 %v3011
    %v5020 = vunpack.c.h.b16 %v3011
    %v5021 = vunpack.c.l.b16 %v3012
    %v5022 = vunpack.c.l.b16 %v3013
    %v5023 = vunpack.c.h.b16 %v3013
    %v5024 = vunpack.c.l.b16 %v3014
    %v5025 = vunpack.c.h.b16 %v3014
    %v5026 = vunpack.c.l.b16 %v3015
    %v5027 = vunpack.c.l.b16 %v3016
    %v5028 = vunpack.c.h.b16 %v3016
    %v5029 = vunpack.c.l.b16 %v3017
    %v5030 = vunpack.c.h.b16 %v3017
    %v5031 = vunpack.c.l.b16 %v3018
    %v5032 = vunpack.c.l.b16 %v3019
    %v5033 = vunpack.c.h.b16 %v3019
    %v5034 = vunpack.c.l.b16 %v3020
    %v5035 = vunpack.c.h.b16 %v3020
    %v5036 = vunpack.c.l.b16 %v3021
    %v5037 = vunpack.c.l.b16 %v3022
    %v5038 = vunpack.c.h.b16 %v3022
    %v5039 = vunpack.c.l.b16 %v3023
    %v5040 = vunpack.c.h.b16 %v3023
    %v5041 = vunpack.c.l.b16 %v3024
    %v5042 = vunpack.c.l.b16 %v3025
    %v5043 = vunpack.c.h.b16 %v3025
    %v5044 = vunpack.c.l.b16 %v3026
    %v5045 = vunpack.c.h.b16 %v3026
    %v5046 = vunpack.c.l.b16 %v3027
    %v5047 = vunpack.c.l.b16 %v3028
    %v5048 = vunpack.c.h.b16 %v3028
    %v5049 = vunpack.c.l.b16 %v3029
    %v5050 = vunpack.c.h.b16 %v3029
    %v5051 = vunpack.c.l.b16 %v3030
    %v5052 = vunpack.c.l.b16 %v3031
    %v5053 = vunpack.c.h.b16 %v3031
    %v5054 = vunpack.c.l.b16 %v3032
    %v5055 = vunpack.c.h.b16 %v3032
    %v5056 = vunpack.c.l.b16 %v3033
    %v5057 = vunpack.c.l.b16 %v3034
    %v5058 = vunpack.c.h.b16 %v3034
    %v5059 = vunpack.c.l.b16 %v3035
    %v5060 = vunpack.c.h.b16 %v3035
    %v5061 = vunpack.c.l.b16 %v3036
    %v5062 = vunpack.c.l.b16 %v3037
    %v5063 = vunpack.c.h.b16 %v3037
    %v5064 = vunpack.c.l.b16 %v3038
    %v5065 = vunpack.c.h.b16 %v3038
    %v5066 = vunpack.c.l.b16 %v3039
    %v5067 = vunpack.c.l.b16 %v3040
    %v5068 = vunpack.c.h.b16 %v3040
    %v5069 = vunpack.c.l.b16 %v3041
    %v5070 = vunpack.c.h.b16 %v3041
    %v5071 = vunpack.c.l.b16 %v3042
    %v5072 = vunpack.c.l.b16 %v3043
    %v5073 = vunpack.c.h.b16 %v3043
    %v5074 = vunpack.c.l.b16 %v3044
    %v5075 = vunpack.c.h.b16 %v3044
    %v5076 = vunpack.c.l.b16 %v3045
    %v5077 = vunpack.c.l.b16 %v3046
    %v5078 = vunpack.c.h.b16 %v3046
    %v5079 = vunpack.c.l.b16 %v3047
    %v5080 = vunpack.c.h.b16 %v3047
    %v5081 = vunpack.c.l.b16 %v3048
    %v5082 = vunpack.c.l.b16 %v3049
    %v5083 = vunpack.c.h.b16 %v3049
    %v5084 = vunpack.c.l.b16 %v3050
    %v5085 = vunpack.c.h.b16 %v3050
    %v5086 = vunpack.c.l.b16 %v3051
    %v5087 = vunpack.c.l.b16 %v3052
    %v5088 = vunpack.c.h.b16 %v3052
    %v5089 = vunpack.c.l.b16 %v3053
    %v5090 = vunpack.c.h.b16 %v3053
    %v5091 = vunpack.c.l.b16 %v3054
    %v5092 = vunpack.c.l.b16 %v3055
    %v5093 = vunpack.c.h.b16 %v3055
    %v5094 = vunpack.c.l.b16 %v3056
    %v5095 = vunpack.c.h.b16 %v3056
    %v5096 = vunpack.c.l.b16 %v3057
    %v5097 = vunpack.c.l.b16 %v3058
    %v5098 = vunpack.c.h.b16 %v3058
    %v5099 = vunpack.c.l.b16 %v3059
    %v5100 = vunpack.c.h.b16 %v3059
    %v5101 = vunpack.c.l.b16 %v3060
    %v5102 = vunpack.c.l.b16 %v3061
    %v5103 = vunpack.c.h.b16 %v3061
    %v5104 = vunpack.c.l.b16 %v3062
    %v5105 = vunpack.c.h.b16 %v3062
    %v5106 = vunpack.c.l.b16 %v3063
    %v5107 = vunpack.c.l.b16 %v3064
    %v5108 = vunpack.c.h.b16 %v3064
    %v5109 = vunpack.c.l.b16 %v3065
    %v5110 = vunpack.c.h.b16 %v3065
    %v5111 = vunpack.c.l.b16 %v3066
    %v5112 = vunpack.c.l.b16 %v3067
    %v5113 = vunpack.c.h.b16 %v3067
    %v5114 = vunpack.c.l.b16 %v3068
    %v5115 = vunpack.c.h.b16 %v3068
    %v5116 = vunpack.c.l.b16 %v3069
    %v5117 = vunpack.c.l.b16 %v3070
    %v5118 = vunpack.c.h.b16 %v3070
    %v5119 = vunpack.c.l.b16 %v3071
    %v5120 = vunpack.c.h.b16 %v3071
    %v5121 = vunpack.c.l.b16 %v3072
    %v5122 = vunpack.c.l.b16 %v3073
    %v5123 = vunpack.c.h.b16 %v3073
    %v5124 = vunpack.c.l.b16 %v3074
    %v5125 = vunpack.c.h.b16 %v3074
    %v5126 = vunpack.c.l.b16 %v3075
    %v5127 = vunpack.c.l.b16 %v3076
    %v5128 = vunpack.c.h.b16 %v3076
    %v5129 = vunpack.c.l.b16 %v3077
    %v5130 = vunpack.c.h.b16 %v3077
    %v5131 = vunpack.c.l.b16 %v3078
    %v5132 = vunpack.c.l.b16 %v3079
    %v5133 = vunpack.c.h.b16 %v3079
    %v5134 = vunpack.c.l.b16 %v3080
    %v5135 = vunpack.c.h.b16 %v3080
    %v5136 = vunpack.c.l.b16 %v3081
    %v5137 = vunpack.c.l.b16 %v3082
    %v5138 = vunpack.c.h.b16 %v3082
    %v5139 = vunpack.c.l.b16 %v3083
    %v5140 = vunpack.c.h.b16 %v3083
    %v5141 = vunpack.c.l.b16 %v3084
    %v5142 = vunpack.c.l.b16 %v3085
    %v5143 = vunpack.c.h.b16 %v3085
    %v5144 = vunpack.c.l.b16 %v3086
    %v5145 = vunpack.c.h.b16 %v3086
    %v5146 = vunpack.c.l.b16 %v3087
    %v5147 = vunpack.c.l.b16 %v3088
    %v5148 = vunpack.c.h.b16 %v3088
    %v5149 = vunpack.c.l.b16 %v3089
    %v5150 = vunpack.c.h.b16 %v3089
    %v5151 = vunpack.c.l.b16 %v3090
    %v5152 = vunpack.c.l.b16 %v3091
    %v5153 = vunpack.c.h.b16 %v3091
    %v5154 = vunpack.c.l.b16 %v3092
    %v5155 = vunpack.c.h.b16 %v3092
    %v5156 = vunpack.c.l.b16 %v3093
    %v5157 = vunpack.c.l.b16 %v3094
    %v5158 = vunpack.c.h.b16 %v3094
    %v5159 = vunpack.c.l.b16 %v3095
    %v5160 = vunpack.c.h.b16 %v3095
    %v5161 = vunpack.c.l.b16 %v3096
    %v5162 = vunpack.c.l.b16 %v3097
    %v5163 = vunpack.c.h.b16 %v3097
    %v5164 = vunpack.c.l.b16 %v3098
    %v5165 = vunpack.c.h.b16 %v3098
    %v5166 = vunpack.c.l.b16 %v3099
    %v5167 = vunpack.c.l.b16 %v3100
    %v5168 = vunpack.c.h.b16 %v3100
    %v5169 = vunpack.c.l.b16 %v3101
    %v5170 = vunpack.c.h.b16 %v3101
    %v5171 = vunpack.c.l.b16 %v3102
    %v5172 = vunpack.c.l.b16 %v3103
    %v5173 = vunpack.c.h.b16 %v3103
    %v5174 = vunpack.c.l.b16 %v3104
    %v5175 = vunpack.c.h.b16 %v3104
    %v5176 = vunpack.c.l.b16 %v3105
    %v5177 = vunpack.c.l.b16 %v3106
    %v5178 = vunpack.c.h.b16 %v3106
    %v5179 = vunpack.c.l.b16 %v3107
    %v5180 = vunpack.c.h.b16 %v3107
    %v5181 = vunpack.c.l.b16 %v3108
    %v5182 = vunpack.c.l.b16 %v3109
    %v5183 = vunpack.c.h.b16 %v3109
    %v5184 = vunpack.c.l.b16 %v3110
    %v5185 = vunpack.c.h.b16 %v3110
    %v5186 = vunpack.c.l.b16 %v3111
    %v5187 = vpack.c.b16 %v3912, %v3907
    %v5188 = vpack.c.b16 %v3913, %v3908
    %v5189 = vpack.c.b16 %v3914, %v3909
    %v5190 = vpack.c.b16 %v3915, %v3910
    %v5191 = vpack.c.b16 %v3916, %v3911
    %v5192 = vpack.c.b16 %v3922, %v3917
    %v5193 = vpack.c.b16 %v3923, %v3918
    %v5194 = vpack.c.b16 %v3924, %v3919
    %v5195 = vpack.c.b16 %v3925, %v3920
    %v5196 = vpack.c.b16 %v3926, %v3921
    %v5197 = vpack.c.b16 %v3932, %v3927
    %v5198 = vpack.c.b16 %v3933, %v3928
    %v5199 = vpack.c.b16 %v3934, %v3929
    %v5200 = vpack.c.b16 %v3935, %v3930
    %v5201 = vpack.c.b16 %v3936, %v3931
    %v5202 = vpack.c.b16 %v3942, %v3937
    %v5203 = vpack.c.b16 %v3943, %v3938
    %v5204 = vpack.c.b16 %v3944, %v3939
    %v5205 = vpack.c.b16 %v3945, %v3940
    %v5206 = vpack.c.b16 %v3946, %v3941
    %v5207 = vpack.c.b16 %v3952, %v3947
    %v5208 = vpack.c.b16 %v3953, %v3948
    %v5209 = vpack.c.b16 %v3954, %v3949
    %v5210 = vpack.c.b16 %v3955, %v3950
    %v5211 = vpack.c.b16 %v3956, %v3951
    %v5212 = vpack.c.b16 %v3962, %v3957
    %v5213 = vpack.c.b16 %v3963, %v3958
    %v5214 = vpack.c.b16 %v3964, %v3959
    %v5215 = vpack.c.b16 %v3965, %v3960
    %v5216 = vpack.c.b16 %v3966, %v3961
    %v5217 = vpack.c.b16 %v3972, %v3967
    %v5218 = vpack.c.b16 %v3973, %v3968
    %v5219 = vpack.c.b16 %v3974, %v3969
    %v5220 = vpack.c.b16 %v3975, %v3970
    %v5221 = vpack.c.b16 %v3976, %v3971
    %v5222 = vpack.c.b16 %v3982, %v3977
    %v5223 = vpack.c.b16 %v3983, %v3978
    %v5224 = vpack.c.b16 %v3984, %v3979
    %v5225 = vpack.c.b16 %v3985, %v3980
    %v5226 = vpack.c.b16 %v3986, %v3981
    %v5227 = vpack.c.b16 %v3992, %v3987
    %v5228 = vpack.c.b16 %v3993, %v3988
    %v5229 = vpack.c.b16 %v3994, %v3989
    %v5230 = vpack.c.b16 %v3995, %v3990
    %v5231 = vpack.c.b16 %v3996, %v3991
    %v5232 = vpack.c.b16 %v4002, %v3997
    %v5233 = vpack.c.b16 %v4003, %v3998
    %v5234 = vpack.c.b16 %v4004, %v3999
    %v5235 = vpack.c.b16 %v4005, %v4000
    %v5236 = vpack.c.b16 %v4006, %v4001
    %v5237 = vpack.c.b16 %v4012, %v4007
    %v5238 = vpack.c.b16 %v4013, %v4008
    %v5239 = vpack.c.b16 %v4014, %v4009
    %v5240 = vpack.c.b16 %v4015, %v4010
    %v5241 = vpack.c.b16 %v4016, %v4011
    %v5242 = vpack.c.b16 %v4022, %v4017
    %v5243 = vpack.c.b16 %v4023, %v4018
    %v5244 = vpack.c.b16 %v4024, %v4019
    %v5245 = vpack.c.b16 %v4025, %v4020
    %v5246 = vpack.c.b16 %v4026, %v4021
    %v5247 = vpack.c.b16 %v4032, %v4027
    %v5248 = vpack.c.b16 %v4033, %v4028
    %v5249 = vpack.c.b16 %v4034, %v4029
    %v5250 = vpack.c.b16 %v4035, %v4030
    %v5251 = vpack.c.b16 %v4036, %v4031
    %v5252 = vpack.c.b16 %v4042, %v4037
    %v5253 = vpack.c.b16 %v4043, %v4038
    %v5254 = vpack.c.b16 %v4044, %v4039
    %v5255 = vpack.c.b16 %v4045, %v4040
    %v5256 = vpack.c.b16 %v4046, %v4041
    %v5257 = vpack.c.b16 %v4052, %v4047
    %v5258 = vpack.c.b16 %v4053, %v4048
    %v5259 = vpack.c.b16 %v4054, %v4049
    %v5260 = vpack.c.b16 %v4055, %v4050
    %v5261 = vpack.c.b16 %v4056, %v4051
    %v5262 = vpack.c.b16 %v4062, %v4057
    %v5263 = vpack.c.b16 %v4063, %v4058
    %v5264 = vpack.c.b16 %v4064, %v4059
    %v5265 = vpack.c.b16 %v4065, %v4060
    %v5266 = vpack.c.b16 %v4066, %v4061
    %v5267 = vpack.c.b16 %v4072, %v4067
    %v5268 = vpack.c.b16 %v4073, %v4068
    %v5269 = vpack.c.b16 %v4074, %v4069
    %v5270 = vpack.c.b16 %v4075, %v4070
    %v5271 = vpack.c.b16 %v4076, %v4071
    %v5272 = vpack.c.b16 %v4082, %v4077
    %v5273 = vpack.c.b16 %v4083, %v4078
    %v5274 = vpack.c.b16 %v4084, %v4079
    %v5275 = vpack.c.b16 %v4085, %v4080
    %v5276 = vpack.c.b16 %v4086, %v4081
    %v5277 = vpack.c.b16 %v4092, %v4087
    %v5278 = vpack.c.b16 %v4093, %v4088
    %v5279 = vpack.c.b16 %v4094, %v4089
    %v5280 = vpack.c.b16 %v4095, %v4090
    %v5281 = vpack.c.b16 %v4096, %v4091
    %v5282 = vpack.c.b16 %v4102, %v4097
    %v5283 = vpack.c.b16 %v4103, %v4098
    %v5284 = vpack.c.b16 %v4104, %v4099
    %v5285 = vpack.c.b16 %v4105, %v4100
    %v5286 = vpack.c.b16 %v4106, %v4101
    %v5287 = vpack.c.b16 %v4112, %v4107
    %v5288 = vpack.c.b16 %v4113, %v4108
    %v5289 = vpack.c.b16 %v4114, %v4109
    %v5290 = vpack.c.b16 %v4115, %v4110
    %v5291 = vpack.c.b16 %v4116, %v4111
    %v5292 = vpack.c.b16 %v4122, %v4117
    %v5293 = vpack.c.b16 %v4123, %v4118
    %v5294 = vpack.c.b16 %v4124, %v4119
    %v5295 = vpack.c.b16 %v4125, %v4120
    %v5296 = vpack.c.b16 %v4126, %v4121
    %v5297 = vpack.c.b16 %v4132, %v4127
    %v5298 = vpack.c.b16 %v4133, %v4128
    %v5299 = vpack.c.b16 %v4134, %v4129
    %v5300 = vpack.c.b16 %v4135, %v4130
    %v5301 = vpack.c.b16 %v4136, %v4131
    %v5302 = vpack.c.b16 %v4142, %v4137
    %v5303 = vpack.c.b16 %v4143, %v4138
    %v5304 = vpack.c.b16 %v4144, %v4139
    %v5305 = vpack.c.b16 %v4145, %v4140
    %v5306 = vpack.c.b16 %v4146, %v4141
    %v5307 = vpack.c.b16 %v4152, %v4147
    %v5308 = vpack.c.b16 %v4153, %v4148
    %v5309 = vpack.c.b16 %v4154, %v4149
    %v5310 = vpack.c.b16 %v4155, %v4150
    %v5311 = vpack.c.b16 %v4156, %v4151
    %v5312 = vpack.c.b16 %v4162, %v4157
    %v5313 = vpack.c.b16 %v4163, %v4158
    %v5314 = vpack.c.b16 %v4164, %v4159
    %v5315 = vpack.c.b16 %v4165, %v4160
    %v5316 = vpack.c.b16 %v4166, %v4161
    %v5317 = vpack.c.b16 %v4172, %v4167
    %v5318 = vpack.c.b16 %v4173, %v4168
    %v5319 = vpack.c.b16 %v4174, %v4169
    %v5320 = vpack.c.b16 %v4175, %v4170
    %v5321 = vpack.c.b16 %v4176, %v4171
    %v5322 = vpack.c.b16 %v4182, %v4177
    %v5323 = vpack.c.b16 %v4183, %v4178
    %v5324 = vpack.c.b16 %v4184, %v4179
    %v5325 = vpack.c.b16 %v4185, %v4180
    %v5326 = vpack.c.b16 %v4186, %v4181
    %v5327 = vpack.c.b16 %v4192, %v4187
    %v5328 = vpack.c.b16 %v4193, %v4188
    %v5329 = vpack.c.b16 %v4194, %v4189
    %v5330 = vpack.c.b16 %v4195, %v4190
    %v5331 = vpack.c.b16 %v4196, %v4191
    %v5332 = vpack.c.b16 %v4202, %v4197
    %v5333 = vpack.c.b16 %v4203, %v4198
    %v5334 = vpack.c.b16 %v4204, %v4199
    %v5335 = vpack.c.b16 %v4205, %v4200
    %v5336 = vpack.c.b16 %v4206, %v4201
    %v5337 = vpack.c.b16 %v4212, %v4207
    %v5338 = vpack.c.b16 %v4213, %v4208
    %v5339 = vpack.c.b16 %v4214, %v4209
    %v5340 = vpack.c.b16 %v4215, %v4210
    %v5341 = vpack.c.b16 %v4216, %v4211
    %v5342 = vpack.c.b16 %v4222, %v4217
    %v5343 = vpack.c.b16 %v4223, %v4218
    %v5344 = vpack.c.b16 %v4224, %v4219
    %v5345 = vpack.c.b16 %v4225, %v4220
    %v5346 = vpack.c.b16 %v4226, %v4221
    %v5347 = vpack.c.b16 %v4232, %v4227
    %v5348 = vpack.c.b16 %v4233, %v4228
    %v5349 = vpack.c.b16 %v4234, %v4229
    %v5350 = vpack.c.b16 %v4235, %v4230
    %v5351 = vpack.c.b16 %v4236, %v4231
    %v5352 = vpack.c.b16 %v4242, %v4237
    %v5353 = vpack.c.b16 %v4243, %v4238
    %v5354 = vpack.c.b16 %v4244, %v4239
    %v5355 = vpack.c.b16 %v4245, %v4240
    %v5356 = vpack.c.b16 %v4246, %v4241
    %v5357 = vpack.c.b16 %v4252, %v4247
    %v5358 = vpack.c.b16 %v4253, %v4248
    %v5359 = vpack.c.b16 %v4254, %v4249
    %v5360 = vpack.c.b16 %v4255, %v4250
    %v5361 = vpack.c.b16 %v4256, %v4251
    %v5362 = vpack.c.b16 %v4262, %v4257
    %v5363 = vpack.c.b16 %v4263, %v4258
    %v5364 = vpack.c.b16 %v4264, %v4259
    %v5365 = vpack.c.b16 %v4265, %v4260
    %v5366 = vpack.c.b16 %v4266, %v4261
    %v5367 = vpack.c.b16 %v4272, %v4267
    %v5368 = vpack.c.b16 %v4273, %v4268
    %v5369 = vpack.c.b16 %v4274, %v4269
    %v5370 = vpack.c.b16 %v4275, %v4270
    %v5371 = vpack.c.b16 %v4276, %v4271
    %v5372 = vpack.c.b16 %v4282, %v4277
    %v5373 = vpack.c.b16 %v4283, %v4278
    %v5374 = vpack.c.b16 %v4284, %v4279
    %v5375 = vpack.c.b16 %v4285, %v4280
    %v5376 = vpack.c.b16 %v4286, %v4281
    %v5377 = vpack.c.b16 %v4292, %v4287
    %v5378 = vpack.c.b16 %v4293, %v4288
    %v5379 = vpack.c.b16 %v4294, %v4289
    %v5380 = vpack.c.b16 %v4295, %v4290
    %v5381 = vpack.c.b16 %v4296, %v4291
    %v5382 = vpack.c.b16 %v4302, %v4297
    %v5383 = vpack.c.b16 %v4303, %v4298
    %v5384 = vpack.c.b16 %v4304, %v4299
    %v5385 = vpack.c.b16 %v4305, %v4300
    %v5386 = vpack.c.b16 %v4306, %v4301
    %v5387 = vpack.c.b16 %v4312, %v4307
    %v5388 = vpack.c.b16 %v4313, %v4308
    %v5389 = vpack.c.b16 %v4314, %v4309
    %v5390 = vpack.c.b16 %v4315, %v4310
    %v5391 = vpack.c.b16 %v4316, %v4311
    %v5392 = vpack.c.b16 %v4322, %v4317
    %v5393 = vpack.c.b16 %v4323, %v4318
    %v5394 = vpack.c.b16 %v4324, %v4319
    %v5395 = vpack.c.b16 %v4325, %v4320
    %v5396 = vpack.c.b16 %v4326, %v4321
    %v5397 = vpack.c.b16 %v4332, %v4327
    %v5398 = vpack.c.b16 %v4333, %v4328
    %v5399 = vpack.c.b16 %v4334, %v4329
    %v5400 = vpack.c.b16 %v4335, %v4330
    %v5401 = vpack.c.b16 %v4336, %v4331
    %v5402 = vpack.c.b16 %v4342, %v4337
    %v5403 = vpack.c.b16 %v4343, %v4338
    %v5404 = vpack.c.b16 %v4344, %v4339
    %v5405 = vpack.c.b16 %v4345, %v4340
    %v5406 = vpack.c.b16 %v4346, %v4341
    %v5407 = vpack.c.b16 %v4352, %v4347
    %v5408 = vpack.c.b16 %v4353, %v4348
    %v5409 = vpack.c.b16 %v4354, %v4349
    %v5410 = vpack.c.b16 %v4355, %v4350
    %v5411 = vpack.c.b16 %v4356, %v4351
    %v5412 = vpack.c.b16 %v4362, %v4357
    %v5413 = vpack.c.b16 %v4363, %v4358
    %v5414 = vpack.c.b16 %v4364, %v4359
    %v5415 = vpack.c.b16 %v4365, %v4360
    %v5416 = vpack.c.b16 %v4366, %v4361
    %v5417 = vpack.c.b16 %v4372, %v4367
    %v5418 = vpack.c.b16 %v4373, %v4368
    %v5419 = vpack.c.b16 %v4374, %v4369
    %v5420 = vpack.c.b16 %v4375, %v4370
    %v5421 = vpack.c.b16 %v4376, %v4371
    %v5422 = vpack.c.b16 %v4382, %v4377
    %v5423 = vpack.c.b16 %v4383, %v4378
    %v5424 = vpack.c.b16 %v4384, %v4379
    %v5425 = vpack.c.b16 %v4385, %v4380
    %v5426 = vpack.c.b16 %v4386, %v4381
    %v5427 = vpack.c.b16 %v4392, %v4387
    %v5428 = vpack.c.b16 %v4393, %v4388
    %v5429 = vpack.c.b16 %v4394, %v4389
    %v5430 = vpack.c.b16 %v4395, %v4390
    %v5431 = vpack.c.b16 %v4396, %v4391
    %v5432 = vpack.c.b16 %v4402, %v4397
    %v5433 = vpack.c.b16 %v4403, %v4398
    %v5434 = vpack.c.b16 %v4404, %v4399
    %v5435 = vpack.c.b16 %v4405, %v4400
    %v5436 = vpack.c.b16 %v4406, %v4401
    %v5437 = vpack.c.b16 %v4412, %v4407
    %v5438 = vpack.c.b16 %v4413, %v4408
    %v5439 = vpack.c.b16 %v4414, %v4409
    %v5440 = vpack.c.b16 %v4415, %v4410
    %v5441 = vpack.c.b16 %v4416, %v4411
    %v5442 = vpack.c.b16 %v4422, %v4417
    %v5443 = vpack.c.b16 %v4423, %v4418
    %v5444 = vpack.c.b16 %v4424, %v4419
    %v5445 = vpack.c.b16 %v4425, %v4420
    %v5446 = vpack.c.b16 %v4426, %v4421
    %v5447 = vpack.c.b16 %v4432, %v4427
    %v5448 = vpack.c.b16 %v4433, %v4428
    %v5449 = vpack.c.b16 %v4434, %v4429
    %v5450 = vpack.c.b16 %v4435, %v4430
    %v5451 = vpack.c.b16 %v4436, %v4431
    %v5452 = vpack.c.b16 %v4442, %v4437
    %v5453 = vpack.c.b16 %v4443, %v4438
    %v5454 = vpack.c.b16 %v4444, %v4439
    %v5455 = vpack.c.b16 %v4445, %v4440
    %v5456 = vpack.c.b16 %v4446, %v4441
    %v5457 = vpack.c.b16 %v4452, %v4447
    %v5458 = vpack.c.b16 %v4453, %v4448
    %v5459 = vpack.c.b16 %v4454, %v4449
    %v5460 = vpack.c.b16 %v4455, %v4450
    %v5461 = vpack.c.b16 %v4456, %v4451
    %v5462 = vpack.c.b16 %v4462, %v4457
    %v5463 = vpack.c.b16 %v4463, %v4458
    %v5464 = vpack.c.b16 %v4464, %v4459
    %v5465 = vpack.c.b16 %v4465, %v4460
    %v5466 = vpack.c.b16 %v4466, %v4461
    %v5467 = vpack.c.b16 %v4472, %v4467
    %v5468 = vpack.c.b16 %v4473, %v4468
    %v5469 = vpack.c.b16 %v4474, %v4469
    %v5470 = vpack.c.b16 %v4475, %v4470
    %v5471 = vpack.c.b16 %v4476, %v4471
    %v5472 = vpack.c.b16 %v4482, %v4477
    %v5473 = vpack.c.b16 %v4483, %v4478
    %v5474 = vpack.c.b16 %v4484, %v4479
    %v5475 = vpack.c.b16 %v4485, %v4480
    %v5476 = vpack.c.b16 %v4486, %v4481
    %v5477 = vpack.c.b16 %v4492, %v4487
    %v5478 = vpack.c.b16 %v4493, %v4488
    %v5479 = vpack.c.b16 %v4494, %v4489
    %v5480 = vpack.c.b16 %v4495, %v4490
    %v5481 = vpack.c.b16 %v4496, %v4491
    %v5482 = vpack.c.b16 %v4502, %v4497
    %v5483 = vpack.c.b16 %v4503, %v4498
    %v5484 = vpack.c.b16 %v4504, %v4499
    %v5485 = vpack.c.b16 %v4505, %v4500
    %v5486 = vpack.c.b16 %v4506, %v4501
    %v5487 = vpack.c.b16 %v4512, %v4507
    %v5488 = vpack.c.b16 %v4513, %v4508
    %v5489 = vpack.c.b16 %v4514, %v4509
    %v5490 = vpack.c.b16 %v4515, %v4510
    %v5491 = vpack.c.b16 %v4516, %v4511
    %v5492 = vpack.c.b16 %v4522, %v4517
    %v5493 = vpack.c.b16 %v4523, %v4518
    %v5494 = vpack.c.b16 %v4524, %v4519
    %v5495 = vpack.c.b16 %v4525, %v4520
    %v5496 = vpack.c.b16 %v4526, %v4521
    %v5497 = vpack.c.b16 %v4532, %v4527
    %v5498 = vpack.c.b16 %v4533, %v4528
    %v5499 = vpack.c.b16 %v4534, %v4529
    %v5500 = vpack.c.b16 %v4535, %v4530
    %v5501 = vpack.c.b16 %v4536, %v4531
    %v5502 = vpack.c.b16 %v4542, %v4537
    %v5503 = vpack.c.b16 %v4543, %v4538
    %v5504 = vpack.c.b16 %v4544, %v4539
    %v5505 = vpack.c.b16 %v4545, %v4540
    %v5506 = vpack.c.b16 %v4546, %v4541
    %v5507 = vpack.c.b16 %v4552, %v4547
    %v5508 = vpack.c.b16 %v4553, %v4548
    %v5509 = vpack.c.b16 %v4554, %v4549
    %v5510 = vpack.c.b16 %v4555, %v4550
    %v5511 = vpack.c.b16 %v4556, %v4551
    %v5512 = vpack.c.b16 %v4562, %v4557
    %v5513 = vpack.c.b16 %v4563, %v4558
    %v5514 = vpack.c.b16 %v4564, %v4559
    %v5515 = vpack.c.b16 %v4565, %v4560
    %v5516 = vpack.c.b16 %v4566, %v4561
    %v5517 = vpack.c.b16 %v4572, %v4567
    %v5518 = vpack.c.b16 %v4573, %v4568
    %v5519 = vpack.c.b16 %v4574, %v4569
    %v5520 = vpack.c.b16 %v4575, %v4570
    %v5521 = vpack.c.b16 %v4576, %v4571
    %v5522 = vpack.c.b16 %v4582, %v4577
    %v5523 = vpack.c.b16 %v4583, %v4578
    %v5524 = vpack.c.b16 %v4584, %v4579
    %v5525 = vpack.c.b16 %v4585, %v4580
    %v5526 = vpack.c.b16 %v4586, %v4581
    %v5527 = vpack.c.b16 %v4592, %v4587
    %v5528 = vpack.c.b16 %v4593, %v4588
    %v5529 = vpack.c.b16 %v4594, %v4589
    %v5530 = vpack.c.b16 %v4595, %v4590
    %v5531 = vpack.c.b16 %v4596, %v4591
    %v5532 = vpack.c.b16 %v4602, %v4597
    %v5533 = vpack.c.b16 %v4603, %v4598
    %v5534 = vpack.c.b16 %v4604, %v4599
    %v5535 = vpack.c.b16 %v4605, %v4600
    %v5536 = vpack.c.b16 %v4606, %v4601
    %v5537 = vpack.c.b16 %v4612, %v4607
    %v5538 = vpack.c.b16 %v4613, %v4608
    %v5539 = vpack.c.b16 %v4614, %v4609
    %v5540 = vpack.c.b16 %v4615, %v4610
    %v5541 = vpack.c.b16 %v4616, %v4611
    %v5542 = vpack.c.b16 %v4622, %v4617
    %v5543 = vpack.c.b16 %v4623, %v4618
    %v5544 = vpack.c.b16 %v4624, %v4619
    %v5545 = vpack.c.b16 %v4625, %v4620
    %v5546 = vpack.c.b16 %v4626, %v4621
    %v5547 = vpack.c.b16 %v4632, %v4627
    %v5548 = vpack.c.b16 %v4633, %v4628
    %v5549 = vpack.c.b16 %v4634, %v4629
    %v5550 = vpack.c.b16 %v4635, %v4630
    %v5551 = vpack.c.b16 %v4636, %v4631
    %v5552 = vpack.c.b16 %v4642, %v4637
    %v5553 = vpack.c.b16 %v4643, %v4638
    %v5554 = vpack.c.b16 %v4644, %v4639
    %v5555 = vpack.c.b16 %v4645, %v4640
    %v5556 = vpack.c.b16 %v4646, %v4641
    %v5557 = vpack.c.b16 %v4652, %v4647
    %v5558 = vpack.c.b16 %v4653, %v4648
    %v5559 = vpack.c.b16 %v4654, %v4649
    %v5560 = vpack.c.b16 %v4655, %v4650
    %v5561 = vpack.c.b16 %v4656, %v4651
    %v5562 = vpack.c.b16 %v4662, %v4657
    %v5563 = vpack.c.b16 %v4663, %v4658
    %v5564 = vpack.c.b16 %v4664, %v4659
    %v5565 = vpack.c.b16 %v4665, %v4660
    %v5566 = vpack.c.b16 %v4666, %v4661
    %v5567 = vpack.c.b16 %v4672, %v4667
    %v5568 = vpack.c.b16 %v4673, %v4668
    %v5569 = vpack.c.b16 %v4674, %v4669
    %v5570 = vpack.c.b16 %v4675, %v4670
    %v5571 = vpack.c.b16 %v4676, %v4671
    %v5572 = vpack.c.b16 %v4682, %v4677
    %v5573 = vpack.c.b16 %v4683, %v4678
    %v5574 = vpack.c.b16 %v4684, %v4679
    %v5575 = vpack.c.b16 %v4685, %v4680
    %v5576 = vpack.c.b16 %v4686, %v4681
    %v5577 = vpack.c.b16 %v4692, %v4687
    %v5578 = vpack.c.b16 %v4693, %v4688
    %v5579 = vpack.c.b16 %v4694, %v4689
    %v5580 = vpack.c.b16 %v4695, %v4690
    %v5581 = vpack.c.b16 %v4696, %v4691
    %v5582 = vpack.c.b16 %v4702, %v4697
    %v5583 = vpack.c.b16 %v4703, %v4698
    %v5584 = vpack.c.b16 %v4704, %v4699
    %v5585 = vpack.c.b16 %v4705, %v4700
    %v5586 = vpack.c.b16 %v4706, %v4701
    %v5587 = vpack.c.b16 %v4712, %v4707
    %v5588 = vpack.c.b16 %v4713, %v4708
    %v5589 = vpack.c.b16 %v4714, %v4709
    %v5590 = vpack.c.b16 %v4715, %v4710
    %v5591 = vpack.c.b16 %v4716, %v4711
    %v5592 = vpack.c.b16 %v4722, %v4717
    %v5593 = vpack.c.b16 %v4723, %v4718
    %v5594 = vpack.c.b16 %v4724, %v4719
    %v5595 = vpack.c.b16 %v4725, %v4720
    %v5596 = vpack.c.b16 %v4726, %v4721
    %v5597 = vpack.c.b16 %v4732, %v4727
    %v5598 = vpack.c.b16 %v4733, %v4728
    %v5599 = vpack.c.b16 %v4734, %v4729
    %v5600 = vpack.c.b16 %v4735, %v4730
    %v5601 = vpack.c.b16 %v4736, %v4731
    %v5602 = vpack.c.b16 %v4742, %v4737
    %v5603 = vpack.c.b16 %v4743, %v4738
    %v5604 = vpack.c.b16 %v4744, %v4739
    %v5605 = vpack.c.b16 %v4745, %v4740
    %v5606 = vpack.c.b16 %v4746, %v4741
    %v5607 = vpack.c.b16 %v4752, %v4747
    %v5608 = vpack.c.b16 %v4753, %v4748
    %v5609 = vpack.c.b16 %v4754, %v4749
    %v5610 = vpack.c.b16 %v4755, %v4750
    %v5611 = vpack.c.b16 %v4756, %v4751
    %v5612 = vpack.c.b16 %v4762, %v4757
    %v5613 = vpack.c.b16 %v4763, %v4758
    %v5614 = vpack.c.b16 %v4764, %v4759
    %v5615 = vpack.c.b16 %v4765, %v4760
    %v5616 = vpack.c.b16 %v4766, %v4761
    %v5617 = vpack.c.b16 %v4772, %v4767
    %v5618 = vpack.c.b16 %v4773, %v4768
    %v5619 = vpack.c.b16 %v4774, %v4769
    %v5620 = vpack.c.b16 %v4775, %v4770
    %v5621 = vpack.c.b16 %v4776, %v4771
    %v5622 = vpack.c.b16 %v4782, %v4777
    %v5623 = vpack.c.b16 %v4783, %v4778
    %v5624 = vpack.c.b16 %v4784, %v4779
    %v5625 = vpack.c.b16 %v4785, %v4780
    %v5626 = vpack.c.b16 %v4786, %v4781
    %v5627 = vpack.c.b16 %v4792, %v4787
    %v5628 = vpack.c.b16 %v4793, %v4788
    %v5629 = vpack.c.b16 %v4794, %v4789
    %v5630 = vpack.c.b16 %v4795, %v4790
    %v5631 = vpack.c.b16 %v4796, %v4791
    %v5632 = vpack.c.b16 %v4802, %v4797
    %v5633 = vpack.c.b16 %v4803, %v4798
    %v5634 = vpack.c.b16 %v4804, %v4799
    %v5635 = vpack.c.b16 %v4805, %v4800
    %v5636 = vpack.c.b16 %v4806, %v4801
    %v5637 = vpack.c.b16 %v4812, %v4807
    %v5638 = vpack.c.b16 %v4813, %v4808
    %v5639 = vpack.c.b16 %v4814, %v4809
    %v5640 = vpack.c.b16 %v4815, %v4810
    %v5641 = vpack.c.b16 %v4816, %v4811
    %v5642 = vpack.c.b16 %v4822, %v4817
    %v5643 = vpack.c.b16 %v4823, %v4818
    %v5644 = vpack.c.b16 %v4824, %v4819
    %v5645 = vpack.c.b16 %v4825, %v4820
    %v5646 = vpack.c.b16 %v4826, %v4821
    %v5647 = vpack.c.b16 %v4832, %v4827
    %v5648 = vpack.c.b16 %v4833, %v4828
    %v5649 = vpack.c.b16 %v4834, %v4829
    %v5650 = vpack.c.b16 %v4835, %v4830
    %v5651 = vpack.c.b16 %v4836, %v4831
    %v5652 = vpack.c.b16 %v4842, %v4837
    %v5653 = vpack.c.b16 %v4843, %v4838
    %v5654 = vpack.c.b16 %v4844, %v4839
    %v5655 = vpack.c.b16 %v4845, %v4840
    %v5656 = vpack.c.b16 %v4846, %v4841
    %v5657 = vpack.c.b16 %v4852, %v4847
    %v5658 = vpack.c.b16 %v4853, %v4848
    %v5659 = vpack.c.b16 %v4854, %v4849
    %v5660 = vpack.c.b16 %v4855, %v4850
    %v5661 = vpack.c.b16 %v4856, %v4851
    %v5662 = vpack.c.b16 %v4862, %v4857
    %v5663 = vpack.c.b16 %v4863, %v4858
    %v5664 = vpack.c.b16 %v4864, %v4859
    %v5665 = vpack.c.b16 %v4865, %v4860
    %v5666 = vpack.c.b16 %v4866, %v4861
    %v5667 = vpack.c.b16 %v4872, %v4867
    %v5668 = vpack.c.b16 %v4873, %v4868
    %v5669 = vpack.c.b16 %v4874, %v4869
    %v5670 = vpack.c.b16 %v4875, %v4870
    %v5671 = vpack.c.b16 %v4876, %v4871
    %v5672 = vpack.c.b16 %v4882, %v4877
    %v5673 = vpack.c.b16 %v4883, %v4878
    %v5674 = vpack.c.b16 %v4884, %v4879
    %v5675 = vpack.c.b16 %v4885, %v4880
    %v5676 = vpack.c.b16 %v4886, %v4881
    %v5677 = vpack.c.b16 %v4892, %v4887
    %v5678 = vpack.c.b16 %v4893, %v4888
    %v5679 = vpack.c.b16 %v4894, %v4889
    %v5680 = vpack.c.b16 %v4895, %v4890
    %v5681 = vpack.c.b16 %v4896, %v4891
    %v5682 = vpack.c.b16 %v4902, %v4897
    %v5683 = vpack.c.b16 %v4903, %v4898
    %v5684 = vpack.c.b16 %v4904, %v4899
    %v5685 = vpack.c.b16 %v4905, %v4900
    %v5686 = vpack.c.b16 %v4906, %v4901
    %v5687 = vpack.c.b16 %v4912, %v4907
    %v5688 = vpack.c.b16 %v4913, %v4908
    %v5689 = vpack.c.b16 %v4914, %v4909
    %v5690 = vpack.c.b16 %v4915, %v4910
    %v5691 = vpack.c.b16 %v4916, %v4911
    %v5692 = vpack.c.b16 %v4922, %v4917
    %v5693 = vpack.c.b16 %v4923, %v4918
    %v5694 = vpack.c.b16 %v4924, %v4919
    %v5695 = vpack.c.b16 %v4925, %v4920
    %v5696 = vpack.c.b16 %v4926, %v4921
    %v5697 = vpack.c.b16 %v4932, %v4927
    %v5698 = vpack.c.b16 %v4933, %v4928
    %v5699 = vpack.c.b16 %v4934, %v4929
    %v5700 = vpack.c.b16 %v4935, %v4930
    %v5701 = vpack.c.b16 %v4936, %v4931
    %v5702 = vpack.c.b16 %v4942, %v4937
    %v5703 = vpack.c.b16 %v4943, %v4938
    %v5704 = vpack.c.b16 %v4944, %v4939
    %v5705 = vpack.c.b16 %v4945, %v4940
    %v5706 = vpack.c.b16 %v4946, %v4941
    %v5707 = vpack.c.b16 %v4952, %v4947
    %v5708 = vpack.c.b16 %v4953, %v4948
    %v5709 = vpack.c.b16 %v4954, %v4949
    %v5710 = vpack.c.b16 %v4955, %v4950
    %v5711 = vpack.c.b16 %v4956, %v4951
    %v5712 = vpack.c.b16 %v4962, %v4957
    %v5713 = vpack.c.b16 %v4963, %v4958
    %v5714 = vpack.c.b16 %v4964, %v4959
    %v5715 = vpack.c.b16 %v4965, %v4960
    %v5716 = vpack.c.b16 %v4966, %v4961
    %v5717 = vpack.c.b16 %v4972, %v4967
    %v5718 = vpack.c.b16 %v4973, %v4968
    %v5719 = vpack.c.b16 %v4974, %v4969
    %v5720 = vpack.c.b16 %v4975, %v4970
    %v5721 = vpack.c.b16 %v4976, %v4971
    %v5722 = vpack.c.b16 %v4982, %v4977
    %v5723 = vpack.c.b16 %v4983, %v4978
    %v5724 = vpack.c.b16 %v4984, %v4979
    %v5725 = vpack.c.b16 %v4985, %v4980
    %v5726 = vpack.c.b16 %v4986, %v4981
    %v5727 = vpack.c.b16 %v4992, %v4987
    %v5728 = vpack.c.b16 %v4993, %v4988
    %v5729 = vpack.c.b16 %v4994, %v4989
    %v5730 = vpack.c.b16 %v4995, %v4990
    %v5731 = vpack.c.b16 %v4996, %v4991
    %v5732 = vpack.c.b16 %v5002, %v4997
    %v5733 = vpack.c.b16 %v5003, %v4998
    %v5734 = vpack.c.b16 %v5004, %v4999
    %v5735 = vpack.c.b16 %v5005, %v5000
    %v5736 = vpack.c.b16 %v5006, %v5001
    %v5737 = vpack.c.b16 %v5012, %v5007
    %v5738 = vpack.c.b16 %v5013, %v5008
    %v5739 = vpack.c.b16 %v5014, %v5009
    %v5740 = vpack.c.b16 %v5015, %v5010
    %v5741 = vpack.c.b16 %v5016, %v5011
    %v5742 = vpack.c.b16 %v5022, %v5017
    %v5743 = vpack.c.b16 %v5023, %v5018
    %v5744 = vpack.c.b16 %v5024, %v5019
    %v5745 = vpack.c.b16 %v5025, %v5020
    %v5746 = vpack.c.b16 %v5026, %v5021
    %v5747 = vpack.c.b16 %v5032, %v5027
    %v5748 = vpack.c.b16 %v5033, %v5028
    %v5749 = vpack.c.b16 %v5034, %v5029
    %v5750 = vpack.c.b16 %v5035, %v5030
    %v5751 = vpack.c.b16 %v5036, %v5031
    %v5752 = vpack.c.b16 %v5042, %v5037
    %v5753 = vpack.c.b16 %v5043, %v5038
    %v5754 = vpack.c.b16 %v5044, %v5039
    %v5755 = vpack.c.b16 %v5045, %v5040
    %v5756 = vpack.c.b16 %v5046, %v5041
    %v5757 = vpack.c.b16 %v5052, %v5047
    %v5758 = vpack.c.b16 %v5053, %v5048
    %v5759 = vpack.c.b16 %v5054, %v5049
    %v5760 = vpack.c.b16 %v5055, %v5050
    %v5761 = vpack.c.b16 %v5056, %v5051
    %v5762 = vpack.c.b16 %v5062, %v5057
    %v5763 = vpack.c.b16 %v5063, %v5058
    %v5764 = vpack.c.b16 %v5064, %v5059
    %v5765 = vpack.c.b16 %v5065, %v5060
    %v5766 = vpack.c.b16 %v5066, %v5061
    %v5767 = vpack.c.b16 %v5072, %v5067
    %v5768 = vpack.c.b16 %v5073, %v5068
    %v5769 = vpack.c.b16 %v5074, %v5069
    %v5770 = vpack.c.b16 %v5075, %v5070
    %v5771 = vpack.c.b16 %v5076, %v5071
    %v5772 = vpack.c.b16 %v5082, %v5077
    %v5773 = vpack.c.b16 %v5083, %v5078
    %v5774 = vpack.c.b16 %v5084, %v5079
    %v5775 = vpack.c.b16 %v5085, %v5080
    %v5776 = vpack.c.b16 %v5086, %v5081
    %v5777 = vpack.c.b16 %v5092, %v5087
    %v5778 = vpack.c.b16 %v5093, %v5088
    %v5779 = vpack.c.b16 %v5094, %v5089
    %v5780 = vpack.c.b16 %v5095, %v5090
    %v5781 = vpack.c.b16 %v5096, %v5091
    %v5782 = vpack.c.b16 %v5102, %v5097
    %v5783 = vpack.c.b16 %v5103, %v5098
    %v5784 = vpack.c.b16 %v5104, %v5099
    %v5785 = vpack.c.b16 %v5105, %v5100
    %v5786 = vpack.c.b16 %v5106, %v5101
    %v5787 = vpack.c.b16 %v5112, %v5107
    %v5788 = vpack.c.b16 %v5113, %v5108
    %v5789 = vpack.c.b16 %v5114, %v5109
    %v5790 = vpack.c.b16 %v5115, %v5110
    %v5791 = vpack.c.b16 %v5116, %v5111
    %v5792 = vpack.c.b16 %v5122, %v5117
    %v5793 = vpack.c.b16 %v5123, %v5118
    %v5794 = vpack.c.b16 %v5124, %v5119
    %v5795 = vpack.c.b16 %v5125, %v5120
    %v5796 = vpack.c.b16 %v5126, %v5121
    %v5797 = vpack.c.b16 %v5132, %v5127
    %v5798 = vpack.c.b16 %v5133, %v5128
    %v5799 = vpack.c.b16 %v5134, %v5129
    %v5800 = vpack.c.b16 %v5135, %v5130
    %v5801 = vpack.c.b16 %v5136, %v5131
    %v5802 = vpack.c.b16 %v5142, %v5137
    %v5803 = vpack.c.b16 %v5143, %v5138
    %v5804 = vpack.c.b16 %v5144, %v5139
    %v5805 = vpack.c.b16 %v5145, %v5140
    %v5806 = vpack.c.b16 %v5146, %v5141
    %v5807 = vpack.c.b16 %v5152, %v5147
    %v5808 = vpack.c.b16 %v5153, %v5148
    %v5809 = vpack.c.b16 %v5154, %v5149
    %v5810 = vpack.c.b16 %v5155, %v5150
    %v5811 = vpack.c.b16 %v5156, %v5151
    %v5812 = vpack.c.b16 %v5162, %v5157
    %v5813 = vpack.c.b16 %v5163, %v5158
    %v5814 = vpack.c.b16 %v5164, %v5159
    %v5815 = vpack.c.b16 %v5165, %v5160
    %v5816 = vpack.c.b16 %v5166, %v5161
    %v5817 = vpack.c.b16 %v5172, %v5167
    %v5818 = vpack.c.b16 %v5173, %v5168
    %v5819 = vpack.c.b16 %v5174, %v5169
    %v5820 = vpack.c.b16 %v5175, %v5170
    %v5821 = vpack.c.b16 %v5176, %v5171
    %v5822 = vpack.c.b16 %v5182, %v5177
    %v5823 = vpack.c.b16 %v5183, %v5178
    %v5824 = vpack.c.b16 %v5184, %v5179
    %v5825 = vpack.c.b16 %v5185, %v5180
    %v5826 = vpack.c.b16 %v5186, %v5181
    %6467 = vmatprep.subr.bf16.mxu0 %v5223
    %6468 = vmatpush1.bf16.msra.mxu0 %v5222
    %6469 = vmatprep.subr.bf16.mxu0 %v5218
    %6470 = vmatpush1.bf16.msra.mxu0 %v5217
    %6471 = vmatprep.subr.bf16.mxu0 %v5213
    %6472 = vmatpush1.bf16.msra.mxu0 %v5212
    %6473 = vmatprep.subr.bf16.mxu0 %v5208
    %6474 = vmatpush1.bf16.msra.mxu0 %v5207
    %6475 = vmatprep.subr.bf16.mxu0 %v5203
    %6476 = vmatpush1.bf16.msra.mxu0 %v5202
    %6477 = vmatprep.subr.bf16.mxu0 %v5198
    %6478 = vmatpush1.bf16.msra.mxu0 %v5197
    %6479 = vmatprep.subr.bf16.mxu0 %v5193
    %6480 = vmatpush1.bf16.msra.mxu0 %v5192
    %6481 = vmatprep.subr.bf16.mxu0 %v5188
    %6482 = vmatpush1.bf16.msra.mxu0 %v5187
    %6483 = vmatprep.subr.bf16.mxu0 %v5263
    %6484 = vmatpush2.bf16.msra.mxu0 %v5262
    %6485 = vmatprep.subr.bf16.mxu0 %v5258
    %6486 = vmatpush2.bf16.msra.mxu0 %v5257
    %6487 = vmatprep.subr.bf16.mxu0 %v5253
    %6488 = vmatpush2.bf16.msra.mxu0 %v5252
    %6489 = vmatprep.subr.bf16.mxu0 %v5248
    %6490 = vmatpush2.bf16.msra.mxu0 %v5247
    %6491 = vmatprep.subr.bf16.mxu0 %v5243
    %6492 = vmatpush2.bf16.msra.mxu0 %v5242
    %6493 = vmatprep.subr.bf16.mxu0 %v5238
    %6494 = vmatpush2.bf16.msra.mxu0 %v5237
    %6495 = vmatprep.subr.bf16.mxu0 %v5233
    %6496 = vmatpush2.bf16.msra.mxu0 %v5232
    %6497 = vmatprep.subr.bf16.mxu0 %v5228
    %6498 = vmatpush2.bf16.msra.mxu0 %v5227
    %6499 = vmatprep.mubr.bf16.mxu0 %v2329
    %6500 = vmatmul.mubr.bf16.gmra.mxu0 %v2328
    %v6501 = vpop.f32.mrf.mxu0
    %v6502 = vadd.f32 %v3117, %v6501
    %v6503 = vpop.f32.mrf.mxu0
    %v6504 = vadd.f32 %v3121, %v6503
    %v6505 = vpop.f32.mrf.mxu0
    %v6506 = vpop.f32.mrf.mxu0
    %6507 = vdwg.mxu0
    %6508 = vmatprep.subr.bf16.mxu0 %v5303
    %6509 = vmatpush1.bf16.msra.mxu0 %v5302
    %6510 = vmatprep.subr.bf16.mxu0 %v5298
    %6511 = vmatpush1.bf16.msra.mxu0 %v5297
    %6512 = vmatprep.subr.bf16.mxu0 %v5293
    %6513 = vmatpush1.bf16.msra.mxu0 %v5292
    %6514 = vmatprep.subr.bf16.mxu0 %v5288
    %6515 = vmatpush1.bf16.msra.mxu0 %v5287
    %6516 = vmatprep.subr.bf16.mxu0 %v5283
    %6517 = vmatpush1.bf16.msra.mxu0 %v5282
    %6518 = vmatprep.subr.bf16.mxu0 %v5278
    %6519 = vmatpush1.bf16.msra.mxu0 %v5277
    %6520 = vmatprep.subr.bf16.mxu0 %v5273
    %6521 = vmatpush1.bf16.msra.mxu0 %v5272
    %6522 = vmatprep.subr.bf16.mxu0 %v5268
    %6523 = vmatpush1.bf16.msra.mxu0 %v5267
    %6524 = vmatprep.subr.bf16.mxu0 %v5343
    %6525 = vmatpush2.bf16.msra.mxu0 %v5342
    %6526 = vmatprep.subr.bf16.mxu0 %v5338
    %6527 = vmatpush2.bf16.msra.mxu0 %v5337
    %6528 = vmatprep.subr.bf16.mxu0 %v5333
    %6529 = vmatpush2.bf16.msra.mxu0 %v5332
    %6530 = vmatprep.subr.bf16.mxu0 %v5328
    %6531 = vmatpush2.bf16.msra.mxu0 %v5327
    %6532 = vmatprep.subr.bf16.mxu0 %v5323
    %6533 = vmatpush2.bf16.msra.mxu0 %v5322
    %6534 = vmatprep.subr.bf16.mxu0 %v5318
    %6535 = vmatpush2.bf16.msra.mxu0 %v5317
    %6536 = vmatprep.subr.bf16.mxu0 %v5313
    %6537 = vmatpush2.bf16.msra.mxu0 %v5312
    %6538 = vmatprep.subr.bf16.mxu0 %v5308
    %6539 = vmatpush2.bf16.msra.mxu0 %v5307
    %6540 = vmatprep.mubr.bf16.mxu0 %v2331
    %6541 = vmatmul.mubr.bf16.gmra.mxu0 %v2330
    %v6542 = vpop.f32.mrf.mxu0
    %v6543 = vadd.f32 %v6502, %v6542
    %v6544 = vpop.f32.mrf.mxu0
    %v6545 = vadd.f32 %v6504, %v6544
    %v6546 = vpop.f32.mrf.mxu0
    %v6547 = vpop.f32.mrf.mxu0
    %6548 = vdwg.mxu0
    %6549 = vmatprep.subr.bf16.mxu0 %v5383
    %6550 = vmatpush1.bf16.msra.mxu0 %v5382
    %6551 = vmatprep.subr.bf16.mxu0 %v5378
    %6552 = vmatpush1.bf16.msra.mxu0 %v5377
    %6553 = vmatprep.subr.bf16.mxu0 %v5373
    %6554 = vmatpush1.bf16.msra.mxu0 %v5372
    %6555 = vmatprep.subr.bf16.mxu0 %v5368
    %6556 = vmatpush1.bf16.msra.mxu0 %v5367
    %6557 = vmatprep.subr.bf16.mxu0 %v5363
    %6558 = vmatpush1.bf16.msra.mxu0 %v5362
    %6559 = vmatprep.subr.bf16.mxu0 %v5358
    %6560 = vmatpush1.bf16.msra.mxu0 %v5357
    %6561 = vmatprep.subr.bf16.mxu0 %v5353
    %6562 = vmatpush1.bf16.msra.mxu0 %v5352
    %6563 = vmatprep.subr.bf16.mxu0 %v5348
    %6564 = vmatpush1.bf16.msra.mxu0 %v5347
    %6565 = vmatprep.subr.bf16.mxu0 %v5423
    %6566 = vmatpush2.bf16.msra.mxu0 %v5422
    %6567 = vmatprep.subr.bf16.mxu0 %v5418
    %6568 = vmatpush2.bf16.msra.mxu0 %v5417
    %6569 = vmatprep.subr.bf16.mxu0 %v5413
    %6570 = vmatpush2.bf16.msra.mxu0 %v5412
    %6571 = vmatprep.subr.bf16.mxu0 %v5408
    %6572 = vmatpush2.bf16.msra.mxu0 %v5407
    %6573 = vmatprep.subr.bf16.mxu0 %v5403
    %6574 = vmatpush2.bf16.msra.mxu0 %v5402
    %6575 = vmatprep.subr.bf16.mxu0 %v5398
    %6576 = vmatpush2.bf16.msra.mxu0 %v5397
    %6577 = vmatprep.subr.bf16.mxu0 %v5393
    %6578 = vmatpush2.bf16.msra.mxu0 %v5392
    %6579 = vmatprep.subr.bf16.mxu0 %v5388
    %6580 = vmatpush2.bf16.msra.mxu0 %v5387
    %6581 = vmatprep.mubr.bf16.mxu0 %v2333
    %6582 = vmatmul.mubr.bf16.gmra.mxu0 %v2332
    %v6583 = vpop.f32.mrf.mxu0
    %v6584 = vadd.f32 %v6543, %v6583
    %v6585 = vpop.f32.mrf.mxu0
    %v6586 = vadd.f32 %v6545, %v6585
    %v6587 = vpop.f32.mrf.mxu0
    %v6588 = vpop.f32.mrf.mxu0
    %6589 = vdwg.mxu0
    %6590 = vmatprep.subr.bf16.mxu0 %v5463
    %6591 = vmatpush1.bf16.msra.mxu0 %v5462
    %6592 = vmatprep.subr.bf16.mxu0 %v5458
    %6593 = vmatpush1.bf16.msra.mxu0 %v5457
    %6594 = vmatprep.subr.bf16.mxu0 %v5453
    %6595 = vmatpush1.bf16.msra.mxu0 %v5452
    %6596 = vmatprep.subr.bf16.mxu0 %v5448
    %6597 = vmatpush1.bf16.msra.mxu0 %v5447
    %6598 = vmatprep.subr.bf16.mxu0 %v5443
    %6599 = vmatpush1.bf16.msra.mxu0 %v5442
    %6600 = vmatprep.subr.bf16.mxu0 %v5438
    %6601 = vmatpush1.bf16.msra.mxu0 %v5437
    %6602 = vmatprep.subr.bf16.mxu0 %v5433
    %6603 = vmatpush1.bf16.msra.mxu0 %v5432
    %6604 = vmatprep.subr.bf16.mxu0 %v5428
    %6605 = vmatpush1.bf16.msra.mxu0 %v5427
    %6606 = vmatprep.subr.bf16.mxu0 %v5503
    %6607 = vmatpush2.bf16.msra.mxu0 %v5502
    %6608 = vmatprep.subr.bf16.mxu0 %v5498
    %6609 = vmatpush2.bf16.msra.mxu0 %v5497
    %6610 = vmatprep.subr.bf16.mxu0 %v5493
    %6611 = vmatpush2.bf16.msra.mxu0 %v5492
    %6612 = vmatprep.subr.bf16.mxu0 %v5488
    %6613 = vmatpush2.bf16.msra.mxu0 %v5487
    %6614 = vmatprep.subr.bf16.mxu0 %v5483
    %6615 = vmatpush2.bf16.msra.mxu0 %v5482
    %6616 = vmatprep.subr.bf16.mxu0 %v5478
    %6617 = vmatpush2.bf16.msra.mxu0 %v5477
    %6618 = vmatprep.subr.bf16.mxu0 %v5473
    %6619 = vmatpush2.bf16.msra.mxu0 %v5472
    %6620 = vmatprep.subr.bf16.mxu0 %v5468
    %6621 = vmatpush2.bf16.msra.mxu0 %v5467
    %6622 = vmatprep.mubr.bf16.mxu0 %v2335
    %6623 = vmatmul.mubr.bf16.gmra.mxu0 %v2334
    %v6624 = vpop.f32.mrf.mxu0
    %v6625 = vadd.f32 %v6584, %v6624
    %v6626 = vpop.f32.mrf.mxu0
    %v6627 = vadd.f32 %v6586, %v6626
    %v6628 = vpop.f32.mrf.mxu0
    %v6629 = vpop.f32.mrf.mxu0
    %6630 = vdwg.mxu0
    %6631 = vmatprep.subr.bf16.mxu0 %v5543
    %6632 = vmatpush1.bf16.msra.mxu0 %v5542
    %6633 = vmatprep.subr.bf16.mxu0 %v5538
    %6634 = vmatpush1.bf16.msra.mxu0 %v5537
    %6635 = vmatprep.subr.bf16.mxu0 %v5533
    %6636 = vmatpush1.bf16.msra.mxu0 %v5532
    %6637 = vmatprep.subr.bf16.mxu0 %v5528
    %6638 = vmatpush1.bf16.msra.mxu0 %v5527
    %6639 = vmatprep.subr.bf16.mxu0 %v5523
    %6640 = vmatpush1.bf16.msra.mxu0 %v5522
    %6641 = vmatprep.subr.bf16.mxu0 %v5518
    %6642 = vmatpush1.bf16.msra.mxu0 %v5517
    %6643 = vmatprep.subr.bf16.mxu0 %v5513
    %6644 = vmatpush1.bf16.msra.mxu0 %v5512
    %6645 = vmatprep.subr.bf16.mxu0 %v5508
    %6646 = vmatpush1.bf16.msra.mxu0 %v5507
    %6647 = vmatprep.subr.bf16.mxu0 %v5583
    %6648 = vmatpush2.bf16.msra.mxu0 %v5582
    %6649 = vmatprep.subr.bf16.mxu0 %v5578
    %6650 = vmatpush2.bf16.msra.mxu0 %v5577
    %6651 = vmatprep.subr.bf16.mxu0 %v5573
    %6652 = vmatpush2.bf16.msra.mxu0 %v5572
    %6653 = vmatprep.subr.bf16.mxu0 %v5568
    %6654 = vmatpush2.bf16.msra.mxu0 %v5567
    %6655 = vmatprep.subr.bf16.mxu0 %v5563
    %6656 = vmatpush2.bf16.msra.mxu0 %v5562
    %6657 = vmatprep.subr.bf16.mxu0 %v5558
    %6658 = vmatpush2.bf16.msra.mxu0 %v5557
    %6659 = vmatprep.subr.bf16.mxu0 %v5553
    %6660 = vmatpush2.bf16.msra.mxu0 %v5552
    %6661 = vmatprep.subr.bf16.mxu0 %v5548
    %6662 = vmatpush2.bf16.msra.mxu0 %v5547
    %6663 = vmatprep.mubr.bf16.mxu0 %v2337
    %6664 = vmatmul.mubr.bf16.gmra.mxu0 %v2336
    %v6665 = vpop.f32.mrf.mxu0
    %v6666 = vadd.f32 %v6625, %v6665
    %v6667 = vpop.f32.mrf.mxu0
    %v6668 = vadd.f32 %v6627, %v6667
    %v6669 = vpop.f32.mrf.mxu0
    %v6670 = vpop.f32.mrf.mxu0
    %6671 = vdwg.mxu0
    %6672 = vmatprep.subr.bf16.mxu0 %v5623
    %6673 = vmatpush1.bf16.msra.mxu0 %v5622
    %6674 = vmatprep.subr.bf16.mxu0 %v5618
    %6675 = vmatpush1.bf16.msra.mxu0 %v5617
    %6676 = vmatprep.subr.bf16.mxu0 %v5613
    %6677 = vmatpush1.bf16.msra.mxu0 %v5612
    %6678 = vmatprep.subr.bf16.mxu0 %v5608
    %6679 = vmatpush1.bf16.msra.mxu0 %v5607
    %6680 = vmatprep.subr.bf16.mxu0 %v5603
    %6681 = vmatpush1.bf16.msra.mxu0 %v5602
    %6682 = vmatprep.subr.bf16.mxu0 %v5598
    %6683 = vmatpush1.bf16.msra.mxu0 %v5597
    %6684 = vmatprep.subr.bf16.mxu0 %v5593
    %6685 = vmatpush1.bf16.msra.mxu0 %v5592
    %6686 = vmatprep.subr.bf16.mxu0 %v5588
    %6687 = vmatpush1.bf16.msra.mxu0 %v5587
    %6688 = vmatprep.subr.bf16.mxu0 %v5663
    %6689 = vmatpush2.bf16.msra.mxu0 %v5662
    %6690 = vmatprep.subr.bf16.mxu0 %v5658
    %6691 = vmatpush2.bf16.msra.mxu0 %v5657
    %6692 = vmatprep.subr.bf16.mxu0 %v5653
    %6693 = vmatpush2.bf16.msra.mxu0 %v5652
    %6694 = vmatprep.subr.bf16.mxu0 %v5648
    %6695 = vmatpush2.bf16.msra.mxu0 %v5647
    %6696 = vmatprep.subr.bf16.mxu0 %v5643
    %6697 = vmatpush2.bf16.msra.mxu0 %v5642
    %6698 = vmatprep.subr.bf16.mxu0 %v5638
    %6699 = vmatpush2.bf16.msra.mxu0 %v5637
    %6700 = vmatprep.subr.bf16.mxu0 %v5633
    %6701 = vmatpush2.bf16.msra.mxu0 %v5632
    %6702 = vmatprep.subr.bf16.mxu0 %v5628
    %6703 = vmatpush2.bf16.msra.mxu0 %v5627
    %6704 = vmatprep.mubr.bf16.mxu0 %v2339
    %6705 = vmatmul.mubr.bf16.gmra.mxu0 %v2338
    %v6706 = vpop.f32.mrf.mxu0
    %v6707 = vadd.f32 %v6666, %v6706
    %v6708 = vpop.f32.mrf.mxu0
    %v6709 = vadd.f32 %v6668, %v6708
    %v6710 = vpop.f32.mrf.mxu0
    %v6711 = vpop.f32.mrf.mxu0
    %6712 = vdwg.mxu0
    %6713 = vmatprep.subr.bf16.mxu0 %v5703
    %6714 = vmatpush1.bf16.msra.mxu0 %v5702
    %6715 = vmatprep.subr.bf16.mxu0 %v5698
    %6716 = vmatpush1.bf16.msra.mxu0 %v5697
    %6717 = vmatprep.subr.bf16.mxu0 %v5693
    %6718 = vmatpush1.bf16.msra.mxu0 %v5692
    %6719 = vmatprep.subr.bf16.mxu0 %v5688
    %6720 = vmatpush1.bf16.msra.mxu0 %v5687
    %6721 = vmatprep.subr.bf16.mxu0 %v5683
    %6722 = vmatpush1.bf16.msra.mxu0 %v5682
    %6723 = vmatprep.subr.bf16.mxu0 %v5678
    %6724 = vmatpush1.bf16.msra.mxu0 %v5677
    %6725 = vmatprep.subr.bf16.mxu0 %v5673
    %6726 = vmatpush1.bf16.msra.mxu0 %v5672
    %6727 = vmatprep.subr.bf16.mxu0 %v5668
    %6728 = vmatpush1.bf16.msra.mxu0 %v5667
    %6729 = vmatprep.subr.bf16.mxu0 %v5743
    %6730 = vmatpush2.bf16.msra.mxu0 %v5742
    %6731 = vmatprep.subr.bf16.mxu0 %v5738
    %6732 = vmatpush2.bf16.msra.mxu0 %v5737
    %6733 = vmatprep.subr.bf16.mxu0 %v5733
    %6734 = vmatpush2.bf16.msra.mxu0 %v5732
    %6735 = vmatprep.subr.bf16.mxu0 %v5728
    %6736 = vmatpush2.bf16.msra.mxu0 %v5727
    %6737 = vmatprep.subr.bf16.mxu0 %v5723
    %6738 = vmatpush2.bf16.msra.mxu0 %v5722
    %6739 = vmatprep.subr.bf16.mxu0 %v5718
    %6740 = vmatpush2.bf16.msra.mxu0 %v5717
    %6741 = vmatprep.subr.bf16.mxu0 %v5713
    %6742 = vmatpush2.bf16.msra.mxu0 %v5712
    %6743 = vmatprep.subr.bf16.mxu0 %v5708
    %6744 = vmatpush2.bf16.msra.mxu0 %v5707
    %6745 = vmatprep.mubr.bf16.mxu0 %v2341
    %6746 = vmatmul.mubr.bf16.gmra.mxu0 %v2340
    %v6747 = vpop.f32.mrf.mxu0
    %v6748 = vadd.f32 %v6707, %v6747
    %v6749 = vpop.f32.mrf.mxu0
    %v6750 = vadd.f32 %v6709, %v6749
    %v6751 = vpop.f32.mrf.mxu0
    %v6752 = vpop.f32.mrf.mxu0
    %6753 = vdwg.mxu0
    %6754 = vmatprep.subr.bf16.mxu0 %v5783
    %6755 = vmatpush1.bf16.msra.mxu0 %v5782
    %6756 = vmatprep.subr.bf16.mxu0 %v5778
    %6757 = vmatpush1.bf16.msra.mxu0 %v5777
    %6758 = vmatprep.subr.bf16.mxu0 %v5773
    %6759 = vmatpush1.bf16.msra.mxu0 %v5772
    %6760 = vmatprep.subr.bf16.mxu0 %v5768
    %6761 = vmatpush1.bf16.msra.mxu0 %v5767
    %6762 = vmatprep.subr.bf16.mxu0 %v5763
    %6763 = vmatpush1.bf16.msra.mxu0 %v5762
    %6764 = vmatprep.subr.bf16.mxu0 %v5758
    %6765 = vmatpush1.bf16.msra.mxu0 %v5757
    %6766 = vmatprep.subr.bf16.mxu0 %v5753
    %6767 = vmatpush1.bf16.msra.mxu0 %v5752
    %6768 = vmatprep.subr.bf16.mxu0 %v5748
    %6769 = vmatpush1.bf16.msra.mxu0 %v5747
    %6770 = vmatprep.subr.bf16.mxu0 %v5823
    %6771 = vmatpush2.bf16.msra.mxu0 %v5822
    %6772 = vmatprep.subr.bf16.mxu0 %v5818
    %6773 = vmatpush2.bf16.msra.mxu0 %v5817
    %6774 = vmatprep.subr.bf16.mxu0 %v5813
    %6775 = vmatpush2.bf16.msra.mxu0 %v5812
    %6776 = vmatprep.subr.bf16.mxu0 %v5808
    %6777 = vmatpush2.bf16.msra.mxu0 %v5807
    %6778 = vmatprep.subr.bf16.mxu0 %v5803
    %6779 = vmatpush2.bf16.msra.mxu0 %v5802
    %6780 = vmatprep.subr.bf16.mxu0 %v5798
    %6781 = vmatpush2.bf16.msra.mxu0 %v5797
    %6782 = vmatprep.subr.bf16.mxu0 %v5793
    %6783 = vmatpush2.bf16.msra.mxu0 %v5792
    %6784 = vmatprep.subr.bf16.mxu0 %v5788
    %6785 = vmatpush2.bf16.msra.mxu0 %v5787
    %6786 = vmatprep.mubr.bf16.mxu0 %v2343
    %6787 = vmatmul.mubr.bf16.gmra.mxu0 %v2342
    %v6788 = vpop.f32.mrf.mxu0
    %v6789 = vadd.f32 %v6748, %v6788
    %v6790 = vpop.f32.mrf.mxu0
    %v6791 = vadd.f32 %v6750, %v6790
    %v6792 = vpop.f32.mrf.mxu0
    %v6793 = vpop.f32.mrf.mxu0
    %6794 = vdwg.mxu0
    %6795 = vmatprep.subr.bf16.mxu0 %v5225
    %6796 = vmatpush1.bf16.msra.mxu0 %v5224
    %6797 = vmatprep.subr.bf16.mxu0 %v5220
    %6798 = vmatpush1.bf16.msra.mxu0 %v5219
    %6799 = vmatprep.subr.bf16.mxu0 %v5215
    %6800 = vmatpush1.bf16.msra.mxu0 %v5214
    %6801 = vmatprep.subr.bf16.mxu0 %v5210
    %6802 = vmatpush1.bf16.msra.mxu0 %v5209
    %6803 = vmatprep.subr.bf16.mxu0 %v5205
    %6804 = vmatpush1.bf16.msra.mxu0 %v5204
    %6805 = vmatprep.subr.bf16.mxu0 %v5200
    %6806 = vmatpush1.bf16.msra.mxu0 %v5199
    %6807 = vmatprep.subr.bf16.mxu0 %v5195
    %6808 = vmatpush1.bf16.msra.mxu0 %v5194
    %6809 = vmatprep.subr.bf16.mxu0 %v5190
    %6810 = vmatpush1.bf16.msra.mxu0 %v5189
    %6811 = vmatprep.subr.bf16.mxu0 %v5265
    %6812 = vmatpush2.bf16.msra.mxu0 %v5264
    %6813 = vmatprep.subr.bf16.mxu0 %v5260
    %6814 = vmatpush2.bf16.msra.mxu0 %v5259
    %6815 = vmatprep.subr.bf16.mxu0 %v5255
    %6816 = vmatpush2.bf16.msra.mxu0 %v5254
    %6817 = vmatprep.subr.bf16.mxu0 %v5250
    %6818 = vmatpush2.bf16.msra.mxu0 %v5249
    %6819 = vmatprep.subr.bf16.mxu0 %v5245
    %6820 = vmatpush2.bf16.msra.mxu0 %v5244
    %6821 = vmatprep.subr.bf16.mxu0 %v5240
    %6822 = vmatpush2.bf16.msra.mxu0 %v5239
    %6823 = vmatprep.subr.bf16.mxu0 %v5235
    %6824 = vmatpush2.bf16.msra.mxu0 %v5234
    %6825 = vmatprep.subr.bf16.mxu0 %v5230
    %6826 = vmatpush2.bf16.msra.mxu0 %v5229
    %6827 = vmatprep.mubr.bf16.mxu0 %v2329
    %6828 = vmatmul.mubr.bf16.gmra.mxu0 %v2328
    %v6829 = vpop.f32.mrf.mxu0
    %v6830 = vadd.f32 %v3125, %v6829
    %v6831 = vpop.f32.mrf.mxu0
    %v6832 = vadd.f32 %v3129, %v6831
    %v6833 = vpop.f32.mrf.mxu0
    %v6834 = vpop.f32.mrf.mxu0
    %6835 = vdwg.mxu0
    %6836 = vmatprep.subr.bf16.mxu0 %v5305
    %6837 = vmatpush1.bf16.msra.mxu0 %v5304
    %6838 = vmatprep.subr.bf16.mxu0 %v5300
    %6839 = vmatpush1.bf16.msra.mxu0 %v5299
    %6840 = vmatprep.subr.bf16.mxu0 %v5295
    %6841 = vmatpush1.bf16.msra.mxu0 %v5294
    %6842 = vmatprep.subr.bf16.mxu0 %v5290
    %6843 = vmatpush1.bf16.msra.mxu0 %v5289
    %6844 = vmatprep.subr.bf16.mxu0 %v5285
    %6845 = vmatpush1.bf16.msra.mxu0 %v5284
    %6846 = vmatprep.subr.bf16.mxu0 %v5280
    %6847 = vmatpush1.bf16.msra.mxu0 %v5279
    %6848 = vmatprep.subr.bf16.mxu0 %v5275
    %6849 = vmatpush1.bf16.msra.mxu0 %v5274
    %6850 = vmatprep.subr.bf16.mxu0 %v5270
    %6851 = vmatpush1.bf16.msra.mxu0 %v5269
    %6852 = vmatprep.subr.bf16.mxu0 %v5345
    %6853 = vmatpush2.bf16.msra.mxu0 %v5344
    %6854 = vmatprep.subr.bf16.mxu0 %v5340
    %6855 = vmatpush2.bf16.msra.mxu0 %v5339
    %6856 = vmatprep.subr.bf16.mxu0 %v5335
    %6857 = vmatpush2.bf16.msra.mxu0 %v5334
    %6858 = vmatprep.subr.bf16.mxu0 %v5330
    %6859 = vmatpush2.bf16.msra.mxu0 %v5329
    %6860 = vmatprep.subr.bf16.mxu0 %v5325
    %6861 = vmatpush2.bf16.msra.mxu0 %v5324
    %6862 = vmatprep.subr.bf16.mxu0 %v5320
    %6863 = vmatpush2.bf16.msra.mxu0 %v5319
    %6864 = vmatprep.subr.bf16.mxu0 %v5315
    %6865 = vmatpush2.bf16.msra.mxu0 %v5314
    %6866 = vmatprep.subr.bf16.mxu0 %v5310
    %6867 = vmatpush2.bf16.msra.mxu0 %v5309
    %6868 = vmatprep.mubr.bf16.mxu0 %v2331
    %6869 = vmatmul.mubr.bf16.gmra.mxu0 %v2330
    %v6870 = vpop.f32.mrf.mxu0
    %v6871 = vadd.f32 %v6830, %v6870
    %v6872 = vpop.f32.mrf.mxu0
    %v6873 = vadd.f32 %v6832, %v6872
    %v6874 = vpop.f32.mrf.mxu0
    %v6875 = vpop.f32.mrf.mxu0
    %6876 = vdwg.mxu0
    %6877 = vmatprep.subr.bf16.mxu0 %v5385
    %6878 = vmatpush1.bf16.msra.mxu0 %v5384
    %6879 = vmatprep.subr.bf16.mxu0 %v5380
    %6880 = vmatpush1.bf16.msra.mxu0 %v5379
    %6881 = vmatprep.subr.bf16.mxu0 %v5375
    %6882 = vmatpush1.bf16.msra.mxu0 %v5374
    %6883 = vmatprep.subr.bf16.mxu0 %v5370
    %6884 = vmatpush1.bf16.msra.mxu0 %v5369
    %6885 = vmatprep.subr.bf16.mxu0 %v5365
    %6886 = vmatpush1.bf16.msra.mxu0 %v5364
    %6887 = vmatprep.subr.bf16.mxu0 %v5360
    %6888 = vmatpush1.bf16.msra.mxu0 %v5359
    %6889 = vmatprep.subr.bf16.mxu0 %v5355
    %6890 = vmatpush1.bf16.msra.mxu0 %v5354
    %6891 = vmatprep.subr.bf16.mxu0 %v5350
    %6892 = vmatpush1.bf16.msra.mxu0 %v5349
    %6893 = vmatprep.subr.bf16.mxu0 %v5425
    %6894 = vmatpush2.bf16.msra.mxu0 %v5424
    %6895 = vmatprep.subr.bf16.mxu0 %v5420
    %6896 = vmatpush2.bf16.msra.mxu0 %v5419
    %6897 = vmatprep.subr.bf16.mxu0 %v5415
    %6898 = vmatpush2.bf16.msra.mxu0 %v5414
    %6899 = vmatprep.subr.bf16.mxu0 %v5410
    %6900 = vmatpush2.bf16.msra.mxu0 %v5409
    %6901 = vmatprep.subr.bf16.mxu0 %v5405
    %6902 = vmatpush2.bf16.msra.mxu0 %v5404
    %6903 = vmatprep.subr.bf16.mxu0 %v5400
    %6904 = vmatpush2.bf16.msra.mxu0 %v5399
    %6905 = vmatprep.subr.bf16.mxu0 %v5395
    %6906 = vmatpush2.bf16.msra.mxu0 %v5394
    %6907 = vmatprep.subr.bf16.mxu0 %v5390
    %6908 = vmatpush2.bf16.msra.mxu0 %v5389
    %6909 = vmatprep.mubr.bf16.mxu0 %v2333
    %6910 = vmatmul.mubr.bf16.gmra.mxu0 %v2332
    %v6911 = vpop.f32.mrf.mxu0
    %v6912 = vadd.f32 %v6871, %v6911
    %v6913 = vpop.f32.mrf.mxu0
    %v6914 = vadd.f32 %v6873, %v6913
    %v6915 = vpop.f32.mrf.mxu0
    %v6916 = vpop.f32.mrf.mxu0
    %6917 = vdwg.mxu0
    %6918 = vmatprep.subr.bf16.mxu0 %v5465
    %6919 = vmatpush1.bf16.msra.mxu0 %v5464
    %6920 = vmatprep.subr.bf16.mxu0 %v5460
    %6921 = vmatpush1.bf16.msra.mxu0 %v5459
    %6922 = vmatprep.subr.bf16.mxu0 %v5455
    %6923 = vmatpush1.bf16.msra.mxu0 %v5454
    %6924 = vmatprep.subr.bf16.mxu0 %v5450
    %6925 = vmatpush1.bf16.msra.mxu0 %v5449
    %6926 = vmatprep.subr.bf16.mxu0 %v5445
    %6927 = vmatpush1.bf16.msra.mxu0 %v5444
    %6928 = vmatprep.subr.bf16.mxu0 %v5440
    %6929 = vmatpush1.bf16.msra.mxu0 %v5439
    %6930 = vmatprep.subr.bf16.mxu0 %v5435
    %6931 = vmatpush1.bf16.msra.mxu0 %v5434
    %6932 = vmatprep.subr.bf16.mxu0 %v5430
    %6933 = vmatpush1.bf16.msra.mxu0 %v5429
    %6934 = vmatprep.subr.bf16.mxu0 %v5505
    %6935 = vmatpush2.bf16.msra.mxu0 %v5504
    %6936 = vmatprep.subr.bf16.mxu0 %v5500
    %6937 = vmatpush2.bf16.msra.mxu0 %v5499
    %6938 = vmatprep.subr.bf16.mxu0 %v5495
    %6939 = vmatpush2.bf16.msra.mxu0 %v5494
    %6940 = vmatprep.subr.bf16.mxu0 %v5490
    %6941 = vmatpush2.bf16.msra.mxu0 %v5489
    %6942 = vmatprep.subr.bf16.mxu0 %v5485
    %6943 = vmatpush2.bf16.msra.mxu0 %v5484
    %6944 = vmatprep.subr.bf16.mxu0 %v5480
    %6945 = vmatpush2.bf16.msra.mxu0 %v5479
    %6946 = vmatprep.subr.bf16.mxu0 %v5475
    %6947 = vmatpush2.bf16.msra.mxu0 %v5474
    %6948 = vmatprep.subr.bf16.mxu0 %v5470
    %6949 = vmatpush2.bf16.msra.mxu0 %v5469
    %6950 = vmatprep.mubr.bf16.mxu0 %v2335
    %6951 = vmatmul.mubr.bf16.gmra.mxu0 %v2334
    %v6952 = vpop.f32.mrf.mxu0
    %v6953 = vadd.f32 %v6912, %v6952
    %v6954 = vpop.f32.mrf.mxu0
    %v6955 = vadd.f32 %v6914, %v6954
    %v6956 = vpop.f32.mrf.mxu0
    %v6957 = vpop.f32.mrf.mxu0
    %6958 = vdwg.mxu0
    %6959 = vmatprep.subr.bf16.mxu0 %v5545
    %6960 = vmatpush1.bf16.msra.mxu0 %v5544
    %6961 = vmatprep.subr.bf16.mxu0 %v5540
    %6962 = vmatpush1.bf16.msra.mxu0 %v5539
    %6963 = vmatprep.subr.bf16.mxu0 %v5535
    %6964 = vmatpush1.bf16.msra.mxu0 %v5534
    %6965 = vmatprep.subr.bf16.mxu0 %v5530
    %6966 = vmatpush1.bf16.msra.mxu0 %v5529
    %6967 = vmatprep.subr.bf16.mxu0 %v5525
    %6968 = vmatpush1.bf16.msra.mxu0 %v5524
    %6969 = vmatprep.subr.bf16.mxu0 %v5520
    %6970 = vmatpush1.bf16.msra.mxu0 %v5519
    %6971 = vmatprep.subr.bf16.mxu0 %v5515
    %6972 = vmatpush1.bf16.msra.mxu0 %v5514
    %6973 = vmatprep.subr.bf16.mxu0 %v5510
    %6974 = vmatpush1.bf16.msra.mxu0 %v5509
    %6975 = vmatprep.subr.bf16.mxu0 %v5585
    %6976 = vmatpush2.bf16.msra.mxu0 %v5584
    %6977 = vmatprep.subr.bf16.mxu0 %v5580
    %6978 = vmatpush2.bf16.msra.mxu0 %v5579
    %6979 = vmatprep.subr.bf16.mxu0 %v5575
    %6980 = vmatpush2.bf16.msra.mxu0 %v5574
    %6981 = vmatprep.subr.bf16.mxu0 %v5570
    %6982 = vmatpush2.bf16.msra.mxu0 %v5569
    %6983 = vmatprep.subr.bf16.mxu0 %v5565
    %6984 = vmatpush2.bf16.msra.mxu0 %v5564
    %6985 = vmatprep.subr.bf16.mxu0 %v5560
    %6986 = vmatpush2.bf16.msra.mxu0 %v5559
    %6987 = vmatprep.subr.bf16.mxu0 %v5555
    %6988 = vmatpush2.bf16.msra.mxu0 %v5554
    %6989 = vmatprep.subr.bf16.mxu0 %v5550
    %6990 = vmatpush2.bf16.msra.mxu0 %v5549
    %6991 = vmatprep.mubr.bf16.mxu0 %v2337
    %6992 = vmatmul.mubr.bf16.gmra.mxu0 %v2336
    %v6993 = vpop.f32.mrf.mxu0
    %v6994 = vadd.f32 %v6953, %v6993
    %v6995 = vpop.f32.mrf.mxu0
    %v6996 = vadd.f32 %v6955, %v6995
    %v6997 = vpop.f32.mrf.mxu0
    %v6998 = vpop.f32.mrf.mxu0
    %6999 = vdwg.mxu0
    %7000 = vmatprep.subr.bf16.mxu0 %v5625
    %7001 = vmatpush1.bf16.msra.mxu0 %v5624
    %7002 = vmatprep.subr.bf16.mxu0 %v5620
    %7003 = vmatpush1.bf16.msra.mxu0 %v5619
    %7004 = vmatprep.subr.bf16.mxu0 %v5615
    %7005 = vmatpush1.bf16.msra.mxu0 %v5614
    %7006 = vmatprep.subr.bf16.mxu0 %v5610
    %7007 = vmatpush1.bf16.msra.mxu0 %v5609
    %7008 = vmatprep.subr.bf16.mxu0 %v5605
    %7009 = vmatpush1.bf16.msra.mxu0 %v5604
    %7010 = vmatprep.subr.bf16.mxu0 %v5600
    %7011 = vmatpush1.bf16.msra.mxu0 %v5599
    %7012 = vmatprep.subr.bf16.mxu0 %v5595
    %7013 = vmatpush1.bf16.msra.mxu0 %v5594
    %7014 = vmatprep.subr.bf16.mxu0 %v5590
    %7015 = vmatpush1.bf16.msra.mxu0 %v5589
    %7016 = vmatprep.subr.bf16.mxu0 %v5665
    %7017 = vmatpush2.bf16.msra.mxu0 %v5664
    %7018 = vmatprep.subr.bf16.mxu0 %v5660
    %7019 = vmatpush2.bf16.msra.mxu0 %v5659
    %7020 = vmatprep.subr.bf16.mxu0 %v5655
    %7021 = vmatpush2.bf16.msra.mxu0 %v5654
    %7022 = vmatprep.subr.bf16.mxu0 %v5650
    %7023 = vmatpush2.bf16.msra.mxu0 %v5649
    %7024 = vmatprep.subr.bf16.mxu0 %v5645
    %7025 = vmatpush2.bf16.msra.mxu0 %v5644
    %7026 = vmatprep.subr.bf16.mxu0 %v5640
    %7027 = vmatpush2.bf16.msra.mxu0 %v5639
    %7028 = vmatprep.subr.bf16.mxu0 %v5635
    %7029 = vmatpush2.bf16.msra.mxu0 %v5634
    %7030 = vmatprep.subr.bf16.mxu0 %v5630
    %7031 = vmatpush2.bf16.msra.mxu0 %v5629
    %7032 = vmatprep.mubr.bf16.mxu0 %v2339
    %7033 = vmatmul.mubr.bf16.gmra.mxu0 %v2338
    %v7034 = vpop.f32.mrf.mxu0
    %v7035 = vadd.f32 %v6994, %v7034
    %v7036 = vpop.f32.mrf.mxu0
    %v7037 = vadd.f32 %v6996, %v7036
    %v7038 = vpop.f32.mrf.mxu0
    %v7039 = vpop.f32.mrf.mxu0
    %7040 = vdwg.mxu0
    %7041 = vmatprep.subr.bf16.mxu0 %v5705
    %7042 = vmatpush1.bf16.msra.mxu0 %v5704
    %7043 = vmatprep.subr.bf16.mxu0 %v5700
    %7044 = vmatpush1.bf16.msra.mxu0 %v5699
    %7045 = vmatprep.subr.bf16.mxu0 %v5695
    %7046 = vmatpush1.bf16.msra.mxu0 %v5694
    %7047 = vmatprep.subr.bf16.mxu0 %v5690
    %7048 = vmatpush1.bf16.msra.mxu0 %v5689
    %7049 = vmatprep.subr.bf16.mxu0 %v5685
    %7050 = vmatpush1.bf16.msra.mxu0 %v5684
    %7051 = vmatprep.subr.bf16.mxu0 %v5680
    %7052 = vmatpush1.bf16.msra.mxu0 %v5679
    %7053 = vmatprep.subr.bf16.mxu0 %v5675
    %7054 = vmatpush1.bf16.msra.mxu0 %v5674
    %7055 = vmatprep.subr.bf16.mxu0 %v5670
    %7056 = vmatpush1.bf16.msra.mxu0 %v5669
    %7057 = vmatprep.subr.bf16.mxu0 %v5745
    %7058 = vmatpush2.bf16.msra.mxu0 %v5744
    %7059 = vmatprep.subr.bf16.mxu0 %v5740
    %7060 = vmatpush2.bf16.msra.mxu0 %v5739
    %7061 = vmatprep.subr.bf16.mxu0 %v5735
    %7062 = vmatpush2.bf16.msra.mxu0 %v5734
    %7063 = vmatprep.subr.bf16.mxu0 %v5730
    %7064 = vmatpush2.bf16.msra.mxu0 %v5729
    %7065 = vmatprep.subr.bf16.mxu0 %v5725
    %7066 = vmatpush2.bf16.msra.mxu0 %v5724
    %7067 = vmatprep.subr.bf16.mxu0 %v5720
    %7068 = vmatpush2.bf16.msra.mxu0 %v5719
    %7069 = vmatprep.subr.bf16.mxu0 %v5715
    %7070 = vmatpush2.bf16.msra.mxu0 %v5714
    %7071 = vmatprep.subr.bf16.mxu0 %v5710
    %7072 = vmatpush2.bf16.msra.mxu0 %v5709
    %7073 = vmatprep.mubr.bf16.mxu0 %v2341
    %7074 = vmatmul.mubr.bf16.gmra.mxu0 %v2340
    %v7075 = vpop.f32.mrf.mxu0
    %v7076 = vadd.f32 %v7035, %v7075
    %v7077 = vpop.f32.mrf.mxu0
    %v7078 = vadd.f32 %v7037, %v7077
    %v7079 = vpop.f32.mrf.mxu0
    %v7080 = vpop.f32.mrf.mxu0
    %7081 = vdwg.mxu0
    %7082 = vmatprep.subr.bf16.mxu0 %v5785
    %7083 = vmatpush1.bf16.msra.mxu0 %v5784
    %7084 = vmatprep.subr.bf16.mxu0 %v5780
    %7085 = vmatpush1.bf16.msra.mxu0 %v5779
    %7086 = vmatprep.subr.bf16.mxu0 %v5775
    %7087 = vmatpush1.bf16.msra.mxu0 %v5774
    %7088 = vmatprep.subr.bf16.mxu0 %v5770
    %7089 = vmatpush1.bf16.msra.mxu0 %v5769
    %7090 = vmatprep.subr.bf16.mxu0 %v5765
    %7091 = vmatpush1.bf16.msra.mxu0 %v5764
    %7092 = vmatprep.subr.bf16.mxu0 %v5760
    %7093 = vmatpush1.bf16.msra.mxu0 %v5759
    %7094 = vmatprep.subr.bf16.mxu0 %v5755
    %7095 = vmatpush1.bf16.msra.mxu0 %v5754
    %7096 = vmatprep.subr.bf16.mxu0 %v5750
    %7097 = vmatpush1.bf16.msra.mxu0 %v5749
    %7098 = vmatprep.subr.bf16.mxu0 %v5825
    %7099 = vmatpush2.bf16.msra.mxu0 %v5824
    %7100 = vmatprep.subr.bf16.mxu0 %v5820
    %7101 = vmatpush2.bf16.msra.mxu0 %v5819
    %7102 = vmatprep.subr.bf16.mxu0 %v5815
    %7103 = vmatpush2.bf16.msra.mxu0 %v5814
    %7104 = vmatprep.subr.bf16.mxu0 %v5810
    %7105 = vmatpush2.bf16.msra.mxu0 %v5809
    %7106 = vmatprep.subr.bf16.mxu0 %v5805
    %7107 = vmatpush2.bf16.msra.mxu0 %v5804
    %7108 = vmatprep.subr.bf16.mxu0 %v5800
    %7109 = vmatpush2.bf16.msra.mxu0 %v5799
    %7110 = vmatprep.subr.bf16.mxu0 %v5795
    %7111 = vmatpush2.bf16.msra.mxu0 %v5794
    %7112 = vmatprep.subr.bf16.mxu0 %v5790
    %7113 = vmatpush2.bf16.msra.mxu0 %v5789
    %7114 = vmatprep.mubr.bf16.mxu0 %v2343
    %7115 = vmatmul.mubr.bf16.gmra.mxu0 %v2342
    %v7116 = vpop.f32.mrf.mxu0
    %v7117 = vadd.f32 %v7076, %v7116
    %v7118 = vpop.f32.mrf.mxu0
    %v7119 = vadd.f32 %v7078, %v7118
    %v7120 = vpop.f32.mrf.mxu0
    %v7121 = vpop.f32.mrf.mxu0
    %7122 = vdwg.mxu0
    %7123 = vmatprep.subr.bf16.mxu0 0
    %7124 = vmatpush1.bf16.msra.mxu0 %v5226
    %7125 = vmatprep.subr.bf16.mxu0 0
    %7126 = vmatpush1.bf16.msra.mxu0 %v5221
    %7127 = vmatprep.subr.bf16.mxu0 0
    %7128 = vmatpush1.bf16.msra.mxu0 %v5216
    %7129 = vmatprep.subr.bf16.mxu0 0
    %7130 = vmatpush1.bf16.msra.mxu0 %v5211
    %7131 = vmatprep.subr.bf16.mxu0 0
    %7132 = vmatpush1.bf16.msra.mxu0 %v5206
    %7133 = vmatprep.subr.bf16.mxu0 0
    %7134 = vmatpush1.bf16.msra.mxu0 %v5201
    %7135 = vmatprep.subr.bf16.mxu0 0
    %7136 = vmatpush1.bf16.msra.mxu0 %v5196
    %7137 = vmatprep.subr.bf16.mxu0 0
    %7138 = vmatpush1.bf16.msra.mxu0 %v5191
    %7139 = vmatprep.subr.bf16.mxu0 0
    %7140 = vmatpush2.bf16.msra.mxu0 %v5266
    %7141 = vmatprep.subr.bf16.mxu0 0
    %7142 = vmatpush2.bf16.msra.mxu0 %v5261
    %7143 = vmatprep.subr.bf16.mxu0 0
    %7144 = vmatpush2.bf16.msra.mxu0 %v5256
    %7145 = vmatprep.subr.bf16.mxu0 0
    %7146 = vmatpush2.bf16.msra.mxu0 %v5251
    %7147 = vmatprep.subr.bf16.mxu0 0
    %7148 = vmatpush2.bf16.msra.mxu0 %v5246
    %7149 = vmatprep.subr.bf16.mxu0 0
    %7150 = vmatpush2.bf16.msra.mxu0 %v5241
    %7151 = vmatprep.subr.bf16.mxu0 0
    %7152 = vmatpush2.bf16.msra.mxu0 %v5236
    %7153 = vmatprep.subr.bf16.mxu0 0
    %7154 = vmatpush2.bf16.msra.mxu0 %v5231
    %7155 = vmatprep.mubr.bf16.mxu0 %v2329
    %7156 = vmatmul.mubr.bf16.gmra.mxu0 %v2328
    %v7157 = vpop.f32.mrf.mxu0
    %v7158 = vadd.f32 %v3133, %v7157
    %v7159 = vpop.f32.mrf.mxu0
    %v7160 = vpop.f32.mrf.mxu0
    %v7161 = vpop.f32.mrf.mxu0
    %7162 = vdwg.mxu0
    %7163 = vmatprep.subr.bf16.mxu0 0
    %7164 = vmatpush1.bf16.msra.mxu0 %v5306
    %7165 = vmatprep.subr.bf16.mxu0 0
    %7166 = vmatpush1.bf16.msra.mxu0 %v5301
    %7167 = vmatprep.subr.bf16.mxu0 0
    %7168 = vmatpush1.bf16.msra.mxu0 %v5296
    %7169 = vmatprep.subr.bf16.mxu0 0
    %7170 = vmatpush1.bf16.msra.mxu0 %v5291
    %7171 = vmatprep.subr.bf16.mxu0 0
    %7172 = vmatpush1.bf16.msra.mxu0 %v5286
    %7173 = vmatprep.subr.bf16.mxu0 0
    %7174 = vmatpush1.bf16.msra.mxu0 %v5281
    %7175 = vmatprep.subr.bf16.mxu0 0
    %7176 = vmatpush1.bf16.msra.mxu0 %v5276
    %7177 = vmatprep.subr.bf16.mxu0 0
    %7178 = vmatpush1.bf16.msra.mxu0 %v5271
    %7179 = vmatprep.subr.bf16.mxu0 0
    %7180 = vmatpush2.bf16.msra.mxu0 %v5346
    %7181 = vmatprep.subr.bf16.mxu0 0
    %7182 = vmatpush2.bf16.msra.mxu0 %v5341
    %7183 = vmatprep.subr.bf16.mxu0 0
    %7184 = vmatpush2.bf16.msra.mxu0 %v5336
    %7185 = vmatprep.subr.bf16.mxu0 0
    %7186 = vmatpush2.bf16.msra.mxu0 %v5331
    %7187 = vmatprep.subr.bf16.mxu0 0
    %7188 = vmatpush2.bf16.msra.mxu0 %v5326
    %7189 = vmatprep.subr.bf16.mxu0 0
    %7190 = vmatpush2.bf16.msra.mxu0 %v5321
    %7191 = vmatprep.subr.bf16.mxu0 0
    %7192 = vmatpush2.bf16.msra.mxu0 %v5316
    %7193 = vmatprep.subr.bf16.mxu0 0
    %7194 = vmatpush2.bf16.msra.mxu0 %v5311
    %7195 = vmatprep.mubr.bf16.mxu0 %v2331
    %7196 = vmatmul.mubr.bf16.gmra.mxu0 %v2330
    %v7197 = vpop.f32.mrf.mxu0
    %v7198 = vadd.f32 %v7158, %v7197
    %v7199 = vpop.f32.mrf.mxu0
    %v7200 = vpop.f32.mrf.mxu0
    %v7201 = vpop.f32.mrf.mxu0
    %7202 = vdwg.mxu0
    %7203 = vmatprep.subr.bf16.mxu0 0
    %7204 = vmatpush1.bf16.msra.mxu0 %v5386
    %7205 = vmatprep.subr.bf16.mxu0 0
    %7206 = vmatpush1.bf16.msra.mxu0 %v5381
    %7207 = vmatprep.subr.bf16.mxu0 0
    %7208 = vmatpush1.bf16.msra.mxu0 %v5376
    %7209 = vmatprep.subr.bf16.mxu0 0
    %7210 = vmatpush1.bf16.msra.mxu0 %v5371
    %7211 = vmatprep.subr.bf16.mxu0 0
    %7212 = vmatpush1.bf16.msra.mxu0 %v5366
    %7213 = vmatprep.subr.bf16.mxu0 0
    %7214 = vmatpush1.bf16.msra.mxu0 %v5361
    %7215 = vmatprep.subr.bf16.mxu0 0
    %7216 = vmatpush1.bf16.msra.mxu0 %v5356
    %7217 = vmatprep.subr.bf16.mxu0 0
    %7218 = vmatpush1.bf16.msra.mxu0 %v5351
    %7219 = vmatprep.subr.bf16.mxu0 0
    %7220 = vmatpush2.bf16.msra.mxu0 %v5426
    %7221 = vmatprep.subr.bf16.mxu0 0
    %7222 = vmatpush2.bf16.msra.mxu0 %v5421
    %7223 = vmatprep.subr.bf16.mxu0 0
    %7224 = vmatpush2.bf16.msra.mxu0 %v5416
    %7225 = vmatprep.subr.bf16.mxu0 0
    %7226 = vmatpush2.bf16.msra.mxu0 %v5411
    %7227 = vmatprep.subr.bf16.mxu0 0
    %7228 = vmatpush2.bf16.msra.mxu0 %v5406
    %7229 = vmatprep.subr.bf16.mxu0 0
    %7230 = vmatpush2.bf16.msra.mxu0 %v5401
    %7231 = vmatprep.subr.bf16.mxu0 0
    %7232 = vmatpush2.bf16.msra.mxu0 %v5396
    %7233 = vmatprep.subr.bf16.mxu0 0
    %7234 = vmatpush2.bf16.msra.mxu0 %v5391
    %7235 = vmatprep.mubr.bf16.mxu0 %v2333
    %7236 = vmatmul.mubr.bf16.gmra.mxu0 %v2332
    %v7237 = vpop.f32.mrf.mxu0
    %v7238 = vadd.f32 %v7198, %v7237
    %v7239 = vpop.f32.mrf.mxu0
    %v7240 = vpop.f32.mrf.mxu0
    %v7241 = vpop.f32.mrf.mxu0
    %7242 = vdwg.mxu0
    %7243 = vmatprep.subr.bf16.mxu0 0
    %7244 = vmatpush1.bf16.msra.mxu0 %v5466
    %7245 = vmatprep.subr.bf16.mxu0 0
    %7246 = vmatpush1.bf16.msra.mxu0 %v5461
    %7247 = vmatprep.subr.bf16.mxu0 0
    %7248 = vmatpush1.bf16.msra.mxu0 %v5456
    %7249 = vmatprep.subr.bf16.mxu0 0
    %7250 = vmatpush1.bf16.msra.mxu0 %v5451
    %7251 = vmatprep.subr.bf16.mxu0 0
    %7252 = vmatpush1.bf16.msra.mxu0 %v5446
    %7253 = vmatprep.subr.bf16.mxu0 0
    %7254 = vmatpush1.bf16.msra.mxu0 %v5441
    %7255 = vmatprep.subr.bf16.mxu0 0
    %7256 = vmatpush1.bf16.msra.mxu0 %v5436
    %7257 = vmatprep.subr.bf16.mxu0 0
    %7258 = vmatpush1.bf16.msra.mxu0 %v5431
    %7259 = vmatprep.subr.bf16.mxu0 0
    %7260 = vmatpush2.bf16.msra.mxu0 %v5506
    %7261 = vmatprep.subr.bf16.mxu0 0
    %7262 = vmatpush2.bf16.msra.mxu0 %v5501
    %7263 = vmatprep.subr.bf16.mxu0 0
    %7264 = vmatpush2.bf16.msra.mxu0 %v5496
    %7265 = vmatprep.subr.bf16.mxu0 0
    %7266 = vmatpush2.bf16.msra.mxu0 %v5491
    %7267 = vmatprep.subr.bf16.mxu0 0
    %7268 = vmatpush2.bf16.msra.mxu0 %v5486
    %7269 = vmatprep.subr.bf16.mxu0 0
    %7270 = vmatpush2.bf16.msra.mxu0 %v5481
    %7271 = vmatprep.subr.bf16.mxu0 0
    %7272 = vmatpush2.bf16.msra.mxu0 %v5476
    %7273 = vmatprep.subr.bf16.mxu0 0
    %7274 = vmatpush2.bf16.msra.mxu0 %v5471
    %7275 = vmatprep.mubr.bf16.mxu0 %v2335
    %7276 = vmatmul.mubr.bf16.gmra.mxu0 %v2334
    %v7277 = vpop.f32.mrf.mxu0
    %v7278 = vadd.f32 %v7238, %v7277
    %v7279 = vpop.f32.mrf.mxu0
    %v7280 = vpop.f32.mrf.mxu0
    %v7281 = vpop.f32.mrf.mxu0
    %7282 = vdwg.mxu0
    %7283 = vmatprep.subr.bf16.mxu0 0
    %7284 = vmatpush1.bf16.msra.mxu0 %v5546
    %7285 = vmatprep.subr.bf16.mxu0 0
    %7286 = vmatpush1.bf16.msra.mxu0 %v5541
    %7287 = vmatprep.subr.bf16.mxu0 0
    %7288 = vmatpush1.bf16.msra.mxu0 %v5536
    %7289 = vmatprep.subr.bf16.mxu0 0
    %7290 = vmatpush1.bf16.msra.mxu0 %v5531
    %7291 = vmatprep.subr.bf16.mxu0 0
    %7292 = vmatpush1.bf16.msra.mxu0 %v5526
    %7293 = vmatprep.subr.bf16.mxu0 0
    %7294 = vmatpush1.bf16.msra.mxu0 %v5521
    %7295 = vmatprep.subr.bf16.mxu0 0
    %7296 = vmatpush1.bf16.msra.mxu0 %v5516
    %7297 = vmatprep.subr.bf16.mxu0 0
    %7298 = vmatpush1.bf16.msra.mxu0 %v5511
    %7299 = vmatprep.subr.bf16.mxu0 0
    %7300 = vmatpush2.bf16.msra.mxu0 %v5586
    %7301 = vmatprep.subr.bf16.mxu0 0
    %7302 = vmatpush2.bf16.msra.mxu0 %v5581
    %7303 = vmatprep.subr.bf16.mxu0 0
    %7304 = vmatpush2.bf16.msra.mxu0 %v5576
    %7305 = vmatprep.subr.bf16.mxu0 0
    %7306 = vmatpush2.bf16.msra.mxu0 %v5571
    %7307 = vmatprep.subr.bf16.mxu0 0
    %7308 = vmatpush2.bf16.msra.mxu0 %v5566
    %7309 = vmatprep.subr.bf16.mxu0 0
    %7310 = vmatpush2.bf16.msra.mxu0 %v5561
    %7311 = vmatprep.subr.bf16.mxu0 0
    %7312 = vmatpush2.bf16.msra.mxu0 %v5556
    %7313 = vmatprep.subr.bf16.mxu0 0
    %7314 = vmatpush2.bf16.msra.mxu0 %v5551
    %7315 = vmatprep.mubr.bf16.mxu0 %v2337
    %7316 = vmatmul.mubr.bf16.gmra.mxu0 %v2336
    %v7317 = vpop.f32.mrf.mxu0
    %v7318 = vadd.f32 %v7278, %v7317
    %v7319 = vpop.f32.mrf.mxu0
    %v7320 = vpop.f32.mrf.mxu0
    %v7321 = vpop.f32.mrf.mxu0
    %7322 = vdwg.mxu0
    %7323 = vmatprep.subr.bf16.mxu0 0
    %7324 = vmatpush1.bf16.msra.mxu0 %v5626
    %7325 = vmatprep.subr.bf16.mxu0 0
    %7326 = vmatpush1.bf16.msra.mxu0 %v5621
    %7327 = vmatprep.subr.bf16.mxu0 0
    %7328 = vmatpush1.bf16.msra.mxu0 %v5616
    %7329 = vmatprep.subr.bf16.mxu0 0
    %7330 = vmatpush1.bf16.msra.mxu0 %v5611
    %7331 = vmatprep.subr.bf16.mxu0 0
    %7332 = vmatpush1.bf16.msra.mxu0 %v5606
    %7333 = vmatprep.subr.bf16.mxu0 0
    %7334 = vmatpush1.bf16.msra.mxu0 %v5601
    %7335 = vmatprep.subr.bf16.mxu0 0
    %7336 = vmatpush1.bf16.msra.mxu0 %v5596
    %7337 = vmatprep.subr.bf16.mxu0 0
    %7338 = vmatpush1.bf16.msra.mxu0 %v5591
    %7339 = vmatprep.subr.bf16.mxu0 0
    %7340 = vmatpush2.bf16.msra.mxu0 %v5666
    %7341 = vmatprep.subr.bf16.mxu0 0
    %7342 = vmatpush2.bf16.msra.mxu0 %v5661
    %7343 = vmatprep.subr.bf16.mxu0 0
    %7344 = vmatpush2.bf16.msra.mxu0 %v5656
    %7345 = vmatprep.subr.bf16.mxu0 0
    %7346 = vmatpush2.bf16.msra.mxu0 %v5651
    %7347 = vmatprep.subr.bf16.mxu0 0
    %7348 = vmatpush2.bf16.msra.mxu0 %v5646
    %7349 = vmatprep.subr.bf16.mxu0 0
    %7350 = vmatpush2.bf16.msra.mxu0 %v5641
    %7351 = vmatprep.subr.bf16.mxu0 0
    %7352 = vmatpush2.bf16.msra.mxu0 %v5636
    %7353 = vmatprep.subr.bf16.mxu0 0
    %7354 = vmatpush2.bf16.msra.mxu0 %v5631
    %7355 = vmatprep.mubr.bf16.mxu0 %v2339
    %7356 = vmatmul.mubr.bf16.gmra.mxu0 %v2338
    %v7357 = vpop.f32.mrf.mxu0
    %v7358 = vadd.f32 %v7318, %v7357
    %v7359 = vpop.f32.mrf.mxu0
    %v7360 = vpop.f32.mrf.mxu0
    %v7361 = vpop.f32.mrf.mxu0
    %7362 = vdwg.mxu0
    %7363 = vmatprep.subr.bf16.mxu0 0
    %7364 = vmatpush1.bf16.msra.mxu0 %v5706
    %7365 = vmatprep.subr.bf16.mxu0 0
    %7366 = vmatpush1.bf16.msra.mxu0 %v5701
    %7367 = vmatprep.subr.bf16.mxu0 0
    %7368 = vmatpush1.bf16.msra.mxu0 %v5696
    %7369 = vmatprep.subr.bf16.mxu0 0
    %7370 = vmatpush1.bf16.msra.mxu0 %v5691
    %7371 = vmatprep.subr.bf16.mxu0 0
    %7372 = vmatpush1.bf16.msra.mxu0 %v5686
    %7373 = vmatprep.subr.bf16.mxu0 0
    %7374 = vmatpush1.bf16.msra.mxu0 %v5681
    %7375 = vmatprep.subr.bf16.mxu0 0
    %7376 = vmatpush1.bf16.msra.mxu0 %v5676
    %7377 = vmatprep.subr.bf16.mxu0 0
    %7378 = vmatpush1.bf16.msra.mxu0 %v5671
    %7379 = vmatprep.subr.bf16.mxu0 0
    %7380 = vmatpush2.bf16.msra.mxu0 %v5746
    %7381 = vmatprep.subr.bf16.mxu0 0
    %7382 = vmatpush2.bf16.msra.mxu0 %v5741
    %7383 = vmatprep.subr.bf16.mxu0 0
    %7384 = vmatpush2.bf16.msra.mxu0 %v5736
    %7385 = vmatprep.subr.bf16.mxu0 0
    %7386 = vmatpush2.bf16.msra.mxu0 %v5731
    %7387 = vmatprep.subr.bf16.mxu0 0
    %7388 = vmatpush2.bf16.msra.mxu0 %v5726
    %7389 = vmatprep.subr.bf16.mxu0 0
    %7390 = vmatpush2.bf16.msra.mxu0 %v5721
    %7391 = vmatprep.subr.bf16.mxu0 0
    %7392 = vmatpush2.bf16.msra.mxu0 %v5716
    %7393 = vmatprep.subr.bf16.mxu0 0
    %7394 = vmatpush2.bf16.msra.mxu0 %v5711
    %7395 = vmatprep.mubr.bf16.mxu0 %v2341
    %7396 = vmatmul.mubr.bf16.gmra.mxu0 %v2340
    %v7397 = vpop.f32.mrf.mxu0
    %v7398 = vadd.f32 %v7358, %v7397
    %v7399 = vpop.f32.mrf.mxu0
    %v7400 = vpop.f32.mrf.mxu0
    %v7401 = vpop.f32.mrf.mxu0
    %7402 = vdwg.mxu0
    %7403 = vmatprep.subr.bf16.mxu0 0
    %7404 = vmatpush1.bf16.msra.mxu0 %v5786
    %7405 = vmatprep.subr.bf16.mxu0 0
    %7406 = vmatpush1.bf16.msra.mxu0 %v5781
    %7407 = vmatprep.subr.bf16.mxu0 0
    %7408 = vmatpush1.bf16.msra.mxu0 %v5776
    %7409 = vmatprep.subr.bf16.mxu0 0
    %7410 = vmatpush1.bf16.msra.mxu0 %v5771
    %7411 = vmatprep.subr.bf16.mxu0 0
    %7412 = vmatpush1.bf16.msra.mxu0 %v5766
    %7413 = vmatprep.subr.bf16.mxu0 0
    %7414 = vmatpush1.bf16.msra.mxu0 %v5761
    %7415 = vmatprep.subr.bf16.mxu0 0
    %7416 = vmatpush1.bf16.msra.mxu0 %v5756
    %7417 = vmatprep.subr.bf16.mxu0 0
    %7418 = vmatpush1.bf16.msra.mxu0 %v5751
    %7419 = vmatprep.subr.bf16.mxu0 0
    %7420 = vmatpush2.bf16.msra.mxu0 %v5826
    %7421 = vmatprep.subr.bf16.mxu0 0
    %7422 = vmatpush2.bf16.msra.mxu0 %v5821
    %7423 = vmatprep.subr.bf16.mxu0 0
    %7424 = vmatpush2.bf16.msra.mxu0 %v5816
    %7425 = vmatprep.subr.bf16.mxu0 0
    %7426 = vmatpush2.bf16.msra.mxu0 %v5811
    %7427 = vmatprep.subr.bf16.mxu0 0
    %7428 = vmatpush2.bf16.msra.mxu0 %v5806
    %7429 = vmatprep.subr.bf16.mxu0 0
    %7430 = vmatpush2.bf16.msra.mxu0 %v5801
    %7431 = vmatprep.subr.bf16.mxu0 0
    %7432 = vmatpush2.bf16.msra.mxu0 %v5796
    %7433 = vmatprep.subr.bf16.mxu0 0
    %7434 = vmatpush2.bf16.msra.mxu0 %v5791
    %7435 = vmatprep.mubr.bf16.mxu0 %v2343
    %7436 = vmatmul.mubr.bf16.gmra.mxu0 %v2342
    %v7437 = vpop.f32.mrf.mxu0
    %v7438 = vadd.f32 %v7398, %v7437
    %v7439 = vpop.f32.mrf.mxu0
    %v7440 = vpop.f32.mrf.mxu0
    %v7441 = vpop.f32.mrf.mxu0
    %7442 = vdwg.mxu0
    %v7443 = vmax.f32 %v6789, 0.0
    %v7444 = vmax.f32 %v6791, 0.0
    %v7445 = vmax.f32 %v7117, 0.0
    %v7446 = vmax.f32 %v7119, 0.0
    %v7447 = vmax.f32 %v7438, 0.0
    %v7448 = vpack.c.bf16 %v7443, %v7443
    %v7449 = vpack.c.bf16 %v7444, %v7444
    %v7450 = vpack.c.bf16 %v7445, %v7445
    %v7451 = vpack.c.bf16 %v7446, %v7446
    %v7452 = vpack.c.bf16 %v7447, %v7447
    %v7453 = vld [vmem:[%s5] sm:$0xf]
    %v7454 = vld [vmem:[%s5 + $0x4] sm:$0xf]
    %v7455 = vld [vmem:[%s5 + $0x8] sm:$0xf]
    %v7456 = vld [vmem:[%s5 + $0xc] sm:$0xf]
    %v7457 = vld [vmem:[%s5 + $0x10] sm:$0xf]
    %v7458 = vld [vmem:[%s5 + $0x14] sm:$0xf]
    %v7459 = vld [vmem:[%s5 + $0x18] sm:$0xf]
    %v7460 = vld [vmem:[%s5 + $0x1c] sm:$0xf]
    %v7461 = vld [vmem:[%s5 + $0x20] sm:$0xf]
    %v7462 = vld [vmem:[%s5 + $0x24] sm:$0xf]
    %v7463 = vld [vmem:[%s5 + $0x28] sm:$0xf]
    %v7464 = vld [vmem:[%s5 + $0x2c] sm:$0xf]
    %v7465 = vld [vmem:[%s5 + $0x30] sm:$0xf]
    %v7466 = vld [vmem:[%s5 + $0x34] sm:$0xf]
    %v7467 = vld [vmem:[%s5 + $0x38] sm:$0xf]
    %v7468 = vld [vmem:[%s5 + $0x3c] sm:$0xf]
    %v7469 = vld [vmem:[%s5 + $0x40] sm:$0xf]
    %v7470 = vld [vmem:[%s5 + $0x44] sm:$0xf]
    %v7471 = vld [vmem:[%s5 + $0x48] sm:$0xf]
    %v7472 = vld [vmem:[%s5 + $0x4c] sm:$0xf]
    %v7473 = vld [vmem:[%s5 + $0x50] sm:$0xf]
    %v7474 = vld [vmem:[%s5 + $0x54] sm:$0xf]
    %v7475 = vld [vmem:[%s5 + $0x58] sm:$0xf]
    %v7476 = vld [vmem:[%s5 + $0x5c] sm:$0xf]
    %v7477 = vld [vmem:[%s5 + $0x60] sm:$0xf]
    %v7478 = vld [vmem:[%s5 + $0x64] sm:$0xf]
    %v7479 = vld [vmem:[%s5 + $0x68] sm:$0xf]
    %v7480 = vld [vmem:[%s5 + $0x6c] sm:$0xf]
    %v7481 = vld [vmem:[%s5 + $0x70] sm:$0xf]
    %v7482 = vld [vmem:[%s5 + $0x74] sm:$0xf]
    %v7483 = vld [vmem:[%s5 + $0x78] sm:$0xf]
    %v7484 = vld [vmem:[%s5 + $0x7c] sm:$0xf]
    %v7485 = vld [vmem:[%s5 + $0x80] sm:$0xf]
    %v7486 = vld [vmem:[%s5 + $0x84] sm:$0xf]
    %v7487 = vld [vmem:[%s5 + $0x88] sm:$0xf]
    %v7488 = vld [vmem:[%s5 + $0x8c] sm:$0xf]
    %v7489 = vld [vmem:[%s5 + $0x90] sm:$0xf]
    %v7490 = vld [vmem:[%s5 + $0x94] sm:$0xf]
    %v7491 = vld [vmem:[%s5 + $0x98] sm:$0xf]
    %v7492 = vld [vmem:[%s5 + $0x9c] sm:$0xf]
    %v7493 = vld [vmem:[%s5 + $0xa0] sm:$0xf]
    %v7494 = vld [vmem:[%s5 + $0xa4] sm:$0xf]
    %v7495 = vld [vmem:[%s5 + $0xa8] sm:$0xf]
    %v7496 = vld [vmem:[%s5 + $0xac] sm:$0xf]
    %v7497 = vld [vmem:[%s5 + $0xb0] sm:$0xf]
    %v7498 = vld [vmem:[%s5 + $0xb4] sm:$0xf]
    %v7499 = vld [vmem:[%s5 + $0xb8] sm:$0xf]
    %v7500 = vld [vmem:[%s5 + $0xbc] sm:$0xf]
    %v7501 = vld [vmem:[%s5 + $0xc0] sm:$0xf]
    %v7502 = vld [vmem:[%s5 + $0xc4] sm:$0xf]
    %v7503 = vld [vmem:[%s5 + $0xc8] sm:$0xf]
    %v7504 = vld [vmem:[%s5 + $0xcc] sm:$0xf]
    %v7505 = vld [vmem:[%s5 + $0xd0] sm:$0xf]
    %v7506 = vld [vmem:[%s5 + $0xd4] sm:$0xf]
    %v7507 = vld [vmem:[%s5 + $0xd8] sm:$0xf]
    %v7508 = vld [vmem:[%s5 + $0xdc] sm:$0xf]
    %v7509 = vld [vmem:[%s5 + $0xe0] sm:$0xf]
    %v7510 = vld [vmem:[%s5 + $0xe4] sm:$0xf]
    %v7511 = vld [vmem:[%s5 + $0xe8] sm:$0xf]
    %v7512 = vld [vmem:[%s5 + $0xec] sm:$0xf]
    %v7513 = vld [vmem:[%s5 + $0xf0] sm:$0xf]
    %v7514 = vld [vmem:[%s5 + $0xf4] sm:$0xf]
    %v7515 = vld [vmem:[%s5 + $0xf8] sm:$0xf]
    %v7516 = vld [vmem:[%s5 + $0xfc] sm:$0xf]
    %v7517 = vld [vmem:[%s5 + $0x100] sm:$0xf]
    %v7518 = vld [vmem:[%s5 + $0x104] sm:$0xf]
    %v7519 = vld [vmem:[%s5 + $0x108] sm:$0xf]
    %v7520 = vld [vmem:[%s5 + $0x10c] sm:$0xf]
    %v7521 = vld [vmem:[%s5 + $0x110] sm:$0xf]
    %v7522 = vld [vmem:[%s5 + $0x114] sm:$0xf]
    %v7523 = vld [vmem:[%s5 + $0x118] sm:$0xf]
    %v7524 = vld [vmem:[%s5 + $0x11c] sm:$0xf]
    %v7525 = vld [vmem:[%s6] sm:$0x1]
    %v7527 = vlaneseq
    %v7528 = vshrl.u32 %v7527, 7
    %v7529 = vsub.s32 0, %v7528
    %v7530 = vrot.slane %v7525, %v7529
    %v7604 = vunpack.c.l.b16 %v7453
    %v7605 = vunpack.c.l.b16 %v7454
    %v7606 = vunpack.c.l.b16 %v7455
    %v7607 = vunpack.c.l.b16 %v7456
    %v7608 = vunpack.c.l.b16 %v7457
    %v7609 = vunpack.c.l.b16 %v7458
    %v7610 = vunpack.c.l.b16 %v7459
    %v7611 = vunpack.c.l.b16 %v7460
    %v7612 = vunpack.c.l.b16 %v7461
    %v7613 = vunpack.c.l.b16 %v7462
    %v7614 = vunpack.c.l.b16 %v7463
    %v7615 = vunpack.c.l.b16 %v7464
    %v7616 = vunpack.c.l.b16 %v7465
    %v7617 = vunpack.c.l.b16 %v7466
    %v7618 = vunpack.c.l.b16 %v7467
    %v7619 = vunpack.c.l.b16 %v7468
    %v7620 = vunpack.c.l.b16 %v7469
    %v7621 = vunpack.c.l.b16 %v7470
    %v7622 = vunpack.c.l.b16 %v7471
    %v7623 = vunpack.c.l.b16 %v7472
    %v7624 = vunpack.c.l.b16 %v7473
    %v7625 = vunpack.c.l.b16 %v7474
    %v7626 = vunpack.c.l.b16 %v7475
    %v7627 = vunpack.c.l.b16 %v7476
    %v7628 = vunpack.c.l.b16 %v7477
    %v7629 = vunpack.c.l.b16 %v7478
    %v7630 = vunpack.c.l.b16 %v7479
    %v7631 = vunpack.c.l.b16 %v7480
    %v7632 = vunpack.c.l.b16 %v7481
    %v7633 = vunpack.c.l.b16 %v7482
    %v7634 = vunpack.c.l.b16 %v7483
    %v7635 = vunpack.c.l.b16 %v7484
    %v7636 = vunpack.c.l.b16 %v7485
    %v7637 = vunpack.c.l.b16 %v7486
    %v7638 = vunpack.c.l.b16 %v7487
    %v7639 = vunpack.c.l.b16 %v7488
    %v7640 = vunpack.c.l.b16 %v7489
    %v7641 = vunpack.c.l.b16 %v7490
    %v7642 = vunpack.c.l.b16 %v7491
    %v7643 = vunpack.c.l.b16 %v7492
    %v7644 = vunpack.c.l.b16 %v7493
    %v7645 = vunpack.c.l.b16 %v7494
    %v7646 = vunpack.c.l.b16 %v7495
    %v7647 = vunpack.c.l.b16 %v7496
    %v7648 = vunpack.c.l.b16 %v7497
    %v7649 = vunpack.c.l.b16 %v7498
    %v7650 = vunpack.c.l.b16 %v7499
    %v7651 = vunpack.c.l.b16 %v7500
    %v7652 = vunpack.c.l.b16 %v7501
    %v7653 = vunpack.c.l.b16 %v7502
    %v7654 = vunpack.c.l.b16 %v7503
    %v7655 = vunpack.c.l.b16 %v7504
    %v7656 = vunpack.c.l.b16 %v7505
    %v7657 = vunpack.c.l.b16 %v7506
    %v7658 = vunpack.c.l.b16 %v7507
    %v7659 = vunpack.c.l.b16 %v7508
    %v7660 = vunpack.c.l.b16 %v7509
    %v7661 = vunpack.c.l.b16 %v7510
    %v7662 = vunpack.c.l.b16 %v7511
    %v7663 = vunpack.c.l.b16 %v7512
    %v7664 = vunpack.c.l.b16 %v7513
    %v7665 = vunpack.c.l.b16 %v7514
    %v7666 = vunpack.c.l.b16 %v7515
    %v7667 = vunpack.c.l.b16 %v7516
    %v7668 = vunpack.c.l.b16 %v7517
    %v7669 = vunpack.c.l.b16 %v7518
    %v7670 = vunpack.c.l.b16 %v7519
    %v7671 = vunpack.c.l.b16 %v7520
    %v7672 = vunpack.c.l.b16 %v7521
    %v7673 = vunpack.c.l.b16 %v7522
    %v7674 = vunpack.c.l.b16 %v7523
    %v7675 = vunpack.c.l.b16 %v7524
    %v7676 = vpack.c.b16 %v7605, %v7604
    %v7677 = vpack.c.b16 %v7607, %v7606
    %v7678 = vpack.c.b16 %v7609, %v7608
    %v7679 = vpack.c.b16 %v7611, %v7610
    %v7680 = vpack.c.b16 %v7613, %v7612
    %v7681 = vpack.c.b16 %v7615, %v7614
    %v7682 = vpack.c.b16 %v7617, %v7616
    %v7683 = vpack.c.b16 %v7619, %v7618
    %v7684 = vpack.c.b16 %v7621, %v7620
    %v7685 = vpack.c.b16 %v7623, %v7622
    %v7686 = vpack.c.b16 %v7625, %v7624
    %v7687 = vpack.c.b16 %v7627, %v7626
    %v7688 = vpack.c.b16 %v7629, %v7628
    %v7689 = vpack.c.b16 %v7631, %v7630
    %v7690 = vpack.c.b16 %v7633, %v7632
    %v7691 = vpack.c.b16 %v7635, %v7634
    %v7692 = vpack.c.b16 %v7637, %v7636
    %v7693 = vpack.c.b16 %v7639, %v7638
    %v7694 = vpack.c.b16 %v7641, %v7640
    %v7695 = vpack.c.b16 %v7643, %v7642
    %v7696 = vpack.c.b16 %v7645, %v7644
    %v7697 = vpack.c.b16 %v7647, %v7646
    %v7698 = vpack.c.b16 %v7649, %v7648
    %v7699 = vpack.c.b16 %v7651, %v7650
    %v7700 = vpack.c.b16 %v7653, %v7652
    %v7701 = vpack.c.b16 %v7655, %v7654
    %v7702 = vpack.c.b16 %v7657, %v7656
    %v7703 = vpack.c.b16 %v7659, %v7658
    %v7704 = vpack.c.b16 %v7661, %v7660
    %v7705 = vpack.c.b16 %v7663, %v7662
    %v7706 = vpack.c.b16 %v7665, %v7664
    %v7707 = vpack.c.b16 %v7667, %v7666
    %v7708 = vpack.c.b16 %v7669, %v7668
    %v7709 = vpack.c.b16 %v7671, %v7670
    %v7710 = vpack.c.b16 %v7673, %v7672
    %v7711 = vpack.c.b16 %v7675, %v7674
    %vm7748 = vcmask 523264
    %v7750 = vsel %vm7748, %v7452, 0
    %7752 = vmatprep.subr.bf16.mxu0 0
    %7753 = vmatpush1.bf16.msra.mxu0 %v7683
    %7754 = vmatprep.subr.bf16.mxu0 0
    %7755 = vmatpush1.bf16.msra.mxu0 %v7682
    %7756 = vmatprep.subr.bf16.mxu0 0
    %7757 = vmatpush1.bf16.msra.mxu0 %v7681
    %7758 = vmatprep.subr.bf16.mxu0 0
    %7759 = vmatpush1.bf16.msra.mxu0 %v7680
    %7760 = vmatprep.subr.bf16.mxu0 0
    %7761 = vmatpush1.bf16.msra.mxu0 %v7679
    %7762 = vmatprep.subr.bf16.mxu0 0
    %7763 = vmatpush1.bf16.msra.mxu0 %v7678
    %7764 = vmatprep.subr.bf16.mxu0 0
    %7765 = vmatpush1.bf16.msra.mxu0 %v7677
    %7766 = vmatprep.subr.bf16.mxu0 0
    %7767 = vmatpush1.bf16.msra.mxu0 %v7676
    %7768 = vmatprep.subr.bf16.mxu0 0
    %7769 = vmatpush2.bf16.msra.mxu0 %v7691
    %7770 = vmatprep.subr.bf16.mxu0 0
    %7771 = vmatpush2.bf16.msra.mxu0 %v7690
    %7772 = vmatprep.subr.bf16.mxu0 0
    %7773 = vmatpush2.bf16.msra.mxu0 %v7689
    %7774 = vmatprep.subr.bf16.mxu0 0
    %7775 = vmatpush2.bf16.msra.mxu0 %v7688
    %7776 = vmatprep.subr.bf16.mxu0 0
    %7777 = vmatpush2.bf16.msra.mxu0 %v7687
    %7778 = vmatprep.subr.bf16.mxu0 0
    %7779 = vmatpush2.bf16.msra.mxu0 %v7686
    %7780 = vmatprep.subr.bf16.mxu0 0
    %7781 = vmatpush2.bf16.msra.mxu0 %v7685
    %7782 = vmatprep.subr.bf16.mxu0 0
    %7783 = vmatpush2.bf16.msra.mxu0 %v7684
    %7784 = vmatprep.mubr.bf16.mxu0 %v7449
    %7785 = vmatmul.mubr.bf16.gmra.mxu0 %v7448
    %v7786 = vpop.f32.mrf.mxu0
    %v7787 = vadd.f32 %v7530, %v7786
    %v7788 = vpop.f32.mrf.mxu0
    %v7789 = vpop.f32.mrf.mxu0
    %v7790 = vpop.f32.mrf.mxu0
    %7791 = vdwg.mxu0
    %7792 = vmatprep.subr.bf16.mxu0 0
    %7793 = vmatpush1.bf16.msra.mxu0 %v7699
    %7794 = vmatprep.subr.bf16.mxu0 0
    %7795 = vmatpush1.bf16.msra.mxu0 %v7698
    %7796 = vmatprep.subr.bf16.mxu0 0
    %7797 = vmatpush1.bf16.msra.mxu0 %v7697
    %7798 = vmatprep.subr.bf16.mxu0 0
    %7799 = vmatpush1.bf16.msra.mxu0 %v7696
    %7800 = vmatprep.subr.bf16.mxu0 0
    %7801 = vmatpush1.bf16.msra.mxu0 %v7695
    %7802 = vmatprep.subr.bf16.mxu0 0
    %7803 = vmatpush1.bf16.msra.mxu0 %v7694
    %7804 = vmatprep.subr.bf16.mxu0 0
    %7805 = vmatpush1.bf16.msra.mxu0 %v7693
    %7806 = vmatprep.subr.bf16.mxu0 0
    %7807 = vmatpush1.bf16.msra.mxu0 %v7692
    %7808 = vmatprep.subr.bf16.mxu0 0
    %7809 = vmatpush2.bf16.msra.mxu0 %v7707
    %7810 = vmatprep.subr.bf16.mxu0 0
    %7811 = vmatpush2.bf16.msra.mxu0 %v7706
    %7812 = vmatprep.subr.bf16.mxu0 0
    %7813 = vmatpush2.bf16.msra.mxu0 %v7705
    %7814 = vmatprep.subr.bf16.mxu0 0
    %7815 = vmatpush2.bf16.msra.mxu0 %v7704
    %7816 = vmatprep.subr.bf16.mxu0 0
    %7817 = vmatpush2.bf16.msra.mxu0 %v7703
    %7818 = vmatprep.subr.bf16.mxu0 0
    %7819 = vmatpush2.bf16.msra.mxu0 %v7702
    %7820 = vmatprep.subr.bf16.mxu0 0
    %7821 = vmatpush2.bf16.msra.mxu0 %v7701
    %7822 = vmatprep.subr.bf16.mxu0 0
    %7823 = vmatpush2.bf16.msra.mxu0 %v7700
    %7824 = vmatprep.mubr.bf16.mxu0 %v7451
    %7825 = vmatmul.mubr.bf16.gmra.mxu0 %v7450
    %v7826 = vpop.f32.mrf.mxu0
    %v7827 = vadd.f32 %v7787, %v7826
    %v7828 = vpop.f32.mrf.mxu0
    %v7829 = vpop.f32.mrf.mxu0
    %v7830 = vpop.f32.mrf.mxu0
    %7831 = vdwg.mxu0
    %7832 = vmatprep.subr.bf16.mxu0 0
    %7833 = vmatpush1.bf16.msra.mxu0 0
    %7834 = vmatprep.subr.bf16.mxu0 0
    %7835 = vmatpush1.bf16.msra.mxu0 0
    %7836 = vmatprep.subr.bf16.mxu0 0
    %7837 = vmatpush1.bf16.msra.mxu0 0
    %7838 = vmatprep.subr.bf16.mxu0 0
    %7839 = vmatpush1.bf16.msra.mxu0 0
    %7840 = vmatprep.subr.bf16.mxu0 0
    %7841 = vmatpush1.bf16.msra.mxu0 %v7711
    %7842 = vmatprep.subr.bf16.mxu0 0
    %7843 = vmatpush1.bf16.msra.mxu0 %v7710
    %7844 = vmatprep.subr.bf16.mxu0 0
    %7845 = vmatpush1.bf16.msra.mxu0 %v7709
    %7846 = vmatprep.subr.bf16.mxu0 0
    %7847 = vmatpush1.bf16.msra.mxu0 %v7708
    %7848 = vmatprep.subr.bf16.mxu0 0
    %7849 = vmatpush2.bf16.msra.mxu0 0
    %7850 = vmatprep.subr.bf16.mxu0 0
    %7851 = vmatpush2.bf16.msra.mxu0 0
    %7852 = vmatprep.subr.bf16.mxu0 0
    %7853 = vmatpush2.bf16.msra.mxu0 0
    %7854 = vmatprep.subr.bf16.mxu0 0
    %7855 = vmatpush2.bf16.msra.mxu0 0
    %7856 = vmatprep.subr.bf16.mxu0 0
    %7857 = vmatpush2.bf16.msra.mxu0 0
    %7858 = vmatprep.subr.bf16.mxu0 0
    %7859 = vmatpush2.bf16.msra.mxu0 0
    %7860 = vmatprep.subr.bf16.mxu0 0
    %7861 = vmatpush2.bf16.msra.mxu0 0
    %7862 = vmatprep.subr.bf16.mxu0 0
    %7863 = vmatpush2.bf16.msra.mxu0 0
    %7864 = vmatprep.mubr.bf16.mxu0 0
    %7865 = vmatmul.mubr.bf16.gmra.mxu0 %v7750
    %v7866 = vpop.f32.mrf.mxu0
    %v7867 = vadd.f32 %v7827, %v7866
    %v7868 = vpop.f32.mrf.mxu0
    %v7869 = vpop.f32.mrf.mxu0
    %v7870 = vpop.f32.mrf.mxu0
    %7871 = vdwg.mxu0
    %v7872 = vmax.f32 %v7867, 0.0
    %v7873 = vpack.c.bf16 %v7872, %v7872
    %v7874 = vld [vmem:[%s7] sm:$0xff]
    %v7875 = vld [vmem:[%s7 + $0x8] sm:$0xff]
    %v7876 = vld [vmem:[%s7 + $0x10] sm:$0xff]
    %v7877 = vld [vmem:[%s7 + $0x18] sm:$0xff]
    %v7878 = vld [vmem:[%s7 + $0x20] sm:$0xff]
    %v7879 = vld [vmem:[%s7 + $0x28] sm:$0xff]
    %v7880 = vld [vmem:[%s7 + $0x30] sm:$0xff]
    %v7881 = vld [vmem:[%s7 + $0x38] sm:$0xff]
    %v7882 = vld [vmem:[%s7 + $0x40] sm:$0xff]
    %v7883 = vld [vmem:[%s7 + $0x48] sm:$0xff]
    %v7884 = vld [vmem:[%s7 + $0x50] sm:$0xff]
    %v7885 = vld [vmem:[%s7 + $0x58] sm:$0xff]
    %v7886 = vld [vmem:[%s7 + $0x60] sm:$0xff]
    %v7887 = vld [vmem:[%s7 + $0x68] sm:$0xff]
    %v7888 = vld [vmem:[%s7 + $0x70] sm:$0xff]
    %v7889 = vld [vmem:[%s7 + $0x78] sm:$0xff]
    %v7890 = vld [vmem:[%s8] sm:$0xf]
    %v7892 = vlaneseq
    %v7893 = vshrl.u32 %v7892, 7
    %v7894 = vsub.s32 0, %v7893
    %v7895 = vrot.slane %v7890, %v7894
    %v7896 = vlaneseq
    %v7897 = vshrl.u32 %v7896, 7
    %v7898 = vsub.s32 1, %v7897
    %v7899 = vrot.slane %v7890, %v7898
    %v7900 = vlaneseq
    %v7901 = vshrl.u32 %v7900, 7
    %v7902 = vsub.s32 2, %v7901
    %v7903 = vrot.slane %v7890, %v7902
    %v7904 = vlaneseq
    %v7905 = vshrl.u32 %v7904, 7
    %v7906 = vsub.s32 3, %v7905
    %v7907 = vrot.slane %v7890, %v7906
    %v7928 = vunpack.c.l.b16 %v7874
    %v7929 = vunpack.c.h.b16 %v7874
    %v7930 = vunpack.c.l.b16 %v7875
    %v7931 = vunpack.c.h.b16 %v7875
    %v7932 = vunpack.c.l.b16 %v7876
    %v7933 = vunpack.c.h.b16 %v7876
    %v7934 = vunpack.c.l.b16 %v7877
    %v7935 = vunpack.c.h.b16 %v7877
    %v7936 = vunpack.c.l.b16 %v7878
    %v7937 = vunpack.c.h.b16 %v7878
    %v7938 = vunpack.c.l.b16 %v7879
    %v7939 = vunpack.c.h.b16 %v7879
    %v7940 = vunpack.c.l.b16 %v7880
    %v7941 = vunpack.c.h.b16 %v7880
    %v7942 = vunpack.c.l.b16 %v7881
    %v7943 = vunpack.c.h.b16 %v7881
    %v7944 = vunpack.c.l.b16 %v7882
    %v7945 = vunpack.c.h.b16 %v7882
    %v7946 = vunpack.c.l.b16 %v7883
    %v7947 = vunpack.c.h.b16 %v7883
    %v7948 = vunpack.c.l.b16 %v7884
    %v7949 = vunpack.c.h.b16 %v7884
    %v7950 = vunpack.c.l.b16 %v7885
    %v7951 = vunpack.c.h.b16 %v7885
    %v7952 = vunpack.c.l.b16 %v7886
    %v7953 = vunpack.c.h.b16 %v7886
    %v7954 = vunpack.c.l.b16 %v7887
    %v7955 = vunpack.c.h.b16 %v7887
    %v7956 = vunpack.c.l.b16 %v7888
    %v7957 = vunpack.c.h.b16 %v7888
    %v7958 = vunpack.c.l.b16 %v7889
    %v7959 = vunpack.c.h.b16 %v7889
    %v7960 = vpack.c.b16 %v7932, %v7928
    %v7961 = vpack.c.b16 %v7933, %v7929
    %v7962 = vpack.c.b16 %v7934, %v7930
    %v7963 = vpack.c.b16 %v7935, %v7931
    %v7964 = vpack.c.b16 %v7940, %v7936
    %v7965 = vpack.c.b16 %v7941, %v7937
    %v7966 = vpack.c.b16 %v7942, %v7938
    %v7967 = vpack.c.b16 %v7943, %v7939
    %v7968 = vpack.c.b16 %v7948, %v7944
    %v7969 = vpack.c.b16 %v7949, %v7945
    %v7970 = vpack.c.b16 %v7950, %v7946
    %v7971 = vpack.c.b16 %v7951, %v7947
    %v7972 = vpack.c.b16 %v7956, %v7952
    %v7973 = vpack.c.b16 %v7957, %v7953
    %v7974 = vpack.c.b16 %v7958, %v7954
    %v7975 = vpack.c.b16 %v7959, %v7955
    %v7993 = vsel %vm7748, %v7873, 0
    %7995 = vmatprep.subr.bf16.mxu0 0
    %7996 = vmatpush1.bf16.msra.mxu0 0
    %7997 = vmatprep.subr.bf16.mxu0 0
    %7998 = vmatpush1.bf16.msra.mxu0 0
    %7999 = vmatprep.subr.bf16.mxu0 0
    %8000 = vmatpush1.bf16.msra.mxu0 0
    %8001 = vmatprep.subr.bf16.mxu0 0
    %8002 = vmatpush1.bf16.msra.mxu0 0
    %8003 = vmatprep.subr.bf16.mxu0 %v7973
    %8004 = vmatpush1.bf16.msra.mxu0 %v7972
    %8005 = vmatprep.subr.bf16.mxu0 %v7969
    %8006 = vmatpush1.bf16.msra.mxu0 %v7968
    %8007 = vmatprep.subr.bf16.mxu0 %v7965
    %8008 = vmatpush1.bf16.msra.mxu0 %v7964
    %8009 = vmatprep.subr.bf16.mxu0 %v7961
    %8010 = vmatpush1.bf16.msra.mxu0 %v7960
    %8011 = vmatprep.subr.bf16.mxu0 0
    %8012 = vmatpush2.bf16.msra.mxu0 0
    %8013 = vmatprep.subr.bf16.mxu0 0
    %8014 = vmatpush2.bf16.msra.mxu0 0
    %8015 = vmatprep.subr.bf16.mxu0 0
    %8016 = vmatpush2.bf16.msra.mxu0 0
    %8017 = vmatprep.subr.bf16.mxu0 0
    %8018 = vmatpush2.bf16.msra.mxu0 0
    %8019 = vmatprep.subr.bf16.mxu0 0
    %8020 = vmatpush2.bf16.msra.mxu0 0
    %8021 = vmatprep.subr.bf16.mxu0 0
    %8022 = vmatpush2.bf16.msra.mxu0 0
    %8023 = vmatprep.subr.bf16.mxu0 0
    %8024 = vmatpush2.bf16.msra.mxu0 0
    %8025 = vmatprep.subr.bf16.mxu0 0
    %8026 = vmatpush2.bf16.msra.mxu0 0
    %8027 = vmatprep.mubr.bf16.mxu0 0
    %8028 = vmatmul.mubr.bf16.gmra.mxu0 %v7993
    %v8029 = vpop.f32.mrf.mxu0
    %v8030 = vadd.f32 %v7895, %v8029
    %v8031 = vpop.f32.mrf.mxu0
    %v8032 = vadd.f32 %v7899, %v8031
    %v8033 = vpop.f32.mrf.mxu0
    %v8034 = vpop.f32.mrf.mxu0
    %8035 = vdwg.mxu0
    %8036 = vmatprep.subr.bf16.mxu0 0
    %8037 = vmatpush1.bf16.msra.mxu0 0
    %8038 = vmatprep.subr.bf16.mxu0 0
    %8039 = vmatpush1.bf16.msra.mxu0 0
    %8040 = vmatprep.subr.bf16.mxu0 0
    %8041 = vmatpush1.bf16.msra.mxu0 0
    %8042 = vmatprep.subr.bf16.mxu0 0
    %8043 = vmatpush1.bf16.msra.mxu0 0
    %8044 = vmatprep.subr.bf16.mxu0 %v7975
    %8045 = vmatpush1.bf16.msra.mxu0 %v7974
    %8046 = vmatprep.subr.bf16.mxu0 %v7971
    %8047 = vmatpush1.bf16.msra.mxu0 %v7970
    %8048 = vmatprep.subr.bf16.mxu0 %v7967
    %8049 = vmatpush1.bf16.msra.mxu0 %v7966
    %8050 = vmatprep.subr.bf16.mxu0 %v7963
    %8051 = vmatpush1.bf16.msra.mxu0 %v7962
    %8052 = vmatprep.subr.bf16.mxu0 0
    %8053 = vmatpush2.bf16.msra.mxu0 0
    %8054 = vmatprep.subr.bf16.mxu0 0
    %8055 = vmatpush2.bf16.msra.mxu0 0
    %8056 = vmatprep.subr.bf16.mxu0 0
    %8057 = vmatpush2.bf16.msra.mxu0 0
    %8058 = vmatprep.subr.bf16.mxu0 0
    %8059 = vmatpush2.bf16.msra.mxu0 0
    %8060 = vmatprep.subr.bf16.mxu0 0
    %8061 = vmatpush2.bf16.msra.mxu0 0
    %8062 = vmatprep.subr.bf16.mxu0 0
    %8063 = vmatpush2.bf16.msra.mxu0 0
    %8064 = vmatprep.subr.bf16.mxu0 0
    %8065 = vmatpush2.bf16.msra.mxu0 0
    %8066 = vmatprep.subr.bf16.mxu0 0
    %8067 = vmatpush2.bf16.msra.mxu0 0
    %8068 = vmatprep.mubr.bf16.mxu0 0
    %8069 = vmatmul.mubr.bf16.gmra.mxu0 %v7993
    %v8070 = vpop.f32.mrf.mxu0
    %v8071 = vadd.f32 %v7903, %v8070
    %v8072 = vpop.f32.mrf.mxu0
    %v8073 = vadd.f32 %v7907, %v8072
    %v8074 = vpop.f32.mrf.mxu0
    %v8075 = vpop.f32.mrf.mxu0
    %8076 = vdwg.mxu0
    %v8077 = vmax.f32 %v8030, 0.0
    %v8078 = vmax.f32 %v8032, 0.0
    %v8079 = vmax.f32 %v8071, 0.0
    %v8080 = vmax.f32 %v8073, 0.0
    %v8081 = vpack.c.bf16 %v8077, %v8077
    %v8082 = vpack.c.bf16 %v8078, %v8078
    %v8083 = vpack.c.bf16 %v8079, %v8079
    %v8084 = vpack.c.bf16 %v8080, %v8080
    %v8085 = vld [vmem:[%s9] sm:$0xf]
    %v8086 = vld [vmem:[%s9 + $0x4] sm:$0xf]
    %v8087 = vld [vmem:[%s9 + $0x8] sm:$0xf]
    %v8088 = vld [vmem:[%s9 + $0xc] sm:$0xf]
    %v8089 = vld [vmem:[%s9 + $0x10] sm:$0xf]
    %v8090 = vld [vmem:[%s9 + $0x14] sm:$0xf]
    %v8091 = vld [vmem:[%s9 + $0x18] sm:$0xf]
    %v8092 = vld [vmem:[%s9 + $0x1c] sm:$0xf]
    %v8093 = vld [vmem:[%s9 + $0x20] sm:$0xf]
    %v8094 = vld [vmem:[%s9 + $0x24] sm:$0xf]
    %v8095 = vld [vmem:[%s9 + $0x28] sm:$0xf]
    %v8096 = vld [vmem:[%s9 + $0x2c] sm:$0xf]
    %v8097 = vld [vmem:[%s9 + $0x30] sm:$0xf]
    %v8098 = vld [vmem:[%s9 + $0x34] sm:$0xf]
    %v8099 = vld [vmem:[%s9 + $0x38] sm:$0xf]
    %v8100 = vld [vmem:[%s9 + $0x3c] sm:$0xf]
    %v8101 = vld [vmem:[%s9 + $0x40] sm:$0xf]
    %v8102 = vld [vmem:[%s9 + $0x44] sm:$0xf]
    %v8103 = vld [vmem:[%s9 + $0x48] sm:$0xf]
    %v8104 = vld [vmem:[%s9 + $0x4c] sm:$0xf]
    %v8105 = vld [vmem:[%s9 + $0x50] sm:$0xf]
    %v8106 = vld [vmem:[%s9 + $0x54] sm:$0xf]
    %v8107 = vld [vmem:[%s9 + $0x58] sm:$0xf]
    %v8108 = vld [vmem:[%s9 + $0x5c] sm:$0xf]
    %v8109 = vld [vmem:[%s9 + $0x60] sm:$0xf]
    %v8110 = vld [vmem:[%s9 + $0x64] sm:$0xf]
    %v8111 = vld [vmem:[%s9 + $0x68] sm:$0xf]
    %v8112 = vld [vmem:[%s9 + $0x6c] sm:$0xf]
    %v8113 = vld [vmem:[%s9 + $0x70] sm:$0xf]
    %v8114 = vld [vmem:[%s9 + $0x74] sm:$0xf]
    %v8115 = vld [vmem:[%s9 + $0x78] sm:$0xf]
    %v8116 = vld [vmem:[%s9 + $0x7c] sm:$0xf]
    %v8117 = vld [vmem:[%s9 + $0x80] sm:$0xf]
    %v8118 = vld [vmem:[%s9 + $0x84] sm:$0xf]
    %v8119 = vld [vmem:[%s9 + $0x88] sm:$0xf]
    %v8120 = vld [vmem:[%s9 + $0x8c] sm:$0xf]
    %v8121 = vld [vmem:[%s9 + $0x90] sm:$0xf]
    %v8122 = vld [vmem:[%s9 + $0x94] sm:$0xf]
    %v8123 = vld [vmem:[%s9 + $0x98] sm:$0xf]
    %v8124 = vld [vmem:[%s9 + $0x9c] sm:$0xf]
    %v8125 = vld [vmem:[%s9 + $0xa0] sm:$0xf]
    %v8126 = vld [vmem:[%s9 + $0xa4] sm:$0xf]
    %v8127 = vld [vmem:[%s9 + $0xa8] sm:$0xf]
    %v8128 = vld [vmem:[%s9 + $0xac] sm:$0xf]
    %v8129 = vld [vmem:[%s9 + $0xb0] sm:$0xf]
    %v8130 = vld [vmem:[%s9 + $0xb4] sm:$0xf]
    %v8131 = vld [vmem:[%s9 + $0xb8] sm:$0xf]
    %v8132 = vld [vmem:[%s9 + $0xbc] sm:$0xf]
    %v8133 = vld [vmem:[%s9 + $0xc0] sm:$0xf]
    %v8134 = vld [vmem:[%s9 + $0xc4] sm:$0xf]
    %v8135 = vld [vmem:[%s9 + $0xc8] sm:$0xf]
    %v8136 = vld [vmem:[%s9 + $0xcc] sm:$0xf]
    %v8137 = vld [vmem:[%s9 + $0xd0] sm:$0xf]
    %v8138 = vld [vmem:[%s9 + $0xd4] sm:$0xf]
    %v8139 = vld [vmem:[%s9 + $0xd8] sm:$0xf]
    %v8140 = vld [vmem:[%s9 + $0xdc] sm:$0xf]
    %v8141 = vld [vmem:[%s9 + $0xe0] sm:$0xf]
    %v8142 = vld [vmem:[%s9 + $0xe4] sm:$0xf]
    %v8143 = vld [vmem:[%s9 + $0xe8] sm:$0xf]
    %v8144 = vld [vmem:[%s9 + $0xec] sm:$0xf]
    %v8145 = vld [vmem:[%s9 + $0xf0] sm:$0xf]
    %v8146 = vld [vmem:[%s9 + $0xf4] sm:$0xf]
    %v8147 = vld [vmem:[%s9 + $0xf8] sm:$0xf]
    %v8148 = vld [vmem:[%s9 + $0xfc] sm:$0xf]
    %v8149 = vld [vmem:[%s10] sm:$0x1]
    %v8151 = vlaneseq
    %v8152 = vshrl.u32 %v8151, 7
    %v8153 = vsub.s32 0, %v8152
    %v8154 = vrot.slane %v8149, %v8153
    %v8220 = vunpack.c.l.b16 %v8085
    %v8221 = vunpack.c.l.b16 %v8086
    %v8222 = vunpack.c.l.b16 %v8087
    %v8223 = vunpack.c.l.b16 %v8088
    %v8224 = vunpack.c.l.b16 %v8089
    %v8225 = vunpack.c.l.b16 %v8090
    %v8226 = vunpack.c.l.b16 %v8091
    %v8227 = vunpack.c.l.b16 %v8092
    %v8228 = vunpack.c.l.b16 %v8093
    %v8229 = vunpack.c.l.b16 %v8094
    %v8230 = vunpack.c.l.b16 %v8095
    %v8231 = vunpack.c.l.b16 %v8096
    %v8232 = vunpack.c.l.b16 %v8097
    %v8233 = vunpack.c.l.b16 %v8098
    %v8234 = vunpack.c.l.b16 %v8099
    %v8235 = vunpack.c.l.b16 %v8100
    %v8236 = vunpack.c.l.b16 %v8101
    %v8237 = vunpack.c.l.b16 %v8102
    %v8238 = vunpack.c.l.b16 %v8103
    %v8239 = vunpack.c.l.b16 %v8104
    %v8240 = vunpack.c.l.b16 %v8105
    %v8241 = vunpack.c.l.b16 %v8106
    %v8242 = vunpack.c.l.b16 %v8107
    %v8243 = vunpack.c.l.b16 %v8108
    %v8244 = vunpack.c.l.b16 %v8109
    %v8245 = vunpack.c.l.b16 %v8110
    %v8246 = vunpack.c.l.b16 %v8111
    %v8247 = vunpack.c.l.b16 %v8112
    %v8248 = vunpack.c.l.b16 %v8113
    %v8249 = vunpack.c.l.b16 %v8114
    %v8250 = vunpack.c.l.b16 %v8115
    %v8251 = vunpack.c.l.b16 %v8116
    %v8252 = vunpack.c.l.b16 %v8117
    %v8253 = vunpack.c.l.b16 %v8118
    %v8254 = vunpack.c.l.b16 %v8119
    %v8255 = vunpack.c.l.b16 %v8120
    %v8256 = vunpack.c.l.b16 %v8121
    %v8257 = vunpack.c.l.b16 %v8122
    %v8258 = vunpack.c.l.b16 %v8123
    %v8259 = vunpack.c.l.b16 %v8124
    %v8260 = vunpack.c.l.b16 %v8125
    %v8261 = vunpack.c.l.b16 %v8126
    %v8262 = vunpack.c.l.b16 %v8127
    %v8263 = vunpack.c.l.b16 %v8128
    %v8264 = vunpack.c.l.b16 %v8129
    %v8265 = vunpack.c.l.b16 %v8130
    %v8266 = vunpack.c.l.b16 %v8131
    %v8267 = vunpack.c.l.b16 %v8132
    %v8268 = vunpack.c.l.b16 %v8133
    %v8269 = vunpack.c.l.b16 %v8134
    %v8270 = vunpack.c.l.b16 %v8135
    %v8271 = vunpack.c.l.b16 %v8136
    %v8272 = vunpack.c.l.b16 %v8137
    %v8273 = vunpack.c.l.b16 %v8138
    %v8274 = vunpack.c.l.b16 %v8139
    %v8275 = vunpack.c.l.b16 %v8140
    %v8276 = vunpack.c.l.b16 %v8141
    %v8277 = vunpack.c.l.b16 %v8142
    %v8278 = vunpack.c.l.b16 %v8143
    %v8279 = vunpack.c.l.b16 %v8144
    %v8280 = vunpack.c.l.b16 %v8145
    %v8281 = vunpack.c.l.b16 %v8146
    %v8282 = vunpack.c.l.b16 %v8147
    %v8283 = vunpack.c.l.b16 %v8148
    %v8284 = vpack.c.b16 %v8221, %v8220
    %v8285 = vpack.c.b16 %v8223, %v8222
    %v8286 = vpack.c.b16 %v8225, %v8224
    %v8287 = vpack.c.b16 %v8227, %v8226
    %v8288 = vpack.c.b16 %v8229, %v8228
    %v8289 = vpack.c.b16 %v8231, %v8230
    %v8290 = vpack.c.b16 %v8233, %v8232
    %v8291 = vpack.c.b16 %v8235, %v8234
    %v8292 = vpack.c.b16 %v8237, %v8236
    %v8293 = vpack.c.b16 %v8239, %v8238
    %v8294 = vpack.c.b16 %v8241, %v8240
    %v8295 = vpack.c.b16 %v8243, %v8242
    %v8296 = vpack.c.b16 %v8245, %v8244
    %v8297 = vpack.c.b16 %v8247, %v8246
    %v8298 = vpack.c.b16 %v8249, %v8248
    %v8299 = vpack.c.b16 %v8251, %v8250
    %v8300 = vpack.c.b16 %v8253, %v8252
    %v8301 = vpack.c.b16 %v8255, %v8254
    %v8302 = vpack.c.b16 %v8257, %v8256
    %v8303 = vpack.c.b16 %v8259, %v8258
    %v8304 = vpack.c.b16 %v8261, %v8260
    %v8305 = vpack.c.b16 %v8263, %v8262
    %v8306 = vpack.c.b16 %v8265, %v8264
    %v8307 = vpack.c.b16 %v8267, %v8266
    %v8308 = vpack.c.b16 %v8269, %v8268
    %v8309 = vpack.c.b16 %v8271, %v8270
    %v8310 = vpack.c.b16 %v8273, %v8272
    %v8311 = vpack.c.b16 %v8275, %v8274
    %v8312 = vpack.c.b16 %v8277, %v8276
    %v8313 = vpack.c.b16 %v8279, %v8278
    %v8314 = vpack.c.b16 %v8281, %v8280
    %v8315 = vpack.c.b16 %v8283, %v8282
    %8348 = vmatprep.subr.bf16.mxu0 0
    %8349 = vmatpush1.bf16.msra.mxu0 %v8291
    %8350 = vmatprep.subr.bf16.mxu0 0
    %8351 = vmatpush1.bf16.msra.mxu0 %v8290
    %8352 = vmatprep.subr.bf16.mxu0 0
    %8353 = vmatpush1.bf16.msra.mxu0 %v8289
    %8354 = vmatprep.subr.bf16.mxu0 0
    %8355 = vmatpush1.bf16.msra.mxu0 %v8288
    %8356 = vmatprep.subr.bf16.mxu0 0
    %8357 = vmatpush1.bf16.msra.mxu0 %v8287
    %8358 = vmatprep.subr.bf16.mxu0 0
    %8359 = vmatpush1.bf16.msra.mxu0 %v8286
    %8360 = vmatprep.subr.bf16.mxu0 0
    %8361 = vmatpush1.bf16.msra.mxu0 %v8285
    %8362 = vmatprep.subr.bf16.mxu0 0
    %8363 = vmatpush1.bf16.msra.mxu0 %v8284
    %8364 = vmatprep.subr.bf16.mxu0 0
    %8365 = vmatpush2.bf16.msra.mxu0 %v8299
    %8366 = vmatprep.subr.bf16.mxu0 0
    %8367 = vmatpush2.bf16.msra.mxu0 %v8298
    %8368 = vmatprep.subr.bf16.mxu0 0
    %8369 = vmatpush2.bf16.msra.mxu0 %v8297
    %8370 = vmatprep.subr.bf16.mxu0 0
    %8371 = vmatpush2.bf16.msra.mxu0 %v8296
    %8372 = vmatprep.subr.bf16.mxu0 0
    %8373 = vmatpush2.bf16.msra.mxu0 %v8295
    %8374 = vmatprep.subr.bf16.mxu0 0
    %8375 = vmatpush2.bf16.msra.mxu0 %v8294
    %8376 = vmatprep.subr.bf16.mxu0 0
    %8377 = vmatpush2.bf16.msra.mxu0 %v8293
    %8378 = vmatprep.subr.bf16.mxu0 0
    %8379 = vmatpush2.bf16.msra.mxu0 %v8292
    %8380 = vmatprep.mubr.bf16.mxu0 %v8082
    %8381 = vmatmul.mubr.bf16.gmra.mxu0 %v8081
    %v8382 = vpop.f32.mrf.mxu0
    %v8383 = vadd.f32 %v8154, %v8382
    %v8384 = vpop.f32.mrf.mxu0
    %v8385 = vpop.f32.mrf.mxu0
    %v8386 = vpop.f32.mrf.mxu0
    %8387 = vdwg.mxu0
    %8388 = vmatprep.subr.bf16.mxu0 0
    %8389 = vmatpush1.bf16.msra.mxu0 %v8307
    %8390 = vmatprep.subr.bf16.mxu0 0
    %8391 = vmatpush1.bf16.msra.mxu0 %v8306
    %8392 = vmatprep.subr.bf16.mxu0 0
    %8393 = vmatpush1.bf16.msra.mxu0 %v8305
    %8394 = vmatprep.subr.bf16.mxu0 0
    %8395 = vmatpush1.bf16.msra.mxu0 %v8304
    %8396 = vmatprep.subr.bf16.mxu0 0
    %8397 = vmatpush1.bf16.msra.mxu0 %v8303
    %8398 = vmatprep.subr.bf16.mxu0 0
    %8399 = vmatpush1.bf16.msra.mxu0 %v8302
    %8400 = vmatprep.subr.bf16.mxu0 0
    %8401 = vmatpush1.bf16.msra.mxu0 %v8301
    %8402 = vmatprep.subr.bf16.mxu0 0
    %8403 = vmatpush1.bf16.msra.mxu0 %v8300
    %8404 = vmatprep.subr.bf16.mxu0 0
    %8405 = vmatpush2.bf16.msra.mxu0 %v8315
    %8406 = vmatprep.subr.bf16.mxu0 0
    %8407 = vmatpush2.bf16.msra.mxu0 %v8314
    %8408 = vmatprep.subr.bf16.mxu0 0
    %8409 = vmatpush2.bf16.msra.mxu0 %v8313
    %8410 = vmatprep.subr.bf16.mxu0 0
    %8411 = vmatpush2.bf16.msra.mxu0 %v8312
    %8412 = vmatprep.subr.bf16.mxu0 0
    %8413 = vmatpush2.bf16.msra.mxu0 %v8311
    %8414 = vmatprep.subr.bf16.mxu0 0
    %8415 = vmatpush2.bf16.msra.mxu0 %v8310
    %8416 = vmatprep.subr.bf16.mxu0 0
    %8417 = vmatpush2.bf16.msra.mxu0 %v8309
    %8418 = vmatprep.subr.bf16.mxu0 0
    %8419 = vmatpush2.bf16.msra.mxu0 %v8308
    %8420 = vmatprep.mubr.bf16.mxu0 %v8084
    %8421 = vmatmul.mubr.bf16.gmra.mxu0 %v8083
    %v8422 = vpop.f32.mrf.mxu0
    %v8423 = vadd.f32 %v8383, %v8422
    %v8424 = vpop.f32.mrf.mxu0
    %v8425 = vpop.f32.mrf.mxu0
    %v8426 = vpop.f32.mrf.mxu0
    %8427 = vdwg.mxu0
    %vm8428 = vcmask 1041408
    %v8429 = vsel %vm8428, %v8423, 0.0
    %8430 = vadd.xlane.f32.xlu0 %v8429
    %v8431 = vpop.xlane.xlu0 %8430
    %v8432 = vsub.f32 %v8431, %v8423
    %v8433 = vmul.f32 %v8432, 0.16666667
    %8435 = vset.pattern.permute.xlu0 6
    %8436 = vperm.xlu0 %8435, %v8423
    %v8437 = vpop.permute.xlu0 %8436
    %v8439 = vadd.f32 %v8423, %v8437
    %8441 = vset.pattern.permute.xlu0 6
    %8442 = vperm.xlu0 %8441, %v8433
    %v8443 = vpop.permute.xlu0 %8442
    %v8445 = vsub.f32 %v8439, %v8443
    %8446 = vst [vmem:[#allocation4] sm:$0x3] %v8445
    // Predicated region
    $region46: #{_lambda_.1} parent=1 // pred_check
      _
    $region47: #{_lambda_.1} parent=1 // pred_check_branch
      %8448 = sbr.rel (0) target = $region49
    $region48: #{_lambda_.1} parent=1 // pred_region
      %s8450 = ssub.s32 32, 32
      %8451 = vsyncadd [#allocation5], %s8450
      %s8453 = sshll.u32 [#allocation4], 4
      %s8454 = int_to_ptr.vmem [resolvable:$true] %s8453
      %8456 = dma.vmem_to_hbm [thread:$0]  %s8454, 32, %s11, [#allocation5]
    $region49: #{_lambda_.1} parent=1 // pred_fallthru
      _
    // Predicated region
    $region50: #{_lambda_.1} parent=1 // pred_check
      _
    $region51: #{_lambda_.1} parent=1 // pred_check_branch
      %8458 = sbr.rel (0) target = $region53
    $region52: #{_lambda_.1} parent=1 // pred_region
      %8459 = dma.done [#allocation5], 32
    $region53: #{_lambda_.1} parent=1 // pred_fallthru
      _
    %8460 = vsyncpa [#allocation5], 1

</llo_original>
